<compile_context>
chip_gen: v7x
topology: tpu7x:2x2x1
jax: 0.10.0
libtpu: 0.0.40
codegen_flags: <defaults>
</compile_context>

<pallas_src>
import functools

import jax
import jax.numpy as jnp
from jax import lax
from jax.experimental import pallas as pl
from jax.experimental.pallas import tpu as pltpu

BN_EPS = 1e-5


# ----------------------------------------------------------------------------
# Fused per-batch CCM kernel
# ----------------------------------------------------------------------------
def _ccm_kernel(xp_ref,
                aux_w1_ref, aux_b1_ref, aux_w2_ref, aux_b2_ref,
                c3_w_ref, c3_b_ref,
                fp_w1_ref, fp_w2_ref, fo_w1_ref, fo_w2_ref,
                fd_w_ref, fu_w_ref, cbd_w_ref,
                out_ref, sim_ref, aux_ref,
                *, h, w, inv_sqrt_key):
    hw = h * w
    cin = xp_ref.shape[3]
    mid = c3_w_ref.shape[2]
    f32 = jnp.float32

    # ---- aux_head: 1x1 conv(+folded BN)+ReLU -> 1x1 conv(+bias) -> channel softmax
    # center (un-padded) pixels, channels-last: (HW, Cin)
    xc = xp_ref[0, 1:h + 1, 1:w + 1, :].reshape(hw, cin)
    a1 = jnp.maximum(
        jnp.dot(xc, aux_w1_ref[...], preferred_element_type=f32) + aux_b1_ref[...],
        0.0)                                                         # (HW, Cin)
    # channel-first logits via contract-last-dims dot_general -> lane-dense output
    logits = lax.dot_general(aux_w2_ref[...], a1, (((1,), (1,)), ((), ())),
                             preferred_element_type=f32) + aux_b2_ref[...]  # (nc, HW)
    cmax = jnp.max(logits, axis=0, keepdims=True)
    ce = jnp.exp(logits - cmax)
    out_aux_t = ce * pl.reciprocal(jnp.sum(ce, axis=0, keepdims=True), approx=True)
    aux_ref[0] = out_aux_t                                           # (nc, HW) lane-dense

    # ---- conv3x3(+folded BN)+ReLU: 9 shifted matmuls accumulated in VMEM (no im2col)
    feats = jnp.zeros((hw, mid), f32)
    for dy in range(3):
        for dx in range(3):
            win = xp_ref[0, dy:dy + h, dx:dx + w, :].reshape(hw, cin)
            feats = feats + jnp.dot(win, c3_w_ref[dy * 3 + dx],
                                    preferred_element_type=f32)
    feats = jnp.maximum(feats + c3_b_ref[...], 0.0)                  # (HW, mid)

    # ---- SpatialGather: spatial softmax of the (already channel-softmaxed) aux
    #      probabilities -- the reference module really does apply softmax twice.
    smax = jnp.max(out_aux_t, axis=1, keepdims=True)
    se = jnp.exp(out_aux_t - smax)
    probs = se * pl.reciprocal(jnp.sum(se, axis=1, keepdims=True), approx=True)
    proxy = jnp.dot(probs, feats, preferred_element_type=f32)        # (nc, mid)

    # ---- ObjectAttentionBlock (all 1x1 projections fused; folded BN, no biases)
    q = jnp.maximum(jnp.dot(feats, fp_w1_ref[...], preferred_element_type=f32), 0.0)
    q = jnp.maximum(jnp.dot(q, fp_w2_ref[...], preferred_element_type=f32), 0.0)     # (HW, key)
    k = jnp.maximum(jnp.dot(proxy, fo_w1_ref[...], preferred_element_type=f32), 0.0)
    k = jnp.maximum(jnp.dot(k, fo_w2_ref[...], preferred_element_type=f32), 0.0)     # (nc, key)
    v = jnp.maximum(jnp.dot(proxy, fd_w_ref[...], preferred_element_type=f32), 0.0)  # (nc, key)

    # sim = softmax(q @ k^T * key^-0.5) over the proxy (class) axis
    sim = lax.dot_general(q, k, (((1,), (1,)), ((), ())),
                          preferred_element_type=f32) * inv_sqrt_key                 # (HW, nc)
    amax = jnp.max(sim, axis=-1, keepdims=True)
    ae = jnp.exp(sim - amax)
    sim = ae * pl.reciprocal(jnp.sum(ae, axis=-1, keepdims=True), approx=True)
    sim_ref[0] = sim                       # final layout (HW, nc) -- written once

    ctx = jnp.dot(sim, v, preferred_element_type=f32)                # (HW, key)
    up = jnp.maximum(jnp.dot(ctx, fu_w_ref[...], preferred_element_type=f32), 0.0)   # (HW, mid)
    # conv_bn_dropout (eval: Dropout2d identity); emit channel-first (mid, HW)
    out_t = lax.dot_general(cbd_w_ref[...], up, (((1,), (1,)), ((), ())),
                            preferred_element_type=f32)              # (mid, HW)
    out_ref[0] = jnp.maximum(out_t, 0.0)


# ----------------------------------------------------------------------------
# Parameter construction (deterministic; BN folded, eval-mode running stats)
# ----------------------------------------------------------------------------
def make_params(rng, in_channels, mid_channels, key_channels, num_classes):
    s = (1.0 + BN_EPS) ** -0.5  # folded BN: gamma=1, beta=0, mean=0, var=1

    def nrm(k, shape, std=0.1):
        return std * jax.random.normal(k, shape, jnp.float32)

    ks = iter(jax.random.split(rng, 16))
    p = {}
    # aux_head: conv1x1(bias)+BN+ReLU -> conv1x1(bias) -> softmax(channel)
    p["aux_w1"] = nrm(next(ks), (in_channels, in_channels)) * s        # BN folded
    p["aux_b1"] = nrm(next(ks), (1, in_channels)) * s
    p["aux_w2_oi"] = nrm(next(ks), (num_classes, in_channels))         # (out, in)
    p["aux_b2"] = nrm(next(ks), (num_classes, 1))
    # conv3x3(bias)+BN+ReLU, weight laid out (ky*3+kx, cin, mid), BN folded
    p["c3_w"] = nrm(next(ks), (9, in_channels, mid_channels)) * s
    p["c3_b"] = nrm(next(ks), (1, mid_channels)) * s
    # ObjectAttentionBlock 1x1 transforms (no bias) + BN + ReLU, BN folded
    p["fp_w1"] = nrm(next(ks), (mid_channels, key_channels)) * s
    p["fp_w2"] = nrm(next(ks), (key_channels, key_channels)) * s
    p["fo_w1"] = nrm(next(ks), (mid_channels, key_channels)) * s
    p["fo_w2"] = nrm(next(ks), (key_channels, key_channels)) * s
    p["fd_w"] = nrm(next(ks), (mid_channels, key_channels)) * s
    p["fu_w"] = nrm(next(ks), (key_channels, mid_channels)) * s
    # conv_bn_dropout (no bias)+BN+ReLU (+Dropout2d eval=identity), (out, in), folded
    p["cbd_w_oi"] = nrm(next(ks), (mid_channels, mid_channels)) * s
    return p


# ----------------------------------------------------------------------------
# CCM forward
# ----------------------------------------------------------------------------
def ccm_forward(x, p, mid_channels, key_channels, num_classes):
    n, cin, h, w = x.shape
    hw = h * w

    # Pad once in NHWC (halo for the 3x3 conv); the kernel reads x once per batch.
    xp = jnp.pad(jnp.transpose(x, (0, 2, 3, 1)), ((0, 0), (1, 1), (1, 1), (0, 0)))

    weights = [p["aux_w1"], p["aux_b1"], p["aux_w2_oi"], p["aux_b2"],
               p["c3_w"], p["c3_b"],
               p["fp_w1"], p["fp_w2"], p["fo_w1"], p["fo_w2"],
               p["fd_w"], p["fu_w"], p["cbd_w_oi"]]

    in_specs = [pl.BlockSpec((1, h + 2, w + 2, cin), lambda b: (b, 0, 0, 0))]
    # Weights: full blocks with a constant index_map -> fetched once, resident
    # across the whole batch grid.
    in_specs += [pl.BlockSpec(wt.shape, lambda b, nd=wt.ndim: (0,) * nd)
                 for wt in weights]

    out_shape = (
        jax.ShapeDtypeStruct((n, mid_channels, hw), jnp.float32),   # output (channel-first)
        jax.ShapeDtypeStruct((n, hw, num_classes), jnp.float32),    # sim_map (pixel-major)
        jax.ShapeDtypeStruct((n, num_classes, hw), jnp.float32),    # out_aux (channel-first)
    )
    out_specs = (
        pl.BlockSpec((1, mid_channels, hw), lambda b: (b, 0, 0)),
        pl.BlockSpec((1, hw, num_classes), lambda b: (b, 0, 0)),
        pl.BlockSpec((1, num_classes, hw), lambda b: (b, 0, 0)),
    )

    kernel = functools.partial(_ccm_kernel, h=h, w=w,
                               inv_sqrt_key=float(key_channels) ** -0.5)
    out_t, sim_map, aux_t = pl.pallas_call(
        kernel,
        out_shape=out_shape,
        grid=(n,),
        in_specs=in_specs,
        out_specs=out_specs,
        compiler_params=pltpu.CompilerParams(
            dimension_semantics=("parallel",),      # megacore split over batch on v7x
            vmem_limit_bytes=32 * 1024 * 1024),
    )(xp, *weights)

    output = out_t.reshape(n, mid_channels, h, w)    # already channel-first
    out_aux = aux_t.reshape(n, num_classes, h, w)    # already channel-first
    return output, sim_map, out_aux


# ----------------------------------------------------------------------------
if __name__ == "__main__":
    N, IN_C, MID_C, KEY_C, NUM_CLS, H, W = 2, 8, 32, 16, 4, 16, 16

    key = jax.random.PRNGKey(0)
    k_x, k_p = jax.random.split(key)
    x = jax.random.normal(k_x, (N, IN_C, H, W), jnp.float32)
    params = make_params(k_p, IN_C, MID_C, KEY_C, NUM_CLS)

    fwd = jax.jit(functools.partial(
        ccm_forward, mid_channels=MID_C, key_channels=KEY_C, num_classes=NUM_CLS))
    output, sim_map, out_aux = fwd(x, params)
    jax.block_until_ready((output, sim_map, out_aux))

    assert output.shape == (N, MID_C, H, W)
    assert sim_map.shape == (N, H * W, NUM_CLS)
    assert out_aux.shape == (N, NUM_CLS, H, W)
    assert bool(jnp.all(jnp.isfinite(output)))
    assert bool(jnp.all(jnp.isfinite(sim_map)))
    assert bool(jnp.all(jnp.isfinite(out_aux)))

    print("KERNEL_OK")
</pallas_src>

<mosaic_0001>
module attributes {stable_mosaic.version = 11 : i64} {
  func.func @_ccm_kernel(%arg0: i32, %arg1: memref<1x18x18x8xf32, #tpu.memory_space<vmem>>, %arg2: memref<8x8xf32, #tpu.memory_space<vmem>>, %arg3: memref<1x8xf32, #tpu.memory_space<vmem>>, %arg4: memref<4x8xf32, #tpu.memory_space<vmem>>, %arg5: memref<4x1xf32, #tpu.memory_space<vmem>>, %arg6: memref<9x8x32xf32, #tpu.memory_space<vmem>>, %arg7: memref<1x32xf32, #tpu.memory_space<vmem>>, %arg8: memref<32x16xf32, #tpu.memory_space<vmem>>, %arg9: memref<16x16xf32, #tpu.memory_space<vmem>>, %arg10: memref<32x16xf32, #tpu.memory_space<vmem>>, %arg11: memref<16x16xf32, #tpu.memory_space<vmem>>, %arg12: memref<32x16xf32, #tpu.memory_space<vmem>>, %arg13: memref<16x32xf32, #tpu.memory_space<vmem>>, %arg14: memref<32x32xf32, #tpu.memory_space<vmem>>, %arg15: memref<1x32x256xf32, #tpu.memory_space<vmem>>, %arg16: memref<1x256x4xf32, #tpu.memory_space<vmem>>, %arg17: memref<1x4x256xf32, #tpu.memory_space<vmem>>) attributes {dimension_semantics = [#tpu.dimension_semantics<parallel>], iteration_bounds = array<i64: 2>, scalar_prefetch = 0 : i64, scratch_operands = 0 : i64, tpu.core_type = #tpu.core_type<tc>, window_params = [{transform_indices = @transform_0, window_bounds = array<i64: 1, 18, 18, 8>}, {pipeline_mode = #tpu.pipeline_mode<synchronous>, transform_indices = @transform_1, window_bounds = array<i64: 8, 8>}, {pipeline_mode = #tpu.pipeline_mode<synchronous>, transform_indices = @transform_2, window_bounds = array<i64: 1, 8>}, {pipeline_mode = #tpu.pipeline_mode<synchronous>, transform_indices = @transform_3, window_bounds = array<i64: 4, 8>}, {pipeline_mode = #tpu.pipeline_mode<synchronous>, transform_indices = @transform_4, window_bounds = array<i64: 4, 1>}, {pipeline_mode = #tpu.pipeline_mode<synchronous>, transform_indices = @transform_5, window_bounds = array<i64: 9, 8, 32>}, {pipeline_mode = #tpu.pipeline_mode<synchronous>, transform_indices = @transform_6, window_bounds = array<i64: 1, 32>}, {pipeline_mode = #tpu.pipeline_mode<synchronous>, transform_indices = @transform_7, window_bounds = array<i64: 32, 16>}, {pipeline_mode = #tpu.pipeline_mode<synchronous>, transform_indices = @transform_8, window_bounds = array<i64: 16, 16>}, {pipeline_mode = #tpu.pipeline_mode<synchronous>, transform_indices = @transform_9, window_bounds = array<i64: 32, 16>}, {pipeline_mode = #tpu.pipeline_mode<synchronous>, transform_indices = @transform_10, window_bounds = array<i64: 16, 16>}, {pipeline_mode = #tpu.pipeline_mode<synchronous>, transform_indices = @transform_11, window_bounds = array<i64: 32, 16>}, {pipeline_mode = #tpu.pipeline_mode<synchronous>, transform_indices = @transform_12, window_bounds = array<i64: 16, 32>}, {pipeline_mode = #tpu.pipeline_mode<synchronous>, transform_indices = @transform_13, window_bounds = array<i64: 32, 32>}, {transform_indices = @transform_14, window_bounds = array<i64: 1, 32, 256>}, {transform_indices = @transform_15, window_bounds = array<i64: 1, 256, 4>}, {transform_indices = @transform_16, window_bounds = array<i64: 1, 4, 256>}]} {
    %c0 = arith.constant 0 : index
    %c1 = arith.constant 1 : index
    %c1_0 = arith.constant 1 : index
    %c0_1 = arith.constant 0 : index
    %0 = vector.load %arg1[%c0, %c1, %c1_0, %c0_1] : memref<1x18x18x8xf32, #tpu.memory_space<vmem>>, vector<1x16x16x8xf32>
    %1 = vector.shape_cast %0 : vector<1x16x16x8xf32> to vector<16x16x8xf32>
    %2 = vector.shape_cast %1 : vector<16x16x8xf32> to vector<256x8xf32>
    %c0_2 = arith.constant 0 : index
    %c0_3 = arith.constant 0 : index
    %3 = vector.load %arg2[%c0_2, %c0_3] : memref<8x8xf32, #tpu.memory_space<vmem>>, vector<8x8xf32>
    %cst = arith.constant dense<0.000000e+00> : vector<256x8xf32>
    %4 = tpu.matmul %2, %3, %cst {dimension_numbers = #tpu.dot_dimension_numbers<[1], [0], [0], [1], [0, 0, 1, 1], [], []>} : vector<256x8xf32>, vector<8x8xf32>, vector<256x8xf32> -> vector<256x8xf32>
    %c0_4 = arith.constant 0 : index
    %c0_5 = arith.constant 0 : index
    %5 = vector.load %arg3[%c0_4, %c0_5] : memref<1x8xf32, #tpu.memory_space<vmem>>, vector<1x8xf32>
    %6 = vector.broadcast %5 : vector<1x8xf32> to vector<256x8xf32>
    %7 = arith.addf %4, %6 : vector<256x8xf32>
    %cst_6 = arith.constant 0.000000e+00 : f32
    %8 = vector.broadcast %cst_6 : f32 to vector<256x8xf32>
    %9 = arith.maximumf %7, %8 : vector<256x8xf32>
    %c0_7 = arith.constant 0 : index
    %c0_8 = arith.constant 0 : index
    %10 = vector.load %arg4[%c0_7, %c0_8] : memref<4x8xf32, #tpu.memory_space<vmem>>, vector<4x8xf32>
    %cst_9 = arith.constant dense<0.000000e+00> : vector<4x256xf32>
    %11 = tpu.matmul %10, %9, %cst_9 {dimension_numbers = #tpu.dot_dimension_numbers<[1], [1], [0], [0], [0, 0, 1, 0], [], []>} : vector<4x8xf32>, vector<256x8xf32>, vector<4x256xf32> -> vector<4x256xf32>
    %c0_10 = arith.constant 0 : index
    %c0_11 = arith.constant 0 : index
    %12 = vector.load %arg5[%c0_10, %c0_11] : memref<4x1xf32, #tpu.memory_space<vmem>>, vector<4x1xf32>
    %13 = vector.broadcast %12 : vector<4x1xf32> to vector<4x256xf32>
    %14 = arith.addf %11, %13 : vector<4x256xf32>
    %cst_12 = arith.constant dense<0xFF800000> : vector<256xf32>
    %15 = vector.multi_reduction <maximumf>, %14, %cst_12 [0] : vector<4x256xf32> to vector<256xf32>
    %16 = vector.shape_cast %15 : vector<256xf32> to vector<1x256xf32>
    %17 = vector.broadcast %16 : vector<1x256xf32> to vector<4x256xf32>
    %18 = arith.subf %14, %17 : vector<4x256xf32>
    %19 = math.exp %18 : vector<4x256xf32>
    %cst_13 = arith.constant dense<0.000000e+00> : vector<256xf32>
    %20 = vector.multi_reduction <add>, %19, %cst_13 [0] : vector<4x256xf32> to vector<256xf32>
    %21 = vector.shape_cast %20 : vector<256xf32> to vector<1x256xf32>
    %22 = tpu.reciprocal %21 {approx = true} : vector<1x256xf32> -> vector<1x256xf32>
    %23 = vector.broadcast %22 : vector<1x256xf32> to vector<4x256xf32>
    %24 = arith.mulf %19, %23 : vector<4x256xf32>
    %c0_14 = arith.constant 0 : index
    %c0_15 = arith.constant 0 : index
    %c0_16 = arith.constant 0 : index
    %25 = vector.load %arg17[%c0_14, %c0_15, %c0_16] : memref<1x4x256xf32, #tpu.memory_space<vmem>>, vector<1x4x256xf32>
    %26 = vector.shape_cast %25 : vector<1x4x256xf32> to vector<4x256xf32>
    %27 = vector.shape_cast %24 : vector<4x256xf32> to vector<1x4x256xf32>
    tpu.vector_store %arg17[%c0_14, %c0_15, %c0_16], %27 {strides = array<i32>} : memref<1x4x256xf32, #tpu.memory_space<vmem>>, vector<1x4x256xf32>,
    %cst_17 = arith.constant 0.000000e+00 : f32
    %28 = vector.broadcast %cst_17 : f32 to vector<256x32xf32>
    %c0_18 = arith.constant 0 : index
    %c0_19 = arith.constant 0 : index
    %c0_20 = arith.constant 0 : index
    %c0_21 = arith.constant 0 : index
    %29 = vector.load %arg1[%c0_18, %c0_19, %c0_20, %c0_21] : memref<1x18x18x8xf32, #tpu.memory_space<vmem>>, vector<1x16x16x8xf32>
    %30 = vector.shape_cast %29 : vector<1x16x16x8xf32> to vector<16x16x8xf32>
    %31 = vector.shape_cast %30 : vector<16x16x8xf32> to vector<256x8xf32>
    %c0_22 = arith.constant 0 : index
    %c0_23 = arith.constant 0 : index
    %c0_24 = arith.constant 0 : index
    %32 = vector.load %arg6[%c0_22, %c0_23, %c0_24] : memref<9x8x32xf32, #tpu.memory_space<vmem>>, vector<1x8x32xf32>
    %33 = vector.shape_cast %32 : vector<1x8x32xf32> to vector<8x32xf32>
    %cst_25 = arith.constant dense<0.000000e+00> : vector<256x32xf32>
    %34 = tpu.matmul %31, %33, %cst_25 {dimension_numbers = #tpu.dot_dimension_numbers<[1], [0], [0], [1], [0, 0, 1, 1], [], []>} : vector<256x8xf32>, vector<8x32xf32>, vector<256x32xf32> -> vector<256x32xf32>
    %35 = arith.addf %28, %34 : vector<256x32xf32>
    %c0_26 = arith.constant 0 : index
    %c0_27 = arith.constant 0 : index
    %c1_28 = arith.constant 1 : index
    %c0_29 = arith.constant 0 : index
    %36 = vector.load %arg1[%c0_26, %c0_27, %c1_28, %c0_29] : memref<1x18x18x8xf32, #tpu.memory_space<vmem>>, vector<1x16x16x8xf32>
    %37 = vector.shape_cast %36 : vector<1x16x16x8xf32> to vector<16x16x8xf32>
    %38 = vector.shape_cast %37 : vector<16x16x8xf32> to vector<256x8xf32>
    %c1_30 = arith.constant 1 : index
    %c0_31 = arith.constant 0 : index
    %c0_32 = arith.constant 0 : index
    %39 = vector.load %arg6[%c1_30, %c0_31, %c0_32] : memref<9x8x32xf32, #tpu.memory_space<vmem>>, vector<1x8x32xf32>
    %40 = vector.shape_cast %39 : vector<1x8x32xf32> to vector<8x32xf32>
    %cst_33 = arith.constant dense<0.000000e+00> : vector<256x32xf32>
    %41 = tpu.matmul %38, %40, %cst_33 {dimension_numbers = #tpu.dot_dimension_numbers<[1], [0], [0], [1], [0, 0, 1, 1], [], []>} : vector<256x8xf32>, vector<8x32xf32>, vector<256x32xf32> -> vector<256x32xf32>
    %42 = arith.addf %35, %41 : vector<256x32xf32>
    %c0_34 = arith.constant 0 : index
    %c0_35 = arith.constant 0 : index
    %c2 = arith.constant 2 : index
    %c0_36 = arith.constant 0 : index
    %43 = vector.load %arg1[%c0_34, %c0_35, %c2, %c0_36] : memref<1x18x18x8xf32, #tpu.memory_space<vmem>>, vector<1x16x16x8xf32>
    %44 = vector.shape_cast %43 : vector<1x16x16x8xf32> to vector<16x16x8xf32>
    %45 = vector.shape_cast %44 : vector<16x16x8xf32> to vector<256x8xf32>
    %c2_37 = arith.constant 2 : index
    %c0_38 = arith.constant 0 : index
    %c0_39 = arith.constant 0 : index
    %46 = vector.load %arg6[%c2_37, %c0_38, %c0_39] : memref<9x8x32xf32, #tpu.memory_space<vmem>>, vector<1x8x32xf32>
    %47 = vector.shape_cast %46 : vector<1x8x32xf32> to vector<8x32xf32>
    %cst_40 = arith.constant dense<0.000000e+00> : vector<256x32xf32>
    %48 = tpu.matmul %45, %47, %cst_40 {dimension_numbers = #tpu.dot_dimension_numbers<[1], [0], [0], [1], [0, 0, 1, 1], [], []>} : vector<256x8xf32>, vector<8x32xf32>, vector<256x32xf32> -> vector<256x32xf32>
    %49 = arith.addf %42, %48 : vector<256x32xf32>
    %c0_41 = arith.constant 0 : index
    %c1_42 = arith.constant 1 : index
    %c0_43 = arith.constant 0 : index
    %c0_44 = arith.constant 0 : index
    %50 = vector.load %arg1[%c0_41, %c1_42, %c0_43, %c0_44] : memref<1x18x18x8xf32, #tpu.memory_space<vmem>>, vector<1x16x16x8xf32>
    %51 = vector.shape_cast %50 : vector<1x16x16x8xf32> to vector<16x16x8xf32>
    %52 = vector.shape_cast %51 : vector<16x16x8xf32> to vector<256x8xf32>
    %c3 = arith.constant 3 : index
    %c0_45 = arith.constant 0 : index
    %c0_46 = arith.constant 0 : index
    %53 = vector.load %arg6[%c3, %c0_45, %c0_46] : memref<9x8x32xf32, #tpu.memory_space<vmem>>, vector<1x8x32xf32>
    %54 = vector.shape_cast %53 : vector<1x8x32xf32> to vector<8x32xf32>
    %cst_47 = arith.constant dense<0.000000e+00> : vector<256x32xf32>
    %55 = tpu.matmul %52, %54, %cst_47 {dimension_numbers = #tpu.dot_dimension_numbers<[1], [0], [0], [1], [0, 0, 1, 1], [], []>} : vector<256x8xf32>, vector<8x32xf32>, vector<256x32xf32> -> vector<256x32xf32>
    %56 = arith.addf %49, %55 : vector<256x32xf32>
    %c0_48 = arith.constant 0 : index
    %c1_49 = arith.constant 1 : index
    %c1_50 = arith.constant 1 : index
    %c0_51 = arith.constant 0 : index
    %57 = vector.load %arg1[%c0_48, %c1_49, %c1_50, %c0_51] : memref<1x18x18x8xf32, #tpu.memory_space<vmem>>, vector<1x16x16x8xf32>
    %58 = vector.shape_cast %57 : vector<1x16x16x8xf32> to vector<16x16x8xf32>
    %59 = vector.shape_cast %58 : vector<16x16x8xf32> to vector<256x8xf32>
    %c4 = arith.constant 4 : index
    %c0_52 = arith.constant 0 : index
    %c0_53 = arith.constant 0 : index
    %60 = vector.load %arg6[%c4, %c0_52, %c0_53] : memref<9x8x32xf32, #tpu.memory_space<vmem>>, vector<1x8x32xf32>
    %61 = vector.shape_cast %60 : vector<1x8x32xf32> to vector<8x32xf32>
    %cst_54 = arith.constant dense<0.000000e+00> : vector<256x32xf32>
    %62 = tpu.matmul %59, %61, %cst_54 {dimension_numbers = #tpu.dot_dimension_numbers<[1], [0], [0], [1], [0, 0, 1, 1], [], []>} : vector<256x8xf32>, vector<8x32xf32>, vector<256x32xf32> -> vector<256x32xf32>
    %63 = arith.addf %56, %62 : vector<256x32xf32>
    %c0_55 = arith.constant 0 : index
    %c1_56 = arith.constant 1 : index
    %c2_57 = arith.constant 2 : index
    %c0_58 = arith.constant 0 : index
    %64 = vector.load %arg1[%c0_55, %c1_56, %c2_57, %c0_58] : memref<1x18x18x8xf32, #tpu.memory_space<vmem>>, vector<1x16x16x8xf32>
    %65 = vector.shape_cast %64 : vector<1x16x16x8xf32> to vector<16x16x8xf32>
    %66 = vector.shape_cast %65 : vector<16x16x8xf32> to vector<256x8xf32>
    %c5 = arith.constant 5 : index
    %c0_59 = arith.constant 0 : index
    %c0_60 = arith.constant 0 : index
    %67 = vector.load %arg6[%c5, %c0_59, %c0_60] : memref<9x8x32xf32, #tpu.memory_space<vmem>>, vector<1x8x32xf32>
    %68 = vector.shape_cast %67 : vector<1x8x32xf32> to vector<8x32xf32>
    %cst_61 = arith.constant dense<0.000000e+00> : vector<256x32xf32>
    %69 = tpu.matmul %66, %68, %cst_61 {dimension_numbers = #tpu.dot_dimension_numbers<[1], [0], [0], [1], [0, 0, 1, 1], [], []>} : vector<256x8xf32>, vector<8x32xf32>, vector<256x32xf32> -> vector<256x32xf32>
    %70 = arith.addf %63, %69 : vector<256x32xf32>
    %c0_62 = arith.constant 0 : index
    %c2_63 = arith.constant 2 : index
    %c0_64 = arith.constant 0 : index
    %c0_65 = arith.constant 0 : index
    %71 = vector.load %arg1[%c0_62, %c2_63, %c0_64, %c0_65] : memref<1x18x18x8xf32, #tpu.memory_space<vmem>>, vector<1x16x16x8xf32>
    %72 = vector.shape_cast %71 : vector<1x16x16x8xf32> to vector<16x16x8xf32>
    %73 = vector.shape_cast %72 : vector<16x16x8xf32> to vector<256x8xf32>
    %c6 = arith.constant 6 : index
    %c0_66 = arith.constant 0 : index
    %c0_67 = arith.constant 0 : index
    %74 = vector.load %arg6[%c6, %c0_66, %c0_67] : memref<9x8x32xf32, #tpu.memory_space<vmem>>, vector<1x8x32xf32>
    %75 = vector.shape_cast %74 : vector<1x8x32xf32> to vector<8x32xf32>
    %cst_68 = arith.constant dense<0.000000e+00> : vector<256x32xf32>
    %76 = tpu.matmul %73, %75, %cst_68 {dimension_numbers = #tpu.dot_dimension_numbers<[1], [0], [0], [1], [0, 0, 1, 1], [], []>} : vector<256x8xf32>, vector<8x32xf32>, vector<256x32xf32> -> vector<256x32xf32>
    %77 = arith.addf %70, %76 : vector<256x32xf32>
    %c0_69 = arith.constant 0 : index
    %c2_70 = arith.constant 2 : index
    %c1_71 = arith.constant 1 : index
    %c0_72 = arith.constant 0 : index
    %78 = vector.load %arg1[%c0_69, %c2_70, %c1_71, %c0_72] : memref<1x18x18x8xf32, #tpu.memory_space<vmem>>, vector<1x16x16x8xf32>
    %79 = vector.shape_cast %78 : vector<1x16x16x8xf32> to vector<16x16x8xf32>
    %80 = vector.shape_cast %79 : vector<16x16x8xf32> to vector<256x8xf32>
    %c7 = arith.constant 7 : index
    %c0_73 = arith.constant 0 : index
    %c0_74 = arith.constant 0 : index
    %81 = vector.load %arg6[%c7, %c0_73, %c0_74] : memref<9x8x32xf32, #tpu.memory_space<vmem>>, vector<1x8x32xf32>
    %82 = vector.shape_cast %81 : vector<1x8x32xf32> to vector<8x32xf32>
    %cst_75 = arith.constant dense<0.000000e+00> : vector<256x32xf32>
    %83 = tpu.matmul %80, %82, %cst_75 {dimension_numbers = #tpu.dot_dimension_numbers<[1], [0], [0], [1], [0, 0, 1, 1], [], []>} : vector<256x8xf32>, vector<8x32xf32>, vector<256x32xf32> -> vector<256x32xf32>
    %84 = arith.addf %77, %83 : vector<256x32xf32>
    %c0_76 = arith.constant 0 : index
    %c2_77 = arith.constant 2 : index
    %c2_78 = arith.constant 2 : index
    %c0_79 = arith.constant 0 : index
    %85 = vector.load %arg1[%c0_76, %c2_77, %c2_78, %c0_79] : memref<1x18x18x8xf32, #tpu.memory_space<vmem>>, vector<1x16x16x8xf32>
    %86 = vector.shape_cast %85 : vector<1x16x16x8xf32> to vector<16x16x8xf32>
    %87 = vector.shape_cast %86 : vector<16x16x8xf32> to vector<256x8xf32>
    %c8 = arith.constant 8 : index
    %c0_80 = arith.constant 0 : index
    %c0_81 = arith.constant 0 : index
    %88 = vector.load %arg6[%c8, %c0_80, %c0_81] : memref<9x8x32xf32, #tpu.memory_space<vmem>>, vector<1x8x32xf32>
    %89 = vector.shape_cast %88 : vector<1x8x32xf32> to vector<8x32xf32>
    %cst_82 = arith.constant dense<0.000000e+00> : vector<256x32xf32>
    %90 = tpu.matmul %87, %89, %cst_82 {dimension_numbers = #tpu.dot_dimension_numbers<[1], [0], [0], [1], [0, 0, 1, 1], [], []>} : vector<256x8xf32>, vector<8x32xf32>, vector<256x32xf32> -> vector<256x32xf32>
    %91 = arith.addf %84, %90 : vector<256x32xf32>
    %c0_83 = arith.constant 0 : index
    %c0_84 = arith.constant 0 : index
    %92 = vector.load %arg7[%c0_83, %c0_84] : memref<1x32xf32, #tpu.memory_space<vmem>>, vector<1x32xf32>
    %93 = vector.broadcast %92 : vector<1x32xf32> to vector<256x32xf32>
    %94 = arith.addf %91, %93 : vector<256x32xf32>
    %cst_85 = arith.constant 0.000000e+00 : f32
    %95 = vector.broadcast %cst_85 : f32 to vector<256x32xf32>
    %96 = arith.maximumf %94, %95 : vector<256x32xf32>
    %cst_86 = arith.constant dense<0xFF800000> : vector<4xf32>
    %97 = vector.multi_reduction <maximumf>, %24, %cst_86 [1] : vector<4x256xf32> to vector<4xf32>
    %98 = vector.shape_cast %97 : vector<4xf32> to vector<4x1xf32>
    %99 = vector.broadcast %98 : vector<4x1xf32> to vector<4x256xf32>
    %100 = arith.subf %24, %99 : vector<4x256xf32>
    %101 = math.exp %100 : vector<4x256xf32>
    %cst_87 = arith.constant dense<0.000000e+00> : vector<4xf32>
    %102 = vector.multi_reduction <add>, %101, %cst_87 [1] : vector<4x256xf32> to vector<4xf32>
    %103 = vector.shape_cast %102 : vector<4xf32> to vector<4x1xf32>
    %104 = tpu.reciprocal %103 {approx = true} : vector<4x1xf32> -> vector<4x1xf32>
    %105 = vector.broadcast %104 : vector<4x1xf32> to vector<4x256xf32>
    %106 = arith.mulf %101, %105 : vector<4x256xf32>
    %cst_88 = arith.constant dense<0.000000e+00> : vector<4x32xf32>
    %107 = tpu.matmul %106, %96, %cst_88 {dimension_numbers = #tpu.dot_dimension_numbers<[1], [0], [0], [1], [0, 0, 1, 1], [], []>} : vector<4x256xf32>, vector<256x32xf32>, vector<4x32xf32> -> vector<4x32xf32>
    %c0_89 = arith.constant 0 : index
    %c0_90 = arith.constant 0 : index
    %108 = vector.load %arg8[%c0_89, %c0_90] : memref<32x16xf32, #tpu.memory_space<vmem>>, vector<32x16xf32>
    %cst_91 = arith.constant dense<0.000000e+00> : vector<256x16xf32>
    %109 = tpu.matmul %96, %108, %cst_91 {dimension_numbers = #tpu.dot_dimension_numbers<[1], [0], [0], [1], [0, 0, 1, 1], [], []>} : vector<256x32xf32>, vector<32x16xf32>, vector<256x16xf32> -> vector<256x16xf32>
    %cst_92 = arith.constant 0.000000e+00 : f32
    %110 = vector.broadcast %cst_92 : f32 to vector<256x16xf32>
    %111 = arith.maximumf %109, %110 : vector<256x16xf32>
    %c0_93 = arith.constant 0 : index
    %c0_94 = arith.constant 0 : index
    %112 = vector.load %arg9[%c0_93, %c0_94] : memref<16x16xf32, #tpu.memory_space<vmem>>, vector<16x16xf32>
    %cst_95 = arith.constant dense<0.000000e+00> : vector<256x16xf32>
    %113 = tpu.matmul %111, %112, %cst_95 {dimension_numbers = #tpu.dot_dimension_numbers<[1], [0], [0], [1], [0, 0, 1, 1], [], []>} : vector<256x16xf32>, vector<16x16xf32>, vector<256x16xf32> -> vector<256x16xf32>
    %cst_96 = arith.constant 0.000000e+00 : f32
    %114 = vector.broadcast %cst_96 : f32 to vector<256x16xf32>
    %115 = arith.maximumf %113, %114 : vector<256x16xf32>
    %c0_97 = arith.constant 0 : index
    %c0_98 = arith.constant 0 : index
    %116 = vector.load %arg10[%c0_97, %c0_98] : memref<32x16xf32, #tpu.memory_space<vmem>>, vector<32x16xf32>
    %cst_99 = arith.constant dense<0.000000e+00> : vector<4x16xf32>
    %117 = tpu.matmul %107, %116, %cst_99 {dimension_numbers = #tpu.dot_dimension_numbers<[1], [0], [0], [1], [0, 0, 1, 1], [], []>} : vector<4x32xf32>, vector<32x16xf32>, vector<4x16xf32> -> vector<4x16xf32>
    %cst_100 = arith.constant 0.000000e+00 : f32
    %118 = vector.broadcast %cst_100 : f32 to vector<4x16xf32>
    %119 = arith.maximumf %117, %118 : vector<4x16xf32>
    %c0_101 = arith.constant 0 : index
    %c0_102 = arith.constant 0 : index
    %120 = vector.load %arg11[%c0_101, %c0_102] : memref<16x16xf32, #tpu.memory_space<vmem>>, vector<16x16xf32>
    %cst_103 = arith.constant dense<0.000000e+00> : vector<4x16xf32>
    %121 = tpu.matmul %119, %120, %cst_103 {dimension_numbers = #tpu.dot_dimension_numbers<[1], [0], [0], [1], [0, 0, 1, 1], [], []>} : vector<4x16xf32>, vector<16x16xf32>, vector<4x16xf32> -> vector<4x16xf32>
    %cst_104 = arith.constant 0.000000e+00 : f32
    %122 = vector.broadcast %cst_104 : f32 to vector<4x16xf32>
    %123 = arith.maximumf %121, %122 : vector<4x16xf32>
    %c0_105 = arith.constant 0 : index
    %c0_106 = arith.constant 0 : index
    %124 = vector.load %arg12[%c0_105, %c0_106] : memref<32x16xf32, #tpu.memory_space<vmem>>, vector<32x16xf32>
    %cst_107 = arith.constant dense<0.000000e+00> : vector<4x16xf32>
    %125 = tpu.matmul %107, %124, %cst_107 {dimension_numbers = #tpu.dot_dimension_numbers<[1], [0], [0], [1], [0, 0, 1, 1], [], []>} : vector<4x32xf32>, vector<32x16xf32>, vector<4x16xf32> -> vector<4x16xf32>
    %cst_108 = arith.constant 0.000000e+00 : f32
    %126 = vector.broadcast %cst_108 : f32 to vector<4x16xf32>
    %127 = arith.maximumf %125, %126 : vector<4x16xf32>
    %cst_109 = arith.constant dense<0.000000e+00> : vector<256x4xf32>
    %128 = tpu.matmul %115, %123, %cst_109 {dimension_numbers = #tpu.dot_dimension_numbers<[1], [1], [0], [0], [0, 0, 1, 0], [], []>} : vector<256x16xf32>, vector<4x16xf32>, vector<256x4xf32> -> vector<256x4xf32>
    %cst_110 = arith.constant 2.500000e-01 : f32
    %129 = vector.broadcast %cst_110 : f32 to vector<256x4xf32>
    %130 = arith.mulf %128, %129 : vector<256x4xf32>
    %cst_111 = arith.constant dense<0xFF800000> : vector<256xf32>
    %131 = vector.multi_reduction <maximumf>, %130, %cst_111 [1] : vector<256x4xf32> to vector<256xf32>
    %132 = vector.shape_cast %131 : vector<256xf32> to vector<256x1xf32>
    %133 = vector.broadcast %132 : vector<256x1xf32> to vector<256x4xf32>
    %134 = arith.subf %130, %133 : vector<256x4xf32>
    %135 = math.exp %134 : vector<256x4xf32>
    %cst_112 = arith.constant dense<0.000000e+00> : vector<256xf32>
    %136 = vector.multi_reduction <add>, %135, %cst_112 [1] : vector<256x4xf32> to vector<256xf32>
    %137 = vector.shape_cast %136 : vector<256xf32> to vector<256x1xf32>
    %138 = tpu.reciprocal %137 {approx = true} : vector<256x1xf32> -> vector<256x1xf32>
    %139 = vector.broadcast %138 : vector<256x1xf32> to vector<256x4xf32>
    %140 = arith.mulf %135, %139 : vector<256x4xf32>
    %c0_113 = arith.constant 0 : index
    %c0_114 = arith.constant 0 : index
    %c0_115 = arith.constant 0 : index
    %141 = vector.load %arg16[%c0_113, %c0_114, %c0_115] : memref<1x256x4xf32, #tpu.memory_space<vmem>>, vector<1x256x4xf32>
    %142 = vector.shape_cast %141 : vector<1x256x4xf32> to vector<256x4xf32>
    %143 = vector.shape_cast %140 : vector<256x4xf32> to vector<1x256x4xf32>
    tpu.vector_store %arg16[%c0_113, %c0_114, %c0_115], %143 {strides = array<i32>} : memref<1x256x4xf32, #tpu.memory_space<vmem>>, vector<1x256x4xf32>,
    %cst_116 = arith.constant dense<0.000000e+00> : vector<256x16xf32>
    %144 = tpu.matmul %140, %127, %cst_116 {dimension_numbers = #tpu.dot_dimension_numbers<[1], [0], [0], [1], [0, 0, 1, 1], [], []>} : vector<256x4xf32>, vector<4x16xf32>, vector<256x16xf32> -> vector<256x16xf32>
    %c0_117 = arith.constant 0 : index
    %c0_118 = arith.constant 0 : index
    %145 = vector.load %arg13[%c0_117, %c0_118] : memref<16x32xf32, #tpu.memory_space<vmem>>, vector<16x32xf32>
    %cst_119 = arith.constant dense<0.000000e+00> : vector<256x32xf32>
    %146 = tpu.matmul %144, %145, %cst_119 {dimension_numbers = #tpu.dot_dimension_numbers<[1], [0], [0], [1], [0, 0, 1, 1], [], []>} : vector<256x16xf32>, vector<16x32xf32>, vector<256x32xf32> -> vector<256x32xf32>
    %cst_120 = arith.constant 0.000000e+00 : f32
    %147 = vector.broadcast %cst_120 : f32 to vector<256x32xf32>
    %148 = arith.maximumf %146, %147 : vector<256x32xf32>
    %c0_121 = arith.constant 0 : index
    %c0_122 = arith.constant 0 : index
    %149 = vector.load %arg14[%c0_121, %c0_122] : memref<32x32xf32, #tpu.memory_space<vmem>>, vector<32x32xf32>
    %cst_123 = arith.constant dense<0.000000e+00> : vector<32x256xf32>
    %150 = tpu.matmul %149, %148, %cst_123 {dimension_numbers = #tpu.dot_dimension_numbers<[1], [1], [0], [0], [0, 0, 1, 0], [], []>} : vector<32x32xf32>, vector<256x32xf32>, vector<32x256xf32> -> vector<32x256xf32>
    %cst_124 = arith.constant 0.000000e+00 : f32
    %151 = vector.broadcast %cst_124 : f32 to vector<32x256xf32>
    %152 = arith.maximumf %150, %151 : vector<32x256xf32>
    %c0_125 = arith.constant 0 : index
    %c0_126 = arith.constant 0 : index
    %c0_127 = arith.constant 0 : index
    %153 = vector.load %arg15[%c0_125, %c0_126, %c0_127] : memref<1x32x256xf32, #tpu.memory_space<vmem>>, vector<1x32x256xf32>
    %154 = vector.shape_cast %153 : vector<1x32x256xf32> to vector<32x256xf32>
    %155 = vector.shape_cast %152 : vector<32x256xf32> to vector<1x32x256xf32>
    tpu.vector_store %arg15[%c0_125, %c0_126, %c0_127], %155 {strides = array<i32>} : memref<1x32x256xf32, #tpu.memory_space<vmem>>, vector<1x32x256xf32>,
    return
  }
  func.func @transform_0(%arg0: i32) -> (i32, i32, i32, i32) {
    %c0_i32 = arith.constant 0 : i32
    %c0_i32_0 = arith.constant 0 : i32
    %c0_i32_1 = arith.constant 0 : i32
    %c0_i32_2 = arith.constant 0 : i32
    return %arg0, %c0_i32, %c0_i32_0, %c0_i32_1 : i32, i32, i32, i32
  }
  func.func @transform_1(%arg0: i32) -> (i32, i32) {
    %c0_i32 = arith.constant 0 : i32
    %c0_i32_0 = arith.constant 0 : i32
    %c0_i32_1 = arith.constant 0 : i32
    return %c0_i32, %c0_i32_0 : i32, i32
  }
  func.func @transform_2(%arg0: i32) -> (i32, i32) {
    %c0_i32 = arith.constant 0 : i32
    %c0_i32_0 = arith.constant 0 : i32
    %c0_i32_1 = arith.constant 0 : i32
    return %c0_i32, %c0_i32_0 : i32, i32
  }
  func.func @transform_3(%arg0: i32) -> (i32, i32) {
    %c0_i32 = arith.constant 0 : i32
    %c0_i32_0 = arith.constant 0 : i32
    %c0_i32_1 = arith.constant 0 : i32
    return %c0_i32, %c0_i32_0 : i32, i32
  }
  func.func @transform_4(%arg0: i32) -> (i32, i32) {
    %c0_i32 = arith.constant 0 : i32
    %c0_i32_0 = arith.constant 0 : i32
    %c0_i32_1 = arith.constant 0 : i32
    return %c0_i32, %c0_i32_0 : i32, i32
  }
  func.func @transform_5(%arg0: i32) -> (i32, i32, i32) {
    %c0_i32 = arith.constant 0 : i32
    %c0_i32_0 = arith.constant 0 : i32
    %c0_i32_1 = arith.constant 0 : i32
    %c0_i32_2 = arith.constant 0 : i32
    return %c0_i32, %c0_i32_0, %c0_i32_1 : i32, i32, i32
  }
  func.func @transform_6(%arg0: i32) -> (i32, i32) {
    %c0_i32 = arith.constant 0 : i32
    %c0_i32_0 = arith.constant 0 : i32
    %c0_i32_1 = arith.constant 0 : i32
    return %c0_i32, %c0_i32_0 : i32, i32
  }
  func.func @transform_7(%arg0: i32) -> (i32, i32) {
    %c0_i32 = arith.constant 0 : i32
    %c0_i32_0 = arith.constant 0 : i32
    %c0_i32_1 = arith.constant 0 : i32
    return %c0_i32, %c0_i32_0 : i32, i32
  }
  func.func @transform_8(%arg0: i32) -> (i32, i32) {
    %c0_i32 = arith.constant 0 : i32
    %c0_i32_0 = arith.constant 0 : i32
    %c0_i32_1 = arith.constant 0 : i32
    return %c0_i32, %c0_i32_0 : i32, i32
  }
  func.func @transform_9(%arg0: i32) -> (i32, i32) {
    %c0_i32 = arith.constant 0 : i32
    %c0_i32_0 = arith.constant 0 : i32
    %c0_i32_1 = arith.constant 0 : i32
    return %c0_i32, %c0_i32_0 : i32, i32
  }
  func.func @transform_10(%arg0: i32) -> (i32, i32) {
    %c0_i32 = arith.constant 0 : i32
    %c0_i32_0 = arith.constant 0 : i32
    %c0_i32_1 = arith.constant 0 : i32
    return %c0_i32, %c0_i32_0 : i32, i32
  }
  func.func @transform_11(%arg0: i32) -> (i32, i32) {
    %c0_i32 = arith.constant 0 : i32
    %c0_i32_0 = arith.constant 0 : i32
    %c0_i32_1 = arith.constant 0 : i32
    return %c0_i32, %c0_i32_0 : i32, i32
  }
  func.func @transform_12(%arg0: i32) -> (i32, i32) {
    %c0_i32 = arith.constant 0 : i32
    %c0_i32_0 = arith.constant 0 : i32
    %c0_i32_1 = arith.constant 0 : i32
    return %c0_i32, %c0_i32_0 : i32, i32
  }
  func.func @transform_13(%arg0: i32) -> (i32, i32) {
    %c0_i32 = arith.constant 0 : i32
    %c0_i32_0 = arith.constant 0 : i32
    %c0_i32_1 = arith.constant 0 : i32
    return %c0_i32, %c0_i32_0 : i32, i32
  }
  func.func @transform_14(%arg0: i32) -> (i32, i32, i32) {
    %c0_i32 = arith.constant 0 : i32
    %c0_i32_0 = arith.constant 0 : i32
    %c0_i32_1 = arith.constant 0 : i32
    return %arg0, %c0_i32, %c0_i32_0 : i32, i32, i32
  }
  func.func @transform_15(%arg0: i32) -> (i32, i32, i32) {
    %c0_i32 = arith.constant 0 : i32
    %c0_i32_0 = arith.constant 0 : i32
    %c0_i32_1 = arith.constant 0 : i32
    return %arg0, %c0_i32, %c0_i32_0 : i32, i32, i32
  }
  func.func @transform_16(%arg0: i32) -> (i32, i32, i32) {
    %c0_i32 = arith.constant 0 : i32
    %c0_i32_0 = arith.constant 0 : i32
    %c0_i32_1 = arith.constant 0 : i32
    return %arg0, %c0_i32, %c0_i32_0 : i32, i32, i32
  }
}

</mosaic_0001>

<llo_original>
// kernel: ccm_forward.1
$region0: #{ccm_forward.1}
  #allocation0 [shape = 'u32[]', space=smem, size = 0x4, offset = 0x4, fixed_abs, tag = 'smem constant byte address 0x4 - core index']
  #allocation1 [shape = 'u32[144,128]{1,0:T(1,128)}', space=vmem, size = 0x12000, scoped, tag = 'internal scratch']
  %s0 = inlined_call_operand.vmem [shape: f32[2,18,18,8], index: 0, kind: input, shape index: {}]
  %s1 = inlined_call_operand.vmem [shape: f32[8,8], index: 1, kind: input, shape index: {}]
  %s2 = inlined_call_operand.vmem [shape: f32[1,8], index: 2, kind: input, shape index: {}]
  %s3 = inlined_call_operand.vmem [shape: f32[4,8], index: 3, kind: input, shape index: {}]
  %s4 = inlined_call_operand.vmem [shape: f32[4,1], index: 4, kind: input, shape index: {}]
  %s5 = inlined_call_operand.vmem [shape: f32[9,8,32], index: 5, kind: input, shape index: {}]
  %s6 = inlined_call_operand.vmem [shape: f32[1,32], index: 6, kind: input, shape index: {}]
  %s7 = inlined_call_operand.vmem [shape: f32[32,16], index: 7, kind: input, shape index: {}]
  %s8 = inlined_call_operand.vmem [shape: f32[16,16], index: 8, kind: input, shape index: {}]
  %s9 = inlined_call_operand.vmem [shape: f32[32,16], index: 9, kind: input, shape index: {}]
  %s10 = inlined_call_operand.vmem [shape: f32[16,16], index: 10, kind: input, shape index: {}]
  %s11 = inlined_call_operand.vmem [shape: f32[32,16], index: 11, kind: input, shape index: {}]
  %s12 = inlined_call_operand.vmem [shape: f32[16,32], index: 12, kind: input, shape index: {}]
  %s13 = inlined_call_operand.vmem [shape: f32[32,32], index: 13, kind: input, shape index: {}]
  %s14 = inlined_call_operand.vmem [shape: f32[2,32,256], index: 14, kind: output, shape index: {0}]
  %s15 = inlined_call_operand.vmem [shape: f32[2,256,4], index: 15, kind: output, shape index: {1}]
  %s16 = inlined_call_operand.vmem [shape: f32[2,4,256], index: 16, kind: output, shape index: {2}]
  %17 = xla_tuple %s14, %s15, %s16
  %s18 = sld [smem:[#allocation0]]
  $region105: #{ccm_forward.1} parent=0
    _
  %s20 = ssub.s32 1, %s18
  %s21 = scalar_select 0, %s20, %s18
  loop: start=0, step=1, limit=4
  $region2: #{ccm_forward.1} parent=0 // loop_pre_header
    _
  $region3: #{ccm_forward.1} parent=0 // loop_header
    %s23 = sphi 0, %s27
    %p24 = scmp.ge.s32.totalorder %s23, 4
    %s33 = sphi 0, %s35
    %s36 = sphi 0, %s33
    %s37 = sphi 0, %s36
    %s53 = sphi 0, %s37
    %s57 = sphi 0, %s57
    %s59 = sphi 0, %s57
    %s60 = sphi 0, %s59
    %s74 = sphi 0, %s60
    %s78 = sphi 0, %s78
    %s80 = sphi 0, %s78
    %s81 = sphi 0, %s80
    %s95 = sphi 0, %s81
    %s99 = sphi 0, %s99
    %s101 = sphi 0, %s99
    %s102 = sphi 0, %s101
    %s116 = sphi 0, %s102
    %s120 = sphi 0, %s120
    %s122 = sphi 0, %s120
    %s123 = sphi 0, %s122
    %s137 = sphi 0, %s123
    %s141 = sphi 0, %s141
    %s143 = sphi 0, %s141
    %s144 = sphi 0, %s143
    %s158 = sphi 0, %s144
    %s162 = sphi 0, %s162
    %s164 = sphi 0, %s162
    %s165 = sphi 0, %s164
    %s179 = sphi 0, %s165
    %s183 = sphi 0, %s183
    %s185 = sphi 0, %s183
    %s186 = sphi 0, %s185
    %s200 = sphi 0, %s186
    %s204 = sphi 0, %s204
    %s206 = sphi 0, %s204
    %s207 = sphi 0, %s206
    %s221 = sphi 0, %s207
    %s225 = sphi 0, %s225
    %s227 = sphi 0, %s225
    %s228 = sphi 0, %s227
    %s242 = sphi 0, %s228
    %s246 = sphi 0, %s246
    %s248 = sphi 0, %s246
    %s249 = sphi 0, %s248
    %s263 = sphi 0, %s249
    %s267 = sphi 0, %s267
    %s269 = sphi 0, %s267
    %s270 = sphi 0, %s269
    %s284 = sphi 0, %s270
    %s288 = sphi 0, %s288
    %s290 = sphi 0, %s288
    %s291 = sphi 0, %s290
    %s305 = sphi 0, %s291
    %s309 = sphi 0, %s309
    %s311 = sphi 0, %s309
    %s312 = sphi 0, %s311
    %s326 = sphi 0, %s312
    %s332 = sphi 0, %s334
    %s335 = sphi 0, %s332
    %s336 = sphi 0, %s335
    %s352 = sphi 0, %s336
    %s358 = sphi 0, %s360
    %s361 = sphi 0, %s358
    %s362 = sphi 0, %s361
    %s378 = sphi 0, %s362
    %s384 = sphi 0, %s386
    %s387 = sphi 0, %s384
    %s388 = sphi 0, %s387
    %s404 = sphi 0, %s388
  $region4: #{ccm_forward.1} parent=0 // loop_header_branch
    %26 = sbr.rel (%p24) target = $region8
  $region5: #{ccm_forward.1} parent=0 // loop_body
    %s28 = ssub.s32 %s23, 1
    %s29 = ssub.s32 %s23, 2
    %s30 = sadd.s32 %s23, 1
    %s31 = ssub.s32 %s23, %s30
    %p32 = scmp.eq.s32.totalorder %s31, 0
    %s34 = sadd.s32 %s33, 1
    %s35 = scalar_select %p32, %s33, %s34
    %p38 = pneg %p32
    %p39 = scmp.eq.s32.totalorder %s23, 1
    %p40 = por %p38, %p39
    %p41 = scmp.ne.s32.totalorder %s33, %s36
    %p42 = scmp.eq.s32.totalorder %s23, 0
    %p43 = por %p41, %p42
    %p44 = scmp.ne.s32.totalorder %s33, %s36
    %p45 = scmp.eq.s32.totalorder %s28, 1
    %p46 = por %p44, %p45
    %p47 = scmp.ne.s32.totalorder %s36, %s37
    %p48 = scmp.eq.s32.totalorder %s28, 0
    %p49 = por %p47, %p48
    %p50 = scmp.ne.s32.totalorder %s36, %s37
    %p51 = scmp.eq.s32.totalorder %s29, 1
    %p52 = por %p50, %p51
    %p54 = scmp.ne.s32.totalorder %s37, %s53
    %p55 = scmp.eq.s32.totalorder %s29, 0
    %p56 = por %p54, %p55
    %s58 = sadd.s32 %s57, 1
    %p61 = scmp.eq.s32.totalorder %s23, 1
    %p62 = scmp.ne.s32.totalorder %s57, %s59
    %p63 = scmp.eq.s32.totalorder %s23, 0
    %p64 = por %p62, %p63
    %p65 = scmp.ne.s32.totalorder %s57, %s59
    %p66 = scmp.eq.s32.totalorder %s28, 1
    %p67 = por %p65, %p66
    %p68 = scmp.ne.s32.totalorder %s59, %s60
    %p69 = scmp.eq.s32.totalorder %s28, 0
    %p70 = por %p68, %p69
    %p71 = scmp.ne.s32.totalorder %s59, %s60
    %p72 = scmp.eq.s32.totalorder %s29, 1
    %p73 = por %p71, %p72
    %p75 = scmp.ne.s32.totalorder %s60, %s74
    %p76 = scmp.eq.s32.totalorder %s29, 0
    %p77 = por %p75, %p76
    %s79 = sadd.s32 %s78, 1
    %p82 = scmp.eq.s32.totalorder %s23, 1
    %p83 = scmp.ne.s32.totalorder %s78, %s80
    %p84 = scmp.eq.s32.totalorder %s23, 0
    %p85 = por %p83, %p84
    %p86 = scmp.ne.s32.totalorder %s78, %s80
    %p87 = scmp.eq.s32.totalorder %s28, 1
    %p88 = por %p86, %p87
    %p89 = scmp.ne.s32.totalorder %s80, %s81
    %p90 = scmp.eq.s32.totalorder %s28, 0
    %p91 = por %p89, %p90
    %p92 = scmp.ne.s32.totalorder %s80, %s81
    %p93 = scmp.eq.s32.totalorder %s29, 1
    %p94 = por %p92, %p93
    %p96 = scmp.ne.s32.totalorder %s81, %s95
    %p97 = scmp.eq.s32.totalorder %s29, 0
    %p98 = por %p96, %p97
    %s100 = sadd.s32 %s99, 1
    %p103 = scmp.eq.s32.totalorder %s23, 1
    %p104 = scmp.ne.s32.totalorder %s99, %s101
    %p105 = scmp.eq.s32.totalorder %s23, 0
    %p106 = por %p104, %p105
    %p107 = scmp.ne.s32.totalorder %s99, %s101
    %p108 = scmp.eq.s32.totalorder %s28, 1
    %p109 = por %p107, %p108
    %p110 = scmp.ne.s32.totalorder %s101, %s102
    %p111 = scmp.eq.s32.totalorder %s28, 0
    %p112 = por %p110, %p111
    %p113 = scmp.ne.s32.totalorder %s101, %s102
    %p114 = scmp.eq.s32.totalorder %s29, 1
    %p115 = por %p113, %p114
    %p117 = scmp.ne.s32.totalorder %s102, %s116
    %p118 = scmp.eq.s32.totalorder %s29, 0
    %p119 = por %p117, %p118
    %s121 = sadd.s32 %s120, 1
    %p124 = scmp.eq.s32.totalorder %s23, 1
    %p125 = scmp.ne.s32.totalorder %s120, %s122
    %p126 = scmp.eq.s32.totalorder %s23, 0
    %p127 = por %p125, %p126
    %p128 = scmp.ne.s32.totalorder %s120, %s122
    %p129 = scmp.eq.s32.totalorder %s28, 1
    %p130 = por %p128, %p129
    %p131 = scmp.ne.s32.totalorder %s122, %s123
    %p132 = scmp.eq.s32.totalorder %s28, 0
    %p133 = por %p131, %p132
    %p134 = scmp.ne.s32.totalorder %s122, %s123
    %p135 = scmp.eq.s32.totalorder %s29, 1
    %p136 = por %p134, %p135
    %p138 = scmp.ne.s32.totalorder %s123, %s137
    %p139 = scmp.eq.s32.totalorder %s29, 0
    %p140 = por %p138, %p139
    %s142 = sadd.s32 %s141, 1
    %p145 = scmp.eq.s32.totalorder %s23, 1
    %p146 = scmp.ne.s32.totalorder %s141, %s143
    %p147 = scmp.eq.s32.totalorder %s23, 0
    %p148 = por %p146, %p147
    %p149 = scmp.ne.s32.totalorder %s141, %s143
    %p150 = scmp.eq.s32.totalorder %s28, 1
    %p151 = por %p149, %p150
    %p152 = scmp.ne.s32.totalorder %s143, %s144
    %p153 = scmp.eq.s32.totalorder %s28, 0
    %p154 = por %p152, %p153
    %p155 = scmp.ne.s32.totalorder %s143, %s144
    %p156 = scmp.eq.s32.totalorder %s29, 1
    %p157 = por %p155, %p156
    %p159 = scmp.ne.s32.totalorder %s144, %s158
    %p160 = scmp.eq.s32.totalorder %s29, 0
    %p161 = por %p159, %p160
    %s163 = sadd.s32 %s162, 1
    %p166 = scmp.eq.s32.totalorder %s23, 1
    %p167 = scmp.ne.s32.totalorder %s162, %s164
    %p168 = scmp.eq.s32.totalorder %s23, 0
    %p169 = por %p167, %p168
    %p170 = scmp.ne.s32.totalorder %s162, %s164
    %p171 = scmp.eq.s32.totalorder %s28, 1
    %p172 = por %p170, %p171
    %p173 = scmp.ne.s32.totalorder %s164, %s165
    %p174 = scmp.eq.s32.totalorder %s28, 0
    %p175 = por %p173, %p174
    %p176 = scmp.ne.s32.totalorder %s164, %s165
    %p177 = scmp.eq.s32.totalorder %s29, 1
    %p178 = por %p176, %p177
    %p180 = scmp.ne.s32.totalorder %s165, %s179
    %p181 = scmp.eq.s32.totalorder %s29, 0
    %p182 = por %p180, %p181
    %s184 = sadd.s32 %s183, 1
    %p187 = scmp.eq.s32.totalorder %s23, 1
    %p188 = scmp.ne.s32.totalorder %s183, %s185
    %p189 = scmp.eq.s32.totalorder %s23, 0
    %p190 = por %p188, %p189
    %p191 = scmp.ne.s32.totalorder %s183, %s185
    %p192 = scmp.eq.s32.totalorder %s28, 1
    %p193 = por %p191, %p192
    %p194 = scmp.ne.s32.totalorder %s185, %s186
    %p195 = scmp.eq.s32.totalorder %s28, 0
    %p196 = por %p194, %p195
    %p197 = scmp.ne.s32.totalorder %s185, %s186
    %p198 = scmp.eq.s32.totalorder %s29, 1
    %p199 = por %p197, %p198
    %p201 = scmp.ne.s32.totalorder %s186, %s200
    %p202 = scmp.eq.s32.totalorder %s29, 0
    %p203 = por %p201, %p202
    %s205 = sadd.s32 %s204, 1
    %p208 = scmp.eq.s32.totalorder %s23, 1
    %p209 = scmp.ne.s32.totalorder %s204, %s206
    %p210 = scmp.eq.s32.totalorder %s23, 0
    %p211 = por %p209, %p210
    %p212 = scmp.ne.s32.totalorder %s204, %s206
    %p213 = scmp.eq.s32.totalorder %s28, 1
    %p214 = por %p212, %p213
    %p215 = scmp.ne.s32.totalorder %s206, %s207
    %p216 = scmp.eq.s32.totalorder %s28, 0
    %p217 = por %p215, %p216
    %p218 = scmp.ne.s32.totalorder %s206, %s207
    %p219 = scmp.eq.s32.totalorder %s29, 1
    %p220 = por %p218, %p219
    %p222 = scmp.ne.s32.totalorder %s207, %s221
    %p223 = scmp.eq.s32.totalorder %s29, 0
    %p224 = por %p222, %p223
    %s226 = sadd.s32 %s225, 1
    %p229 = scmp.eq.s32.totalorder %s23, 1
    %p230 = scmp.ne.s32.totalorder %s225, %s227
    %p231 = scmp.eq.s32.totalorder %s23, 0
    %p232 = por %p230, %p231
    %p233 = scmp.ne.s32.totalorder %s225, %s227
    %p234 = scmp.eq.s32.totalorder %s28, 1
    %p235 = por %p233, %p234
    %p236 = scmp.ne.s32.totalorder %s227, %s228
    %p237 = scmp.eq.s32.totalorder %s28, 0
    %p238 = por %p236, %p237
    %p239 = scmp.ne.s32.totalorder %s227, %s228
    %p240 = scmp.eq.s32.totalorder %s29, 1
    %p241 = por %p239, %p240
    %p243 = scmp.ne.s32.totalorder %s228, %s242
    %p244 = scmp.eq.s32.totalorder %s29, 0
    %p245 = por %p243, %p244
    %s247 = sadd.s32 %s246, 1
    %p250 = scmp.eq.s32.totalorder %s23, 1
    %p251 = scmp.ne.s32.totalorder %s246, %s248
    %p252 = scmp.eq.s32.totalorder %s23, 0
    %p253 = por %p251, %p252
    %p254 = scmp.ne.s32.totalorder %s246, %s248
    %p255 = scmp.eq.s32.totalorder %s28, 1
    %p256 = por %p254, %p255
    %p257 = scmp.ne.s32.totalorder %s248, %s249
    %p258 = scmp.eq.s32.totalorder %s28, 0
    %p259 = por %p257, %p258
    %p260 = scmp.ne.s32.totalorder %s248, %s249
    %p261 = scmp.eq.s32.totalorder %s29, 1
    %p262 = por %p260, %p261
    %p264 = scmp.ne.s32.totalorder %s249, %s263
    %p265 = scmp.eq.s32.totalorder %s29, 0
    %p266 = por %p264, %p265
    %s268 = sadd.s32 %s267, 1
    %p271 = scmp.eq.s32.totalorder %s23, 1
    %p272 = scmp.ne.s32.totalorder %s267, %s269
    %p273 = scmp.eq.s32.totalorder %s23, 0
    %p274 = por %p272, %p273
    %p275 = scmp.ne.s32.totalorder %s267, %s269
    %p276 = scmp.eq.s32.totalorder %s28, 1
    %p277 = por %p275, %p276
    %p278 = scmp.ne.s32.totalorder %s269, %s270
    %p279 = scmp.eq.s32.totalorder %s28, 0
    %p280 = por %p278, %p279
    %p281 = scmp.ne.s32.totalorder %s269, %s270
    %p282 = scmp.eq.s32.totalorder %s29, 1
    %p283 = por %p281, %p282
    %p285 = scmp.ne.s32.totalorder %s270, %s284
    %p286 = scmp.eq.s32.totalorder %s29, 0
    %p287 = por %p285, %p286
    %s289 = sadd.s32 %s288, 1
    %p292 = scmp.eq.s32.totalorder %s23, 1
    %p293 = scmp.ne.s32.totalorder %s288, %s290
    %p294 = scmp.eq.s32.totalorder %s23, 0
    %p295 = por %p293, %p294
    %p296 = scmp.ne.s32.totalorder %s288, %s290
    %p297 = scmp.eq.s32.totalorder %s28, 1
    %p298 = por %p296, %p297
    %p299 = scmp.ne.s32.totalorder %s290, %s291
    %p300 = scmp.eq.s32.totalorder %s28, 0
    %p301 = por %p299, %p300
    %p302 = scmp.ne.s32.totalorder %s290, %s291
    %p303 = scmp.eq.s32.totalorder %s29, 1
    %p304 = por %p302, %p303
    %p306 = scmp.ne.s32.totalorder %s291, %s305
    %p307 = scmp.eq.s32.totalorder %s29, 0
    %p308 = por %p306, %p307
    %s310 = sadd.s32 %s309, 1
    %p313 = scmp.eq.s32.totalorder %s23, 1
    %p314 = scmp.ne.s32.totalorder %s309, %s311
    %p315 = scmp.eq.s32.totalorder %s23, 0
    %p316 = por %p314, %p315
    %p317 = scmp.ne.s32.totalorder %s309, %s311
    %p318 = scmp.eq.s32.totalorder %s28, 1
    %p319 = por %p317, %p318
    %p320 = scmp.ne.s32.totalorder %s311, %s312
    %p321 = scmp.eq.s32.totalorder %s28, 0
    %p322 = por %p320, %p321
    %p323 = scmp.ne.s32.totalorder %s311, %s312
    %p324 = scmp.eq.s32.totalorder %s29, 1
    %p325 = por %p323, %p324
    %p327 = scmp.ne.s32.totalorder %s312, %s326
    %p328 = scmp.eq.s32.totalorder %s29, 0
    %p329 = por %p327, %p328
    %s330 = ssub.s32 %s23, %s30
    %p331 = scmp.eq.s32.totalorder %s330, 0
    %s333 = sadd.s32 %s332, 1
    %s334 = scalar_select %p331, %s332, %s333
    %p337 = pneg %p331
    %p338 = scmp.eq.s32.totalorder %s23, 1
    %p339 = por %p337, %p338
    %p340 = scmp.ne.s32.totalorder %s332, %s335
    %p341 = scmp.eq.s32.totalorder %s23, 0
    %p342 = por %p340, %p341
    %p343 = scmp.ne.s32.totalorder %s332, %s335
    %p344 = scmp.eq.s32.totalorder %s28, 1
    %p345 = por %p343, %p344
    %p346 = scmp.ne.s32.totalorder %s335, %s336
    %p347 = scmp.eq.s32.totalorder %s28, 0
    %p348 = por %p346, %p347
    %p349 = scmp.ne.s32.totalorder %s335, %s336
    %p350 = scmp.eq.s32.totalorder %s29, 1
    %p351 = por %p349, %p350
    %p353 = scmp.ne.s32.totalorder %s336, %s352
    %p354 = scmp.eq.s32.totalorder %s29, 0
    %p355 = por %p353, %p354
    %s356 = ssub.s32 %s23, %s30
    %p357 = scmp.eq.s32.totalorder %s356, 0
    %s359 = sadd.s32 %s358, 1
    %s360 = scalar_select %p357, %s358, %s359
    %p363 = pneg %p357
    %p364 = scmp.eq.s32.totalorder %s23, 1
    %p365 = por %p363, %p364
    %p366 = scmp.ne.s32.totalorder %s358, %s361
    %p367 = scmp.eq.s32.totalorder %s23, 0
    %p368 = por %p366, %p367
    %p369 = scmp.ne.s32.totalorder %s358, %s361
    %p370 = scmp.eq.s32.totalorder %s28, 1
    %p371 = por %p369, %p370
    %p372 = scmp.ne.s32.totalorder %s361, %s362
    %p373 = scmp.eq.s32.totalorder %s28, 0
    %p374 = por %p372, %p373
    %p375 = scmp.ne.s32.totalorder %s361, %s362
    %p376 = scmp.eq.s32.totalorder %s29, 1
    %p377 = por %p375, %p376
    %p379 = scmp.ne.s32.totalorder %s362, %s378
    %p380 = scmp.eq.s32.totalorder %s29, 0
    %p381 = por %p379, %p380
    %s382 = ssub.s32 %s23, %s30
    %p383 = scmp.eq.s32.totalorder %s382, 0
    %s385 = sadd.s32 %s384, 1
    %s386 = scalar_select %p383, %s384, %s385
    %p389 = pneg %p383
    %p390 = scmp.eq.s32.totalorder %s23, 1
    %p391 = por %p389, %p390
    %p392 = scmp.ne.s32.totalorder %s384, %s387
    %p393 = scmp.eq.s32.totalorder %s23, 0
    %p394 = por %p392, %p393
    %p395 = scmp.ne.s32.totalorder %s384, %s387
    %p396 = scmp.eq.s32.totalorder %s28, 1
    %p397 = por %p395, %p396
    %p398 = scmp.ne.s32.totalorder %s387, %s388
    %p399 = scmp.eq.s32.totalorder %s28, 0
    %p400 = por %p398, %p399
    %p401 = scmp.ne.s32.totalorder %s387, %s388
    %p402 = scmp.eq.s32.totalorder %s29, 1
    %p403 = por %p401, %p402
    %p405 = scmp.ne.s32.totalorder %s388, %s404
    %p406 = scmp.eq.s32.totalorder %s29, 0
    %p407 = por %p405, %p406
    %p408 = scmp.le.s32.totalorder 1, %s23
    %p409 = scmp.lt.s32.totalorder %s23, 3
    %p410 = pnand %p408, %p409
    %p411 = pneg %p410
    // Predicated region
    $region9: #{ccm_forward.1} parent=5 // pred_check
      _
    $region10: #{ccm_forward.1} parent=5 // pred_check_branch
      %413 = sbr.rel (%p410) target = $region12
    $region11: #{ccm_forward.1} parent=5 // pred_region
      %s414 = ssub.s32 %s23, 1
      // Predicated region
      $region13: #{ccm_forward.1} parent=11 // pred_check
        %p415 = pneg %p70
      $region14: #{ccm_forward.1} parent=11 // pred_check_branch
        %417 = sbr.rel (%p415) target = $region16
      $region15: #{ccm_forward.1} parent=11 // pred_region
        _
      $region16: #{ccm_forward.1} parent=11 // pred_fallthru
        _
      // Predicated region
      $region17: #{ccm_forward.1} parent=11 // pred_check
        %p418 = pneg %p91
      $region18: #{ccm_forward.1} parent=11 // pred_check_branch
        %420 = sbr.rel (%p418) target = $region20
      $region19: #{ccm_forward.1} parent=11 // pred_region
        _
      $region20: #{ccm_forward.1} parent=11 // pred_fallthru
        _
      // Predicated region
      $region21: #{ccm_forward.1} parent=11 // pred_check
        %p421 = pneg %p112
      $region22: #{ccm_forward.1} parent=11 // pred_check_branch
        %423 = sbr.rel (%p421) target = $region24
      $region23: #{ccm_forward.1} parent=11 // pred_region
        _
      $region24: #{ccm_forward.1} parent=11 // pred_fallthru
        _
      // Predicated region
      $region25: #{ccm_forward.1} parent=11 // pred_check
        %p424 = pneg %p133
      $region26: #{ccm_forward.1} parent=11 // pred_check_branch
        %426 = sbr.rel (%p424) target = $region28
      $region27: #{ccm_forward.1} parent=11 // pred_region
        _
      $region28: #{ccm_forward.1} parent=11 // pred_fallthru
        _
      // Predicated region
      $region29: #{ccm_forward.1} parent=11 // pred_check
        %p427 = pneg %p154
      $region30: #{ccm_forward.1} parent=11 // pred_check_branch
        %429 = sbr.rel (%p427) target = $region32
      $region31: #{ccm_forward.1} parent=11 // pred_region
        _
      $region32: #{ccm_forward.1} parent=11 // pred_fallthru
        _
      // Predicated region
      $region33: #{ccm_forward.1} parent=11 // pred_check
        %p430 = pneg %p175
      $region34: #{ccm_forward.1} parent=11 // pred_check_branch
        %432 = sbr.rel (%p430) target = $region36
      $region35: #{ccm_forward.1} parent=11 // pred_region
        _
      $region36: #{ccm_forward.1} parent=11 // pred_fallthru
        _
      // Predicated region
      $region37: #{ccm_forward.1} parent=11 // pred_check
        %p433 = pneg %p196
      $region38: #{ccm_forward.1} parent=11 // pred_check_branch
        %435 = sbr.rel (%p433) target = $region40
      $region39: #{ccm_forward.1} parent=11 // pred_region
        _
      $region40: #{ccm_forward.1} parent=11 // pred_fallthru
        _
      // Predicated region
      $region41: #{ccm_forward.1} parent=11 // pred_check
        %p436 = pneg %p217
      $region42: #{ccm_forward.1} parent=11 // pred_check_branch
        %438 = sbr.rel (%p436) target = $region44
      $region43: #{ccm_forward.1} parent=11 // pred_region
        _
      $region44: #{ccm_forward.1} parent=11 // pred_fallthru
        _
      // Predicated region
      $region45: #{ccm_forward.1} parent=11 // pred_check
        %p439 = pneg %p238
      $region46: #{ccm_forward.1} parent=11 // pred_check_branch
        %441 = sbr.rel (%p439) target = $region48
      $region47: #{ccm_forward.1} parent=11 // pred_region
        _
      $region48: #{ccm_forward.1} parent=11 // pred_fallthru
        _
      // Predicated region
      $region49: #{ccm_forward.1} parent=11 // pred_check
        %p442 = pneg %p259
      $region50: #{ccm_forward.1} parent=11 // pred_check_branch
        %444 = sbr.rel (%p442) target = $region52
      $region51: #{ccm_forward.1} parent=11 // pred_region
        _
      $region52: #{ccm_forward.1} parent=11 // pred_fallthru
        _
      // Predicated region
      $region53: #{ccm_forward.1} parent=11 // pred_check
        %p445 = pneg %p280
      $region54: #{ccm_forward.1} parent=11 // pred_check_branch
        %447 = sbr.rel (%p445) target = $region56
      $region55: #{ccm_forward.1} parent=11 // pred_region
        _
      $region56: #{ccm_forward.1} parent=11 // pred_fallthru
        _
      // Predicated region
      $region57: #{ccm_forward.1} parent=11 // pred_check
        %p448 = pneg %p301
      $region58: #{ccm_forward.1} parent=11 // pred_check_branch
        %450 = sbr.rel (%p448) target = $region60
      $region59: #{ccm_forward.1} parent=11 // pred_region
        _
      $region60: #{ccm_forward.1} parent=11 // pred_fallthru
        _
      // Predicated region
      $region61: #{ccm_forward.1} parent=11 // pred_check
        %p451 = pneg %p322
      $region62: #{ccm_forward.1} parent=11 // pred_check_branch
        %453 = sbr.rel (%p451) target = $region64
      $region63: #{ccm_forward.1} parent=11 // pred_region
        _
      $region64: #{ccm_forward.1} parent=11 // pred_fallthru
        _
    $region12: #{ccm_forward.1} parent=5 // pred_fallthru
      _
    %p454 = scmp.lt.s32.totalorder %s23, 2
    // Predicated region
    $region65: #{ccm_forward.1} parent=5 // pred_check
      %p455 = pneg %p454
    $region66: #{ccm_forward.1} parent=5 // pred_check_branch
      %457 = sbr.rel (%p455) target = $region68
    $region67: #{ccm_forward.1} parent=5 // pred_region
      // Predicated region
      $region69: #{ccm_forward.1} parent=67 // pred_check
        %p458 = pneg %p43
      $region70: #{ccm_forward.1} parent=67 // pred_check_branch
        %460 = sbr.rel (%p458) target = $region72
      $region71: #{ccm_forward.1} parent=67 // pred_region
        %p461 = scmp.lt.s32.totalorder %s23, 1
        %s462 = scalar_select %p461, %s23, 1
        %s463 = smul.addr %s462, 54
        %s464 = smul.addr %s463, 8
        %s465 = scalar_lea.vmem %s0, %s464
      $region72: #{ccm_forward.1} parent=67 // pred_fallthru
        _
    $region68: #{ccm_forward.1} parent=5 // pred_fallthru
      _
    %p466 = scmp.le.s32.totalorder 1, %s23
    %p467 = scmp.lt.s32.totalorder %s23, 3
    %p468 = pnand %p466, %p467
    %p469 = pneg %p468
    // Predicated region
    $region73: #{ccm_forward.1} parent=5 // pred_check
      _
    $region74: #{ccm_forward.1} parent=5 // pred_check_branch
      %471 = sbr.rel (%p468) target = $region76
    $region75: #{ccm_forward.1} parent=5 // pred_region
      %s472 = ssub.s32 %s23, 1
      %p473 = scmp.lt.s32.totalorder %s28, 1
      %s474 = scalar_select %p473, %s28, 1
      %s475 = smul.addr %s474, 54
      %s476 = smul.addr %s475, 8
      %s477 = scalar_lea.vmem %s0, %s476
      %p478 = pneg %p49
      %p479 = pneg %p46
      %p480 = pneg %p70
      %p481 = pneg %p67
      %p482 = pneg %p91
      %p483 = pneg %p88
      %p484 = pneg %p112
      %p485 = pneg %p109
      %p486 = pneg %p133
      %p487 = pneg %p130
      %p488 = pneg %p154
      %p489 = pneg %p151
      %p490 = pneg %p175
      %p491 = pneg %p172
      %p492 = pneg %p196
      %p493 = pneg %p193
      %p494 = pneg %p217
      %p495 = pneg %p214
      %p496 = pneg %p238
      %p497 = pneg %p235
      %p498 = pneg %p259
      %p499 = pneg %p256
      %p500 = pneg %p280
      %p501 = pneg %p277
      %p502 = pneg %p301
      %p503 = pneg %p298
      %p504 = pneg %p322
      %p505 = pneg %p319
      %p506 = pneg %p348
      %p507 = pneg %p345
      %p508 = scmp.lt.s32.totalorder %s28, 1
      %s509 = scalar_select %p508, %s28, 1
      %s510 = smul.addr %s509, 8
      %s511 = smul.addr %s510, 8
      %s512 = scalar_lea.vmem %s14, %s511
      %p513 = pneg %p374
      %p514 = pneg %p371
      %p515 = scmp.lt.s32.totalorder %s28, 1
      %s516 = scalar_select %p515, %s28, 1
      %s517 = smul.addr %s516, 32
      %s518 = smul.addr %s517, 8
      %s519 = scalar_lea.vmem %s15, %s518
      %p520 = pneg %p400
      %p521 = pneg %p397
      %p522 = scmp.lt.s32.totalorder %s28, 1
      %s523 = scalar_select %p522, %s28, 1
      %s524 = smul.addr %s523, 2
      %s525 = smul.addr %s524, 4
      %s526 = scalar_lea.vmem %s16, %s525
      %p527 = scmp.lt.s32.totalorder %s28, 1
      %s528 = scalar_select %p527, %s28, 1
      %s529 = smul.addr %s528, 54
      %s530 = smul.addr %s529, 8
      %s531 = scalar_lea.vmem %s0, %s530
      %p532 = scmp.lt.s32.totalorder %s28, 1
      %s533 = scalar_select %p532, %s28, 1
      %s534 = smul.addr %s533, 8
      %s535 = smul.addr %s534, 8
      %s536 = scalar_lea.vmem %s14, %s535
      %p537 = scmp.lt.s32.totalorder %s28, 1
      %s538 = scalar_select %p537, %s28, 1
      %s539 = smul.addr %s538, 32
      %s540 = smul.addr %s539, 8
      %s541 = scalar_lea.vmem %s15, %s540
      %p542 = scmp.lt.s32.totalorder %s28, 1
      %s543 = scalar_select %p542, %s28, 1
      %s544 = smul.addr %s543, 2
      %s545 = smul.addr %s544, 4
      %s546 = scalar_lea.vmem %s16, %s545
      %s547 = scalar_lea.vmem %s531, 24
      %v548 = vld [vmem:[%s547 + $0x1] sm:$0xff]
      %v549 = vld [vmem:[%s547 + $0x9] sm:$0xff]
      %v550 = vld [vmem:[%s547 + $0x19] sm:$0xff]
      %v551 = vld [vmem:[%s547 + $0x21] sm:$0xff]
      %v552 = vld [vmem:[%s547 + $0x31] sm:$0xff]
      %v553 = vld [vmem:[%s547 + $0x39] sm:$0xff]
      %v554 = vld [vmem:[%s547 + $0x49] sm:$0xff]
      %v555 = vld [vmem:[%s547 + $0x51] sm:$0xff]
      %v556 = vld [vmem:[%s547 + $0x61] sm:$0xff]
      %v557 = vld [vmem:[%s547 + $0x69] sm:$0xff]
      %v558 = vld [vmem:[%s547 + $0x79] sm:$0xff]
      %v559 = vld [vmem:[%s547 + $0x81] sm:$0xff]
      %v560 = vld [vmem:[%s547 + $0x91] sm:$0xff]
      %v561 = vld [vmem:[%s547 + $0x99] sm:$0xff]
      %v562 = vld [vmem:[%s547 + $0xa9] sm:$0xff]
      %v563 = vld [vmem:[%s547 + $0xb1] sm:$0xff]
      %v564 = vld [vmem:[%s547 + $0xc1] sm:$0xff]
      %v565 = vld [vmem:[%s547 + $0xc9] sm:$0xff]
      %v566 = vld [vmem:[%s547 + $0xd9] sm:$0xff]
      %v567 = vld [vmem:[%s547 + $0xe1] sm:$0xff]
      %v568 = vld [vmem:[%s547 + $0xf1] sm:$0xff]
      %v569 = vld [vmem:[%s547 + $0xf9] sm:$0xff]
      %v570 = vld [vmem:[%s547 + $0x109] sm:$0xff]
      %v571 = vld [vmem:[%s547 + $0x111] sm:$0xff]
      %v572 = vld [vmem:[%s547 + $0x121] sm:$0xff]
      %v573 = vld [vmem:[%s547 + $0x129] sm:$0xff]
      %v574 = vld [vmem:[%s547 + $0x139] sm:$0xff]
      %v575 = vld [vmem:[%s547 + $0x141] sm:$0xff]
      %v576 = vld [vmem:[%s547 + $0x151] sm:$0xff]
      %v577 = vld [vmem:[%s547 + $0x159] sm:$0xff]
      %v578 = vld [vmem:[%s547 + $0x169] sm:$0xff]
      %v579 = vld [vmem:[%s547 + $0x171] sm:$0xff]
      %v580 = vld [vmem:[%s1] sm:$0xff]
      %v581 = vld [vmem:[%s2] sm:$0x1]
      %v583 = vlaneseq
      %v584 = vshrl.u32 %v583, 7
      %v585 = vsub.s32 0, %v584
      %v586 = vrot.slane %v581, %v585
      %vm588 = vcmask 64512
      %v590 = vsel %vm588, %v548, 0
      %v593 = vsel %vm588, %v549, 0
      %v596 = vsel %vm588, %v550, 0
      %v599 = vsel %vm588, %v551, 0
      %v602 = vsel %vm588, %v552, 0
      %v605 = vsel %vm588, %v553, 0
      %v608 = vsel %vm588, %v554, 0
      %v611 = vsel %vm588, %v555, 0
      %v614 = vsel %vm588, %v556, 0
      %v617 = vsel %vm588, %v557, 0
      %v620 = vsel %vm588, %v558, 0
      %v623 = vsel %vm588, %v559, 0
      %v626 = vsel %vm588, %v560, 0
      %v629 = vsel %vm588, %v561, 0
      %v632 = vsel %vm588, %v562, 0
      %v635 = vsel %vm588, %v563, 0
      %v638 = vsel %vm588, %v564, 0
      %v641 = vsel %vm588, %v565, 0
      %v644 = vsel %vm588, %v566, 0
      %v647 = vsel %vm588, %v567, 0
      %v650 = vsel %vm588, %v568, 0
      %v653 = vsel %vm588, %v569, 0
      %v656 = vsel %vm588, %v570, 0
      %v659 = vsel %vm588, %v571, 0
      %v662 = vsel %vm588, %v572, 0
      %v665 = vsel %vm588, %v573, 0
      %v668 = vsel %vm588, %v574, 0
      %v671 = vsel %vm588, %v575, 0
      %v674 = vsel %vm588, %v576, 0
      %v677 = vsel %vm588, %v577, 0
      %v680 = vsel %vm588, %v578, 0
      %v683 = vsel %vm588, %v579, 0
      %685 = vmatprep.subr.mxu0 0.0
      %686 = vmatpush1.msra.mxu0 %v580
      %687 = vmatprep.subr.mxu0 0.0
      %688 = vmatpush1.msra.mxu0 0.0
      %689 = vmatprep.subr.mxu0 0.0
      %690 = vmatpush1.msra.mxu0 0.0
      %691 = vmatprep.subr.mxu0 0.0
      %692 = vmatpush1.msra.mxu0 0.0
      %693 = vmatprep.subr.mxu0 0.0
      %694 = vmatpush1.msra.mxu0 0.0
      %695 = vmatprep.subr.mxu0 0.0
      %696 = vmatpush1.msra.mxu0 0.0
      %697 = vmatprep.subr.mxu0 0.0
      %698 = vmatpush1.msra.mxu0 0.0
      %699 = vmatprep.subr.mxu0 0.0
      %700 = vmatpush1.msra.mxu0 0.0
      %701 = vmatprep.subr.mxu0 0.0
      %702 = vmatpush1.msra.mxu0 0.0
      %703 = vmatprep.subr.mxu0 0.0
      %704 = vmatpush1.msra.mxu0 0.0
      %705 = vmatprep.subr.mxu0 0.0
      %706 = vmatpush1.msra.mxu0 0.0
      %707 = vmatprep.subr.mxu0 0.0
      %708 = vmatpush1.msra.mxu0 0.0
      %709 = vmatprep.subr.mxu0 0.0
      %710 = vmatpush1.msra.mxu0 0.0
      %711 = vmatprep.subr.mxu0 0.0
      %712 = vmatpush1.msra.mxu0 0.0
      %713 = vmatprep.subr.mxu0 0.0
      %714 = vmatpush1.msra.mxu0 0.0
      %715 = vmatprep.subr.mxu0 0.0
      %716 = vmatpush1.msra.mxu0 0.0
      %717 = vmatprep.subr.mxu0 0.0
      %718 = vmatpush1.msra.mxu0 0.0
      %719 = vmatprep.subr.mxu0 0.0
      %720 = vmatpush1.msra.mxu0 0.0
      %721 = vmatprep.subr.mxu0 0.0
      %722 = vmatpush1.msra.mxu0 0.0
      %723 = vmatprep.subr.mxu0 0.0
      %724 = vmatpush1.msra.mxu0 0.0
      %725 = vmatprep.subr.mxu0 0.0
      %726 = vmatpush1.msra.mxu0 0.0
      %727 = vmatprep.subr.mxu0 0.0
      %728 = vmatpush1.msra.mxu0 0.0
      %729 = vmatprep.subr.mxu0 0.0
      %730 = vmatpush1.msra.mxu0 0.0
      %731 = vmatprep.subr.mxu0 0.0
      %732 = vmatpush1.msra.mxu0 0.0
      %733 = vmatprep.subr.mxu0 0.0
      %734 = vmatpush1.msra.mxu0 0.0
      %735 = vmatprep.subr.mxu0 0.0
      %736 = vmatpush1.msra.mxu0 0.0
      %737 = vmatprep.subr.mxu0 0.0
      %738 = vmatpush1.msra.mxu0 0.0
      %739 = vmatprep.subr.mxu0 0.0
      %740 = vmatpush1.msra.mxu0 0.0
      %741 = vmatprep.subr.mxu0 0.0
      %742 = vmatpush1.msra.mxu0 0.0
      %743 = vmatprep.subr.mxu0 0.0
      %744 = vmatpush1.msra.mxu0 0.0
      %745 = vmatprep.subr.mxu0 0.0
      %746 = vmatpush1.msra.mxu0 0.0
      %747 = vmatprep.subr.mxu0 0.0
      %748 = vmatpush1.msra.mxu0 0.0
      %749 = vmatprep.mubr.f32.mxu0 0.0
      %750 = vmatmul.mubr.f32.gmra.mrb[0].mxu0 %v590
      %v751 = vpop.f32.mrb[0].mxu0
      %v752 = vadd.f32 %v586, %v751
      %v753 = vpop.f32.mrb[0].mxu0
      %754 = vmatprep.mubr.f32.mxu0 0.0
      %755 = vmatmul.mubr.f32.gmra.mrb[0].mxu0 %v593
      %v756 = vpop.f32.mrb[0].mxu0
      %v757 = vadd.f32 %v586, %v756
      %v758 = vpop.f32.mrb[0].mxu0
      %759 = vmatprep.mubr.f32.mxu0 0.0
      %760 = vmatmul.mubr.f32.gmra.mrb[0].mxu0 %v596
      %v761 = vpop.f32.mrb[0].mxu0
      %v762 = vadd.f32 %v586, %v761
      %v763 = vpop.f32.mrb[0].mxu0
      %764 = vmatprep.mubr.f32.mxu0 0.0
      %765 = vmatmul.mubr.f32.gmra.mrb[0].mxu0 %v599
      %v766 = vpop.f32.mrb[0].mxu0
      %v767 = vadd.f32 %v586, %v766
      %v768 = vpop.f32.mrb[0].mxu0
      %769 = vmatprep.mubr.f32.mxu0 0.0
      %770 = vmatmul.mubr.f32.gmra.mrb[0].mxu0 %v602
      %v771 = vpop.f32.mrb[0].mxu0
      %v772 = vadd.f32 %v586, %v771
      %v773 = vpop.f32.mrb[0].mxu0
      %774 = vmatprep.mubr.f32.mxu0 0.0
      %775 = vmatmul.mubr.f32.gmra.mrb[0].mxu0 %v605
      %v776 = vpop.f32.mrb[0].mxu0
      %v777 = vadd.f32 %v586, %v776
      %v778 = vpop.f32.mrb[0].mxu0
      %779 = vmatprep.mubr.f32.mxu0 0.0
      %780 = vmatmul.mubr.f32.gmra.mrb[0].mxu0 %v608
      %v781 = vpop.f32.mrb[0].mxu0
      %v782 = vadd.f32 %v586, %v781
      %v783 = vpop.f32.mrb[0].mxu0
      %784 = vmatprep.mubr.f32.mxu0 0.0
      %785 = vmatmul.mubr.f32.gmra.mrb[0].mxu0 %v611
      %v786 = vpop.f32.mrb[0].mxu0
      %v787 = vadd.f32 %v586, %v786
      %v788 = vpop.f32.mrb[0].mxu0
      %789 = vmatprep.mubr.f32.mxu0 0.0
      %790 = vmatmul.mubr.f32.gmra.mrb[0].mxu0 %v614
      %v791 = vpop.f32.mrb[0].mxu0
      %v792 = vadd.f32 %v586, %v791
      %v793 = vpop.f32.mrb[0].mxu0
      %794 = vmatprep.mubr.f32.mxu0 0.0
      %795 = vmatmul.mubr.f32.gmra.mrb[0].mxu0 %v617
      %v796 = vpop.f32.mrb[0].mxu0
      %v797 = vadd.f32 %v586, %v796
      %v798 = vpop.f32.mrb[0].mxu0
      %799 = vmatprep.mubr.f32.mxu0 0.0
      %800 = vmatmul.mubr.f32.gmra.mrb[0].mxu0 %v620
      %v801 = vpop.f32.mrb[0].mxu0
      %v802 = vadd.f32 %v586, %v801
      %v803 = vpop.f32.mrb[0].mxu0
      %804 = vmatprep.mubr.f32.mxu0 0.0
      %805 = vmatmul.mubr.f32.gmra.mrb[0].mxu0 %v623
      %v806 = vpop.f32.mrb[0].mxu0
      %v807 = vadd.f32 %v586, %v806
      %v808 = vpop.f32.mrb[0].mxu0
      %809 = vmatprep.mubr.f32.mxu0 0.0
      %810 = vmatmul.mubr.f32.gmra.mrb[0].mxu0 %v626
      %v811 = vpop.f32.mrb[0].mxu0
      %v812 = vadd.f32 %v586, %v811
      %v813 = vpop.f32.mrb[0].mxu0
      %814 = vmatprep.mubr.f32.mxu0 0.0
      %815 = vmatmul.mubr.f32.gmra.mrb[0].mxu0 %v629
      %v816 = vpop.f32.mrb[0].mxu0
      %v817 = vadd.f32 %v586, %v816
      %v818 = vpop.f32.mrb[0].mxu0
      %819 = vmatprep.mubr.f32.mxu0 0.0
      %820 = vmatmul.mubr.f32.gmra.mrb[0].mxu0 %v632
      %v821 = vpop.f32.mrb[0].mxu0
      %v822 = vadd.f32 %v586, %v821
      %v823 = vpop.f32.mrb[0].mxu0
      %824 = vmatprep.mubr.f32.mxu0 0.0
      %825 = vmatmul.mubr.f32.gmra.mrb[0].mxu0 %v635
      %v826 = vpop.f32.mrb[0].mxu0
      %v827 = vadd.f32 %v586, %v826
      %v828 = vpop.f32.mrb[0].mxu0
      %829 = vmatprep.mubr.f32.mxu0 0.0
      %830 = vmatmul.mubr.f32.gmra.mrb[0].mxu0 %v638
      %v831 = vpop.f32.mrb[0].mxu0
      %v832 = vadd.f32 %v586, %v831
      %v833 = vpop.f32.mrb[0].mxu0
      %834 = vmatprep.mubr.f32.mxu0 0.0
      %835 = vmatmul.mubr.f32.gmra.mrb[0].mxu0 %v641
      %v836 = vpop.f32.mrb[0].mxu0
      %v837 = vadd.f32 %v586, %v836
      %v838 = vpop.f32.mrb[0].mxu0
      %839 = vmatprep.mubr.f32.mxu0 0.0
      %840 = vmatmul.mubr.f32.gmra.mrb[0].mxu0 %v644
      %v841 = vpop.f32.mrb[0].mxu0
      %v842 = vadd.f32 %v586, %v841
      %v843 = vpop.f32.mrb[0].mxu0
      %844 = vmatprep.mubr.f32.mxu0 0.0
      %845 = vmatmul.mubr.f32.gmra.mrb[0].mxu0 %v647
      %v846 = vpop.f32.mrb[0].mxu0
      %v847 = vadd.f32 %v586, %v846
      %v848 = vpop.f32.mrb[0].mxu0
      %849 = vmatprep.mubr.f32.mxu0 0.0
      %850 = vmatmul.mubr.f32.gmra.mrb[0].mxu0 %v650
      %v851 = vpop.f32.mrb[0].mxu0
      %v852 = vadd.f32 %v586, %v851
      %v853 = vpop.f32.mrb[0].mxu0
      %854 = vmatprep.mubr.f32.mxu0 0.0
      %855 = vmatmul.mubr.f32.gmra.mrb[0].mxu0 %v653
      %v856 = vpop.f32.mrb[0].mxu0
      %v857 = vadd.f32 %v586, %v856
      %v858 = vpop.f32.mrb[0].mxu0
      %859 = vmatprep.mubr.f32.mxu0 0.0
      %860 = vmatmul.mubr.f32.gmra.mrb[0].mxu0 %v656
      %v861 = vpop.f32.mrb[0].mxu0
      %v862 = vadd.f32 %v586, %v861
      %v863 = vpop.f32.mrb[0].mxu0
      %864 = vmatprep.mubr.f32.mxu0 0.0
      %865 = vmatmul.mubr.f32.gmra.mrb[0].mxu0 %v659
      %v866 = vpop.f32.mrb[0].mxu0
      %v867 = vadd.f32 %v586, %v866
      %v868 = vpop.f32.mrb[0].mxu0
      %869 = vmatprep.mubr.f32.mxu0 0.0
      %870 = vmatmul.mubr.f32.gmra.mrb[0].mxu0 %v662
      %v871 = vpop.f32.mrb[0].mxu0
      %v872 = vadd.f32 %v586, %v871
      %v873 = vpop.f32.mrb[0].mxu0
      %874 = vmatprep.mubr.f32.mxu0 0.0
      %875 = vmatmul.mubr.f32.gmra.mrb[0].mxu0 %v665
      %v876 = vpop.f32.mrb[0].mxu0
      %v877 = vadd.f32 %v586, %v876
      %v878 = vpop.f32.mrb[0].mxu0
      %879 = vmatprep.mubr.f32.mxu0 0.0
      %880 = vmatmul.mubr.f32.gmra.mrb[0].mxu0 %v668
      %v881 = vpop.f32.mrb[0].mxu0
      %v882 = vadd.f32 %v586, %v881
      %v883 = vpop.f32.mrb[0].mxu0
      %884 = vmatprep.mubr.f32.mxu0 0.0
      %885 = vmatmul.mubr.f32.gmra.mrb[0].mxu0 %v671
      %v886 = vpop.f32.mrb[0].mxu0
      %v887 = vadd.f32 %v586, %v886
      %v888 = vpop.f32.mrb[0].mxu0
      %889 = vmatprep.mubr.f32.mxu0 0.0
      %890 = vmatmul.mubr.f32.gmra.mrb[0].mxu0 %v674
      %v891 = vpop.f32.mrb[0].mxu0
      %v892 = vadd.f32 %v586, %v891
      %v893 = vpop.f32.mrb[0].mxu0
      %894 = vmatprep.mubr.f32.mxu0 0.0
      %895 = vmatmul.mubr.f32.gmra.mrb[0].mxu0 %v677
      %v896 = vpop.f32.mrb[0].mxu0
      %v897 = vadd.f32 %v586, %v896
      %v898 = vpop.f32.mrb[0].mxu0
      %899 = vmatprep.mubr.f32.mxu0 0.0
      %900 = vmatmul.mubr.f32.gmra.mrb[0].mxu0 %v680
      %v901 = vpop.f32.mrb[0].mxu0
      %v902 = vadd.f32 %v586, %v901
      %v903 = vpop.f32.mrb[0].mxu0
      %904 = vmatprep.mubr.f32.mxu0 0.0
      %905 = vmatmul.mubr.f32.gmra.mrb[0].mxu0 %v683
      %v906 = vpop.f32.mrb[0].mxu0
      %v907 = vadd.f32 %v586, %v906
      %v908 = vpop.f32.mrb[0].mxu0
      %909 = vdwg.mxu0
      %v910 = vmax.f32 %v752, 0.0
      %v911 = vmax.f32 %v757, 0.0
      %v912 = vmax.f32 %v762, 0.0
      %v913 = vmax.f32 %v767, 0.0
      %v914 = vmax.f32 %v772, 0.0
      %v915 = vmax.f32 %v777, 0.0
      %v916 = vmax.f32 %v782, 0.0
      %v917 = vmax.f32 %v787, 0.0
      %v918 = vmax.f32 %v792, 0.0
      %v919 = vmax.f32 %v797, 0.0
      %v920 = vmax.f32 %v802, 0.0
      %v921 = vmax.f32 %v807, 0.0
      %v922 = vmax.f32 %v812, 0.0
      %v923 = vmax.f32 %v817, 0.0
      %v924 = vmax.f32 %v822, 0.0
      %v925 = vmax.f32 %v827, 0.0
      %v926 = vmax.f32 %v832, 0.0
      %v927 = vmax.f32 %v837, 0.0
      %v928 = vmax.f32 %v842, 0.0
      %v929 = vmax.f32 %v847, 0.0
      %v930 = vmax.f32 %v852, 0.0
      %v931 = vmax.f32 %v857, 0.0
      %v932 = vmax.f32 %v862, 0.0
      %v933 = vmax.f32 %v867, 0.0
      %v934 = vmax.f32 %v872, 0.0
      %v935 = vmax.f32 %v877, 0.0
      %v936 = vmax.f32 %v882, 0.0
      %v937 = vmax.f32 %v887, 0.0
      %v938 = vmax.f32 %v892, 0.0
      %v939 = vmax.f32 %v897, 0.0
      %v940 = vmax.f32 %v902, 0.0
      %v941 = vmax.f32 %v907, 0.0
      %v942 = vld [vmem:[%s3] sm:$0xf]
      %v943 = vld [vmem:[%s4] sm:$0xf]
      %945 = vset.pattern.permute.xlu0 0
      %946 = vperm.xlu0 %945, %v943
      %v947 = vpop.permute.xlu0 %946
      %v950 = vsel %vm588, %v942, 0
      %v953 = vsel %vm588, %v910, 0
      %v956 = vsel %vm588, %v911, 0
      %v959 = vsel %vm588, %v912, 0
      %v962 = vsel %vm588, %v913, 0
      %v965 = vsel %vm588, %v914, 0
      %v968 = vsel %vm588, %v915, 0
      %v971 = vsel %vm588, %v916, 0
      %v974 = vsel %vm588, %v917, 0
      %v977 = vsel %vm588, %v918, 0
      %v980 = vsel %vm588, %v919, 0
      %v983 = vsel %vm588, %v920, 0
      %v986 = vsel %vm588, %v921, 0
      %v989 = vsel %vm588, %v922, 0
      %v992 = vsel %vm588, %v923, 0
      %v995 = vsel %vm588, %v924, 0
      %v998 = vsel %vm588, %v925, 0
      %v1001 = vsel %vm588, %v926, 0
      %v1004 = vsel %vm588, %v927, 0
      %v1007 = vsel %vm588, %v928, 0
      %v1010 = vsel %vm588, %v929, 0
      %v1013 = vsel %vm588, %v930, 0
      %v1016 = vsel %vm588, %v931, 0
      %v1019 = vsel %vm588, %v932, 0
      %v1022 = vsel %vm588, %v933, 0
      %v1025 = vsel %vm588, %v934, 0
      %v1028 = vsel %vm588, %v935, 0
      %v1031 = vsel %vm588, %v936, 0
      %v1034 = vsel %vm588, %v937, 0
      %v1037 = vsel %vm588, %v938, 0
      %v1040 = vsel %vm588, %v939, 0
      %v1043 = vsel %vm588, %v940, 0
      %v1046 = vsel %vm588, %v941, 0
      %1048 = vmatprep.subr.mxu0 0.0
      %1049 = vmatpush1.xpose.msra.mxu0 %v953
      %1050 = vmatprep.subr.mxu0 0.0
      %1051 = vmatpush1.xpose.msra.mxu0 %v956
      %1052 = vmatprep.subr.mxu0 0.0
      %1053 = vmatpush1.xpose.msra.mxu0 %v959
      %1054 = vmatprep.subr.mxu0 0.0
      %1055 = vmatpush1.xpose.msra.mxu0 %v962
      %1056 = vmatprep.subr.mxu0 0.0
      %1057 = vmatpush1.xpose.msra.mxu0 %v965
      %1058 = vmatprep.subr.mxu0 0.0
      %1059 = vmatpush1.xpose.msra.mxu0 %v968
      %1060 = vmatprep.subr.mxu0 0.0
      %1061 = vmatpush1.xpose.msra.mxu0 %v971
      %1062 = vmatprep.subr.mxu0 0.0
      %1063 = vmatpush1.xpose.msra.mxu0 %v974
      %1064 = vmatprep.subr.mxu0 0.0
      %1065 = vmatpush1.xpose.msra.mxu0 %v977
      %1066 = vmatprep.subr.mxu0 0.0
      %1067 = vmatpush1.xpose.msra.mxu0 %v980
      %1068 = vmatprep.subr.mxu0 0.0
      %1069 = vmatpush1.xpose.msra.mxu0 %v983
      %1070 = vmatprep.subr.mxu0 0.0
      %1071 = vmatpush1.xpose.msra.mxu0 %v986
      %1072 = vmatprep.subr.mxu0 0.0
      %1073 = vmatpush1.xpose.msra.mxu0 %v989
      %1074 = vmatprep.subr.mxu0 0.0
      %1075 = vmatpush1.xpose.msra.mxu0 %v992
      %1076 = vmatprep.subr.mxu0 0.0
      %1077 = vmatpush1.xpose.msra.mxu0 %v995
      %1078 = vmatprep.subr.mxu0 0.0
      %1079 = vmatpush1.xpose.msra.mxu0 %v998
      %1080 = vmatprep.subr.mxu0 0.0
      %1081 = vmatpush1.xpose.msra.mxu0 %v1001
      %1082 = vmatprep.subr.mxu0 0.0
      %1083 = vmatpush1.xpose.msra.mxu0 %v1004
      %1084 = vmatprep.subr.mxu0 0.0
      %1085 = vmatpush1.xpose.msra.mxu0 %v1007
      %1086 = vmatprep.subr.mxu0 0.0
      %1087 = vmatpush1.xpose.msra.mxu0 %v1010
      %1088 = vmatprep.subr.mxu0 0.0
      %1089 = vmatpush1.xpose.msra.mxu0 %v1013
      %1090 = vmatprep.subr.mxu0 0.0
      %1091 = vmatpush1.xpose.msra.mxu0 %v1016
      %1092 = vmatprep.subr.mxu0 0.0
      %1093 = vmatpush1.xpose.msra.mxu0 %v1019
      %1094 = vmatprep.subr.mxu0 0.0
      %1095 = vmatpush1.xpose.msra.mxu0 %v1022
      %1096 = vmatprep.subr.mxu0 0.0
      %1097 = vmatpush1.xpose.msra.mxu0 %v1025
      %1098 = vmatprep.subr.mxu0 0.0
      %1099 = vmatpush1.xpose.msra.mxu0 %v1028
      %1100 = vmatprep.subr.mxu0 0.0
      %1101 = vmatpush1.xpose.msra.mxu0 %v1031
      %1102 = vmatprep.subr.mxu0 0.0
      %1103 = vmatpush1.xpose.msra.mxu0 %v1034
      %1104 = vmatprep.subr.mxu0 0.0
      %1105 = vmatpush1.xpose.msra.mxu0 %v1037
      %1106 = vmatprep.subr.mxu0 0.0
      %1107 = vmatpush1.xpose.msra.mxu0 %v1040
      %1108 = vmatprep.subr.mxu0 0.0
      %1109 = vmatpush1.xpose.msra.mxu0 %v1043
      %1110 = vmatprep.subr.mxu0 0.0
      %1111 = vmatpush1.xpose.msra.mxu0 %v1046
      %1112 = vmatprep.mubr.f32.mxu0 0.0
      %1113 = vmatmul.mubr.f32.gmra.mrb[0].mxu0 %v950
      %v1114 = vpop.f32.mrb[0].mxu0
      %v1115 = vadd.f32 %v947, %v1114
      %v1116 = vpop.f32.mrb[0].mxu0
      %v1117 = vadd.f32 %v947, %v1116
      %1118 = vdwg.mxu0
      %vm1119 = vcmask 1043456
      %v1120 = vsel %vm1119, %v1115, -inf
      %v1121 = vrot.slane %v1120, 4
      %v1122 = vmax.f32 %v1120, %v1121
      %v1123 = vrot.slane %v1122, 2
      %v1124 = vmax.f32 %v1122, %v1123
      %v1125 = vrot.slane %v1124, 1
      %v1126 = vmax.f32 %v1124, %v1125
      %v1127 = vsel %vm1119, %v1117, -inf
      %v1128 = vrot.slane %v1127, 4
      %v1129 = vmax.f32 %v1127, %v1128
      %v1130 = vrot.slane %v1129, 2
      %v1131 = vmax.f32 %v1129, %v1130
      %v1132 = vrot.slane %v1131, 1
      %v1133 = vmax.f32 %v1131, %v1132
      %v1134 = vsub.f32 %v1115, %v1126
      %v1135 = vsub.f32 %v1117, %v1133
      %v1136 = vmul.f32 %v1134, 1.442695
      %v1137 = vpow.pop %v1136
      %v1138 = vmul.f32 %v1135, 1.442695
      %v1139 = vpow.pop %v1138
      %v1140 = vsel %vm1119, %v1137, 0.0
      %v1141 = vrot.slane %v1140, 4
      %v1142 = vadd.f32 %v1140, %v1141
      %v1143 = vrot.slane %v1142, 2
      %v1144 = vadd.f32 %v1142, %v1143
      %v1145 = vrot.slane %v1144, 1
      %v1146 = vadd.f32 %v1144, %v1145
      %v1147 = vsel %vm1119, %v1139, 0.0
      %v1148 = vrot.slane %v1147, 4
      %v1149 = vadd.f32 %v1147, %v1148
      %v1150 = vrot.slane %v1149, 2
      %v1151 = vadd.f32 %v1149, %v1150
      %v1152 = vrot.slane %v1151, 1
      %v1153 = vadd.f32 %v1151, %v1152
      %v1154 = vrcp.pop %v1146
      %v1155 = vrcp.pop %v1153
      %v1156 = vmul.f32 %v1137, %v1154
      %v1157 = vmul.f32 %v1139, %v1155
      %v1160 = vcombine.low %v1156, %v1157
      %1162 = vst [vmem:[%s546] sm:$0xff] %v1160
      %v1163 = vld [vmem:[%s531] sm:$0xff]
      %v1164 = vld [vmem:[%s531 + $0x8] sm:$0xff]
      %v1165 = vld [vmem:[%s531 + $0x18] sm:$0xff]
      %v1166 = vld [vmem:[%s531 + $0x20] sm:$0xff]
      %v1167 = vld [vmem:[%s531 + $0x30] sm:$0xff]
      %v1168 = vld [vmem:[%s531 + $0x38] sm:$0xff]
      %v1169 = vld [vmem:[%s531 + $0x48] sm:$0xff]
      %v1170 = vld [vmem:[%s531 + $0x50] sm:$0xff]
      %v1171 = vld [vmem:[%s531 + $0x60] sm:$0xff]
      %v1172 = vld [vmem:[%s531 + $0x68] sm:$0xff]
      %v1173 = vld [vmem:[%s531 + $0x78] sm:$0xff]
      %v1174 = vld [vmem:[%s531 + $0x80] sm:$0xff]
      %v1175 = vld [vmem:[%s531 + $0x90] sm:$0xff]
      %v1176 = vld [vmem:[%s531 + $0x98] sm:$0xff]
      %v1177 = vld [vmem:[%s531 + $0xa8] sm:$0xff]
      %v1178 = vld [vmem:[%s531 + $0xb0] sm:$0xff]
      %v1179 = vld [vmem:[%s531 + $0xc0] sm:$0xff]
      %v1180 = vld [vmem:[%s531 + $0xc8] sm:$0xff]
      %v1181 = vld [vmem:[%s531 + $0xd8] sm:$0xff]
      %v1182 = vld [vmem:[%s531 + $0xe0] sm:$0xff]
      %v1183 = vld [vmem:[%s531 + $0xf0] sm:$0xff]
      %v1184 = vld [vmem:[%s531 + $0xf8] sm:$0xff]
      %v1185 = vld [vmem:[%s531 + $0x108] sm:$0xff]
      %v1186 = vld [vmem:[%s531 + $0x110] sm:$0xff]
      %v1187 = vld [vmem:[%s531 + $0x120] sm:$0xff]
      %v1188 = vld [vmem:[%s531 + $0x128] sm:$0xff]
      %v1189 = vld [vmem:[%s531 + $0x138] sm:$0xff]
      %v1190 = vld [vmem:[%s531 + $0x140] sm:$0xff]
      %v1191 = vld [vmem:[%s531 + $0x150] sm:$0xff]
      %v1192 = vld [vmem:[%s531 + $0x158] sm:$0xff]
      %v1193 = vld [vmem:[%s531 + $0x168] sm:$0xff]
      %v1194 = vld [vmem:[%s531 + $0x170] sm:$0xff]
      %v1195 = vld [vmem:[%s5] sm:$0xff]
      %v1196 = vld [vmem:[%s531 + $0x1] sm:$0xff]
      %v1197 = vld [vmem:[%s531 + $0x9] sm:$0xff]
      %v1198 = vld [vmem:[%s531 + $0x19] sm:$0xff]
      %v1199 = vld [vmem:[%s531 + $0x21] sm:$0xff]
      %v1200 = vld [vmem:[%s531 + $0x31] sm:$0xff]
      %v1201 = vld [vmem:[%s531 + $0x39] sm:$0xff]
      %v1202 = vld [vmem:[%s531 + $0x49] sm:$0xff]
      %v1203 = vld [vmem:[%s531 + $0x51] sm:$0xff]
      %v1204 = vld [vmem:[%s531 + $0x61] sm:$0xff]
      %v1205 = vld [vmem:[%s531 + $0x69] sm:$0xff]
      %v1206 = vld [vmem:[%s531 + $0x79] sm:$0xff]
      %v1207 = vld [vmem:[%s531 + $0x81] sm:$0xff]
      %v1208 = vld [vmem:[%s531 + $0x91] sm:$0xff]
      %v1209 = vld [vmem:[%s531 + $0x99] sm:$0xff]
      %v1210 = vld [vmem:[%s531 + $0xa9] sm:$0xff]
      %v1211 = vld [vmem:[%s531 + $0xb1] sm:$0xff]
      %v1212 = vld [vmem:[%s531 + $0xc1] sm:$0xff]
      %v1213 = vld [vmem:[%s531 + $0xc9] sm:$0xff]
      %v1214 = vld [vmem:[%s531 + $0xd9] sm:$0xff]
      %v1215 = vld [vmem:[%s531 + $0xe1] sm:$0xff]
      %v1216 = vld [vmem:[%s531 + $0xf1] sm:$0xff]
      %v1217 = vld [vmem:[%s531 + $0xf9] sm:$0xff]
      %v1218 = vld [vmem:[%s531 + $0x109] sm:$0xff]
      %v1219 = vld [vmem:[%s531 + $0x111] sm:$0xff]
      %v1220 = vld [vmem:[%s531 + $0x121] sm:$0xff]
      %v1221 = vld [vmem:[%s531 + $0x129] sm:$0xff]
      %v1222 = vld [vmem:[%s531 + $0x139] sm:$0xff]
      %v1223 = vld [vmem:[%s531 + $0x141] sm:$0xff]
      %v1224 = vld [vmem:[%s531 + $0x151] sm:$0xff]
      %v1225 = vld [vmem:[%s531 + $0x159] sm:$0xff]
      %v1226 = vld [vmem:[%s531 + $0x169] sm:$0xff]
      %v1227 = vld [vmem:[%s531 + $0x171] sm:$0xff]
      %s1228 = scalar_lea.vmem %s5, 8
      %v1229 = vld [vmem:[%s1228] sm:$0xff]
      %v1231 = vsel %vm588, %v1196, 0
      %v1234 = vsel %vm588, %v1197, 0
      %v1237 = vsel %vm588, %v1198, 0
      %v1240 = vsel %vm588, %v1199, 0
      %v1243 = vsel %vm588, %v1200, 0
      %v1246 = vsel %vm588, %v1201, 0
      %v1249 = vsel %vm588, %v1202, 0
      %v1252 = vsel %vm588, %v1203, 0
      %v1255 = vsel %vm588, %v1204, 0
      %v1258 = vsel %vm588, %v1205, 0
      %v1261 = vsel %vm588, %v1206, 0
      %v1264 = vsel %vm588, %v1207, 0
      %v1267 = vsel %vm588, %v1208, 0
      %v1270 = vsel %vm588, %v1209, 0
      %v1273 = vsel %vm588, %v1210, 0
      %v1276 = vsel %vm588, %v1211, 0
      %v1279 = vsel %vm588, %v1212, 0
      %v1282 = vsel %vm588, %v1213, 0
      %v1285 = vsel %vm588, %v1214, 0
      %v1288 = vsel %vm588, %v1215, 0
      %v1291 = vsel %vm588, %v1216, 0
      %v1294 = vsel %vm588, %v1217, 0
      %v1297 = vsel %vm588, %v1218, 0
      %v1300 = vsel %vm588, %v1219, 0
      %v1303 = vsel %vm588, %v1220, 0
      %v1306 = vsel %vm588, %v1221, 0
      %v1309 = vsel %vm588, %v1222, 0
      %v1312 = vsel %vm588, %v1223, 0
      %v1315 = vsel %vm588, %v1224, 0
      %v1318 = vsel %vm588, %v1225, 0
      %v1321 = vsel %vm588, %v1226, 0
      %v1324 = vsel %vm588, %v1227, 0
      %1326 = vmatprep.subr.mxu0 0.0
      %1327 = vmatpush1.msra.mxu0 %v1229
      %1328 = vmatprep.subr.mxu0 0.0
      %1329 = vmatpush1.msra.mxu0 0.0
      %1330 = vmatprep.subr.mxu0 0.0
      %1331 = vmatpush1.msra.mxu0 0.0
      %1332 = vmatprep.subr.mxu0 0.0
      %1333 = vmatpush1.msra.mxu0 0.0
      %1334 = vmatprep.subr.mxu0 0.0
      %1335 = vmatpush1.msra.mxu0 0.0
      %1336 = vmatprep.subr.mxu0 0.0
      %1337 = vmatpush1.msra.mxu0 0.0
      %1338 = vmatprep.subr.mxu0 0.0
      %1339 = vmatpush1.msra.mxu0 0.0
      %1340 = vmatprep.subr.mxu0 0.0
      %1341 = vmatpush1.msra.mxu0 0.0
      %1342 = vmatprep.subr.mxu0 0.0
      %1343 = vmatpush1.msra.mxu0 0.0
      %1344 = vmatprep.subr.mxu0 0.0
      %1345 = vmatpush1.msra.mxu0 0.0
      %1346 = vmatprep.subr.mxu0 0.0
      %1347 = vmatpush1.msra.mxu0 0.0
      %1348 = vmatprep.subr.mxu0 0.0
      %1349 = vmatpush1.msra.mxu0 0.0
      %1350 = vmatprep.subr.mxu0 0.0
      %1351 = vmatpush1.msra.mxu0 0.0
      %1352 = vmatprep.subr.mxu0 0.0
      %1353 = vmatpush1.msra.mxu0 0.0
      %1354 = vmatprep.subr.mxu0 0.0
      %1355 = vmatpush1.msra.mxu0 0.0
      %1356 = vmatprep.subr.mxu0 0.0
      %1357 = vmatpush1.msra.mxu0 0.0
      %1358 = vmatprep.subr.mxu0 0.0
      %1359 = vmatpush1.msra.mxu0 0.0
      %1360 = vmatprep.subr.mxu0 0.0
      %1361 = vmatpush1.msra.mxu0 0.0
      %1362 = vmatprep.subr.mxu0 0.0
      %1363 = vmatpush1.msra.mxu0 0.0
      %1364 = vmatprep.subr.mxu0 0.0
      %1365 = vmatpush1.msra.mxu0 0.0
      %1366 = vmatprep.subr.mxu0 0.0
      %1367 = vmatpush1.msra.mxu0 0.0
      %1368 = vmatprep.subr.mxu0 0.0
      %1369 = vmatpush1.msra.mxu0 0.0
      %1370 = vmatprep.subr.mxu0 0.0
      %1371 = vmatpush1.msra.mxu0 0.0
      %1372 = vmatprep.subr.mxu0 0.0
      %1373 = vmatpush1.msra.mxu0 0.0
      %1374 = vmatprep.subr.mxu0 0.0
      %1375 = vmatpush1.msra.mxu0 0.0
      %1376 = vmatprep.subr.mxu0 0.0
      %1377 = vmatpush1.msra.mxu0 0.0
      %1378 = vmatprep.subr.mxu0 0.0
      %1379 = vmatpush1.msra.mxu0 0.0
      %1380 = vmatprep.subr.mxu0 0.0
      %1381 = vmatpush1.msra.mxu0 0.0
      %1382 = vmatprep.subr.mxu0 0.0
      %1383 = vmatpush1.msra.mxu0 0.0
      %1384 = vmatprep.subr.mxu0 0.0
      %1385 = vmatpush1.msra.mxu0 0.0
      %1386 = vmatprep.subr.mxu0 0.0
      %1387 = vmatpush1.msra.mxu0 0.0
      %1388 = vmatprep.subr.mxu0 0.0
      %1389 = vmatpush1.msra.mxu0 0.0
      %1390 = vmatprep.mubr.f32.mxu0 0.0
      %1391 = vmatmul.mubr.f32.gmra.mrb[0].mxu0 %v1231
      %v1392 = vpop.f32.mrb[0].mxu0
      %v1393 = vadd.f32 0.0, %v1392
      %v1394 = vpop.f32.mrb[0].mxu0
      %1395 = vmatprep.mubr.f32.mxu0 0.0
      %1396 = vmatmul.mubr.f32.gmra.mrb[0].mxu0 %v1234
      %v1397 = vpop.f32.mrb[0].mxu0
      %v1398 = vadd.f32 0.0, %v1397
      %v1399 = vpop.f32.mrb[0].mxu0
      %1400 = vmatprep.mubr.f32.mxu0 0.0
      %1401 = vmatmul.mubr.f32.gmra.mrb[0].mxu0 %v1237
      %v1402 = vpop.f32.mrb[0].mxu0
      %v1403 = vadd.f32 0.0, %v1402
      %v1404 = vpop.f32.mrb[0].mxu0
      %1405 = vmatprep.mubr.f32.mxu0 0.0
      %1406 = vmatmul.mubr.f32.gmra.mrb[0].mxu0 %v1240
      %v1407 = vpop.f32.mrb[0].mxu0
      %v1408 = vadd.f32 0.0, %v1407
      %v1409 = vpop.f32.mrb[0].mxu0
      %1410 = vmatprep.mubr.f32.mxu0 0.0
      %1411 = vmatmul.mubr.f32.gmra.mrb[0].mxu0 %v1243
      %v1412 = vpop.f32.mrb[0].mxu0
      %v1413 = vadd.f32 0.0, %v1412
      %v1414 = vpop.f32.mrb[0].mxu0
      %1415 = vmatprep.mubr.f32.mxu0 0.0
      %1416 = vmatmul.mubr.f32.gmra.mrb[0].mxu0 %v1246
      %v1417 = vpop.f32.mrb[0].mxu0
      %v1418 = vadd.f32 0.0, %v1417
      %v1419 = vpop.f32.mrb[0].mxu0
      %1420 = vmatprep.mubr.f32.mxu0 0.0
      %1421 = vmatmul.mubr.f32.gmra.mrb[0].mxu0 %v1249
      %v1422 = vpop.f32.mrb[0].mxu0
      %v1423 = vadd.f32 0.0, %v1422
      %v1424 = vpop.f32.mrb[0].mxu0
      %1425 = vmatprep.mubr.f32.mxu0 0.0
      %1426 = vmatmul.mubr.f32.gmra.mrb[0].mxu0 %v1252
      %v1427 = vpop.f32.mrb[0].mxu0
      %v1428 = vadd.f32 0.0, %v1427
      %v1429 = vpop.f32.mrb[0].mxu0
      %1430 = vmatprep.mubr.f32.mxu0 0.0
      %1431 = vmatmul.mubr.f32.gmra.mrb[0].mxu0 %v1255
      %v1432 = vpop.f32.mrb[0].mxu0
      %v1433 = vadd.f32 0.0, %v1432
      %v1434 = vpop.f32.mrb[0].mxu0
      %1435 = vmatprep.mubr.f32.mxu0 0.0
      %1436 = vmatmul.mubr.f32.gmra.mrb[0].mxu0 %v1258
      %v1437 = vpop.f32.mrb[0].mxu0
      %v1438 = vadd.f32 0.0, %v1437
      %v1439 = vpop.f32.mrb[0].mxu0
      %1440 = vmatprep.mubr.f32.mxu0 0.0
      %1441 = vmatmul.mubr.f32.gmra.mrb[0].mxu0 %v1261
      %v1442 = vpop.f32.mrb[0].mxu0
      %v1443 = vadd.f32 0.0, %v1442
      %v1444 = vpop.f32.mrb[0].mxu0
      %1445 = vmatprep.mubr.f32.mxu0 0.0
      %1446 = vmatmul.mubr.f32.gmra.mrb[0].mxu0 %v1264
      %v1447 = vpop.f32.mrb[0].mxu0
      %v1448 = vadd.f32 0.0, %v1447
      %v1449 = vpop.f32.mrb[0].mxu0
      %1450 = vmatprep.mubr.f32.mxu0 0.0
      %1451 = vmatmul.mubr.f32.gmra.mrb[0].mxu0 %v1267
      %v1452 = vpop.f32.mrb[0].mxu0
      %v1453 = vadd.f32 0.0, %v1452
      %v1454 = vpop.f32.mrb[0].mxu0
      %1455 = vmatprep.mubr.f32.mxu0 0.0
      %1456 = vmatmul.mubr.f32.gmra.mrb[0].mxu0 %v1270
      %v1457 = vpop.f32.mrb[0].mxu0
      %v1458 = vadd.f32 0.0, %v1457
      %v1459 = vpop.f32.mrb[0].mxu0
      %1460 = vmatprep.mubr.f32.mxu0 0.0
      %1461 = vmatmul.mubr.f32.gmra.mrb[0].mxu0 %v1273
      %v1462 = vpop.f32.mrb[0].mxu0
      %v1463 = vadd.f32 0.0, %v1462
      %v1464 = vpop.f32.mrb[0].mxu0
      %1465 = vmatprep.mubr.f32.mxu0 0.0
      %1466 = vmatmul.mubr.f32.gmra.mrb[0].mxu0 %v1276
      %v1467 = vpop.f32.mrb[0].mxu0
      %v1468 = vadd.f32 0.0, %v1467
      %v1469 = vpop.f32.mrb[0].mxu0
      %1470 = vmatprep.mubr.f32.mxu0 0.0
      %1471 = vmatmul.mubr.f32.gmra.mrb[0].mxu0 %v1279
      %v1472 = vpop.f32.mrb[0].mxu0
      %v1473 = vadd.f32 0.0, %v1472
      %v1474 = vpop.f32.mrb[0].mxu0
      %1475 = vmatprep.mubr.f32.mxu0 0.0
      %1476 = vmatmul.mubr.f32.gmra.mrb[0].mxu0 %v1282
      %v1477 = vpop.f32.mrb[0].mxu0
      %v1478 = vadd.f32 0.0, %v1477
      %v1479 = vpop.f32.mrb[0].mxu0
      %1480 = vmatprep.mubr.f32.mxu0 0.0
      %1481 = vmatmul.mubr.f32.gmra.mrb[0].mxu0 %v1285
      %v1482 = vpop.f32.mrb[0].mxu0
      %v1483 = vadd.f32 0.0, %v1482
      %v1484 = vpop.f32.mrb[0].mxu0
      %1485 = vmatprep.mubr.f32.mxu0 0.0
      %1486 = vmatmul.mubr.f32.gmra.mrb[0].mxu0 %v1288
      %v1487 = vpop.f32.mrb[0].mxu0
      %v1488 = vadd.f32 0.0, %v1487
      %v1489 = vpop.f32.mrb[0].mxu0
      %1490 = vmatprep.mubr.f32.mxu0 0.0
      %1491 = vmatmul.mubr.f32.gmra.mrb[0].mxu0 %v1291
      %v1492 = vpop.f32.mrb[0].mxu0
      %v1493 = vadd.f32 0.0, %v1492
      %v1494 = vpop.f32.mrb[0].mxu0
      %1495 = vmatprep.mubr.f32.mxu0 0.0
      %1496 = vmatmul.mubr.f32.gmra.mrb[0].mxu0 %v1294
      %v1497 = vpop.f32.mrb[0].mxu0
      %v1498 = vadd.f32 0.0, %v1497
      %v1499 = vpop.f32.mrb[0].mxu0
      %1500 = vmatprep.mubr.f32.mxu0 0.0
      %1501 = vmatmul.mubr.f32.gmra.mrb[0].mxu0 %v1297
      %v1502 = vpop.f32.mrb[0].mxu0
      %v1503 = vadd.f32 0.0, %v1502
      %v1504 = vpop.f32.mrb[0].mxu0
      %1505 = vmatprep.mubr.f32.mxu0 0.0
      %1506 = vmatmul.mubr.f32.gmra.mrb[0].mxu0 %v1300
      %v1507 = vpop.f32.mrb[0].mxu0
      %v1508 = vadd.f32 0.0, %v1507
      %v1509 = vpop.f32.mrb[0].mxu0
      %1510 = vmatprep.mubr.f32.mxu0 0.0
      %1511 = vmatmul.mubr.f32.gmra.mrb[0].mxu0 %v1303
      %v1512 = vpop.f32.mrb[0].mxu0
      %v1513 = vadd.f32 0.0, %v1512
      %v1514 = vpop.f32.mrb[0].mxu0
      %1515 = vmatprep.mubr.f32.mxu0 0.0
      %1516 = vmatmul.mubr.f32.gmra.mrb[0].mxu0 %v1306
      %v1517 = vpop.f32.mrb[0].mxu0
      %v1518 = vadd.f32 0.0, %v1517
      %v1519 = vpop.f32.mrb[0].mxu0
      %1520 = vmatprep.mubr.f32.mxu0 0.0
      %1521 = vmatmul.mubr.f32.gmra.mrb[0].mxu0 %v1309
      %v1522 = vpop.f32.mrb[0].mxu0
      %v1523 = vadd.f32 0.0, %v1522
      %v1524 = vpop.f32.mrb[0].mxu0
      %1525 = vmatprep.mubr.f32.mxu0 0.0
      %1526 = vmatmul.mubr.f32.gmra.mrb[0].mxu0 %v1312
      %v1527 = vpop.f32.mrb[0].mxu0
      %v1528 = vadd.f32 0.0, %v1527
      %v1529 = vpop.f32.mrb[0].mxu0
      %1530 = vmatprep.mubr.f32.mxu0 0.0
      %1531 = vmatmul.mubr.f32.gmra.mrb[0].mxu0 %v1315
      %v1532 = vpop.f32.mrb[0].mxu0
      %v1533 = vadd.f32 0.0, %v1532
      %v1534 = vpop.f32.mrb[0].mxu0
      %1535 = vmatprep.mubr.f32.mxu0 0.0
      %1536 = vmatmul.mubr.f32.gmra.mrb[0].mxu0 %v1318
      %v1537 = vpop.f32.mrb[0].mxu0
      %v1538 = vadd.f32 0.0, %v1537
      %v1539 = vpop.f32.mrb[0].mxu0
      %1540 = vmatprep.mubr.f32.mxu0 0.0
      %1541 = vmatmul.mubr.f32.gmra.mrb[0].mxu0 %v1321
      %v1542 = vpop.f32.mrb[0].mxu0
      %v1543 = vadd.f32 0.0, %v1542
      %v1544 = vpop.f32.mrb[0].mxu0
      %1545 = vmatprep.mubr.f32.mxu0 0.0
      %1546 = vmatmul.mubr.f32.gmra.mrb[0].mxu0 %v1324
      %v1547 = vpop.f32.mrb[0].mxu0
      %v1548 = vadd.f32 0.0, %v1547
      %v1549 = vpop.f32.mrb[0].mxu0
      %1550 = vdwg.mxu0
      %v1552 = vsel %vm588, %v1163, 0
      %v1555 = vsel %vm588, %v1164, 0
      %v1558 = vsel %vm588, %v1165, 0
      %v1561 = vsel %vm588, %v1166, 0
      %v1564 = vsel %vm588, %v1167, 0
      %v1567 = vsel %vm588, %v1168, 0
      %v1570 = vsel %vm588, %v1169, 0
      %v1573 = vsel %vm588, %v1170, 0
      %v1576 = vsel %vm588, %v1171, 0
      %v1579 = vsel %vm588, %v1172, 0
      %v1582 = vsel %vm588, %v1173, 0
      %v1585 = vsel %vm588, %v1174, 0
      %v1588 = vsel %vm588, %v1175, 0
      %v1591 = vsel %vm588, %v1176, 0
      %v1594 = vsel %vm588, %v1177, 0
      %v1597 = vsel %vm588, %v1178, 0
      %v1600 = vsel %vm588, %v1179, 0
      %v1603 = vsel %vm588, %v1180, 0
      %v1606 = vsel %vm588, %v1181, 0
      %v1609 = vsel %vm588, %v1182, 0
      %v1612 = vsel %vm588, %v1183, 0
      %v1615 = vsel %vm588, %v1184, 0
      %v1618 = vsel %vm588, %v1185, 0
      %v1621 = vsel %vm588, %v1186, 0
      %v1624 = vsel %vm588, %v1187, 0
      %v1627 = vsel %vm588, %v1188, 0
      %v1630 = vsel %vm588, %v1189, 0
      %v1633 = vsel %vm588, %v1190, 0
      %v1636 = vsel %vm588, %v1191, 0
      %v1639 = vsel %vm588, %v1192, 0
      %v1642 = vsel %vm588, %v1193, 0
      %v1645 = vsel %vm588, %v1194, 0
      %1647 = vmatprep.subr.mxu0 0.0
      %1648 = vmatpush1.msra.mxu0 %v1195
      %1649 = vmatprep.subr.mxu0 0.0
      %1650 = vmatpush1.msra.mxu0 0.0
      %1651 = vmatprep.subr.mxu0 0.0
      %1652 = vmatpush1.msra.mxu0 0.0
      %1653 = vmatprep.subr.mxu0 0.0
      %1654 = vmatpush1.msra.mxu0 0.0
      %1655 = vmatprep.subr.mxu0 0.0
      %1656 = vmatpush1.msra.mxu0 0.0
      %1657 = vmatprep.subr.mxu0 0.0
      %1658 = vmatpush1.msra.mxu0 0.0
      %1659 = vmatprep.subr.mxu0 0.0
      %1660 = vmatpush1.msra.mxu0 0.0
      %1661 = vmatprep.subr.mxu0 0.0
      %1662 = vmatpush1.msra.mxu0 0.0
      %1663 = vmatprep.subr.mxu0 0.0
      %1664 = vmatpush1.msra.mxu0 0.0
      %1665 = vmatprep.subr.mxu0 0.0
      %1666 = vmatpush1.msra.mxu0 0.0
      %1667 = vmatprep.subr.mxu0 0.0
      %1668 = vmatpush1.msra.mxu0 0.0
      %1669 = vmatprep.subr.mxu0 0.0
      %1670 = vmatpush1.msra.mxu0 0.0
      %1671 = vmatprep.subr.mxu0 0.0
      %1672 = vmatpush1.msra.mxu0 0.0
      %1673 = vmatprep.subr.mxu0 0.0
      %1674 = vmatpush1.msra.mxu0 0.0
      %1675 = vmatprep.subr.mxu0 0.0
      %1676 = vmatpush1.msra.mxu0 0.0
      %1677 = vmatprep.subr.mxu0 0.0
      %1678 = vmatpush1.msra.mxu0 0.0
      %1679 = vmatprep.subr.mxu0 0.0
      %1680 = vmatpush1.msra.mxu0 0.0
      %1681 = vmatprep.subr.mxu0 0.0
      %1682 = vmatpush1.msra.mxu0 0.0
      %1683 = vmatprep.subr.mxu0 0.0
      %1684 = vmatpush1.msra.mxu0 0.0
      %1685 = vmatprep.subr.mxu0 0.0
      %1686 = vmatpush1.msra.mxu0 0.0
      %1687 = vmatprep.subr.mxu0 0.0
      %1688 = vmatpush1.msra.mxu0 0.0
      %1689 = vmatprep.subr.mxu0 0.0
      %1690 = vmatpush1.msra.mxu0 0.0
      %1691 = vmatprep.subr.mxu0 0.0
      %1692 = vmatpush1.msra.mxu0 0.0
      %1693 = vmatprep.subr.mxu0 0.0
      %1694 = vmatpush1.msra.mxu0 0.0
      %1695 = vmatprep.subr.mxu0 0.0
      %1696 = vmatpush1.msra.mxu0 0.0
      %1697 = vmatprep.subr.mxu0 0.0
      %1698 = vmatpush1.msra.mxu0 0.0
      %1699 = vmatprep.subr.mxu0 0.0
      %1700 = vmatpush1.msra.mxu0 0.0
      %1701 = vmatprep.subr.mxu0 0.0
      %1702 = vmatpush1.msra.mxu0 0.0
      %1703 = vmatprep.subr.mxu0 0.0
      %1704 = vmatpush1.msra.mxu0 0.0
      %1705 = vmatprep.subr.mxu0 0.0
      %1706 = vmatpush1.msra.mxu0 0.0
      %1707 = vmatprep.subr.mxu0 0.0
      %1708 = vmatpush1.msra.mxu0 0.0
      %1709 = vmatprep.subr.mxu0 0.0
      %1710 = vmatpush1.msra.mxu0 0.0
      %1711 = vmatprep.mubr.f32.mxu0 0.0
      %1712 = vmatmul.mubr.f32.gmra.mrb[0].mxu0 %v1552
      %v1713 = vpop.f32.mrb[0].mxu0
      %v1714 = vadd.f32 %v1393, %v1713
      %v1715 = vpop.f32.mrb[0].mxu0
      %1716 = vmatprep.mubr.f32.mxu0 0.0
      %1717 = vmatmul.mubr.f32.gmra.mrb[0].mxu0 %v1555
      %v1718 = vpop.f32.mrb[0].mxu0
      %v1719 = vadd.f32 %v1398, %v1718
      %v1720 = vpop.f32.mrb[0].mxu0
      %1721 = vmatprep.mubr.f32.mxu0 0.0
      %1722 = vmatmul.mubr.f32.gmra.mrb[0].mxu0 %v1558
      %v1723 = vpop.f32.mrb[0].mxu0
      %v1724 = vadd.f32 %v1403, %v1723
      %v1725 = vpop.f32.mrb[0].mxu0
      %1726 = vmatprep.mubr.f32.mxu0 0.0
      %1727 = vmatmul.mubr.f32.gmra.mrb[0].mxu0 %v1561
      %v1728 = vpop.f32.mrb[0].mxu0
      %v1729 = vadd.f32 %v1408, %v1728
      %v1730 = vpop.f32.mrb[0].mxu0
      %1731 = vmatprep.mubr.f32.mxu0 0.0
      %1732 = vmatmul.mubr.f32.gmra.mrb[0].mxu0 %v1564
      %v1733 = vpop.f32.mrb[0].mxu0
      %v1734 = vadd.f32 %v1413, %v1733
      %v1735 = vpop.f32.mrb[0].mxu0
      %1736 = vmatprep.mubr.f32.mxu0 0.0
      %1737 = vmatmul.mubr.f32.gmra.mrb[0].mxu0 %v1567
      %v1738 = vpop.f32.mrb[0].mxu0
      %v1739 = vadd.f32 %v1418, %v1738
      %v1740 = vpop.f32.mrb[0].mxu0
      %1741 = vmatprep.mubr.f32.mxu0 0.0
      %1742 = vmatmul.mubr.f32.gmra.mrb[0].mxu0 %v1570
      %v1743 = vpop.f32.mrb[0].mxu0
      %v1744 = vadd.f32 %v1423, %v1743
      %v1745 = vpop.f32.mrb[0].mxu0
      %1746 = vmatprep.mubr.f32.mxu0 0.0
      %1747 = vmatmul.mubr.f32.gmra.mrb[0].mxu0 %v1573
      %v1748 = vpop.f32.mrb[0].mxu0
      %v1749 = vadd.f32 %v1428, %v1748
      %v1750 = vpop.f32.mrb[0].mxu0
      %1751 = vmatprep.mubr.f32.mxu0 0.0
      %1752 = vmatmul.mubr.f32.gmra.mrb[0].mxu0 %v1576
      %v1753 = vpop.f32.mrb[0].mxu0
      %v1754 = vadd.f32 %v1433, %v1753
      %v1755 = vpop.f32.mrb[0].mxu0
      %1756 = vmatprep.mubr.f32.mxu0 0.0
      %1757 = vmatmul.mubr.f32.gmra.mrb[0].mxu0 %v1579
      %v1758 = vpop.f32.mrb[0].mxu0
      %v1759 = vadd.f32 %v1438, %v1758
      %v1760 = vpop.f32.mrb[0].mxu0
      %1761 = vmatprep.mubr.f32.mxu0 0.0
      %1762 = vmatmul.mubr.f32.gmra.mrb[0].mxu0 %v1582
      %v1763 = vpop.f32.mrb[0].mxu0
      %v1764 = vadd.f32 %v1443, %v1763
      %v1765 = vpop.f32.mrb[0].mxu0
      %1766 = vmatprep.mubr.f32.mxu0 0.0
      %1767 = vmatmul.mubr.f32.gmra.mrb[0].mxu0 %v1585
      %v1768 = vpop.f32.mrb[0].mxu0
      %v1769 = vadd.f32 %v1448, %v1768
      %v1770 = vpop.f32.mrb[0].mxu0
      %1771 = vmatprep.mubr.f32.mxu0 0.0
      %1772 = vmatmul.mubr.f32.gmra.mrb[0].mxu0 %v1588
      %v1773 = vpop.f32.mrb[0].mxu0
      %v1774 = vadd.f32 %v1453, %v1773
      %v1775 = vpop.f32.mrb[0].mxu0
      %1776 = vmatprep.mubr.f32.mxu0 0.0
      %1777 = vmatmul.mubr.f32.gmra.mrb[0].mxu0 %v1591
      %v1778 = vpop.f32.mrb[0].mxu0
      %v1779 = vadd.f32 %v1458, %v1778
      %v1780 = vpop.f32.mrb[0].mxu0
      %1781 = vmatprep.mubr.f32.mxu0 0.0
      %1782 = vmatmul.mubr.f32.gmra.mrb[0].mxu0 %v1594
      %v1783 = vpop.f32.mrb[0].mxu0
      %v1784 = vadd.f32 %v1463, %v1783
      %v1785 = vpop.f32.mrb[0].mxu0
      %1786 = vmatprep.mubr.f32.mxu0 0.0
      %1787 = vmatmul.mubr.f32.gmra.mrb[0].mxu0 %v1597
      %v1788 = vpop.f32.mrb[0].mxu0
      %v1789 = vadd.f32 %v1468, %v1788
      %v1790 = vpop.f32.mrb[0].mxu0
      %1791 = vmatprep.mubr.f32.mxu0 0.0
      %1792 = vmatmul.mubr.f32.gmra.mrb[0].mxu0 %v1600
      %v1793 = vpop.f32.mrb[0].mxu0
      %v1794 = vadd.f32 %v1473, %v1793
      %v1795 = vpop.f32.mrb[0].mxu0
      %1796 = vmatprep.mubr.f32.mxu0 0.0
      %1797 = vmatmul.mubr.f32.gmra.mrb[0].mxu0 %v1603
      %v1798 = vpop.f32.mrb[0].mxu0
      %v1799 = vadd.f32 %v1478, %v1798
      %v1800 = vpop.f32.mrb[0].mxu0
      %1801 = vmatprep.mubr.f32.mxu0 0.0
      %1802 = vmatmul.mubr.f32.gmra.mrb[0].mxu0 %v1606
      %v1803 = vpop.f32.mrb[0].mxu0
      %v1804 = vadd.f32 %v1483, %v1803
      %v1805 = vpop.f32.mrb[0].mxu0
      %1806 = vmatprep.mubr.f32.mxu0 0.0
      %1807 = vmatmul.mubr.f32.gmra.mrb[0].mxu0 %v1609
      %v1808 = vpop.f32.mrb[0].mxu0
      %v1809 = vadd.f32 %v1488, %v1808
      %v1810 = vpop.f32.mrb[0].mxu0
      %1811 = vmatprep.mubr.f32.mxu0 0.0
      %1812 = vmatmul.mubr.f32.gmra.mrb[0].mxu0 %v1612
      %v1813 = vpop.f32.mrb[0].mxu0
      %v1814 = vadd.f32 %v1493, %v1813
      %v1815 = vpop.f32.mrb[0].mxu0
      %1816 = vmatprep.mubr.f32.mxu0 0.0
      %1817 = vmatmul.mubr.f32.gmra.mrb[0].mxu0 %v1615
      %v1818 = vpop.f32.mrb[0].mxu0
      %v1819 = vadd.f32 %v1498, %v1818
      %v1820 = vpop.f32.mrb[0].mxu0
      %1821 = vmatprep.mubr.f32.mxu0 0.0
      %1822 = vmatmul.mubr.f32.gmra.mrb[0].mxu0 %v1618
      %v1823 = vpop.f32.mrb[0].mxu0
      %v1824 = vadd.f32 %v1503, %v1823
      %v1825 = vpop.f32.mrb[0].mxu0
      %1826 = vmatprep.mubr.f32.mxu0 0.0
      %1827 = vmatmul.mubr.f32.gmra.mrb[0].mxu0 %v1621
      %v1828 = vpop.f32.mrb[0].mxu0
      %v1829 = vadd.f32 %v1508, %v1828
      %v1830 = vpop.f32.mrb[0].mxu0
      %1831 = vmatprep.mubr.f32.mxu0 0.0
      %1832 = vmatmul.mubr.f32.gmra.mrb[0].mxu0 %v1624
      %v1833 = vpop.f32.mrb[0].mxu0
      %v1834 = vadd.f32 %v1513, %v1833
      %v1835 = vpop.f32.mrb[0].mxu0
      %1836 = vmatprep.mubr.f32.mxu0 0.0
      %1837 = vmatmul.mubr.f32.gmra.mrb[0].mxu0 %v1627
      %v1838 = vpop.f32.mrb[0].mxu0
      %v1839 = vadd.f32 %v1518, %v1838
      %v1840 = vpop.f32.mrb[0].mxu0
      %1841 = vmatprep.mubr.f32.mxu0 0.0
      %1842 = vmatmul.mubr.f32.gmra.mrb[0].mxu0 %v1630
      %v1843 = vpop.f32.mrb[0].mxu0
      %v1844 = vadd.f32 %v1523, %v1843
      %v1845 = vpop.f32.mrb[0].mxu0
      %1846 = vmatprep.mubr.f32.mxu0 0.0
      %1847 = vmatmul.mubr.f32.gmra.mrb[0].mxu0 %v1633
      %v1848 = vpop.f32.mrb[0].mxu0
      %v1849 = vadd.f32 %v1528, %v1848
      %v1850 = vpop.f32.mrb[0].mxu0
      %1851 = vmatprep.mubr.f32.mxu0 0.0
      %1852 = vmatmul.mubr.f32.gmra.mrb[0].mxu0 %v1636
      %v1853 = vpop.f32.mrb[0].mxu0
      %v1854 = vadd.f32 %v1533, %v1853
      %v1855 = vpop.f32.mrb[0].mxu0
      %1856 = vmatprep.mubr.f32.mxu0 0.0
      %1857 = vmatmul.mubr.f32.gmra.mrb[0].mxu0 %v1639
      %v1858 = vpop.f32.mrb[0].mxu0
      %v1859 = vadd.f32 %v1538, %v1858
      %v1860 = vpop.f32.mrb[0].mxu0
      %1861 = vmatprep.mubr.f32.mxu0 0.0
      %1862 = vmatmul.mubr.f32.gmra.mrb[0].mxu0 %v1642
      %v1863 = vpop.f32.mrb[0].mxu0
      %v1864 = vadd.f32 %v1543, %v1863
      %v1865 = vpop.f32.mrb[0].mxu0
      %1866 = vmatprep.mubr.f32.mxu0 0.0
      %1867 = vmatmul.mubr.f32.gmra.mrb[0].mxu0 %v1645
      %v1868 = vpop.f32.mrb[0].mxu0
      %v1869 = vadd.f32 %v1548, %v1868
      %v1870 = vpop.f32.mrb[0].mxu0
      %1871 = vdwg.mxu0
      %v1872 = vld [vmem:[%s531 + $0x2] sm:$0xff]
      %v1873 = vld [vmem:[%s531 + $0xa] sm:$0xff]
      %v1874 = vld [vmem:[%s531 + $0x1a] sm:$0xff]
      %v1875 = vld [vmem:[%s531 + $0x22] sm:$0xff]
      %v1876 = vld [vmem:[%s531 + $0x32] sm:$0xff]
      %v1877 = vld [vmem:[%s531 + $0x3a] sm:$0xff]
      %v1878 = vld [vmem:[%s531 + $0x4a] sm:$0xff]
      %v1879 = vld [vmem:[%s531 + $0x52] sm:$0xff]
      %v1880 = vld [vmem:[%s531 + $0x62] sm:$0xff]
      %v1881 = vld [vmem:[%s531 + $0x6a] sm:$0xff]
      %v1882 = vld [vmem:[%s531 + $0x7a] sm:$0xff]
      %v1883 = vld [vmem:[%s531 + $0x82] sm:$0xff]
      %v1884 = vld [vmem:[%s531 + $0x92] sm:$0xff]
      %v1885 = vld [vmem:[%s531 + $0x9a] sm:$0xff]
      %v1886 = vld [vmem:[%s531 + $0xaa] sm:$0xff]
      %v1887 = vld [vmem:[%s531 + $0xb2] sm:$0xff]
      %v1888 = vld [vmem:[%s531 + $0xc2] sm:$0xff]
      %v1889 = vld [vmem:[%s531 + $0xca] sm:$0xff]
      %v1890 = vld [vmem:[%s531 + $0xda] sm:$0xff]
      %v1891 = vld [vmem:[%s531 + $0xe2] sm:$0xff]
      %v1892 = vld [vmem:[%s531 + $0xf2] sm:$0xff]
      %v1893 = vld [vmem:[%s531 + $0xfa] sm:$0xff]
      %v1894 = vld [vmem:[%s531 + $0x10a] sm:$0xff]
      %v1895 = vld [vmem:[%s531 + $0x112] sm:$0xff]
      %v1896 = vld [vmem:[%s531 + $0x122] sm:$0xff]
      %v1897 = vld [vmem:[%s531 + $0x12a] sm:$0xff]
      %v1898 = vld [vmem:[%s531 + $0x13a] sm:$0xff]
      %v1899 = vld [vmem:[%s531 + $0x142] sm:$0xff]
      %v1900 = vld [vmem:[%s531 + $0x152] sm:$0xff]
      %v1901 = vld [vmem:[%s531 + $0x15a] sm:$0xff]
      %v1902 = vld [vmem:[%s531 + $0x16a] sm:$0xff]
      %v1903 = vld [vmem:[%s531 + $0x172] sm:$0xff]
      %s1904 = scalar_lea.vmem %s5, 16
      %v1905 = vld [vmem:[%s1904] sm:$0xff]
      %v1907 = vsel %vm588, %v1872, 0
      %v1910 = vsel %vm588, %v1873, 0
      %v1913 = vsel %vm588, %v1874, 0
      %v1916 = vsel %vm588, %v1875, 0
      %v1919 = vsel %vm588, %v1876, 0
      %v1922 = vsel %vm588, %v1877, 0
      %v1925 = vsel %vm588, %v1878, 0
      %v1928 = vsel %vm588, %v1879, 0
      %v1931 = vsel %vm588, %v1880, 0
      %v1934 = vsel %vm588, %v1881, 0
      %v1937 = vsel %vm588, %v1882, 0
      %v1940 = vsel %vm588, %v1883, 0
      %v1943 = vsel %vm588, %v1884, 0
      %v1946 = vsel %vm588, %v1885, 0
      %v1949 = vsel %vm588, %v1886, 0
      %v1952 = vsel %vm588, %v1887, 0
      %v1955 = vsel %vm588, %v1888, 0
      %v1958 = vsel %vm588, %v1889, 0
      %v1961 = vsel %vm588, %v1890, 0
      %v1964 = vsel %vm588, %v1891, 0
      %v1967 = vsel %vm588, %v1892, 0
      %v1970 = vsel %vm588, %v1893, 0
      %v1973 = vsel %vm588, %v1894, 0
      %v1976 = vsel %vm588, %v1895, 0
      %v1979 = vsel %vm588, %v1896, 0
      %v1982 = vsel %vm588, %v1897, 0
      %v1985 = vsel %vm588, %v1898, 0
      %v1988 = vsel %vm588, %v1899, 0
      %v1991 = vsel %vm588, %v1900, 0
      %v1994 = vsel %vm588, %v1901, 0
      %v1997 = vsel %vm588, %v1902, 0
      %v2000 = vsel %vm588, %v1903, 0
      %2002 = vmatprep.subr.mxu0 0.0
      %2003 = vmatpush1.msra.mxu0 %v1905
      %2004 = vmatprep.subr.mxu0 0.0
      %2005 = vmatpush1.msra.mxu0 0.0
      %2006 = vmatprep.subr.mxu0 0.0
      %2007 = vmatpush1.msra.mxu0 0.0
      %2008 = vmatprep.subr.mxu0 0.0
      %2009 = vmatpush1.msra.mxu0 0.0
      %2010 = vmatprep.subr.mxu0 0.0
      %2011 = vmatpush1.msra.mxu0 0.0
      %2012 = vmatprep.subr.mxu0 0.0
      %2013 = vmatpush1.msra.mxu0 0.0
      %2014 = vmatprep.subr.mxu0 0.0
      %2015 = vmatpush1.msra.mxu0 0.0
      %2016 = vmatprep.subr.mxu0 0.0
      %2017 = vmatpush1.msra.mxu0 0.0
      %2018 = vmatprep.subr.mxu0 0.0
      %2019 = vmatpush1.msra.mxu0 0.0
      %2020 = vmatprep.subr.mxu0 0.0
      %2021 = vmatpush1.msra.mxu0 0.0
      %2022 = vmatprep.subr.mxu0 0.0
      %2023 = vmatpush1.msra.mxu0 0.0
      %2024 = vmatprep.subr.mxu0 0.0
      %2025 = vmatpush1.msra.mxu0 0.0
      %2026 = vmatprep.subr.mxu0 0.0
      %2027 = vmatpush1.msra.mxu0 0.0
      %2028 = vmatprep.subr.mxu0 0.0
      %2029 = vmatpush1.msra.mxu0 0.0
      %2030 = vmatprep.subr.mxu0 0.0
      %2031 = vmatpush1.msra.mxu0 0.0
      %2032 = vmatprep.subr.mxu0 0.0
      %2033 = vmatpush1.msra.mxu0 0.0
      %2034 = vmatprep.subr.mxu0 0.0
      %2035 = vmatpush1.msra.mxu0 0.0
      %2036 = vmatprep.subr.mxu0 0.0
      %2037 = vmatpush1.msra.mxu0 0.0
      %2038 = vmatprep.subr.mxu0 0.0
      %2039 = vmatpush1.msra.mxu0 0.0
      %2040 = vmatprep.subr.mxu0 0.0
      %2041 = vmatpush1.msra.mxu0 0.0
      %2042 = vmatprep.subr.mxu0 0.0
      %2043 = vmatpush1.msra.mxu0 0.0
      %2044 = vmatprep.subr.mxu0 0.0
      %2045 = vmatpush1.msra.mxu0 0.0
      %2046 = vmatprep.subr.mxu0 0.0
      %2047 = vmatpush1.msra.mxu0 0.0
      %2048 = vmatprep.subr.mxu0 0.0
      %2049 = vmatpush1.msra.mxu0 0.0
      %2050 = vmatprep.subr.mxu0 0.0
      %2051 = vmatpush1.msra.mxu0 0.0
      %2052 = vmatprep.subr.mxu0 0.0
      %2053 = vmatpush1.msra.mxu0 0.0
      %2054 = vmatprep.subr.mxu0 0.0
      %2055 = vmatpush1.msra.mxu0 0.0
      %2056 = vmatprep.subr.mxu0 0.0
      %2057 = vmatpush1.msra.mxu0 0.0
      %2058 = vmatprep.subr.mxu0 0.0
      %2059 = vmatpush1.msra.mxu0 0.0
      %2060 = vmatprep.subr.mxu0 0.0
      %2061 = vmatpush1.msra.mxu0 0.0
      %2062 = vmatprep.subr.mxu0 0.0
      %2063 = vmatpush1.msra.mxu0 0.0
      %2064 = vmatprep.subr.mxu0 0.0
      %2065 = vmatpush1.msra.mxu0 0.0
      %2066 = vmatprep.mubr.f32.mxu0 0.0
      %2067 = vmatmul.mubr.f32.gmra.mrb[0].mxu0 %v1907
      %v2068 = vpop.f32.mrb[0].mxu0
      %v2069 = vadd.f32 0.0, %v2068
      %v2070 = vpop.f32.mrb[0].mxu0
      %2071 = vmatprep.mubr.f32.mxu0 0.0
      %2072 = vmatmul.mubr.f32.gmra.mrb[0].mxu0 %v1910
      %v2073 = vpop.f32.mrb[0].mxu0
      %v2074 = vadd.f32 0.0, %v2073
      %v2075 = vpop.f32.mrb[0].mxu0
      %2076 = vmatprep.mubr.f32.mxu0 0.0
      %2077 = vmatmul.mubr.f32.gmra.mrb[0].mxu0 %v1913
      %v2078 = vpop.f32.mrb[0].mxu0
      %v2079 = vadd.f32 0.0, %v2078
      %v2080 = vpop.f32.mrb[0].mxu0
      %2081 = vmatprep.mubr.f32.mxu0 0.0
      %2082 = vmatmul.mubr.f32.gmra.mrb[0].mxu0 %v1916
      %v2083 = vpop.f32.mrb[0].mxu0
      %v2084 = vadd.f32 0.0, %v2083
      %v2085 = vpop.f32.mrb[0].mxu0
      %2086 = vmatprep.mubr.f32.mxu0 0.0
      %2087 = vmatmul.mubr.f32.gmra.mrb[0].mxu0 %v1919
      %v2088 = vpop.f32.mrb[0].mxu0
      %v2089 = vadd.f32 0.0, %v2088
      %v2090 = vpop.f32.mrb[0].mxu0
      %2091 = vmatprep.mubr.f32.mxu0 0.0
      %2092 = vmatmul.mubr.f32.gmra.mrb[0].mxu0 %v1922
      %v2093 = vpop.f32.mrb[0].mxu0
      %v2094 = vadd.f32 0.0, %v2093
      %v2095 = vpop.f32.mrb[0].mxu0
      %2096 = vmatprep.mubr.f32.mxu0 0.0
      %2097 = vmatmul.mubr.f32.gmra.mrb[0].mxu0 %v1925
      %v2098 = vpop.f32.mrb[0].mxu0
      %v2099 = vadd.f32 0.0, %v2098
      %v2100 = vpop.f32.mrb[0].mxu0
      %2101 = vmatprep.mubr.f32.mxu0 0.0
      %2102 = vmatmul.mubr.f32.gmra.mrb[0].mxu0 %v1928
      %v2103 = vpop.f32.mrb[0].mxu0
      %v2104 = vadd.f32 0.0, %v2103
      %v2105 = vpop.f32.mrb[0].mxu0
      %2106 = vmatprep.mubr.f32.mxu0 0.0
      %2107 = vmatmul.mubr.f32.gmra.mrb[0].mxu0 %v1931
      %v2108 = vpop.f32.mrb[0].mxu0
      %v2109 = vadd.f32 0.0, %v2108
      %v2110 = vpop.f32.mrb[0].mxu0
      %2111 = vmatprep.mubr.f32.mxu0 0.0
      %2112 = vmatmul.mubr.f32.gmra.mrb[0].mxu0 %v1934
      %v2113 = vpop.f32.mrb[0].mxu0
      %v2114 = vadd.f32 0.0, %v2113
      %v2115 = vpop.f32.mrb[0].mxu0
      %2116 = vmatprep.mubr.f32.mxu0 0.0
      %2117 = vmatmul.mubr.f32.gmra.mrb[0].mxu0 %v1937
      %v2118 = vpop.f32.mrb[0].mxu0
      %v2119 = vadd.f32 0.0, %v2118
      %v2120 = vpop.f32.mrb[0].mxu0
      %2121 = vmatprep.mubr.f32.mxu0 0.0
      %2122 = vmatmul.mubr.f32.gmra.mrb[0].mxu0 %v1940
      %v2123 = vpop.f32.mrb[0].mxu0
      %v2124 = vadd.f32 0.0, %v2123
      %v2125 = vpop.f32.mrb[0].mxu0
      %2126 = vmatprep.mubr.f32.mxu0 0.0
      %2127 = vmatmul.mubr.f32.gmra.mrb[0].mxu0 %v1943
      %v2128 = vpop.f32.mrb[0].mxu0
      %v2129 = vadd.f32 0.0, %v2128
      %v2130 = vpop.f32.mrb[0].mxu0
      %2131 = vmatprep.mubr.f32.mxu0 0.0
      %2132 = vmatmul.mubr.f32.gmra.mrb[0].mxu0 %v1946
      %v2133 = vpop.f32.mrb[0].mxu0
      %v2134 = vadd.f32 0.0, %v2133
      %v2135 = vpop.f32.mrb[0].mxu0
      %2136 = vmatprep.mubr.f32.mxu0 0.0
      %2137 = vmatmul.mubr.f32.gmra.mrb[0].mxu0 %v1949
      %v2138 = vpop.f32.mrb[0].mxu0
      %v2139 = vadd.f32 0.0, %v2138
      %v2140 = vpop.f32.mrb[0].mxu0
      %2141 = vmatprep.mubr.f32.mxu0 0.0
      %2142 = vmatmul.mubr.f32.gmra.mrb[0].mxu0 %v1952
      %v2143 = vpop.f32.mrb[0].mxu0
      %v2144 = vadd.f32 0.0, %v2143
      %v2145 = vpop.f32.mrb[0].mxu0
      %2146 = vmatprep.mubr.f32.mxu0 0.0
      %2147 = vmatmul.mubr.f32.gmra.mrb[0].mxu0 %v1955
      %v2148 = vpop.f32.mrb[0].mxu0
      %v2149 = vadd.f32 0.0, %v2148
      %v2150 = vpop.f32.mrb[0].mxu0
      %2151 = vmatprep.mubr.f32.mxu0 0.0
      %2152 = vmatmul.mubr.f32.gmra.mrb[0].mxu0 %v1958
      %v2153 = vpop.f32.mrb[0].mxu0
      %v2154 = vadd.f32 0.0, %v2153
      %v2155 = vpop.f32.mrb[0].mxu0
      %2156 = vmatprep.mubr.f32.mxu0 0.0
      %2157 = vmatmul.mubr.f32.gmra.mrb[0].mxu0 %v1961
      %v2158 = vpop.f32.mrb[0].mxu0
      %v2159 = vadd.f32 0.0, %v2158
      %v2160 = vpop.f32.mrb[0].mxu0
      %2161 = vmatprep.mubr.f32.mxu0 0.0
      %2162 = vmatmul.mubr.f32.gmra.mrb[0].mxu0 %v1964
      %v2163 = vpop.f32.mrb[0].mxu0
      %v2164 = vadd.f32 0.0, %v2163
      %v2165 = vpop.f32.mrb[0].mxu0
      %2166 = vmatprep.mubr.f32.mxu0 0.0
      %2167 = vmatmul.mubr.f32.gmra.mrb[0].mxu0 %v1967
      %v2168 = vpop.f32.mrb[0].mxu0
      %v2169 = vadd.f32 0.0, %v2168
      %v2170 = vpop.f32.mrb[0].mxu0
      %2171 = vmatprep.mubr.f32.mxu0 0.0
      %2172 = vmatmul.mubr.f32.gmra.mrb[0].mxu0 %v1970
      %v2173 = vpop.f32.mrb[0].mxu0
      %v2174 = vadd.f32 0.0, %v2173
      %v2175 = vpop.f32.mrb[0].mxu0
      %2176 = vmatprep.mubr.f32.mxu0 0.0
      %2177 = vmatmul.mubr.f32.gmra.mrb[0].mxu0 %v1973
      %v2178 = vpop.f32.mrb[0].mxu0
      %v2179 = vadd.f32 0.0, %v2178
      %v2180 = vpop.f32.mrb[0].mxu0
      %2181 = vmatprep.mubr.f32.mxu0 0.0
      %2182 = vmatmul.mubr.f32.gmra.mrb[0].mxu0 %v1976
      %v2183 = vpop.f32.mrb[0].mxu0
      %v2184 = vadd.f32 0.0, %v2183
      %v2185 = vpop.f32.mrb[0].mxu0
      %2186 = vmatprep.mubr.f32.mxu0 0.0
      %2187 = vmatmul.mubr.f32.gmra.mrb[0].mxu0 %v1979
      %v2188 = vpop.f32.mrb[0].mxu0
      %v2189 = vadd.f32 0.0, %v2188
      %v2190 = vpop.f32.mrb[0].mxu0
      %2191 = vmatprep.mubr.f32.mxu0 0.0
      %2192 = vmatmul.mubr.f32.gmra.mrb[0].mxu0 %v1982
      %v2193 = vpop.f32.mrb[0].mxu0
      %v2194 = vadd.f32 0.0, %v2193
      %v2195 = vpop.f32.mrb[0].mxu0
      %2196 = vmatprep.mubr.f32.mxu0 0.0
      %2197 = vmatmul.mubr.f32.gmra.mrb[0].mxu0 %v1985
      %v2198 = vpop.f32.mrb[0].mxu0
      %v2199 = vadd.f32 0.0, %v2198
      %v2200 = vpop.f32.mrb[0].mxu0
      %2201 = vmatprep.mubr.f32.mxu0 0.0
      %2202 = vmatmul.mubr.f32.gmra.mrb[0].mxu0 %v1988
      %v2203 = vpop.f32.mrb[0].mxu0
      %v2204 = vadd.f32 0.0, %v2203
      %v2205 = vpop.f32.mrb[0].mxu0
      %2206 = vmatprep.mubr.f32.mxu0 0.0
      %2207 = vmatmul.mubr.f32.gmra.mrb[0].mxu0 %v1991
      %v2208 = vpop.f32.mrb[0].mxu0
      %v2209 = vadd.f32 0.0, %v2208
      %v2210 = vpop.f32.mrb[0].mxu0
      %2211 = vmatprep.mubr.f32.mxu0 0.0
      %2212 = vmatmul.mubr.f32.gmra.mrb[0].mxu0 %v1994
      %v2213 = vpop.f32.mrb[0].mxu0
      %v2214 = vadd.f32 0.0, %v2213
      %v2215 = vpop.f32.mrb[0].mxu0
      %2216 = vmatprep.mubr.f32.mxu0 0.0
      %2217 = vmatmul.mubr.f32.gmra.mrb[0].mxu0 %v1997
      %v2218 = vpop.f32.mrb[0].mxu0
      %v2219 = vadd.f32 0.0, %v2218
      %v2220 = vpop.f32.mrb[0].mxu0
      %2221 = vmatprep.mubr.f32.mxu0 0.0
      %2222 = vmatmul.mubr.f32.gmra.mrb[0].mxu0 %v2000
      %v2223 = vpop.f32.mrb[0].mxu0
      %v2224 = vadd.f32 0.0, %v2223
      %v2225 = vpop.f32.mrb[0].mxu0
      %2226 = vdwg.mxu0
      %v2227 = vadd.f32 %v1714, %v2069
      %v2228 = vadd.f32 %v1719, %v2074
      %v2229 = vadd.f32 %v1724, %v2079
      %v2230 = vadd.f32 %v1729, %v2084
      %v2231 = vadd.f32 %v1734, %v2089
      %v2232 = vadd.f32 %v1739, %v2094
      %v2233 = vadd.f32 %v1744, %v2099
      %v2234 = vadd.f32 %v1749, %v2104
      %v2235 = vadd.f32 %v1754, %v2109
      %v2236 = vadd.f32 %v1759, %v2114
      %v2237 = vadd.f32 %v1764, %v2119
      %v2238 = vadd.f32 %v1769, %v2124
      %v2239 = vadd.f32 %v1774, %v2129
      %v2240 = vadd.f32 %v1779, %v2134
      %v2241 = vadd.f32 %v1784, %v2139
      %v2242 = vadd.f32 %v1789, %v2144
      %v2243 = vadd.f32 %v1794, %v2149
      %v2244 = vadd.f32 %v1799, %v2154
      %v2245 = vadd.f32 %v1804, %v2159
      %v2246 = vadd.f32 %v1809, %v2164
      %v2247 = vadd.f32 %v1814, %v2169
      %v2248 = vadd.f32 %v1819, %v2174
      %v2249 = vadd.f32 %v1824, %v2179
      %v2250 = vadd.f32 %v1829, %v2184
      %v2251 = vadd.f32 %v1834, %v2189
      %v2252 = vadd.f32 %v1839, %v2194
      %v2253 = vadd.f32 %v1844, %v2199
      %v2254 = vadd.f32 %v1849, %v2204
      %v2255 = vadd.f32 %v1854, %v2209
      %v2256 = vadd.f32 %v1859, %v2214
      %v2257 = vadd.f32 %v1864, %v2219
      %v2258 = vadd.f32 %v1869, %v2224
      %v2259 = vld [vmem:[%s547] sm:$0xff]
      %v2260 = vld [vmem:[%s547 + $0x8] sm:$0xff]
      %v2261 = vld [vmem:[%s547 + $0x18] sm:$0xff]
      %v2262 = vld [vmem:[%s547 + $0x20] sm:$0xff]
      %v2263 = vld [vmem:[%s547 + $0x30] sm:$0xff]
      %v2264 = vld [vmem:[%s547 + $0x38] sm:$0xff]
      %v2265 = vld [vmem:[%s547 + $0x48] sm:$0xff]
      %v2266 = vld [vmem:[%s547 + $0x50] sm:$0xff]
      %v2267 = vld [vmem:[%s547 + $0x60] sm:$0xff]
      %v2268 = vld [vmem:[%s547 + $0x68] sm:$0xff]
      %v2269 = vld [vmem:[%s547 + $0x78] sm:$0xff]
      %v2270 = vld [vmem:[%s547 + $0x80] sm:$0xff]
      %v2271 = vld [vmem:[%s547 + $0x90] sm:$0xff]
      %v2272 = vld [vmem:[%s547 + $0x98] sm:$0xff]
      %v2273 = vld [vmem:[%s547 + $0xa8] sm:$0xff]
      %v2274 = vld [vmem:[%s547 + $0xb0] sm:$0xff]
      %v2275 = vld [vmem:[%s547 + $0xc0] sm:$0xff]
      %v2276 = vld [vmem:[%s547 + $0xc8] sm:$0xff]
      %v2277 = vld [vmem:[%s547 + $0xd8] sm:$0xff]
      %v2278 = vld [vmem:[%s547 + $0xe0] sm:$0xff]
      %v2279 = vld [vmem:[%s547 + $0xf0] sm:$0xff]
      %v2280 = vld [vmem:[%s547 + $0xf8] sm:$0xff]
      %v2281 = vld [vmem:[%s547 + $0x108] sm:$0xff]
      %v2282 = vld [vmem:[%s547 + $0x110] sm:$0xff]
      %v2283 = vld [vmem:[%s547 + $0x120] sm:$0xff]
      %v2284 = vld [vmem:[%s547 + $0x128] sm:$0xff]
      %v2285 = vld [vmem:[%s547 + $0x138] sm:$0xff]
      %v2286 = vld [vmem:[%s547 + $0x140] sm:$0xff]
      %v2287 = vld [vmem:[%s547 + $0x150] sm:$0xff]
      %v2288 = vld [vmem:[%s547 + $0x158] sm:$0xff]
      %v2289 = vld [vmem:[%s547 + $0x168] sm:$0xff]
      %v2290 = vld [vmem:[%s547 + $0x170] sm:$0xff]
      %s2291 = scalar_lea.vmem %s5, 24
      %v2292 = vld [vmem:[%s2291] sm:$0xff]
      %v2294 = vsel %vm588, %v2259, 0
      %v2297 = vsel %vm588, %v2260, 0
      %v2300 = vsel %vm588, %v2261, 0
      %v2303 = vsel %vm588, %v2262, 0
      %v2306 = vsel %vm588, %v2263, 0
      %v2309 = vsel %vm588, %v2264, 0
      %v2312 = vsel %vm588, %v2265, 0
      %v2315 = vsel %vm588, %v2266, 0
      %v2318 = vsel %vm588, %v2267, 0
      %v2321 = vsel %vm588, %v2268, 0
      %v2324 = vsel %vm588, %v2269, 0
      %v2327 = vsel %vm588, %v2270, 0
      %v2330 = vsel %vm588, %v2271, 0
      %v2333 = vsel %vm588, %v2272, 0
      %v2336 = vsel %vm588, %v2273, 0
      %v2339 = vsel %vm588, %v2274, 0
      %v2342 = vsel %vm588, %v2275, 0
      %v2345 = vsel %vm588, %v2276, 0
      %v2348 = vsel %vm588, %v2277, 0
      %v2351 = vsel %vm588, %v2278, 0
      %v2354 = vsel %vm588, %v2279, 0
      %v2357 = vsel %vm588, %v2280, 0
      %v2360 = vsel %vm588, %v2281, 0
      %v2363 = vsel %vm588, %v2282, 0
      %v2366 = vsel %vm588, %v2283, 0
      %v2369 = vsel %vm588, %v2284, 0
      %v2372 = vsel %vm588, %v2285, 0
      %v2375 = vsel %vm588, %v2286, 0
      %v2378 = vsel %vm588, %v2287, 0
      %v2381 = vsel %vm588, %v2288, 0
      %v2384 = vsel %vm588, %v2289, 0
      %v2387 = vsel %vm588, %v2290, 0
      %2389 = vmatprep.subr.mxu0 0.0
      %2390 = vmatpush1.msra.mxu0 %v2292
      %2391 = vmatprep.subr.mxu0 0.0
      %2392 = vmatpush1.msra.mxu0 0.0
      %2393 = vmatprep.subr.mxu0 0.0
      %2394 = vmatpush1.msra.mxu0 0.0
      %2395 = vmatprep.subr.mxu0 0.0
      %2396 = vmatpush1.msra.mxu0 0.0
      %2397 = vmatprep.subr.mxu0 0.0
      %2398 = vmatpush1.msra.mxu0 0.0
      %2399 = vmatprep.subr.mxu0 0.0
      %2400 = vmatpush1.msra.mxu0 0.0
      %2401 = vmatprep.subr.mxu0 0.0
      %2402 = vmatpush1.msra.mxu0 0.0
      %2403 = vmatprep.subr.mxu0 0.0
      %2404 = vmatpush1.msra.mxu0 0.0
      %2405 = vmatprep.subr.mxu0 0.0
      %2406 = vmatpush1.msra.mxu0 0.0
      %2407 = vmatprep.subr.mxu0 0.0
      %2408 = vmatpush1.msra.mxu0 0.0
      %2409 = vmatprep.subr.mxu0 0.0
      %2410 = vmatpush1.msra.mxu0 0.0
      %2411 = vmatprep.subr.mxu0 0.0
      %2412 = vmatpush1.msra.mxu0 0.0
      %2413 = vmatprep.subr.mxu0 0.0
      %2414 = vmatpush1.msra.mxu0 0.0
      %2415 = vmatprep.subr.mxu0 0.0
      %2416 = vmatpush1.msra.mxu0 0.0
      %2417 = vmatprep.subr.mxu0 0.0
      %2418 = vmatpush1.msra.mxu0 0.0
      %2419 = vmatprep.subr.mxu0 0.0
      %2420 = vmatpush1.msra.mxu0 0.0
      %2421 = vmatprep.subr.mxu0 0.0
      %2422 = vmatpush1.msra.mxu0 0.0
      %2423 = vmatprep.subr.mxu0 0.0
      %2424 = vmatpush1.msra.mxu0 0.0
      %2425 = vmatprep.subr.mxu0 0.0
      %2426 = vmatpush1.msra.mxu0 0.0
      %2427 = vmatprep.subr.mxu0 0.0
      %2428 = vmatpush1.msra.mxu0 0.0
      %2429 = vmatprep.subr.mxu0 0.0
      %2430 = vmatpush1.msra.mxu0 0.0
      %2431 = vmatprep.subr.mxu0 0.0
      %2432 = vmatpush1.msra.mxu0 0.0
      %2433 = vmatprep.subr.mxu0 0.0
      %2434 = vmatpush1.msra.mxu0 0.0
      %2435 = vmatprep.subr.mxu0 0.0
      %2436 = vmatpush1.msra.mxu0 0.0
      %2437 = vmatprep.subr.mxu0 0.0
      %2438 = vmatpush1.msra.mxu0 0.0
      %2439 = vmatprep.subr.mxu0 0.0
      %2440 = vmatpush1.msra.mxu0 0.0
      %2441 = vmatprep.subr.mxu0 0.0
      %2442 = vmatpush1.msra.mxu0 0.0
      %2443 = vmatprep.subr.mxu0 0.0
      %2444 = vmatpush1.msra.mxu0 0.0
      %2445 = vmatprep.subr.mxu0 0.0
      %2446 = vmatpush1.msra.mxu0 0.0
      %2447 = vmatprep.subr.mxu0 0.0
      %2448 = vmatpush1.msra.mxu0 0.0
      %2449 = vmatprep.subr.mxu0 0.0
      %2450 = vmatpush1.msra.mxu0 0.0
      %2451 = vmatprep.subr.mxu0 0.0
      %2452 = vmatpush1.msra.mxu0 0.0
      %2453 = vmatprep.mubr.f32.mxu0 0.0
      %2454 = vmatmul.mubr.f32.gmra.mrb[0].mxu0 %v2294
      %v2455 = vpop.f32.mrb[0].mxu0
      %v2456 = vadd.f32 0.0, %v2455
      %v2457 = vpop.f32.mrb[0].mxu0
      %2458 = vmatprep.mubr.f32.mxu0 0.0
      %2459 = vmatmul.mubr.f32.gmra.mrb[0].mxu0 %v2297
      %v2460 = vpop.f32.mrb[0].mxu0
      %v2461 = vadd.f32 0.0, %v2460
      %v2462 = vpop.f32.mrb[0].mxu0
      %2463 = vmatprep.mubr.f32.mxu0 0.0
      %2464 = vmatmul.mubr.f32.gmra.mrb[0].mxu0 %v2300
      %v2465 = vpop.f32.mrb[0].mxu0
      %v2466 = vadd.f32 0.0, %v2465
      %v2467 = vpop.f32.mrb[0].mxu0
      %2468 = vmatprep.mubr.f32.mxu0 0.0
      %2469 = vmatmul.mubr.f32.gmra.mrb[0].mxu0 %v2303
      %v2470 = vpop.f32.mrb[0].mxu0
      %v2471 = vadd.f32 0.0, %v2470
      %v2472 = vpop.f32.mrb[0].mxu0
      %2473 = vmatprep.mubr.f32.mxu0 0.0
      %2474 = vmatmul.mubr.f32.gmra.mrb[0].mxu0 %v2306
      %v2475 = vpop.f32.mrb[0].mxu0
      %v2476 = vadd.f32 0.0, %v2475
      %v2477 = vpop.f32.mrb[0].mxu0
      %2478 = vmatprep.mubr.f32.mxu0 0.0
      %2479 = vmatmul.mubr.f32.gmra.mrb[0].mxu0 %v2309
      %v2480 = vpop.f32.mrb[0].mxu0
      %v2481 = vadd.f32 0.0, %v2480
      %v2482 = vpop.f32.mrb[0].mxu0
      %2483 = vmatprep.mubr.f32.mxu0 0.0
      %2484 = vmatmul.mubr.f32.gmra.mrb[0].mxu0 %v2312
      %v2485 = vpop.f32.mrb[0].mxu0
      %v2486 = vadd.f32 0.0, %v2485
      %v2487 = vpop.f32.mrb[0].mxu0
      %2488 = vmatprep.mubr.f32.mxu0 0.0
      %2489 = vmatmul.mubr.f32.gmra.mrb[0].mxu0 %v2315
      %v2490 = vpop.f32.mrb[0].mxu0
      %v2491 = vadd.f32 0.0, %v2490
      %v2492 = vpop.f32.mrb[0].mxu0
      %2493 = vmatprep.mubr.f32.mxu0 0.0
      %2494 = vmatmul.mubr.f32.gmra.mrb[0].mxu0 %v2318
      %v2495 = vpop.f32.mrb[0].mxu0
      %v2496 = vadd.f32 0.0, %v2495
      %v2497 = vpop.f32.mrb[0].mxu0
      %2498 = vmatprep.mubr.f32.mxu0 0.0
      %2499 = vmatmul.mubr.f32.gmra.mrb[0].mxu0 %v2321
      %v2500 = vpop.f32.mrb[0].mxu0
      %v2501 = vadd.f32 0.0, %v2500
      %v2502 = vpop.f32.mrb[0].mxu0
      %2503 = vmatprep.mubr.f32.mxu0 0.0
      %2504 = vmatmul.mubr.f32.gmra.mrb[0].mxu0 %v2324
      %v2505 = vpop.f32.mrb[0].mxu0
      %v2506 = vadd.f32 0.0, %v2505
      %v2507 = vpop.f32.mrb[0].mxu0
      %2508 = vmatprep.mubr.f32.mxu0 0.0
      %2509 = vmatmul.mubr.f32.gmra.mrb[0].mxu0 %v2327
      %v2510 = vpop.f32.mrb[0].mxu0
      %v2511 = vadd.f32 0.0, %v2510
      %v2512 = vpop.f32.mrb[0].mxu0
      %2513 = vmatprep.mubr.f32.mxu0 0.0
      %2514 = vmatmul.mubr.f32.gmra.mrb[0].mxu0 %v2330
      %v2515 = vpop.f32.mrb[0].mxu0
      %v2516 = vadd.f32 0.0, %v2515
      %v2517 = vpop.f32.mrb[0].mxu0
      %2518 = vmatprep.mubr.f32.mxu0 0.0
      %2519 = vmatmul.mubr.f32.gmra.mrb[0].mxu0 %v2333
      %v2520 = vpop.f32.mrb[0].mxu0
      %v2521 = vadd.f32 0.0, %v2520
      %v2522 = vpop.f32.mrb[0].mxu0
      %2523 = vmatprep.mubr.f32.mxu0 0.0
      %2524 = vmatmul.mubr.f32.gmra.mrb[0].mxu0 %v2336
      %v2525 = vpop.f32.mrb[0].mxu0
      %v2526 = vadd.f32 0.0, %v2525
      %v2527 = vpop.f32.mrb[0].mxu0
      %2528 = vmatprep.mubr.f32.mxu0 0.0
      %2529 = vmatmul.mubr.f32.gmra.mrb[0].mxu0 %v2339
      %v2530 = vpop.f32.mrb[0].mxu0
      %v2531 = vadd.f32 0.0, %v2530
      %v2532 = vpop.f32.mrb[0].mxu0
      %2533 = vmatprep.mubr.f32.mxu0 0.0
      %2534 = vmatmul.mubr.f32.gmra.mrb[0].mxu0 %v2342
      %v2535 = vpop.f32.mrb[0].mxu0
      %v2536 = vadd.f32 0.0, %v2535
      %v2537 = vpop.f32.mrb[0].mxu0
      %2538 = vmatprep.mubr.f32.mxu0 0.0
      %2539 = vmatmul.mubr.f32.gmra.mrb[0].mxu0 %v2345
      %v2540 = vpop.f32.mrb[0].mxu0
      %v2541 = vadd.f32 0.0, %v2540
      %v2542 = vpop.f32.mrb[0].mxu0
      %2543 = vmatprep.mubr.f32.mxu0 0.0
      %2544 = vmatmul.mubr.f32.gmra.mrb[0].mxu0 %v2348
      %v2545 = vpop.f32.mrb[0].mxu0
      %v2546 = vadd.f32 0.0, %v2545
      %v2547 = vpop.f32.mrb[0].mxu0
      %2548 = vmatprep.mubr.f32.mxu0 0.0
      %2549 = vmatmul.mubr.f32.gmra.mrb[0].mxu0 %v2351
      %v2550 = vpop.f32.mrb[0].mxu0
      %v2551 = vadd.f32 0.0, %v2550
      %v2552 = vpop.f32.mrb[0].mxu0
      %2553 = vmatprep.mubr.f32.mxu0 0.0
      %2554 = vmatmul.mubr.f32.gmra.mrb[0].mxu0 %v2354
      %v2555 = vpop.f32.mrb[0].mxu0
      %v2556 = vadd.f32 0.0, %v2555
      %v2557 = vpop.f32.mrb[0].mxu0
      %2558 = vmatprep.mubr.f32.mxu0 0.0
      %2559 = vmatmul.mubr.f32.gmra.mrb[0].mxu0 %v2357
      %v2560 = vpop.f32.mrb[0].mxu0
      %v2561 = vadd.f32 0.0, %v2560
      %v2562 = vpop.f32.mrb[0].mxu0
      %2563 = vmatprep.mubr.f32.mxu0 0.0
      %2564 = vmatmul.mubr.f32.gmra.mrb[0].mxu0 %v2360
      %v2565 = vpop.f32.mrb[0].mxu0
      %v2566 = vadd.f32 0.0, %v2565
      %v2567 = vpop.f32.mrb[0].mxu0
      %2568 = vmatprep.mubr.f32.mxu0 0.0
      %2569 = vmatmul.mubr.f32.gmra.mrb[0].mxu0 %v2363
      %v2570 = vpop.f32.mrb[0].mxu0
      %v2571 = vadd.f32 0.0, %v2570
      %v2572 = vpop.f32.mrb[0].mxu0
      %2573 = vmatprep.mubr.f32.mxu0 0.0
      %2574 = vmatmul.mubr.f32.gmra.mrb[0].mxu0 %v2366
      %v2575 = vpop.f32.mrb[0].mxu0
      %v2576 = vadd.f32 0.0, %v2575
      %v2577 = vpop.f32.mrb[0].mxu0
      %2578 = vmatprep.mubr.f32.mxu0 0.0
      %2579 = vmatmul.mubr.f32.gmra.mrb[0].mxu0 %v2369
      %v2580 = vpop.f32.mrb[0].mxu0
      %v2581 = vadd.f32 0.0, %v2580
      %v2582 = vpop.f32.mrb[0].mxu0
      %2583 = vmatprep.mubr.f32.mxu0 0.0
      %2584 = vmatmul.mubr.f32.gmra.mrb[0].mxu0 %v2372
      %v2585 = vpop.f32.mrb[0].mxu0
      %v2586 = vadd.f32 0.0, %v2585
      %v2587 = vpop.f32.mrb[0].mxu0
      %2588 = vmatprep.mubr.f32.mxu0 0.0
      %2589 = vmatmul.mubr.f32.gmra.mrb[0].mxu0 %v2375
      %v2590 = vpop.f32.mrb[0].mxu0
      %v2591 = vadd.f32 0.0, %v2590
      %v2592 = vpop.f32.mrb[0].mxu0
      %2593 = vmatprep.mubr.f32.mxu0 0.0
      %2594 = vmatmul.mubr.f32.gmra.mrb[0].mxu0 %v2378
      %v2595 = vpop.f32.mrb[0].mxu0
      %v2596 = vadd.f32 0.0, %v2595
      %v2597 = vpop.f32.mrb[0].mxu0
      %2598 = vmatprep.mubr.f32.mxu0 0.0
      %2599 = vmatmul.mubr.f32.gmra.mrb[0].mxu0 %v2381
      %v2600 = vpop.f32.mrb[0].mxu0
      %v2601 = vadd.f32 0.0, %v2600
      %v2602 = vpop.f32.mrb[0].mxu0
      %2603 = vmatprep.mubr.f32.mxu0 0.0
      %2604 = vmatmul.mubr.f32.gmra.mrb[0].mxu0 %v2384
      %v2605 = vpop.f32.mrb[0].mxu0
      %v2606 = vadd.f32 0.0, %v2605
      %v2607 = vpop.f32.mrb[0].mxu0
      %2608 = vmatprep.mubr.f32.mxu0 0.0
      %2609 = vmatmul.mubr.f32.gmra.mrb[0].mxu0 %v2387
      %v2610 = vpop.f32.mrb[0].mxu0
      %v2611 = vadd.f32 0.0, %v2610
      %v2612 = vpop.f32.mrb[0].mxu0
      %2613 = vdwg.mxu0
      %v2614 = vadd.f32 %v2227, %v2456
      %v2615 = vadd.f32 %v2228, %v2461
      %v2616 = vadd.f32 %v2229, %v2466
      %v2617 = vadd.f32 %v2230, %v2471
      %v2618 = vadd.f32 %v2231, %v2476
      %v2619 = vadd.f32 %v2232, %v2481
      %v2620 = vadd.f32 %v2233, %v2486
      %v2621 = vadd.f32 %v2234, %v2491
      %v2622 = vadd.f32 %v2235, %v2496
      %v2623 = vadd.f32 %v2236, %v2501
      %v2624 = vadd.f32 %v2237, %v2506
      %v2625 = vadd.f32 %v2238, %v2511
      %v2626 = vadd.f32 %v2239, %v2516
      %v2627 = vadd.f32 %v2240, %v2521
      %v2628 = vadd.f32 %v2241, %v2526
      %v2629 = vadd.f32 %v2242, %v2531
      %v2630 = vadd.f32 %v2243, %v2536
      %v2631 = vadd.f32 %v2244, %v2541
      %v2632 = vadd.f32 %v2245, %v2546
      %v2633 = vadd.f32 %v2246, %v2551
      %v2634 = vadd.f32 %v2247, %v2556
      %v2635 = vadd.f32 %v2248, %v2561
      %v2636 = vadd.f32 %v2249, %v2566
      %v2637 = vadd.f32 %v2250, %v2571
      %v2638 = vadd.f32 %v2251, %v2576
      %v2639 = vadd.f32 %v2252, %v2581
      %v2640 = vadd.f32 %v2253, %v2586
      %v2641 = vadd.f32 %v2254, %v2591
      %v2642 = vadd.f32 %v2255, %v2596
      %v2643 = vadd.f32 %v2256, %v2601
      %v2644 = vadd.f32 %v2257, %v2606
      %v2645 = vadd.f32 %v2258, %v2611
      %v2646 = vld [vmem:[%s547 + $0x1] sm:$0xff]
      %v2647 = vld [vmem:[%s547 + $0x9] sm:$0xff]
      %v2648 = vld [vmem:[%s547 + $0x19] sm:$0xff]
      %v2649 = vld [vmem:[%s547 + $0x21] sm:$0xff]
      %v2650 = vld [vmem:[%s547 + $0x31] sm:$0xff]
      %v2651 = vld [vmem:[%s547 + $0x39] sm:$0xff]
      %v2652 = vld [vmem:[%s547 + $0x49] sm:$0xff]
      %v2653 = vld [vmem:[%s547 + $0x51] sm:$0xff]
      %v2654 = vld [vmem:[%s547 + $0x61] sm:$0xff]
      %v2655 = vld [vmem:[%s547 + $0x69] sm:$0xff]
      %v2656 = vld [vmem:[%s547 + $0x79] sm:$0xff]
      %v2657 = vld [vmem:[%s547 + $0x81] sm:$0xff]
      %v2658 = vld [vmem:[%s547 + $0x91] sm:$0xff]
      %v2659 = vld [vmem:[%s547 + $0x99] sm:$0xff]
      %v2660 = vld [vmem:[%s547 + $0xa9] sm:$0xff]
      %v2661 = vld [vmem:[%s547 + $0xb1] sm:$0xff]
      %v2662 = vld [vmem:[%s547 + $0xc1] sm:$0xff]
      %v2663 = vld [vmem:[%s547 + $0xc9] sm:$0xff]
      %v2664 = vld [vmem:[%s547 + $0xd9] sm:$0xff]
      %v2665 = vld [vmem:[%s547 + $0xe1] sm:$0xff]
      %v2666 = vld [vmem:[%s547 + $0xf1] sm:$0xff]
      %v2667 = vld [vmem:[%s547 + $0xf9] sm:$0xff]
      %v2668 = vld [vmem:[%s547 + $0x109] sm:$0xff]
      %v2669 = vld [vmem:[%s547 + $0x111] sm:$0xff]
      %v2670 = vld [vmem:[%s547 + $0x121] sm:$0xff]
      %v2671 = vld [vmem:[%s547 + $0x129] sm:$0xff]
      %v2672 = vld [vmem:[%s547 + $0x139] sm:$0xff]
      %v2673 = vld [vmem:[%s547 + $0x141] sm:$0xff]
      %v2674 = vld [vmem:[%s547 + $0x151] sm:$0xff]
      %v2675 = vld [vmem:[%s547 + $0x159] sm:$0xff]
      %v2676 = vld [vmem:[%s547 + $0x169] sm:$0xff]
      %v2677 = vld [vmem:[%s547 + $0x171] sm:$0xff]
      %s2678 = scalar_lea.vmem %s5, 32
      %v2679 = vld [vmem:[%s2678] sm:$0xff]
      %v2681 = vsel %vm588, %v2646, 0
      %v2684 = vsel %vm588, %v2647, 0
      %v2687 = vsel %vm588, %v2648, 0
      %v2690 = vsel %vm588, %v2649, 0
      %v2693 = vsel %vm588, %v2650, 0
      %v2696 = vsel %vm588, %v2651, 0
      %v2699 = vsel %vm588, %v2652, 0
      %v2702 = vsel %vm588, %v2653, 0
      %v2705 = vsel %vm588, %v2654, 0
      %v2708 = vsel %vm588, %v2655, 0
      %v2711 = vsel %vm588, %v2656, 0
      %v2714 = vsel %vm588, %v2657, 0
      %v2717 = vsel %vm588, %v2658, 0
      %v2720 = vsel %vm588, %v2659, 0
      %v2723 = vsel %vm588, %v2660, 0
      %v2726 = vsel %vm588, %v2661, 0
      %v2729 = vsel %vm588, %v2662, 0
      %v2732 = vsel %vm588, %v2663, 0
      %v2735 = vsel %vm588, %v2664, 0
      %v2738 = vsel %vm588, %v2665, 0
      %v2741 = vsel %vm588, %v2666, 0
      %v2744 = vsel %vm588, %v2667, 0
      %v2747 = vsel %vm588, %v2668, 0
      %v2750 = vsel %vm588, %v2669, 0
      %v2753 = vsel %vm588, %v2670, 0
      %v2756 = vsel %vm588, %v2671, 0
      %v2759 = vsel %vm588, %v2672, 0
      %v2762 = vsel %vm588, %v2673, 0
      %v2765 = vsel %vm588, %v2674, 0
      %v2768 = vsel %vm588, %v2675, 0
      %v2771 = vsel %vm588, %v2676, 0
      %v2774 = vsel %vm588, %v2677, 0
      %2776 = vmatprep.subr.mxu0 0.0
      %2777 = vmatpush1.msra.mxu0 %v2679
      %2778 = vmatprep.subr.mxu0 0.0
      %2779 = vmatpush1.msra.mxu0 0.0
      %2780 = vmatprep.subr.mxu0 0.0
      %2781 = vmatpush1.msra.mxu0 0.0
      %2782 = vmatprep.subr.mxu0 0.0
      %2783 = vmatpush1.msra.mxu0 0.0
      %2784 = vmatprep.subr.mxu0 0.0
      %2785 = vmatpush1.msra.mxu0 0.0
      %2786 = vmatprep.subr.mxu0 0.0
      %2787 = vmatpush1.msra.mxu0 0.0
      %2788 = vmatprep.subr.mxu0 0.0
      %2789 = vmatpush1.msra.mxu0 0.0
      %2790 = vmatprep.subr.mxu0 0.0
      %2791 = vmatpush1.msra.mxu0 0.0
      %2792 = vmatprep.subr.mxu0 0.0
      %2793 = vmatpush1.msra.mxu0 0.0
      %2794 = vmatprep.subr.mxu0 0.0
      %2795 = vmatpush1.msra.mxu0 0.0
      %2796 = vmatprep.subr.mxu0 0.0
      %2797 = vmatpush1.msra.mxu0 0.0
      %2798 = vmatprep.subr.mxu0 0.0
      %2799 = vmatpush1.msra.mxu0 0.0
      %2800 = vmatprep.subr.mxu0 0.0
      %2801 = vmatpush1.msra.mxu0 0.0
      %2802 = vmatprep.subr.mxu0 0.0
      %2803 = vmatpush1.msra.mxu0 0.0
      %2804 = vmatprep.subr.mxu0 0.0
      %2805 = vmatpush1.msra.mxu0 0.0
      %2806 = vmatprep.subr.mxu0 0.0
      %2807 = vmatpush1.msra.mxu0 0.0
      %2808 = vmatprep.subr.mxu0 0.0
      %2809 = vmatpush1.msra.mxu0 0.0
      %2810 = vmatprep.subr.mxu0 0.0
      %2811 = vmatpush1.msra.mxu0 0.0
      %2812 = vmatprep.subr.mxu0 0.0
      %2813 = vmatpush1.msra.mxu0 0.0
      %2814 = vmatprep.subr.mxu0 0.0
      %2815 = vmatpush1.msra.mxu0 0.0
      %2816 = vmatprep.subr.mxu0 0.0
      %2817 = vmatpush1.msra.mxu0 0.0
      %2818 = vmatprep.subr.mxu0 0.0
      %2819 = vmatpush1.msra.mxu0 0.0
      %2820 = vmatprep.subr.mxu0 0.0
      %2821 = vmatpush1.msra.mxu0 0.0
      %2822 = vmatprep.subr.mxu0 0.0
      %2823 = vmatpush1.msra.mxu0 0.0
      %2824 = vmatprep.subr.mxu0 0.0
      %2825 = vmatpush1.msra.mxu0 0.0
      %2826 = vmatprep.subr.mxu0 0.0
      %2827 = vmatpush1.msra.mxu0 0.0
      %2828 = vmatprep.subr.mxu0 0.0
      %2829 = vmatpush1.msra.mxu0 0.0
      %2830 = vmatprep.subr.mxu0 0.0
      %2831 = vmatpush1.msra.mxu0 0.0
      %2832 = vmatprep.subr.mxu0 0.0
      %2833 = vmatpush1.msra.mxu0 0.0
      %2834 = vmatprep.subr.mxu0 0.0
      %2835 = vmatpush1.msra.mxu0 0.0
      %2836 = vmatprep.subr.mxu0 0.0
      %2837 = vmatpush1.msra.mxu0 0.0
      %2838 = vmatprep.subr.mxu0 0.0
      %2839 = vmatpush1.msra.mxu0 0.0
      %2840 = vmatprep.mubr.f32.mxu0 0.0
      %2841 = vmatmul.mubr.f32.gmra.mrb[0].mxu0 %v2681
      %v2842 = vpop.f32.mrb[0].mxu0
      %v2843 = vadd.f32 0.0, %v2842
      %v2844 = vpop.f32.mrb[0].mxu0
      %2845 = vmatprep.mubr.f32.mxu0 0.0
      %2846 = vmatmul.mubr.f32.gmra.mrb[0].mxu0 %v2684
      %v2847 = vpop.f32.mrb[0].mxu0
      %v2848 = vadd.f32 0.0, %v2847
      %v2849 = vpop.f32.mrb[0].mxu0
      %2850 = vmatprep.mubr.f32.mxu0 0.0
      %2851 = vmatmul.mubr.f32.gmra.mrb[0].mxu0 %v2687
      %v2852 = vpop.f32.mrb[0].mxu0
      %v2853 = vadd.f32 0.0, %v2852
      %v2854 = vpop.f32.mrb[0].mxu0
      %2855 = vmatprep.mubr.f32.mxu0 0.0
      %2856 = vmatmul.mubr.f32.gmra.mrb[0].mxu0 %v2690
      %v2857 = vpop.f32.mrb[0].mxu0
      %v2858 = vadd.f32 0.0, %v2857
      %v2859 = vpop.f32.mrb[0].mxu0
      %2860 = vmatprep.mubr.f32.mxu0 0.0
      %2861 = vmatmul.mubr.f32.gmra.mrb[0].mxu0 %v2693
      %v2862 = vpop.f32.mrb[0].mxu0
      %v2863 = vadd.f32 0.0, %v2862
      %v2864 = vpop.f32.mrb[0].mxu0
      %2865 = vmatprep.mubr.f32.mxu0 0.0
      %2866 = vmatmul.mubr.f32.gmra.mrb[0].mxu0 %v2696
      %v2867 = vpop.f32.mrb[0].mxu0
      %v2868 = vadd.f32 0.0, %v2867
      %v2869 = vpop.f32.mrb[0].mxu0
      %2870 = vmatprep.mubr.f32.mxu0 0.0
      %2871 = vmatmul.mubr.f32.gmra.mrb[0].mxu0 %v2699
      %v2872 = vpop.f32.mrb[0].mxu0
      %v2873 = vadd.f32 0.0, %v2872
      %v2874 = vpop.f32.mrb[0].mxu0
      %2875 = vmatprep.mubr.f32.mxu0 0.0
      %2876 = vmatmul.mubr.f32.gmra.mrb[0].mxu0 %v2702
      %v2877 = vpop.f32.mrb[0].mxu0
      %v2878 = vadd.f32 0.0, %v2877
      %v2879 = vpop.f32.mrb[0].mxu0
      %2880 = vmatprep.mubr.f32.mxu0 0.0
      %2881 = vmatmul.mubr.f32.gmra.mrb[0].mxu0 %v2705
      %v2882 = vpop.f32.mrb[0].mxu0
      %v2883 = vadd.f32 0.0, %v2882
      %v2884 = vpop.f32.mrb[0].mxu0
      %2885 = vmatprep.mubr.f32.mxu0 0.0
      %2886 = vmatmul.mubr.f32.gmra.mrb[0].mxu0 %v2708
      %v2887 = vpop.f32.mrb[0].mxu0
      %v2888 = vadd.f32 0.0, %v2887
      %v2889 = vpop.f32.mrb[0].mxu0
      %2890 = vmatprep.mubr.f32.mxu0 0.0
      %2891 = vmatmul.mubr.f32.gmra.mrb[0].mxu0 %v2711
      %v2892 = vpop.f32.mrb[0].mxu0
      %v2893 = vadd.f32 0.0, %v2892
      %v2894 = vpop.f32.mrb[0].mxu0
      %2895 = vmatprep.mubr.f32.mxu0 0.0
      %2896 = vmatmul.mubr.f32.gmra.mrb[0].mxu0 %v2714
      %v2897 = vpop.f32.mrb[0].mxu0
      %v2898 = vadd.f32 0.0, %v2897
      %v2899 = vpop.f32.mrb[0].mxu0
      %2900 = vmatprep.mubr.f32.mxu0 0.0
      %2901 = vmatmul.mubr.f32.gmra.mrb[0].mxu0 %v2717
      %v2902 = vpop.f32.mrb[0].mxu0
      %v2903 = vadd.f32 0.0, %v2902
      %v2904 = vpop.f32.mrb[0].mxu0
      %2905 = vmatprep.mubr.f32.mxu0 0.0
      %2906 = vmatmul.mubr.f32.gmra.mrb[0].mxu0 %v2720
      %v2907 = vpop.f32.mrb[0].mxu0
      %v2908 = vadd.f32 0.0, %v2907
      %v2909 = vpop.f32.mrb[0].mxu0
      %2910 = vmatprep.mubr.f32.mxu0 0.0
      %2911 = vmatmul.mubr.f32.gmra.mrb[0].mxu0 %v2723
      %v2912 = vpop.f32.mrb[0].mxu0
      %v2913 = vadd.f32 0.0, %v2912
      %v2914 = vpop.f32.mrb[0].mxu0
      %2915 = vmatprep.mubr.f32.mxu0 0.0
      %2916 = vmatmul.mubr.f32.gmra.mrb[0].mxu0 %v2726
      %v2917 = vpop.f32.mrb[0].mxu0
      %v2918 = vadd.f32 0.0, %v2917
      %v2919 = vpop.f32.mrb[0].mxu0
      %2920 = vmatprep.mubr.f32.mxu0 0.0
      %2921 = vmatmul.mubr.f32.gmra.mrb[0].mxu0 %v2729
      %v2922 = vpop.f32.mrb[0].mxu0
      %v2923 = vadd.f32 0.0, %v2922
      %v2924 = vpop.f32.mrb[0].mxu0
      %2925 = vmatprep.mubr.f32.mxu0 0.0
      %2926 = vmatmul.mubr.f32.gmra.mrb[0].mxu0 %v2732
      %v2927 = vpop.f32.mrb[0].mxu0
      %v2928 = vadd.f32 0.0, %v2927
      %v2929 = vpop.f32.mrb[0].mxu0
      %2930 = vmatprep.mubr.f32.mxu0 0.0
      %2931 = vmatmul.mubr.f32.gmra.mrb[0].mxu0 %v2735
      %v2932 = vpop.f32.mrb[0].mxu0
      %v2933 = vadd.f32 0.0, %v2932
      %v2934 = vpop.f32.mrb[0].mxu0
      %2935 = vmatprep.mubr.f32.mxu0 0.0
      %2936 = vmatmul.mubr.f32.gmra.mrb[0].mxu0 %v2738
      %v2937 = vpop.f32.mrb[0].mxu0
      %v2938 = vadd.f32 0.0, %v2937
      %v2939 = vpop.f32.mrb[0].mxu0
      %2940 = vmatprep.mubr.f32.mxu0 0.0
      %2941 = vmatmul.mubr.f32.gmra.mrb[0].mxu0 %v2741
      %v2942 = vpop.f32.mrb[0].mxu0
      %v2943 = vadd.f32 0.0, %v2942
      %v2944 = vpop.f32.mrb[0].mxu0
      %2945 = vmatprep.mubr.f32.mxu0 0.0
      %2946 = vmatmul.mubr.f32.gmra.mrb[0].mxu0 %v2744
      %v2947 = vpop.f32.mrb[0].mxu0
      %v2948 = vadd.f32 0.0, %v2947
      %v2949 = vpop.f32.mrb[0].mxu0
      %2950 = vmatprep.mubr.f32.mxu0 0.0
      %2951 = vmatmul.mubr.f32.gmra.mrb[0].mxu0 %v2747
      %v2952 = vpop.f32.mrb[0].mxu0
      %v2953 = vadd.f32 0.0, %v2952
      %v2954 = vpop.f32.mrb[0].mxu0
      %2955 = vmatprep.mubr.f32.mxu0 0.0
      %2956 = vmatmul.mubr.f32.gmra.mrb[0].mxu0 %v2750
      %v2957 = vpop.f32.mrb[0].mxu0
      %v2958 = vadd.f32 0.0, %v2957
      %v2959 = vpop.f32.mrb[0].mxu0
      %2960 = vmatprep.mubr.f32.mxu0 0.0
      %2961 = vmatmul.mubr.f32.gmra.mrb[0].mxu0 %v2753
      %v2962 = vpop.f32.mrb[0].mxu0
      %v2963 = vadd.f32 0.0, %v2962
      %v2964 = vpop.f32.mrb[0].mxu0
      %2965 = vmatprep.mubr.f32.mxu0 0.0
      %2966 = vmatmul.mubr.f32.gmra.mrb[0].mxu0 %v2756
      %v2967 = vpop.f32.mrb[0].mxu0
      %v2968 = vadd.f32 0.0, %v2967
      %v2969 = vpop.f32.mrb[0].mxu0
      %2970 = vmatprep.mubr.f32.mxu0 0.0
      %2971 = vmatmul.mubr.f32.gmra.mrb[0].mxu0 %v2759
      %v2972 = vpop.f32.mrb[0].mxu0
      %v2973 = vadd.f32 0.0, %v2972
      %v2974 = vpop.f32.mrb[0].mxu0
      %2975 = vmatprep.mubr.f32.mxu0 0.0
      %2976 = vmatmul.mubr.f32.gmra.mrb[0].mxu0 %v2762
      %v2977 = vpop.f32.mrb[0].mxu0
      %v2978 = vadd.f32 0.0, %v2977
      %v2979 = vpop.f32.mrb[0].mxu0
      %2980 = vmatprep.mubr.f32.mxu0 0.0
      %2981 = vmatmul.mubr.f32.gmra.mrb[0].mxu0 %v2765
      %v2982 = vpop.f32.mrb[0].mxu0
      %v2983 = vadd.f32 0.0, %v2982
      %v2984 = vpop.f32.mrb[0].mxu0
      %2985 = vmatprep.mubr.f32.mxu0 0.0
      %2986 = vmatmul.mubr.f32.gmra.mrb[0].mxu0 %v2768
      %v2987 = vpop.f32.mrb[0].mxu0
      %v2988 = vadd.f32 0.0, %v2987
      %v2989 = vpop.f32.mrb[0].mxu0
      %2990 = vmatprep.mubr.f32.mxu0 0.0
      %2991 = vmatmul.mubr.f32.gmra.mrb[0].mxu0 %v2771
      %v2992 = vpop.f32.mrb[0].mxu0
      %v2993 = vadd.f32 0.0, %v2992
      %v2994 = vpop.f32.mrb[0].mxu0
      %2995 = vmatprep.mubr.f32.mxu0 0.0
      %2996 = vmatmul.mubr.f32.gmra.mrb[0].mxu0 %v2774
      %v2997 = vpop.f32.mrb[0].mxu0
      %v2998 = vadd.f32 0.0, %v2997
      %v2999 = vpop.f32.mrb[0].mxu0
      %3000 = vdwg.mxu0
      %v3001 = vadd.f32 %v2614, %v2843
      %v3002 = vadd.f32 %v2615, %v2848
      %v3003 = vadd.f32 %v2616, %v2853
      %v3004 = vadd.f32 %v2617, %v2858
      %v3005 = vadd.f32 %v2618, %v2863
      %v3006 = vadd.f32 %v2619, %v2868
      %v3007 = vadd.f32 %v2620, %v2873
      %v3008 = vadd.f32 %v2621, %v2878
      %v3009 = vadd.f32 %v2622, %v2883
      %v3010 = vadd.f32 %v2623, %v2888
      %v3011 = vadd.f32 %v2624, %v2893
      %v3012 = vadd.f32 %v2625, %v2898
      %v3013 = vadd.f32 %v2626, %v2903
      %v3014 = vadd.f32 %v2627, %v2908
      %v3015 = vadd.f32 %v2628, %v2913
      %v3016 = vadd.f32 %v2629, %v2918
      %v3017 = vadd.f32 %v2630, %v2923
      %v3018 = vadd.f32 %v2631, %v2928
      %v3019 = vadd.f32 %v2632, %v2933
      %v3020 = vadd.f32 %v2633, %v2938
      %v3021 = vadd.f32 %v2634, %v2943
      %v3022 = vadd.f32 %v2635, %v2948
      %v3023 = vadd.f32 %v2636, %v2953
      %v3024 = vadd.f32 %v2637, %v2958
      %v3025 = vadd.f32 %v2638, %v2963
      %v3026 = vadd.f32 %v2639, %v2968
      %v3027 = vadd.f32 %v2640, %v2973
      %v3028 = vadd.f32 %v2641, %v2978
      %v3029 = vadd.f32 %v2642, %v2983
      %v3030 = vadd.f32 %v2643, %v2988
      %v3031 = vadd.f32 %v2644, %v2993
      %v3032 = vadd.f32 %v2645, %v2998
      %v3033 = vld [vmem:[%s547 + $0x2] sm:$0xff]
      %v3034 = vld [vmem:[%s547 + $0xa] sm:$0xff]
      %v3035 = vld [vmem:[%s547 + $0x1a] sm:$0xff]
      %v3036 = vld [vmem:[%s547 + $0x22] sm:$0xff]
      %v3037 = vld [vmem:[%s547 + $0x32] sm:$0xff]
      %v3038 = vld [vmem:[%s547 + $0x3a] sm:$0xff]
      %v3039 = vld [vmem:[%s547 + $0x4a] sm:$0xff]
      %v3040 = vld [vmem:[%s547 + $0x52] sm:$0xff]
      %v3041 = vld [vmem:[%s547 + $0x62] sm:$0xff]
      %v3042 = vld [vmem:[%s547 + $0x6a] sm:$0xff]
      %v3043 = vld [vmem:[%s547 + $0x7a] sm:$0xff]
      %v3044 = vld [vmem:[%s547 + $0x82] sm:$0xff]
      %v3045 = vld [vmem:[%s547 + $0x92] sm:$0xff]
      %v3046 = vld [vmem:[%s547 + $0x9a] sm:$0xff]
      %v3047 = vld [vmem:[%s547 + $0xaa] sm:$0xff]
      %v3048 = vld [vmem:[%s547 + $0xb2] sm:$0xff]
      %v3049 = vld [vmem:[%s547 + $0xc2] sm:$0xff]
      %v3050 = vld [vmem:[%s547 + $0xca] sm:$0xff]
      %v3051 = vld [vmem:[%s547 + $0xda] sm:$0xff]
      %v3052 = vld [vmem:[%s547 + $0xe2] sm:$0xff]
      %v3053 = vld [vmem:[%s547 + $0xf2] sm:$0xff]
      %v3054 = vld [vmem:[%s547 + $0xfa] sm:$0xff]
      %v3055 = vld [vmem:[%s547 + $0x10a] sm:$0xff]
      %v3056 = vld [vmem:[%s547 + $0x112] sm:$0xff]
      %v3057 = vld [vmem:[%s547 + $0x122] sm:$0xff]
      %v3058 = vld [vmem:[%s547 + $0x12a] sm:$0xff]
      %v3059 = vld [vmem:[%s547 + $0x13a] sm:$0xff]
      %v3060 = vld [vmem:[%s547 + $0x142] sm:$0xff]
      %v3061 = vld [vmem:[%s547 + $0x152] sm:$0xff]
      %v3062 = vld [vmem:[%s547 + $0x15a] sm:$0xff]
      %v3063 = vld [vmem:[%s547 + $0x16a] sm:$0xff]
      %v3064 = vld [vmem:[%s547 + $0x172] sm:$0xff]
      %s3065 = scalar_lea.vmem %s5, 40
      %v3066 = vld [vmem:[%s3065] sm:$0xff]
      %v3068 = vsel %vm588, %v3033, 0
      %v3071 = vsel %vm588, %v3034, 0
      %v3074 = vsel %vm588, %v3035, 0
      %v3077 = vsel %vm588, %v3036, 0
      %v3080 = vsel %vm588, %v3037, 0
      %v3083 = vsel %vm588, %v3038, 0
      %v3086 = vsel %vm588, %v3039, 0
      %v3089 = vsel %vm588, %v3040, 0
      %v3092 = vsel %vm588, %v3041, 0
      %v3095 = vsel %vm588, %v3042, 0
      %v3098 = vsel %vm588, %v3043, 0
      %v3101 = vsel %vm588, %v3044, 0
      %v3104 = vsel %vm588, %v3045, 0
      %v3107 = vsel %vm588, %v3046, 0
      %v3110 = vsel %vm588, %v3047, 0
      %v3113 = vsel %vm588, %v3048, 0
      %v3116 = vsel %vm588, %v3049, 0
      %v3119 = vsel %vm588, %v3050, 0
      %v3122 = vsel %vm588, %v3051, 0
      %v3125 = vsel %vm588, %v3052, 0
      %v3128 = vsel %vm588, %v3053, 0
      %v3131 = vsel %vm588, %v3054, 0
      %v3134 = vsel %vm588, %v3055, 0
      %v3137 = vsel %vm588, %v3056, 0
      %v3140 = vsel %vm588, %v3057, 0
      %v3143 = vsel %vm588, %v3058, 0
      %v3146 = vsel %vm588, %v3059, 0
      %v3149 = vsel %vm588, %v3060, 0
      %v3152 = vsel %vm588, %v3061, 0
      %v3155 = vsel %vm588, %v3062, 0
      %v3158 = vsel %vm588, %v3063, 0
      %v3161 = vsel %vm588, %v3064, 0
      %3163 = vmatprep.subr.mxu0 0.0
      %3164 = vmatpush1.msra.mxu0 %v3066
      %3165 = vmatprep.subr.mxu0 0.0
      %3166 = vmatpush1.msra.mxu0 0.0
      %3167 = vmatprep.subr.mxu0 0.0
      %3168 = vmatpush1.msra.mxu0 0.0
      %3169 = vmatprep.subr.mxu0 0.0
      %3170 = vmatpush1.msra.mxu0 0.0
      %3171 = vmatprep.subr.mxu0 0.0
      %3172 = vmatpush1.msra.mxu0 0.0
      %3173 = vmatprep.subr.mxu0 0.0
      %3174 = vmatpush1.msra.mxu0 0.0
      %3175 = vmatprep.subr.mxu0 0.0
      %3176 = vmatpush1.msra.mxu0 0.0
      %3177 = vmatprep.subr.mxu0 0.0
      %3178 = vmatpush1.msra.mxu0 0.0
      %3179 = vmatprep.subr.mxu0 0.0
      %3180 = vmatpush1.msra.mxu0 0.0
      %3181 = vmatprep.subr.mxu0 0.0
      %3182 = vmatpush1.msra.mxu0 0.0
      %3183 = vmatprep.subr.mxu0 0.0
      %3184 = vmatpush1.msra.mxu0 0.0
      %3185 = vmatprep.subr.mxu0 0.0
      %3186 = vmatpush1.msra.mxu0 0.0
      %3187 = vmatprep.subr.mxu0 0.0
      %3188 = vmatpush1.msra.mxu0 0.0
      %3189 = vmatprep.subr.mxu0 0.0
      %3190 = vmatpush1.msra.mxu0 0.0
      %3191 = vmatprep.subr.mxu0 0.0
      %3192 = vmatpush1.msra.mxu0 0.0
      %3193 = vmatprep.subr.mxu0 0.0
      %3194 = vmatpush1.msra.mxu0 0.0
      %3195 = vmatprep.subr.mxu0 0.0
      %3196 = vmatpush1.msra.mxu0 0.0
      %3197 = vmatprep.subr.mxu0 0.0
      %3198 = vmatpush1.msra.mxu0 0.0
      %3199 = vmatprep.subr.mxu0 0.0
      %3200 = vmatpush1.msra.mxu0 0.0
      %3201 = vmatprep.subr.mxu0 0.0
      %3202 = vmatpush1.msra.mxu0 0.0
      %3203 = vmatprep.subr.mxu0 0.0
      %3204 = vmatpush1.msra.mxu0 0.0
      %3205 = vmatprep.subr.mxu0 0.0
      %3206 = vmatpush1.msra.mxu0 0.0
      %3207 = vmatprep.subr.mxu0 0.0
      %3208 = vmatpush1.msra.mxu0 0.0
      %3209 = vmatprep.subr.mxu0 0.0
      %3210 = vmatpush1.msra.mxu0 0.0
      %3211 = vmatprep.subr.mxu0 0.0
      %3212 = vmatpush1.msra.mxu0 0.0
      %3213 = vmatprep.subr.mxu0 0.0
      %3214 = vmatpush1.msra.mxu0 0.0
      %3215 = vmatprep.subr.mxu0 0.0
      %3216 = vmatpush1.msra.mxu0 0.0
      %3217 = vmatprep.subr.mxu0 0.0
      %3218 = vmatpush1.msra.mxu0 0.0
      %3219 = vmatprep.subr.mxu0 0.0
      %3220 = vmatpush1.msra.mxu0 0.0
      %3221 = vmatprep.subr.mxu0 0.0
      %3222 = vmatpush1.msra.mxu0 0.0
      %3223 = vmatprep.subr.mxu0 0.0
      %3224 = vmatpush1.msra.mxu0 0.0
      %3225 = vmatprep.subr.mxu0 0.0
      %3226 = vmatpush1.msra.mxu0 0.0
      %3227 = vmatprep.mubr.f32.mxu0 0.0
      %3228 = vmatmul.mubr.f32.gmra.mrb[0].mxu0 %v3068
      %v3229 = vpop.f32.mrb[0].mxu0
      %v3230 = vadd.f32 0.0, %v3229
      %v3231 = vpop.f32.mrb[0].mxu0
      %3232 = vmatprep.mubr.f32.mxu0 0.0
      %3233 = vmatmul.mubr.f32.gmra.mrb[0].mxu0 %v3071
      %v3234 = vpop.f32.mrb[0].mxu0
      %v3235 = vadd.f32 0.0, %v3234
      %v3236 = vpop.f32.mrb[0].mxu0
      %3237 = vmatprep.mubr.f32.mxu0 0.0
      %3238 = vmatmul.mubr.f32.gmra.mrb[0].mxu0 %v3074
      %v3239 = vpop.f32.mrb[0].mxu0
      %v3240 = vadd.f32 0.0, %v3239
      %v3241 = vpop.f32.mrb[0].mxu0
      %3242 = vmatprep.mubr.f32.mxu0 0.0
      %3243 = vmatmul.mubr.f32.gmra.mrb[0].mxu0 %v3077
      %v3244 = vpop.f32.mrb[0].mxu0
      %v3245 = vadd.f32 0.0, %v3244
      %v3246 = vpop.f32.mrb[0].mxu0
      %3247 = vmatprep.mubr.f32.mxu0 0.0
      %3248 = vmatmul.mubr.f32.gmra.mrb[0].mxu0 %v3080
      %v3249 = vpop.f32.mrb[0].mxu0
      %v3250 = vadd.f32 0.0, %v3249
      %v3251 = vpop.f32.mrb[0].mxu0
      %3252 = vmatprep.mubr.f32.mxu0 0.0
      %3253 = vmatmul.mubr.f32.gmra.mrb[0].mxu0 %v3083
      %v3254 = vpop.f32.mrb[0].mxu0
      %v3255 = vadd.f32 0.0, %v3254
      %v3256 = vpop.f32.mrb[0].mxu0
      %3257 = vmatprep.mubr.f32.mxu0 0.0
      %3258 = vmatmul.mubr.f32.gmra.mrb[0].mxu0 %v3086
      %v3259 = vpop.f32.mrb[0].mxu0
      %v3260 = vadd.f32 0.0, %v3259
      %v3261 = vpop.f32.mrb[0].mxu0
      %3262 = vmatprep.mubr.f32.mxu0 0.0
      %3263 = vmatmul.mubr.f32.gmra.mrb[0].mxu0 %v3089
      %v3264 = vpop.f32.mrb[0].mxu0
      %v3265 = vadd.f32 0.0, %v3264
      %v3266 = vpop.f32.mrb[0].mxu0
      %3267 = vmatprep.mubr.f32.mxu0 0.0
      %3268 = vmatmul.mubr.f32.gmra.mrb[0].mxu0 %v3092
      %v3269 = vpop.f32.mrb[0].mxu0
      %v3270 = vadd.f32 0.0, %v3269
      %v3271 = vpop.f32.mrb[0].mxu0
      %3272 = vmatprep.mubr.f32.mxu0 0.0
      %3273 = vmatmul.mubr.f32.gmra.mrb[0].mxu0 %v3095
      %v3274 = vpop.f32.mrb[0].mxu0
      %v3275 = vadd.f32 0.0, %v3274
      %v3276 = vpop.f32.mrb[0].mxu0
      %3277 = vmatprep.mubr.f32.mxu0 0.0
      %3278 = vmatmul.mubr.f32.gmra.mrb[0].mxu0 %v3098
      %v3279 = vpop.f32.mrb[0].mxu0
      %v3280 = vadd.f32 0.0, %v3279
      %v3281 = vpop.f32.mrb[0].mxu0
      %3282 = vmatprep.mubr.f32.mxu0 0.0
      %3283 = vmatmul.mubr.f32.gmra.mrb[0].mxu0 %v3101
      %v3284 = vpop.f32.mrb[0].mxu0
      %v3285 = vadd.f32 0.0, %v3284
      %v3286 = vpop.f32.mrb[0].mxu0
      %3287 = vmatprep.mubr.f32.mxu0 0.0
      %3288 = vmatmul.mubr.f32.gmra.mrb[0].mxu0 %v3104
      %v3289 = vpop.f32.mrb[0].mxu0
      %v3290 = vadd.f32 0.0, %v3289
      %v3291 = vpop.f32.mrb[0].mxu0
      %3292 = vmatprep.mubr.f32.mxu0 0.0
      %3293 = vmatmul.mubr.f32.gmra.mrb[0].mxu0 %v3107
      %v3294 = vpop.f32.mrb[0].mxu0
      %v3295 = vadd.f32 0.0, %v3294
      %v3296 = vpop.f32.mrb[0].mxu0
      %3297 = vmatprep.mubr.f32.mxu0 0.0
      %3298 = vmatmul.mubr.f32.gmra.mrb[0].mxu0 %v3110
      %v3299 = vpop.f32.mrb[0].mxu0
      %v3300 = vadd.f32 0.0, %v3299
      %v3301 = vpop.f32.mrb[0].mxu0
      %3302 = vmatprep.mubr.f32.mxu0 0.0
      %3303 = vmatmul.mubr.f32.gmra.mrb[0].mxu0 %v3113
      %v3304 = vpop.f32.mrb[0].mxu0
      %v3305 = vadd.f32 0.0, %v3304
      %v3306 = vpop.f32.mrb[0].mxu0
      %3307 = vmatprep.mubr.f32.mxu0 0.0
      %3308 = vmatmul.mubr.f32.gmra.mrb[0].mxu0 %v3116
      %v3309 = vpop.f32.mrb[0].mxu0
      %v3310 = vadd.f32 0.0, %v3309
      %v3311 = vpop.f32.mrb[0].mxu0
      %3312 = vmatprep.mubr.f32.mxu0 0.0
      %3313 = vmatmul.mubr.f32.gmra.mrb[0].mxu0 %v3119
      %v3314 = vpop.f32.mrb[0].mxu0
      %v3315 = vadd.f32 0.0, %v3314
      %v3316 = vpop.f32.mrb[0].mxu0
      %3317 = vmatprep.mubr.f32.mxu0 0.0
      %3318 = vmatmul.mubr.f32.gmra.mrb[0].mxu0 %v3122
      %v3319 = vpop.f32.mrb[0].mxu0
      %v3320 = vadd.f32 0.0, %v3319
      %v3321 = vpop.f32.mrb[0].mxu0
      %3322 = vmatprep.mubr.f32.mxu0 0.0
      %3323 = vmatmul.mubr.f32.gmra.mrb[0].mxu0 %v3125
      %v3324 = vpop.f32.mrb[0].mxu0
      %v3325 = vadd.f32 0.0, %v3324
      %v3326 = vpop.f32.mrb[0].mxu0
      %3327 = vmatprep.mubr.f32.mxu0 0.0
      %3328 = vmatmul.mubr.f32.gmra.mrb[0].mxu0 %v3128
      %v3329 = vpop.f32.mrb[0].mxu0
      %v3330 = vadd.f32 0.0, %v3329
      %v3331 = vpop.f32.mrb[0].mxu0
      %3332 = vmatprep.mubr.f32.mxu0 0.0
      %3333 = vmatmul.mubr.f32.gmra.mrb[0].mxu0 %v3131
      %v3334 = vpop.f32.mrb[0].mxu0
      %v3335 = vadd.f32 0.0, %v3334
      %v3336 = vpop.f32.mrb[0].mxu0
      %3337 = vmatprep.mubr.f32.mxu0 0.0
      %3338 = vmatmul.mubr.f32.gmra.mrb[0].mxu0 %v3134
      %v3339 = vpop.f32.mrb[0].mxu0
      %v3340 = vadd.f32 0.0, %v3339
      %v3341 = vpop.f32.mrb[0].mxu0
      %3342 = vmatprep.mubr.f32.mxu0 0.0
      %3343 = vmatmul.mubr.f32.gmra.mrb[0].mxu0 %v3137
      %v3344 = vpop.f32.mrb[0].mxu0
      %v3345 = vadd.f32 0.0, %v3344
      %v3346 = vpop.f32.mrb[0].mxu0
      %3347 = vmatprep.mubr.f32.mxu0 0.0
      %3348 = vmatmul.mubr.f32.gmra.mrb[0].mxu0 %v3140
      %v3349 = vpop.f32.mrb[0].mxu0
      %v3350 = vadd.f32 0.0, %v3349
      %v3351 = vpop.f32.mrb[0].mxu0
      %3352 = vmatprep.mubr.f32.mxu0 0.0
      %3353 = vmatmul.mubr.f32.gmra.mrb[0].mxu0 %v3143
      %v3354 = vpop.f32.mrb[0].mxu0
      %v3355 = vadd.f32 0.0, %v3354
      %v3356 = vpop.f32.mrb[0].mxu0
      %3357 = vmatprep.mubr.f32.mxu0 0.0
      %3358 = vmatmul.mubr.f32.gmra.mrb[0].mxu0 %v3146
      %v3359 = vpop.f32.mrb[0].mxu0
      %v3360 = vadd.f32 0.0, %v3359
      %v3361 = vpop.f32.mrb[0].mxu0
      %3362 = vmatprep.mubr.f32.mxu0 0.0
      %3363 = vmatmul.mubr.f32.gmra.mrb[0].mxu0 %v3149
      %v3364 = vpop.f32.mrb[0].mxu0
      %v3365 = vadd.f32 0.0, %v3364
      %v3366 = vpop.f32.mrb[0].mxu0
      %3367 = vmatprep.mubr.f32.mxu0 0.0
      %3368 = vmatmul.mubr.f32.gmra.mrb[0].mxu0 %v3152
      %v3369 = vpop.f32.mrb[0].mxu0
      %v3370 = vadd.f32 0.0, %v3369
      %v3371 = vpop.f32.mrb[0].mxu0
      %3372 = vmatprep.mubr.f32.mxu0 0.0
      %3373 = vmatmul.mubr.f32.gmra.mrb[0].mxu0 %v3155
      %v3374 = vpop.f32.mrb[0].mxu0
      %v3375 = vadd.f32 0.0, %v3374
      %v3376 = vpop.f32.mrb[0].mxu0
      %3377 = vmatprep.mubr.f32.mxu0 0.0
      %3378 = vmatmul.mubr.f32.gmra.mrb[0].mxu0 %v3158
      %v3379 = vpop.f32.mrb[0].mxu0
      %v3380 = vadd.f32 0.0, %v3379
      %v3381 = vpop.f32.mrb[0].mxu0
      %3382 = vmatprep.mubr.f32.mxu0 0.0
      %3383 = vmatmul.mubr.f32.gmra.mrb[0].mxu0 %v3161
      %v3384 = vpop.f32.mrb[0].mxu0
      %v3385 = vadd.f32 0.0, %v3384
      %v3386 = vpop.f32.mrb[0].mxu0
      %3387 = vdwg.mxu0
      %v3388 = vadd.f32 %v3001, %v3230
      %v3389 = vadd.f32 %v3002, %v3235
      %v3390 = vadd.f32 %v3003, %v3240
      %v3391 = vadd.f32 %v3004, %v3245
      %v3392 = vadd.f32 %v3005, %v3250
      %v3393 = vadd.f32 %v3006, %v3255
      %v3394 = vadd.f32 %v3007, %v3260
      %v3395 = vadd.f32 %v3008, %v3265
      %v3396 = vadd.f32 %v3009, %v3270
      %v3397 = vadd.f32 %v3010, %v3275
      %v3398 = vadd.f32 %v3011, %v3280
      %v3399 = vadd.f32 %v3012, %v3285
      %v3400 = vadd.f32 %v3013, %v3290
      %v3401 = vadd.f32 %v3014, %v3295
      %v3402 = vadd.f32 %v3015, %v3300
      %v3403 = vadd.f32 %v3016, %v3305
      %v3404 = vadd.f32 %v3017, %v3310
      %v3405 = vadd.f32 %v3018, %v3315
      %v3406 = vadd.f32 %v3019, %v3320
      %v3407 = vadd.f32 %v3020, %v3325
      %v3408 = vadd.f32 %v3021, %v3330
      %v3409 = vadd.f32 %v3022, %v3335
      %v3410 = vadd.f32 %v3023, %v3340
      %v3411 = vadd.f32 %v3024, %v3345
      %v3412 = vadd.f32 %v3025, %v3350
      %v3413 = vadd.f32 %v3026, %v3355
      %v3414 = vadd.f32 %v3027, %v3360
      %v3415 = vadd.f32 %v3028, %v3365
      %v3416 = vadd.f32 %v3029, %v3370
      %v3417 = vadd.f32 %v3030, %v3375
      %v3418 = vadd.f32 %v3031, %v3380
      %v3419 = vadd.f32 %v3032, %v3385
      %s3420 = scalar_lea.vmem %s531, 48
      %v3421 = vld [vmem:[%s3420] sm:$0xff]
      %v3422 = vld [vmem:[%s3420 + $0x8] sm:$0xff]
      %v3423 = vld [vmem:[%s3420 + $0x18] sm:$0xff]
      %v3424 = vld [vmem:[%s3420 + $0x20] sm:$0xff]
      %v3425 = vld [vmem:[%s3420 + $0x30] sm:$0xff]
      %v3426 = vld [vmem:[%s3420 + $0x38] sm:$0xff]
      %v3427 = vld [vmem:[%s3420 + $0x48] sm:$0xff]
      %v3428 = vld [vmem:[%s3420 + $0x50] sm:$0xff]
      %v3429 = vld [vmem:[%s3420 + $0x60] sm:$0xff]
      %v3430 = vld [vmem:[%s3420 + $0x68] sm:$0xff]
      %v3431 = vld [vmem:[%s3420 + $0x78] sm:$0xff]
      %v3432 = vld [vmem:[%s3420 + $0x80] sm:$0xff]
      %v3433 = vld [vmem:[%s3420 + $0x90] sm:$0xff]
      %v3434 = vld [vmem:[%s3420 + $0x98] sm:$0xff]
      %v3435 = vld [vmem:[%s3420 + $0xa8] sm:$0xff]
      %v3436 = vld [vmem:[%s3420 + $0xb0] sm:$0xff]
      %v3437 = vld [vmem:[%s3420 + $0xc0] sm:$0xff]
      %v3438 = vld [vmem:[%s3420 + $0xc8] sm:$0xff]
      %v3439 = vld [vmem:[%s3420 + $0xd8] sm:$0xff]
      %v3440 = vld [vmem:[%s3420 + $0xe0] sm:$0xff]
      %v3441 = vld [vmem:[%s3420 + $0xf0] sm:$0xff]
      %v3442 = vld [vmem:[%s3420 + $0xf8] sm:$0xff]
      %v3443 = vld [vmem:[%s3420 + $0x108] sm:$0xff]
      %v3444 = vld [vmem:[%s3420 + $0x110] sm:$0xff]
      %v3445 = vld [vmem:[%s3420 + $0x120] sm:$0xff]
      %v3446 = vld [vmem:[%s3420 + $0x128] sm:$0xff]
      %v3447 = vld [vmem:[%s3420 + $0x138] sm:$0xff]
      %v3448 = vld [vmem:[%s3420 + $0x140] sm:$0xff]
      %v3449 = vld [vmem:[%s3420 + $0x150] sm:$0xff]
      %v3450 = vld [vmem:[%s3420 + $0x158] sm:$0xff]
      %v3451 = vld [vmem:[%s3420 + $0x168] sm:$0xff]
      %v3452 = vld [vmem:[%s3420 + $0x170] sm:$0xff]
      %s3453 = scalar_lea.vmem %s5, 48
      %v3454 = vld [vmem:[%s3453] sm:$0xff]
      %v3456 = vsel %vm588, %v3421, 0
      %v3459 = vsel %vm588, %v3422, 0
      %v3462 = vsel %vm588, %v3423, 0
      %v3465 = vsel %vm588, %v3424, 0
      %v3468 = vsel %vm588, %v3425, 0
      %v3471 = vsel %vm588, %v3426, 0
      %v3474 = vsel %vm588, %v3427, 0
      %v3477 = vsel %vm588, %v3428, 0
      %v3480 = vsel %vm588, %v3429, 0
      %v3483 = vsel %vm588, %v3430, 0
      %v3486 = vsel %vm588, %v3431, 0
      %v3489 = vsel %vm588, %v3432, 0
      %v3492 = vsel %vm588, %v3433, 0
      %v3495 = vsel %vm588, %v3434, 0
      %v3498 = vsel %vm588, %v3435, 0
      %v3501 = vsel %vm588, %v3436, 0
      %v3504 = vsel %vm588, %v3437, 0
      %v3507 = vsel %vm588, %v3438, 0
      %v3510 = vsel %vm588, %v3439, 0
      %v3513 = vsel %vm588, %v3440, 0
      %v3516 = vsel %vm588, %v3441, 0
      %v3519 = vsel %vm588, %v3442, 0
      %v3522 = vsel %vm588, %v3443, 0
      %v3525 = vsel %vm588, %v3444, 0
      %v3528 = vsel %vm588, %v3445, 0
      %v3531 = vsel %vm588, %v3446, 0
      %v3534 = vsel %vm588, %v3447, 0
      %v3537 = vsel %vm588, %v3448, 0
      %v3540 = vsel %vm588, %v3449, 0
      %v3543 = vsel %vm588, %v3450, 0
      %v3546 = vsel %vm588, %v3451, 0
      %v3549 = vsel %vm588, %v3452, 0
      %3551 = vmatprep.subr.mxu0 0.0
      %3552 = vmatpush1.msra.mxu0 %v3454
      %3553 = vmatprep.subr.mxu0 0.0
      %3554 = vmatpush1.msra.mxu0 0.0
      %3555 = vmatprep.subr.mxu0 0.0
      %3556 = vmatpush1.msra.mxu0 0.0
      %3557 = vmatprep.subr.mxu0 0.0
      %3558 = vmatpush1.msra.mxu0 0.0
      %3559 = vmatprep.subr.mxu0 0.0
      %3560 = vmatpush1.msra.mxu0 0.0
      %3561 = vmatprep.subr.mxu0 0.0
      %3562 = vmatpush1.msra.mxu0 0.0
      %3563 = vmatprep.subr.mxu0 0.0
      %3564 = vmatpush1.msra.mxu0 0.0
      %3565 = vmatprep.subr.mxu0 0.0
      %3566 = vmatpush1.msra.mxu0 0.0
      %3567 = vmatprep.subr.mxu0 0.0
      %3568 = vmatpush1.msra.mxu0 0.0
      %3569 = vmatprep.subr.mxu0 0.0
      %3570 = vmatpush1.msra.mxu0 0.0
      %3571 = vmatprep.subr.mxu0 0.0
      %3572 = vmatpush1.msra.mxu0 0.0
      %3573 = vmatprep.subr.mxu0 0.0
      %3574 = vmatpush1.msra.mxu0 0.0
      %3575 = vmatprep.subr.mxu0 0.0
      %3576 = vmatpush1.msra.mxu0 0.0
      %3577 = vmatprep.subr.mxu0 0.0
      %3578 = vmatpush1.msra.mxu0 0.0
      %3579 = vmatprep.subr.mxu0 0.0
      %3580 = vmatpush1.msra.mxu0 0.0
      %3581 = vmatprep.subr.mxu0 0.0
      %3582 = vmatpush1.msra.mxu0 0.0
      %3583 = vmatprep.subr.mxu0 0.0
      %3584 = vmatpush1.msra.mxu0 0.0
      %3585 = vmatprep.subr.mxu0 0.0
      %3586 = vmatpush1.msra.mxu0 0.0
      %3587 = vmatprep.subr.mxu0 0.0
      %3588 = vmatpush1.msra.mxu0 0.0
      %3589 = vmatprep.subr.mxu0 0.0
      %3590 = vmatpush1.msra.mxu0 0.0
      %3591 = vmatprep.subr.mxu0 0.0
      %3592 = vmatpush1.msra.mxu0 0.0
      %3593 = vmatprep.subr.mxu0 0.0
      %3594 = vmatpush1.msra.mxu0 0.0
      %3595 = vmatprep.subr.mxu0 0.0
      %3596 = vmatpush1.msra.mxu0 0.0
      %3597 = vmatprep.subr.mxu0 0.0
      %3598 = vmatpush1.msra.mxu0 0.0
      %3599 = vmatprep.subr.mxu0 0.0
      %3600 = vmatpush1.msra.mxu0 0.0
      %3601 = vmatprep.subr.mxu0 0.0
      %3602 = vmatpush1.msra.mxu0 0.0
      %3603 = vmatprep.subr.mxu0 0.0
      %3604 = vmatpush1.msra.mxu0 0.0
      %3605 = vmatprep.subr.mxu0 0.0
      %3606 = vmatpush1.msra.mxu0 0.0
      %3607 = vmatprep.subr.mxu0 0.0
      %3608 = vmatpush1.msra.mxu0 0.0
      %3609 = vmatprep.subr.mxu0 0.0
      %3610 = vmatpush1.msra.mxu0 0.0
      %3611 = vmatprep.subr.mxu0 0.0
      %3612 = vmatpush1.msra.mxu0 0.0
      %3613 = vmatprep.subr.mxu0 0.0
      %3614 = vmatpush1.msra.mxu0 0.0
      %3615 = vmatprep.mubr.f32.mxu0 0.0
      %3616 = vmatmul.mubr.f32.gmra.mrb[0].mxu0 %v3456
      %v3617 = vpop.f32.mrb[0].mxu0
      %v3618 = vadd.f32 0.0, %v3617
      %v3619 = vpop.f32.mrb[0].mxu0
      %3620 = vmatprep.mubr.f32.mxu0 0.0
      %3621 = vmatmul.mubr.f32.gmra.mrb[0].mxu0 %v3459
      %v3622 = vpop.f32.mrb[0].mxu0
      %v3623 = vadd.f32 0.0, %v3622
      %v3624 = vpop.f32.mrb[0].mxu0
      %3625 = vmatprep.mubr.f32.mxu0 0.0
      %3626 = vmatmul.mubr.f32.gmra.mrb[0].mxu0 %v3462
      %v3627 = vpop.f32.mrb[0].mxu0
      %v3628 = vadd.f32 0.0, %v3627
      %v3629 = vpop.f32.mrb[0].mxu0
      %3630 = vmatprep.mubr.f32.mxu0 0.0
      %3631 = vmatmul.mubr.f32.gmra.mrb[0].mxu0 %v3465
      %v3632 = vpop.f32.mrb[0].mxu0
      %v3633 = vadd.f32 0.0, %v3632
      %v3634 = vpop.f32.mrb[0].mxu0
      %3635 = vmatprep.mubr.f32.mxu0 0.0
      %3636 = vmatmul.mubr.f32.gmra.mrb[0].mxu0 %v3468
      %v3637 = vpop.f32.mrb[0].mxu0
      %v3638 = vadd.f32 0.0, %v3637
      %v3639 = vpop.f32.mrb[0].mxu0
      %3640 = vmatprep.mubr.f32.mxu0 0.0
      %3641 = vmatmul.mubr.f32.gmra.mrb[0].mxu0 %v3471
      %v3642 = vpop.f32.mrb[0].mxu0
      %v3643 = vadd.f32 0.0, %v3642
      %v3644 = vpop.f32.mrb[0].mxu0
      %3645 = vmatprep.mubr.f32.mxu0 0.0
      %3646 = vmatmul.mubr.f32.gmra.mrb[0].mxu0 %v3474
      %v3647 = vpop.f32.mrb[0].mxu0
      %v3648 = vadd.f32 0.0, %v3647
      %v3649 = vpop.f32.mrb[0].mxu0
      %3650 = vmatprep.mubr.f32.mxu0 0.0
      %3651 = vmatmul.mubr.f32.gmra.mrb[0].mxu0 %v3477
      %v3652 = vpop.f32.mrb[0].mxu0
      %v3653 = vadd.f32 0.0, %v3652
      %v3654 = vpop.f32.mrb[0].mxu0
      %3655 = vmatprep.mubr.f32.mxu0 0.0
      %3656 = vmatmul.mubr.f32.gmra.mrb[0].mxu0 %v3480
      %v3657 = vpop.f32.mrb[0].mxu0
      %v3658 = vadd.f32 0.0, %v3657
      %v3659 = vpop.f32.mrb[0].mxu0
      %3660 = vmatprep.mubr.f32.mxu0 0.0
      %3661 = vmatmul.mubr.f32.gmra.mrb[0].mxu0 %v3483
      %v3662 = vpop.f32.mrb[0].mxu0
      %v3663 = vadd.f32 0.0, %v3662
      %v3664 = vpop.f32.mrb[0].mxu0
      %3665 = vmatprep.mubr.f32.mxu0 0.0
      %3666 = vmatmul.mubr.f32.gmra.mrb[0].mxu0 %v3486
      %v3667 = vpop.f32.mrb[0].mxu0
      %v3668 = vadd.f32 0.0, %v3667
      %v3669 = vpop.f32.mrb[0].mxu0
      %3670 = vmatprep.mubr.f32.mxu0 0.0
      %3671 = vmatmul.mubr.f32.gmra.mrb[0].mxu0 %v3489
      %v3672 = vpop.f32.mrb[0].mxu0
      %v3673 = vadd.f32 0.0, %v3672
      %v3674 = vpop.f32.mrb[0].mxu0
      %3675 = vmatprep.mubr.f32.mxu0 0.0
      %3676 = vmatmul.mubr.f32.gmra.mrb[0].mxu0 %v3492
      %v3677 = vpop.f32.mrb[0].mxu0
      %v3678 = vadd.f32 0.0, %v3677
      %v3679 = vpop.f32.mrb[0].mxu0
      %3680 = vmatprep.mubr.f32.mxu0 0.0
      %3681 = vmatmul.mubr.f32.gmra.mrb[0].mxu0 %v3495
      %v3682 = vpop.f32.mrb[0].mxu0
      %v3683 = vadd.f32 0.0, %v3682
      %v3684 = vpop.f32.mrb[0].mxu0
      %3685 = vmatprep.mubr.f32.mxu0 0.0
      %3686 = vmatmul.mubr.f32.gmra.mrb[0].mxu0 %v3498
      %v3687 = vpop.f32.mrb[0].mxu0
      %v3688 = vadd.f32 0.0, %v3687
      %v3689 = vpop.f32.mrb[0].mxu0
      %3690 = vmatprep.mubr.f32.mxu0 0.0
      %3691 = vmatmul.mubr.f32.gmra.mrb[0].mxu0 %v3501
      %v3692 = vpop.f32.mrb[0].mxu0
      %v3693 = vadd.f32 0.0, %v3692
      %v3694 = vpop.f32.mrb[0].mxu0
      %3695 = vmatprep.mubr.f32.mxu0 0.0
      %3696 = vmatmul.mubr.f32.gmra.mrb[0].mxu0 %v3504
      %v3697 = vpop.f32.mrb[0].mxu0
      %v3698 = vadd.f32 0.0, %v3697
      %v3699 = vpop.f32.mrb[0].mxu0
      %3700 = vmatprep.mubr.f32.mxu0 0.0
      %3701 = vmatmul.mubr.f32.gmra.mrb[0].mxu0 %v3507
      %v3702 = vpop.f32.mrb[0].mxu0
      %v3703 = vadd.f32 0.0, %v3702
      %v3704 = vpop.f32.mrb[0].mxu0
      %3705 = vmatprep.mubr.f32.mxu0 0.0
      %3706 = vmatmul.mubr.f32.gmra.mrb[0].mxu0 %v3510
      %v3707 = vpop.f32.mrb[0].mxu0
      %v3708 = vadd.f32 0.0, %v3707
      %v3709 = vpop.f32.mrb[0].mxu0
      %3710 = vmatprep.mubr.f32.mxu0 0.0
      %3711 = vmatmul.mubr.f32.gmra.mrb[0].mxu0 %v3513
      %v3712 = vpop.f32.mrb[0].mxu0
      %v3713 = vadd.f32 0.0, %v3712
      %v3714 = vpop.f32.mrb[0].mxu0
      %3715 = vmatprep.mubr.f32.mxu0 0.0
      %3716 = vmatmul.mubr.f32.gmra.mrb[0].mxu0 %v3516
      %v3717 = vpop.f32.mrb[0].mxu0
      %v3718 = vadd.f32 0.0, %v3717
      %v3719 = vpop.f32.mrb[0].mxu0
      %3720 = vmatprep.mubr.f32.mxu0 0.0
      %3721 = vmatmul.mubr.f32.gmra.mrb[0].mxu0 %v3519
      %v3722 = vpop.f32.mrb[0].mxu0
      %v3723 = vadd.f32 0.0, %v3722
      %v3724 = vpop.f32.mrb[0].mxu0
      %3725 = vmatprep.mubr.f32.mxu0 0.0
      %3726 = vmatmul.mubr.f32.gmra.mrb[0].mxu0 %v3522
      %v3727 = vpop.f32.mrb[0].mxu0
      %v3728 = vadd.f32 0.0, %v3727
      %v3729 = vpop.f32.mrb[0].mxu0
      %3730 = vmatprep.mubr.f32.mxu0 0.0
      %3731 = vmatmul.mubr.f32.gmra.mrb[0].mxu0 %v3525
      %v3732 = vpop.f32.mrb[0].mxu0
      %v3733 = vadd.f32 0.0, %v3732
      %v3734 = vpop.f32.mrb[0].mxu0
      %3735 = vmatprep.mubr.f32.mxu0 0.0
      %3736 = vmatmul.mubr.f32.gmra.mrb[0].mxu0 %v3528
      %v3737 = vpop.f32.mrb[0].mxu0
      %v3738 = vadd.f32 0.0, %v3737
      %v3739 = vpop.f32.mrb[0].mxu0
      %3740 = vmatprep.mubr.f32.mxu0 0.0
      %3741 = vmatmul.mubr.f32.gmra.mrb[0].mxu0 %v3531
      %v3742 = vpop.f32.mrb[0].mxu0
      %v3743 = vadd.f32 0.0, %v3742
      %v3744 = vpop.f32.mrb[0].mxu0
      %3745 = vmatprep.mubr.f32.mxu0 0.0
      %3746 = vmatmul.mubr.f32.gmra.mrb[0].mxu0 %v3534
      %v3747 = vpop.f32.mrb[0].mxu0
      %v3748 = vadd.f32 0.0, %v3747
      %v3749 = vpop.f32.mrb[0].mxu0
      %3750 = vmatprep.mubr.f32.mxu0 0.0
      %3751 = vmatmul.mubr.f32.gmra.mrb[0].mxu0 %v3537
      %v3752 = vpop.f32.mrb[0].mxu0
      %v3753 = vadd.f32 0.0, %v3752
      %v3754 = vpop.f32.mrb[0].mxu0
      %3755 = vmatprep.mubr.f32.mxu0 0.0
      %3756 = vmatmul.mubr.f32.gmra.mrb[0].mxu0 %v3540
      %v3757 = vpop.f32.mrb[0].mxu0
      %v3758 = vadd.f32 0.0, %v3757
      %v3759 = vpop.f32.mrb[0].mxu0
      %3760 = vmatprep.mubr.f32.mxu0 0.0
      %3761 = vmatmul.mubr.f32.gmra.mrb[0].mxu0 %v3543
      %v3762 = vpop.f32.mrb[0].mxu0
      %v3763 = vadd.f32 0.0, %v3762
      %v3764 = vpop.f32.mrb[0].mxu0
      %3765 = vmatprep.mubr.f32.mxu0 0.0
      %3766 = vmatmul.mubr.f32.gmra.mrb[0].mxu0 %v3546
      %v3767 = vpop.f32.mrb[0].mxu0
      %v3768 = vadd.f32 0.0, %v3767
      %v3769 = vpop.f32.mrb[0].mxu0
      %3770 = vmatprep.mubr.f32.mxu0 0.0
      %3771 = vmatmul.mubr.f32.gmra.mrb[0].mxu0 %v3549
      %v3772 = vpop.f32.mrb[0].mxu0
      %v3773 = vadd.f32 0.0, %v3772
      %v3774 = vpop.f32.mrb[0].mxu0
      %3775 = vdwg.mxu0
      %v3776 = vadd.f32 %v3388, %v3618
      %v3777 = vadd.f32 %v3389, %v3623
      %v3778 = vadd.f32 %v3390, %v3628
      %v3779 = vadd.f32 %v3391, %v3633
      %v3780 = vadd.f32 %v3392, %v3638
      %v3781 = vadd.f32 %v3393, %v3643
      %v3782 = vadd.f32 %v3394, %v3648
      %v3783 = vadd.f32 %v3395, %v3653
      %v3784 = vadd.f32 %v3396, %v3658
      %v3785 = vadd.f32 %v3397, %v3663
      %v3786 = vadd.f32 %v3398, %v3668
      %v3787 = vadd.f32 %v3399, %v3673
      %v3788 = vadd.f32 %v3400, %v3678
      %v3789 = vadd.f32 %v3401, %v3683
      %v3790 = vadd.f32 %v3402, %v3688
      %v3791 = vadd.f32 %v3403, %v3693
      %v3792 = vadd.f32 %v3404, %v3698
      %v3793 = vadd.f32 %v3405, %v3703
      %v3794 = vadd.f32 %v3406, %v3708
      %v3795 = vadd.f32 %v3407, %v3713
      %v3796 = vadd.f32 %v3408, %v3718
      %v3797 = vadd.f32 %v3409, %v3723
      %v3798 = vadd.f32 %v3410, %v3728
      %v3799 = vadd.f32 %v3411, %v3733
      %v3800 = vadd.f32 %v3412, %v3738
      %v3801 = vadd.f32 %v3413, %v3743
      %v3802 = vadd.f32 %v3414, %v3748
      %v3803 = vadd.f32 %v3415, %v3753
      %v3804 = vadd.f32 %v3416, %v3758
      %v3805 = vadd.f32 %v3417, %v3763
      %v3806 = vadd.f32 %v3418, %v3768
      %v3807 = vadd.f32 %v3419, %v3773
      %v3808 = vld [vmem:[%s3420 + $0x1] sm:$0xff]
      %v3809 = vld [vmem:[%s3420 + $0x9] sm:$0xff]
      %v3810 = vld [vmem:[%s3420 + $0x19] sm:$0xff]
      %v3811 = vld [vmem:[%s3420 + $0x21] sm:$0xff]
      %v3812 = vld [vmem:[%s3420 + $0x31] sm:$0xff]
      %v3813 = vld [vmem:[%s3420 + $0x39] sm:$0xff]
      %v3814 = vld [vmem:[%s3420 + $0x49] sm:$0xff]
      %v3815 = vld [vmem:[%s3420 + $0x51] sm:$0xff]
      %v3816 = vld [vmem:[%s3420 + $0x61] sm:$0xff]
      %v3817 = vld [vmem:[%s3420 + $0x69] sm:$0xff]
      %v3818 = vld [vmem:[%s3420 + $0x79] sm:$0xff]
      %v3819 = vld [vmem:[%s3420 + $0x81] sm:$0xff]
      %v3820 = vld [vmem:[%s3420 + $0x91] sm:$0xff]
      %v3821 = vld [vmem:[%s3420 + $0x99] sm:$0xff]
      %v3822 = vld [vmem:[%s3420 + $0xa9] sm:$0xff]
      %v3823 = vld [vmem:[%s3420 + $0xb1] sm:$0xff]
      %v3824 = vld [vmem:[%s3420 + $0xc1] sm:$0xff]
      %v3825 = vld [vmem:[%s3420 + $0xc9] sm:$0xff]
      %v3826 = vld [vmem:[%s3420 + $0xd9] sm:$0xff]
      %v3827 = vld [vmem:[%s3420 + $0xe1] sm:$0xff]
      %v3828 = vld [vmem:[%s3420 + $0xf1] sm:$0xff]
      %v3829 = vld [vmem:[%s3420 + $0xf9] sm:$0xff]
      %v3830 = vld [vmem:[%s3420 + $0x109] sm:$0xff]
      %v3831 = vld [vmem:[%s3420 + $0x111] sm:$0xff]
      %v3832 = vld [vmem:[%s3420 + $0x121] sm:$0xff]
      %v3833 = vld [vmem:[%s3420 + $0x129] sm:$0xff]
      %v3834 = vld [vmem:[%s3420 + $0x139] sm:$0xff]
      %v3835 = vld [vmem:[%s3420 + $0x141] sm:$0xff]
      %v3836 = vld [vmem:[%s3420 + $0x151] sm:$0xff]
      %v3837 = vld [vmem:[%s3420 + $0x159] sm:$0xff]
      %v3838 = vld [vmem:[%s3420 + $0x169] sm:$0xff]
      %v3839 = vld [vmem:[%s3420 + $0x171] sm:$0xff]
      %s3840 = scalar_lea.vmem %s5, 56
      %v3841 = vld [vmem:[%s3840] sm:$0xff]
      %v3843 = vsel %vm588, %v3808, 0
      %v3846 = vsel %vm588, %v3809, 0
      %v3849 = vsel %vm588, %v3810, 0
      %v3852 = vsel %vm588, %v3811, 0
      %v3855 = vsel %vm588, %v3812, 0
      %v3858 = vsel %vm588, %v3813, 0
      %v3861 = vsel %vm588, %v3814, 0
      %v3864 = vsel %vm588, %v3815, 0
      %v3867 = vsel %vm588, %v3816, 0
      %v3870 = vsel %vm588, %v3817, 0
      %v3873 = vsel %vm588, %v3818, 0
      %v3876 = vsel %vm588, %v3819, 0
      %v3879 = vsel %vm588, %v3820, 0
      %v3882 = vsel %vm588, %v3821, 0
      %v3885 = vsel %vm588, %v3822, 0
      %v3888 = vsel %vm588, %v3823, 0
      %v3891 = vsel %vm588, %v3824, 0
      %v3894 = vsel %vm588, %v3825, 0
      %v3897 = vsel %vm588, %v3826, 0
      %v3900 = vsel %vm588, %v3827, 0
      %v3903 = vsel %vm588, %v3828, 0
      %v3906 = vsel %vm588, %v3829, 0
      %v3909 = vsel %vm588, %v3830, 0
      %v3912 = vsel %vm588, %v3831, 0
      %v3915 = vsel %vm588, %v3832, 0
      %v3918 = vsel %vm588, %v3833, 0
      %v3921 = vsel %vm588, %v3834, 0
      %v3924 = vsel %vm588, %v3835, 0
      %v3927 = vsel %vm588, %v3836, 0
      %v3930 = vsel %vm588, %v3837, 0
      %v3933 = vsel %vm588, %v3838, 0
      %v3936 = vsel %vm588, %v3839, 0
      %3938 = vmatprep.subr.mxu0 0.0
      %3939 = vmatpush1.msra.mxu0 %v3841
      %3940 = vmatprep.subr.mxu0 0.0
      %3941 = vmatpush1.msra.mxu0 0.0
      %3942 = vmatprep.subr.mxu0 0.0
      %3943 = vmatpush1.msra.mxu0 0.0
      %3944 = vmatprep.subr.mxu0 0.0
      %3945 = vmatpush1.msra.mxu0 0.0
      %3946 = vmatprep.subr.mxu0 0.0
      %3947 = vmatpush1.msra.mxu0 0.0
      %3948 = vmatprep.subr.mxu0 0.0
      %3949 = vmatpush1.msra.mxu0 0.0
      %3950 = vmatprep.subr.mxu0 0.0
      %3951 = vmatpush1.msra.mxu0 0.0
      %3952 = vmatprep.subr.mxu0 0.0
      %3953 = vmatpush1.msra.mxu0 0.0
      %3954 = vmatprep.subr.mxu0 0.0
      %3955 = vmatpush1.msra.mxu0 0.0
      %3956 = vmatprep.subr.mxu0 0.0
      %3957 = vmatpush1.msra.mxu0 0.0
      %3958 = vmatprep.subr.mxu0 0.0
      %3959 = vmatpush1.msra.mxu0 0.0
      %3960 = vmatprep.subr.mxu0 0.0
      %3961 = vmatpush1.msra.mxu0 0.0
      %3962 = vmatprep.subr.mxu0 0.0
      %3963 = vmatpush1.msra.mxu0 0.0
      %3964 = vmatprep.subr.mxu0 0.0
      %3965 = vmatpush1.msra.mxu0 0.0
      %3966 = vmatprep.subr.mxu0 0.0
      %3967 = vmatpush1.msra.mxu0 0.0
      %3968 = vmatprep.subr.mxu0 0.0
      %3969 = vmatpush1.msra.mxu0 0.0
      %3970 = vmatprep.subr.mxu0 0.0
      %3971 = vmatpush1.msra.mxu0 0.0
      %3972 = vmatprep.subr.mxu0 0.0
      %3973 = vmatpush1.msra.mxu0 0.0
      %3974 = vmatprep.subr.mxu0 0.0
      %3975 = vmatpush1.msra.mxu0 0.0
      %3976 = vmatprep.subr.mxu0 0.0
      %3977 = vmatpush1.msra.mxu0 0.0
      %3978 = vmatprep.subr.mxu0 0.0
      %3979 = vmatpush1.msra.mxu0 0.0
      %3980 = vmatprep.subr.mxu0 0.0
      %3981 = vmatpush1.msra.mxu0 0.0
      %3982 = vmatprep.subr.mxu0 0.0
      %3983 = vmatpush1.msra.mxu0 0.0
      %3984 = vmatprep.subr.mxu0 0.0
      %3985 = vmatpush1.msra.mxu0 0.0
      %3986 = vmatprep.subr.mxu0 0.0
      %3987 = vmatpush1.msra.mxu0 0.0
      %3988 = vmatprep.subr.mxu0 0.0
      %3989 = vmatpush1.msra.mxu0 0.0
      %3990 = vmatprep.subr.mxu0 0.0
      %3991 = vmatpush1.msra.mxu0 0.0
      %3992 = vmatprep.subr.mxu0 0.0
      %3993 = vmatpush1.msra.mxu0 0.0
      %3994 = vmatprep.subr.mxu0 0.0
      %3995 = vmatpush1.msra.mxu0 0.0
      %3996 = vmatprep.subr.mxu0 0.0
      %3997 = vmatpush1.msra.mxu0 0.0
      %3998 = vmatprep.subr.mxu0 0.0
      %3999 = vmatpush1.msra.mxu0 0.0
      %4000 = vmatprep.subr.mxu0 0.0
      %4001 = vmatpush1.msra.mxu0 0.0
      %4002 = vmatprep.mubr.f32.mxu0 0.0
      %4003 = vmatmul.mubr.f32.gmra.mrb[0].mxu0 %v3843
      %v4004 = vpop.f32.mrb[0].mxu0
      %v4005 = vadd.f32 0.0, %v4004
      %v4006 = vpop.f32.mrb[0].mxu0
      %4007 = vmatprep.mubr.f32.mxu0 0.0
      %4008 = vmatmul.mubr.f32.gmra.mrb[0].mxu0 %v3846
      %v4009 = vpop.f32.mrb[0].mxu0
      %v4010 = vadd.f32 0.0, %v4009
      %v4011 = vpop.f32.mrb[0].mxu0
      %4012 = vmatprep.mubr.f32.mxu0 0.0
      %4013 = vmatmul.mubr.f32.gmra.mrb[0].mxu0 %v3849
      %v4014 = vpop.f32.mrb[0].mxu0
      %v4015 = vadd.f32 0.0, %v4014
      %v4016 = vpop.f32.mrb[0].mxu0
      %4017 = vmatprep.mubr.f32.mxu0 0.0
      %4018 = vmatmul.mubr.f32.gmra.mrb[0].mxu0 %v3852
      %v4019 = vpop.f32.mrb[0].mxu0
      %v4020 = vadd.f32 0.0, %v4019
      %v4021 = vpop.f32.mrb[0].mxu0
      %4022 = vmatprep.mubr.f32.mxu0 0.0
      %4023 = vmatmul.mubr.f32.gmra.mrb[0].mxu0 %v3855
      %v4024 = vpop.f32.mrb[0].mxu0
      %v4025 = vadd.f32 0.0, %v4024
      %v4026 = vpop.f32.mrb[0].mxu0
      %4027 = vmatprep.mubr.f32.mxu0 0.0
      %4028 = vmatmul.mubr.f32.gmra.mrb[0].mxu0 %v3858
      %v4029 = vpop.f32.mrb[0].mxu0
      %v4030 = vadd.f32 0.0, %v4029
      %v4031 = vpop.f32.mrb[0].mxu0
      %4032 = vmatprep.mubr.f32.mxu0 0.0
      %4033 = vmatmul.mubr.f32.gmra.mrb[0].mxu0 %v3861
      %v4034 = vpop.f32.mrb[0].mxu0
      %v4035 = vadd.f32 0.0, %v4034
      %v4036 = vpop.f32.mrb[0].mxu0
      %4037 = vmatprep.mubr.f32.mxu0 0.0
      %4038 = vmatmul.mubr.f32.gmra.mrb[0].mxu0 %v3864
      %v4039 = vpop.f32.mrb[0].mxu0
      %v4040 = vadd.f32 0.0, %v4039
      %v4041 = vpop.f32.mrb[0].mxu0
      %4042 = vmatprep.mubr.f32.mxu0 0.0
      %4043 = vmatmul.mubr.f32.gmra.mrb[0].mxu0 %v3867
      %v4044 = vpop.f32.mrb[0].mxu0
      %v4045 = vadd.f32 0.0, %v4044
      %v4046 = vpop.f32.mrb[0].mxu0
      %4047 = vmatprep.mubr.f32.mxu0 0.0
      %4048 = vmatmul.mubr.f32.gmra.mrb[0].mxu0 %v3870
      %v4049 = vpop.f32.mrb[0].mxu0
      %v4050 = vadd.f32 0.0, %v4049
      %v4051 = vpop.f32.mrb[0].mxu0
      %4052 = vmatprep.mubr.f32.mxu0 0.0
      %4053 = vmatmul.mubr.f32.gmra.mrb[0].mxu0 %v3873
      %v4054 = vpop.f32.mrb[0].mxu0
      %v4055 = vadd.f32 0.0, %v4054
      %v4056 = vpop.f32.mrb[0].mxu0
      %4057 = vmatprep.mubr.f32.mxu0 0.0
      %4058 = vmatmul.mubr.f32.gmra.mrb[0].mxu0 %v3876
      %v4059 = vpop.f32.mrb[0].mxu0
      %v4060 = vadd.f32 0.0, %v4059
      %v4061 = vpop.f32.mrb[0].mxu0
      %4062 = vmatprep.mubr.f32.mxu0 0.0
      %4063 = vmatmul.mubr.f32.gmra.mrb[0].mxu0 %v3879
      %v4064 = vpop.f32.mrb[0].mxu0
      %v4065 = vadd.f32 0.0, %v4064
      %v4066 = vpop.f32.mrb[0].mxu0
      %4067 = vmatprep.mubr.f32.mxu0 0.0
      %4068 = vmatmul.mubr.f32.gmra.mrb[0].mxu0 %v3882
      %v4069 = vpop.f32.mrb[0].mxu0
      %v4070 = vadd.f32 0.0, %v4069
      %v4071 = vpop.f32.mrb[0].mxu0
      %4072 = vmatprep.mubr.f32.mxu0 0.0
      %4073 = vmatmul.mubr.f32.gmra.mrb[0].mxu0 %v3885
      %v4074 = vpop.f32.mrb[0].mxu0
      %v4075 = vadd.f32 0.0, %v4074
      %v4076 = vpop.f32.mrb[0].mxu0
      %4077 = vmatprep.mubr.f32.mxu0 0.0
      %4078 = vmatmul.mubr.f32.gmra.mrb[0].mxu0 %v3888
      %v4079 = vpop.f32.mrb[0].mxu0
      %v4080 = vadd.f32 0.0, %v4079
      %v4081 = vpop.f32.mrb[0].mxu0
      %4082 = vmatprep.mubr.f32.mxu0 0.0
      %4083 = vmatmul.mubr.f32.gmra.mrb[0].mxu0 %v3891
      %v4084 = vpop.f32.mrb[0].mxu0
      %v4085 = vadd.f32 0.0, %v4084
      %v4086 = vpop.f32.mrb[0].mxu0
      %4087 = vmatprep.mubr.f32.mxu0 0.0
      %4088 = vmatmul.mubr.f32.gmra.mrb[0].mxu0 %v3894
      %v4089 = vpop.f32.mrb[0].mxu0
      %v4090 = vadd.f32 0.0, %v4089
      %v4091 = vpop.f32.mrb[0].mxu0
      %4092 = vmatprep.mubr.f32.mxu0 0.0
      %4093 = vmatmul.mubr.f32.gmra.mrb[0].mxu0 %v3897
      %v4094 = vpop.f32.mrb[0].mxu0
      %v4095 = vadd.f32 0.0, %v4094
      %v4096 = vpop.f32.mrb[0].mxu0
      %4097 = vmatprep.mubr.f32.mxu0 0.0
      %4098 = vmatmul.mubr.f32.gmra.mrb[0].mxu0 %v3900
      %v4099 = vpop.f32.mrb[0].mxu0
      %v4100 = vadd.f32 0.0, %v4099
      %v4101 = vpop.f32.mrb[0].mxu0
      %4102 = vmatprep.mubr.f32.mxu0 0.0
      %4103 = vmatmul.mubr.f32.gmra.mrb[0].mxu0 %v3903
      %v4104 = vpop.f32.mrb[0].mxu0
      %v4105 = vadd.f32 0.0, %v4104
      %v4106 = vpop.f32.mrb[0].mxu0
      %4107 = vmatprep.mubr.f32.mxu0 0.0
      %4108 = vmatmul.mubr.f32.gmra.mrb[0].mxu0 %v3906
      %v4109 = vpop.f32.mrb[0].mxu0
      %v4110 = vadd.f32 0.0, %v4109
      %v4111 = vpop.f32.mrb[0].mxu0
      %4112 = vmatprep.mubr.f32.mxu0 0.0
      %4113 = vmatmul.mubr.f32.gmra.mrb[0].mxu0 %v3909
      %v4114 = vpop.f32.mrb[0].mxu0
      %v4115 = vadd.f32 0.0, %v4114
      %v4116 = vpop.f32.mrb[0].mxu0
      %4117 = vmatprep.mubr.f32.mxu0 0.0
      %4118 = vmatmul.mubr.f32.gmra.mrb[0].mxu0 %v3912
      %v4119 = vpop.f32.mrb[0].mxu0
      %v4120 = vadd.f32 0.0, %v4119
      %v4121 = vpop.f32.mrb[0].mxu0
      %4122 = vmatprep.mubr.f32.mxu0 0.0
      %4123 = vmatmul.mubr.f32.gmra.mrb[0].mxu0 %v3915
      %v4124 = vpop.f32.mrb[0].mxu0
      %v4125 = vadd.f32 0.0, %v4124
      %v4126 = vpop.f32.mrb[0].mxu0
      %4127 = vmatprep.mubr.f32.mxu0 0.0
      %4128 = vmatmul.mubr.f32.gmra.mrb[0].mxu0 %v3918
      %v4129 = vpop.f32.mrb[0].mxu0
      %v4130 = vadd.f32 0.0, %v4129
      %v4131 = vpop.f32.mrb[0].mxu0
      %4132 = vmatprep.mubr.f32.mxu0 0.0
      %4133 = vmatmul.mubr.f32.gmra.mrb[0].mxu0 %v3921
      %v4134 = vpop.f32.mrb[0].mxu0
      %v4135 = vadd.f32 0.0, %v4134
      %v4136 = vpop.f32.mrb[0].mxu0
      %4137 = vmatprep.mubr.f32.mxu0 0.0
      %4138 = vmatmul.mubr.f32.gmra.mrb[0].mxu0 %v3924
      %v4139 = vpop.f32.mrb[0].mxu0
      %v4140 = vadd.f32 0.0, %v4139
      %v4141 = vpop.f32.mrb[0].mxu0
      %4142 = vmatprep.mubr.f32.mxu0 0.0
      %4143 = vmatmul.mubr.f32.gmra.mrb[0].mxu0 %v3927
      %v4144 = vpop.f32.mrb[0].mxu0
      %v4145 = vadd.f32 0.0, %v4144
      %v4146 = vpop.f32.mrb[0].mxu0
      %4147 = vmatprep.mubr.f32.mxu0 0.0
      %4148 = vmatmul.mubr.f32.gmra.mrb[0].mxu0 %v3930
      %v4149 = vpop.f32.mrb[0].mxu0
      %v4150 = vadd.f32 0.0, %v4149
      %v4151 = vpop.f32.mrb[0].mxu0
      %4152 = vmatprep.mubr.f32.mxu0 0.0
      %4153 = vmatmul.mubr.f32.gmra.mrb[0].mxu0 %v3933
      %v4154 = vpop.f32.mrb[0].mxu0
      %v4155 = vadd.f32 0.0, %v4154
      %v4156 = vpop.f32.mrb[0].mxu0
      %4157 = vmatprep.mubr.f32.mxu0 0.0
      %4158 = vmatmul.mubr.f32.gmra.mrb[0].mxu0 %v3936
      %v4159 = vpop.f32.mrb[0].mxu0
      %v4160 = vadd.f32 0.0, %v4159
      %v4161 = vpop.f32.mrb[0].mxu0
      %4162 = vdwg.mxu0
      %v4163 = vadd.f32 %v3776, %v4005
      %v4164 = vadd.f32 %v3777, %v4010
      %v4165 = vadd.f32 %v3778, %v4015
      %v4166 = vadd.f32 %v3779, %v4020
      %v4167 = vadd.f32 %v3780, %v4025
      %v4168 = vadd.f32 %v3781, %v4030
      %v4169 = vadd.f32 %v3782, %v4035
      %v4170 = vadd.f32 %v3783, %v4040
      %v4171 = vadd.f32 %v3784, %v4045
      %v4172 = vadd.f32 %v3785, %v4050
      %v4173 = vadd.f32 %v3786, %v4055
      %v4174 = vadd.f32 %v3787, %v4060
      %v4175 = vadd.f32 %v3788, %v4065
      %v4176 = vadd.f32 %v3789, %v4070
      %v4177 = vadd.f32 %v3790, %v4075
      %v4178 = vadd.f32 %v3791, %v4080
      %v4179 = vadd.f32 %v3792, %v4085
      %v4180 = vadd.f32 %v3793, %v4090
      %v4181 = vadd.f32 %v3794, %v4095
      %v4182 = vadd.f32 %v3795, %v4100
      %v4183 = vadd.f32 %v3796, %v4105
      %v4184 = vadd.f32 %v3797, %v4110
      %v4185 = vadd.f32 %v3798, %v4115
      %v4186 = vadd.f32 %v3799, %v4120
      %v4187 = vadd.f32 %v3800, %v4125
      %v4188 = vadd.f32 %v3801, %v4130
      %v4189 = vadd.f32 %v3802, %v4135
      %v4190 = vadd.f32 %v3803, %v4140
      %v4191 = vadd.f32 %v3804, %v4145
      %v4192 = vadd.f32 %v3805, %v4150
      %v4193 = vadd.f32 %v3806, %v4155
      %v4194 = vadd.f32 %v3807, %v4160
      %v4195 = vld [vmem:[%s3420 + $0x2] sm:$0xff]
      %v4196 = vld [vmem:[%s3420 + $0xa] sm:$0xff]
      %v4197 = vld [vmem:[%s3420 + $0x1a] sm:$0xff]
      %v4198 = vld [vmem:[%s3420 + $0x22] sm:$0xff]
      %v4199 = vld [vmem:[%s3420 + $0x32] sm:$0xff]
      %v4200 = vld [vmem:[%s3420 + $0x3a] sm:$0xff]
      %v4201 = vld [vmem:[%s3420 + $0x4a] sm:$0xff]
      %v4202 = vld [vmem:[%s3420 + $0x52] sm:$0xff]
      %v4203 = vld [vmem:[%s3420 + $0x62] sm:$0xff]
      %v4204 = vld [vmem:[%s3420 + $0x6a] sm:$0xff]
      %v4205 = vld [vmem:[%s3420 + $0x7a] sm:$0xff]
      %v4206 = vld [vmem:[%s3420 + $0x82] sm:$0xff]
      %v4207 = vld [vmem:[%s3420 + $0x92] sm:$0xff]
      %v4208 = vld [vmem:[%s3420 + $0x9a] sm:$0xff]
      %v4209 = vld [vmem:[%s3420 + $0xaa] sm:$0xff]
      %v4210 = vld [vmem:[%s3420 + $0xb2] sm:$0xff]
      %v4211 = vld [vmem:[%s3420 + $0xc2] sm:$0xff]
      %v4212 = vld [vmem:[%s3420 + $0xca] sm:$0xff]
      %v4213 = vld [vmem:[%s3420 + $0xda] sm:$0xff]
      %v4214 = vld [vmem:[%s3420 + $0xe2] sm:$0xff]
      %v4215 = vld [vmem:[%s3420 + $0xf2] sm:$0xff]
      %v4216 = vld [vmem:[%s3420 + $0xfa] sm:$0xff]
      %v4217 = vld [vmem:[%s3420 + $0x10a] sm:$0xff]
      %v4218 = vld [vmem:[%s3420 + $0x112] sm:$0xff]
      %v4219 = vld [vmem:[%s3420 + $0x122] sm:$0xff]
      %v4220 = vld [vmem:[%s3420 + $0x12a] sm:$0xff]
      %v4221 = vld [vmem:[%s3420 + $0x13a] sm:$0xff]
      %v4222 = vld [vmem:[%s3420 + $0x142] sm:$0xff]
      %v4223 = vld [vmem:[%s3420 + $0x152] sm:$0xff]
      %v4224 = vld [vmem:[%s3420 + $0x15a] sm:$0xff]
      %v4225 = vld [vmem:[%s3420 + $0x16a] sm:$0xff]
      %v4226 = vld [vmem:[%s3420 + $0x172] sm:$0xff]
      %s4227 = scalar_lea.vmem %s5, 64
      %v4228 = vld [vmem:[%s4227] sm:$0xff]
      %v4230 = vsel %vm588, %v4195, 0
      %v4233 = vsel %vm588, %v4196, 0
      %v4236 = vsel %vm588, %v4197, 0
      %v4239 = vsel %vm588, %v4198, 0
      %v4242 = vsel %vm588, %v4199, 0
      %v4245 = vsel %vm588, %v4200, 0
      %v4248 = vsel %vm588, %v4201, 0
      %v4251 = vsel %vm588, %v4202, 0
      %v4254 = vsel %vm588, %v4203, 0
      %v4257 = vsel %vm588, %v4204, 0
      %v4260 = vsel %vm588, %v4205, 0
      %v4263 = vsel %vm588, %v4206, 0
      %v4266 = vsel %vm588, %v4207, 0
      %v4269 = vsel %vm588, %v4208, 0
      %v4272 = vsel %vm588, %v4209, 0
      %v4275 = vsel %vm588, %v4210, 0
      %v4278 = vsel %vm588, %v4211, 0
      %v4281 = vsel %vm588, %v4212, 0
      %v4284 = vsel %vm588, %v4213, 0
      %v4287 = vsel %vm588, %v4214, 0
      %v4290 = vsel %vm588, %v4215, 0
      %v4293 = vsel %vm588, %v4216, 0
      %v4296 = vsel %vm588, %v4217, 0
      %v4299 = vsel %vm588, %v4218, 0
      %v4302 = vsel %vm588, %v4219, 0
      %v4305 = vsel %vm588, %v4220, 0
      %v4308 = vsel %vm588, %v4221, 0
      %v4311 = vsel %vm588, %v4222, 0
      %v4314 = vsel %vm588, %v4223, 0
      %v4317 = vsel %vm588, %v4224, 0
      %v4320 = vsel %vm588, %v4225, 0
      %v4323 = vsel %vm588, %v4226, 0
      %4325 = vmatprep.subr.mxu0 0.0
      %4326 = vmatpush1.msra.mxu0 %v4228
      %4327 = vmatprep.subr.mxu0 0.0
      %4328 = vmatpush1.msra.mxu0 0.0
      %4329 = vmatprep.subr.mxu0 0.0
      %4330 = vmatpush1.msra.mxu0 0.0
      %4331 = vmatprep.subr.mxu0 0.0
      %4332 = vmatpush1.msra.mxu0 0.0
      %4333 = vmatprep.subr.mxu0 0.0
      %4334 = vmatpush1.msra.mxu0 0.0
      %4335 = vmatprep.subr.mxu0 0.0
      %4336 = vmatpush1.msra.mxu0 0.0
      %4337 = vmatprep.subr.mxu0 0.0
      %4338 = vmatpush1.msra.mxu0 0.0
      %4339 = vmatprep.subr.mxu0 0.0
      %4340 = vmatpush1.msra.mxu0 0.0
      %4341 = vmatprep.subr.mxu0 0.0
      %4342 = vmatpush1.msra.mxu0 0.0
      %4343 = vmatprep.subr.mxu0 0.0
      %4344 = vmatpush1.msra.mxu0 0.0
      %4345 = vmatprep.subr.mxu0 0.0
      %4346 = vmatpush1.msra.mxu0 0.0
      %4347 = vmatprep.subr.mxu0 0.0
      %4348 = vmatpush1.msra.mxu0 0.0
      %4349 = vmatprep.subr.mxu0 0.0
      %4350 = vmatpush1.msra.mxu0 0.0
      %4351 = vmatprep.subr.mxu0 0.0
      %4352 = vmatpush1.msra.mxu0 0.0
      %4353 = vmatprep.subr.mxu0 0.0
      %4354 = vmatpush1.msra.mxu0 0.0
      %4355 = vmatprep.subr.mxu0 0.0
      %4356 = vmatpush1.msra.mxu0 0.0
      %4357 = vmatprep.subr.mxu0 0.0
      %4358 = vmatpush1.msra.mxu0 0.0
      %4359 = vmatprep.subr.mxu0 0.0
      %4360 = vmatpush1.msra.mxu0 0.0
      %4361 = vmatprep.subr.mxu0 0.0
      %4362 = vmatpush1.msra.mxu0 0.0
      %4363 = vmatprep.subr.mxu0 0.0
      %4364 = vmatpush1.msra.mxu0 0.0
      %4365 = vmatprep.subr.mxu0 0.0
      %4366 = vmatpush1.msra.mxu0 0.0
      %4367 = vmatprep.subr.mxu0 0.0
      %4368 = vmatpush1.msra.mxu0 0.0
      %4369 = vmatprep.subr.mxu0 0.0
      %4370 = vmatpush1.msra.mxu0 0.0
      %4371 = vmatprep.subr.mxu0 0.0
      %4372 = vmatpush1.msra.mxu0 0.0
      %4373 = vmatprep.subr.mxu0 0.0
      %4374 = vmatpush1.msra.mxu0 0.0
      %4375 = vmatprep.subr.mxu0 0.0
      %4376 = vmatpush1.msra.mxu0 0.0
      %4377 = vmatprep.subr.mxu0 0.0
      %4378 = vmatpush1.msra.mxu0 0.0
      %4379 = vmatprep.subr.mxu0 0.0
      %4380 = vmatpush1.msra.mxu0 0.0
      %4381 = vmatprep.subr.mxu0 0.0
      %4382 = vmatpush1.msra.mxu0 0.0
      %4383 = vmatprep.subr.mxu0 0.0
      %4384 = vmatpush1.msra.mxu0 0.0
      %4385 = vmatprep.subr.mxu0 0.0
      %4386 = vmatpush1.msra.mxu0 0.0
      %4387 = vmatprep.subr.mxu0 0.0
      %4388 = vmatpush1.msra.mxu0 0.0
      %4389 = vmatprep.mubr.f32.mxu0 0.0
      %4390 = vmatmul.mubr.f32.gmra.mrb[0].mxu0 %v4230
      %v4391 = vpop.f32.mrb[0].mxu0
      %v4392 = vadd.f32 0.0, %v4391
      %v4393 = vpop.f32.mrb[0].mxu0
      %4394 = vmatprep.mubr.f32.mxu0 0.0
      %4395 = vmatmul.mubr.f32.gmra.mrb[0].mxu0 %v4233
      %v4396 = vpop.f32.mrb[0].mxu0
      %v4397 = vadd.f32 0.0, %v4396
      %v4398 = vpop.f32.mrb[0].mxu0
      %4399 = vmatprep.mubr.f32.mxu0 0.0
      %4400 = vmatmul.mubr.f32.gmra.mrb[0].mxu0 %v4236
      %v4401 = vpop.f32.mrb[0].mxu0
      %v4402 = vadd.f32 0.0, %v4401
      %v4403 = vpop.f32.mrb[0].mxu0
      %4404 = vmatprep.mubr.f32.mxu0 0.0
      %4405 = vmatmul.mubr.f32.gmra.mrb[0].mxu0 %v4239
      %v4406 = vpop.f32.mrb[0].mxu0
      %v4407 = vadd.f32 0.0, %v4406
      %v4408 = vpop.f32.mrb[0].mxu0
      %4409 = vmatprep.mubr.f32.mxu0 0.0
      %4410 = vmatmul.mubr.f32.gmra.mrb[0].mxu0 %v4242
      %v4411 = vpop.f32.mrb[0].mxu0
      %v4412 = vadd.f32 0.0, %v4411
      %v4413 = vpop.f32.mrb[0].mxu0
      %4414 = vmatprep.mubr.f32.mxu0 0.0
      %4415 = vmatmul.mubr.f32.gmra.mrb[0].mxu0 %v4245
      %v4416 = vpop.f32.mrb[0].mxu0
      %v4417 = vadd.f32 0.0, %v4416
      %v4418 = vpop.f32.mrb[0].mxu0
      %4419 = vmatprep.mubr.f32.mxu0 0.0
      %4420 = vmatmul.mubr.f32.gmra.mrb[0].mxu0 %v4248
      %v4421 = vpop.f32.mrb[0].mxu0
      %v4422 = vadd.f32 0.0, %v4421
      %v4423 = vpop.f32.mrb[0].mxu0
      %4424 = vmatprep.mubr.f32.mxu0 0.0
      %4425 = vmatmul.mubr.f32.gmra.mrb[0].mxu0 %v4251
      %v4426 = vpop.f32.mrb[0].mxu0
      %v4427 = vadd.f32 0.0, %v4426
      %v4428 = vpop.f32.mrb[0].mxu0
      %4429 = vmatprep.mubr.f32.mxu0 0.0
      %4430 = vmatmul.mubr.f32.gmra.mrb[0].mxu0 %v4254
      %v4431 = vpop.f32.mrb[0].mxu0
      %v4432 = vadd.f32 0.0, %v4431
      %v4433 = vpop.f32.mrb[0].mxu0
      %4434 = vmatprep.mubr.f32.mxu0 0.0
      %4435 = vmatmul.mubr.f32.gmra.mrb[0].mxu0 %v4257
      %v4436 = vpop.f32.mrb[0].mxu0
      %v4437 = vadd.f32 0.0, %v4436
      %v4438 = vpop.f32.mrb[0].mxu0
      %4439 = vmatprep.mubr.f32.mxu0 0.0
      %4440 = vmatmul.mubr.f32.gmra.mrb[0].mxu0 %v4260
      %v4441 = vpop.f32.mrb[0].mxu0
      %v4442 = vadd.f32 0.0, %v4441
      %v4443 = vpop.f32.mrb[0].mxu0
      %4444 = vmatprep.mubr.f32.mxu0 0.0
      %4445 = vmatmul.mubr.f32.gmra.mrb[0].mxu0 %v4263
      %v4446 = vpop.f32.mrb[0].mxu0
      %v4447 = vadd.f32 0.0, %v4446
      %v4448 = vpop.f32.mrb[0].mxu0
      %4449 = vmatprep.mubr.f32.mxu0 0.0
      %4450 = vmatmul.mubr.f32.gmra.mrb[0].mxu0 %v4266
      %v4451 = vpop.f32.mrb[0].mxu0
      %v4452 = vadd.f32 0.0, %v4451
      %v4453 = vpop.f32.mrb[0].mxu0
      %4454 = vmatprep.mubr.f32.mxu0 0.0
      %4455 = vmatmul.mubr.f32.gmra.mrb[0].mxu0 %v4269
      %v4456 = vpop.f32.mrb[0].mxu0
      %v4457 = vadd.f32 0.0, %v4456
      %v4458 = vpop.f32.mrb[0].mxu0
      %4459 = vmatprep.mubr.f32.mxu0 0.0
      %4460 = vmatmul.mubr.f32.gmra.mrb[0].mxu0 %v4272
      %v4461 = vpop.f32.mrb[0].mxu0
      %v4462 = vadd.f32 0.0, %v4461
      %v4463 = vpop.f32.mrb[0].mxu0
      %4464 = vmatprep.mubr.f32.mxu0 0.0
      %4465 = vmatmul.mubr.f32.gmra.mrb[0].mxu0 %v4275
      %v4466 = vpop.f32.mrb[0].mxu0
      %v4467 = vadd.f32 0.0, %v4466
      %v4468 = vpop.f32.mrb[0].mxu0
      %4469 = vmatprep.mubr.f32.mxu0 0.0
      %4470 = vmatmul.mubr.f32.gmra.mrb[0].mxu0 %v4278
      %v4471 = vpop.f32.mrb[0].mxu0
      %v4472 = vadd.f32 0.0, %v4471
      %v4473 = vpop.f32.mrb[0].mxu0
      %4474 = vmatprep.mubr.f32.mxu0 0.0
      %4475 = vmatmul.mubr.f32.gmra.mrb[0].mxu0 %v4281
      %v4476 = vpop.f32.mrb[0].mxu0
      %v4477 = vadd.f32 0.0, %v4476
      %v4478 = vpop.f32.mrb[0].mxu0
      %4479 = vmatprep.mubr.f32.mxu0 0.0
      %4480 = vmatmul.mubr.f32.gmra.mrb[0].mxu0 %v4284
      %v4481 = vpop.f32.mrb[0].mxu0
      %v4482 = vadd.f32 0.0, %v4481
      %v4483 = vpop.f32.mrb[0].mxu0
      %4484 = vmatprep.mubr.f32.mxu0 0.0
      %4485 = vmatmul.mubr.f32.gmra.mrb[0].mxu0 %v4287
      %v4486 = vpop.f32.mrb[0].mxu0
      %v4487 = vadd.f32 0.0, %v4486
      %v4488 = vpop.f32.mrb[0].mxu0
      %4489 = vmatprep.mubr.f32.mxu0 0.0
      %4490 = vmatmul.mubr.f32.gmra.mrb[0].mxu0 %v4290
      %v4491 = vpop.f32.mrb[0].mxu0
      %v4492 = vadd.f32 0.0, %v4491
      %v4493 = vpop.f32.mrb[0].mxu0
      %4494 = vmatprep.mubr.f32.mxu0 0.0
      %4495 = vmatmul.mubr.f32.gmra.mrb[0].mxu0 %v4293
      %v4496 = vpop.f32.mrb[0].mxu0
      %v4497 = vadd.f32 0.0, %v4496
      %v4498 = vpop.f32.mrb[0].mxu0
      %4499 = vmatprep.mubr.f32.mxu0 0.0
      %4500 = vmatmul.mubr.f32.gmra.mrb[0].mxu0 %v4296
      %v4501 = vpop.f32.mrb[0].mxu0
      %v4502 = vadd.f32 0.0, %v4501
      %v4503 = vpop.f32.mrb[0].mxu0
      %4504 = vmatprep.mubr.f32.mxu0 0.0
      %4505 = vmatmul.mubr.f32.gmra.mrb[0].mxu0 %v4299
      %v4506 = vpop.f32.mrb[0].mxu0
      %v4507 = vadd.f32 0.0, %v4506
      %v4508 = vpop.f32.mrb[0].mxu0
      %4509 = vmatprep.mubr.f32.mxu0 0.0
      %4510 = vmatmul.mubr.f32.gmra.mrb[0].mxu0 %v4302
      %v4511 = vpop.f32.mrb[0].mxu0
      %v4512 = vadd.f32 0.0, %v4511
      %v4513 = vpop.f32.mrb[0].mxu0
      %4514 = vmatprep.mubr.f32.mxu0 0.0
      %4515 = vmatmul.mubr.f32.gmra.mrb[0].mxu0 %v4305
      %v4516 = vpop.f32.mrb[0].mxu0
      %v4517 = vadd.f32 0.0, %v4516
      %v4518 = vpop.f32.mrb[0].mxu0
      %4519 = vmatprep.mubr.f32.mxu0 0.0
      %4520 = vmatmul.mubr.f32.gmra.mrb[0].mxu0 %v4308
      %v4521 = vpop.f32.mrb[0].mxu0
      %v4522 = vadd.f32 0.0, %v4521
      %v4523 = vpop.f32.mrb[0].mxu0
      %4524 = vmatprep.mubr.f32.mxu0 0.0
      %4525 = vmatmul.mubr.f32.gmra.mrb[0].mxu0 %v4311
      %v4526 = vpop.f32.mrb[0].mxu0
      %v4527 = vadd.f32 0.0, %v4526
      %v4528 = vpop.f32.mrb[0].mxu0
      %4529 = vmatprep.mubr.f32.mxu0 0.0
      %4530 = vmatmul.mubr.f32.gmra.mrb[0].mxu0 %v4314
      %v4531 = vpop.f32.mrb[0].mxu0
      %v4532 = vadd.f32 0.0, %v4531
      %v4533 = vpop.f32.mrb[0].mxu0
      %4534 = vmatprep.mubr.f32.mxu0 0.0
      %4535 = vmatmul.mubr.f32.gmra.mrb[0].mxu0 %v4317
      %v4536 = vpop.f32.mrb[0].mxu0
      %v4537 = vadd.f32 0.0, %v4536
      %v4538 = vpop.f32.mrb[0].mxu0
      %4539 = vmatprep.mubr.f32.mxu0 0.0
      %4540 = vmatmul.mubr.f32.gmra.mrb[0].mxu0 %v4320
      %v4541 = vpop.f32.mrb[0].mxu0
      %v4542 = vadd.f32 0.0, %v4541
      %v4543 = vpop.f32.mrb[0].mxu0
      %4544 = vmatprep.mubr.f32.mxu0 0.0
      %4545 = vmatmul.mubr.f32.gmra.mrb[0].mxu0 %v4323
      %v4546 = vpop.f32.mrb[0].mxu0
      %v4547 = vadd.f32 0.0, %v4546
      %v4548 = vpop.f32.mrb[0].mxu0
      %4549 = vdwg.mxu0
      %v4550 = vadd.f32 %v4163, %v4392
      %v4551 = vadd.f32 %v4164, %v4397
      %v4552 = vadd.f32 %v4165, %v4402
      %v4553 = vadd.f32 %v4166, %v4407
      %v4554 = vadd.f32 %v4167, %v4412
      %v4555 = vadd.f32 %v4168, %v4417
      %v4556 = vadd.f32 %v4169, %v4422
      %v4557 = vadd.f32 %v4170, %v4427
      %v4558 = vadd.f32 %v4171, %v4432
      %v4559 = vadd.f32 %v4172, %v4437
      %v4560 = vadd.f32 %v4173, %v4442
      %v4561 = vadd.f32 %v4174, %v4447
      %v4562 = vadd.f32 %v4175, %v4452
      %v4563 = vadd.f32 %v4176, %v4457
      %v4564 = vadd.f32 %v4177, %v4462
      %v4565 = vadd.f32 %v4178, %v4467
      %v4566 = vadd.f32 %v4179, %v4472
      %v4567 = vadd.f32 %v4180, %v4477
      %v4568 = vadd.f32 %v4181, %v4482
      %v4569 = vadd.f32 %v4182, %v4487
      %v4570 = vadd.f32 %v4183, %v4492
      %v4571 = vadd.f32 %v4184, %v4497
      %v4572 = vadd.f32 %v4185, %v4502
      %v4573 = vadd.f32 %v4186, %v4507
      %v4574 = vadd.f32 %v4187, %v4512
      %v4575 = vadd.f32 %v4188, %v4517
      %v4576 = vadd.f32 %v4189, %v4522
      %v4577 = vadd.f32 %v4190, %v4527
      %v4578 = vadd.f32 %v4191, %v4532
      %v4579 = vadd.f32 %v4192, %v4537
      %v4580 = vadd.f32 %v4193, %v4542
      %v4581 = vadd.f32 %v4194, %v4547
      %v4582 = vld [vmem:[%s6] sm:$0x1]
      %v4584 = vlaneseq
      %v4585 = vshrl.u32 %v4584, 7
      %v4586 = vsub.s32 0, %v4585
      %v4587 = vrot.slane %v4582, %v4586
      %v4589 = vadd.f32 %v4550, %v4587
      %v4590 = vadd.f32 %v4551, %v4587
      %v4591 = vadd.f32 %v4552, %v4587
      %v4592 = vadd.f32 %v4553, %v4587
      %v4593 = vadd.f32 %v4554, %v4587
      %v4594 = vadd.f32 %v4555, %v4587
      %v4595 = vadd.f32 %v4556, %v4587
      %v4596 = vadd.f32 %v4557, %v4587
      %v4597 = vadd.f32 %v4558, %v4587
      %v4598 = vadd.f32 %v4559, %v4587
      %v4599 = vadd.f32 %v4560, %v4587
      %v4600 = vadd.f32 %v4561, %v4587
      %v4601 = vadd.f32 %v4562, %v4587
      %v4602 = vadd.f32 %v4563, %v4587
      %v4603 = vadd.f32 %v4564, %v4587
      %v4604 = vadd.f32 %v4565, %v4587
      %v4605 = vadd.f32 %v4566, %v4587
      %v4606 = vadd.f32 %v4567, %v4587
      %v4607 = vadd.f32 %v4568, %v4587
      %v4608 = vadd.f32 %v4569, %v4587
      %v4609 = vadd.f32 %v4570, %v4587
      %v4610 = vadd.f32 %v4571, %v4587
      %v4611 = vadd.f32 %v4572, %v4587
      %v4612 = vadd.f32 %v4573, %v4587
      %v4613 = vadd.f32 %v4574, %v4587
      %v4614 = vadd.f32 %v4575, %v4587
      %v4615 = vadd.f32 %v4576, %v4587
      %v4616 = vadd.f32 %v4577, %v4587
      %v4617 = vadd.f32 %v4578, %v4587
      %v4618 = vadd.f32 %v4579, %v4587
      %v4619 = vadd.f32 %v4580, %v4587
      %v4620 = vadd.f32 %v4581, %v4587
      %v4621 = vmax.f32 %v4589, 0.0
      %v4622 = vmax.f32 %v4590, 0.0
      %v4623 = vmax.f32 %v4591, 0.0
      %v4624 = vmax.f32 %v4592, 0.0
      %v4625 = vmax.f32 %v4593, 0.0
      %v4626 = vmax.f32 %v4594, 0.0
      %v4627 = vmax.f32 %v4595, 0.0
      %v4628 = vmax.f32 %v4596, 0.0
      %v4629 = vmax.f32 %v4597, 0.0
      %v4630 = vmax.f32 %v4598, 0.0
      %v4631 = vmax.f32 %v4599, 0.0
      %v4632 = vmax.f32 %v4600, 0.0
      %v4633 = vmax.f32 %v4601, 0.0
      %v4634 = vmax.f32 %v4602, 0.0
      %v4635 = vmax.f32 %v4603, 0.0
      %v4636 = vmax.f32 %v4604, 0.0
      %v4637 = vmax.f32 %v4605, 0.0
      %v4638 = vmax.f32 %v4606, 0.0
      %v4639 = vmax.f32 %v4607, 0.0
      %v4640 = vmax.f32 %v4608, 0.0
      %v4641 = vmax.f32 %v4609, 0.0
      %v4642 = vmax.f32 %v4610, 0.0
      %v4643 = vmax.f32 %v4611, 0.0
      %v4644 = vmax.f32 %v4612, 0.0
      %v4645 = vmax.f32 %v4613, 0.0
      %v4646 = vmax.f32 %v4614, 0.0
      %v4647 = vmax.f32 %v4615, 0.0
      %v4648 = vmax.f32 %v4616, 0.0
      %v4649 = vmax.f32 %v4617, 0.0
      %v4650 = vmax.f32 %v4618, 0.0
      %v4651 = vmax.f32 %v4619, 0.0
      %v4652 = vmax.f32 %v4620, 0.0
      %v4653 = vsel %vm1119, %v1156, -inf
      %v4654 = vsel %vm1119, %v1157, -inf
      %v4655 = vmax.f32 %v4653, %v4654
      %4656 = vmax.xlane.f32.xlu0 %v4655
      %v4657 = vpop.xlane.xlu0 %4656
      %v4658 = vsub.f32 %v1156, %v4657
      %v4659 = vsub.f32 %v1157, %v4657
      %v4660 = vmul.f32 %v4658, 1.442695
      %v4661 = vpow.pop %v4660
      %v4662 = vmul.f32 %v4659, 1.442695
      %v4663 = vpow.pop %v4662
      %v4664 = vsel %vm1119, %v4661, 0.0
      %v4665 = vsel %vm1119, %v4663, 0.0
      %v4666 = vadd.f32 %v4664, %v4665
      %4667 = vadd.xlane.f32.xlu0 %v4666
      %v4668 = vpop.xlane.xlu0 %4667
      %v4669 = vrcp.pop %v4668
      %v4670 = vmul.f32 %v4661, %v4669
      %v4671 = vmul.f32 %v4663, %v4669
      %4672 = vmatprep.subr.mxu0 0.0
      %4673 = vmatpush1.msra.mxu0 %v4621
      %4674 = vmatprep.subr.mxu0 0.0
      %4675 = vmatpush1.msra.mxu0 %v4622
      %4676 = vmatprep.subr.mxu0 0.0
      %4677 = vmatpush1.msra.mxu0 %v4623
      %4678 = vmatprep.subr.mxu0 0.0
      %4679 = vmatpush1.msra.mxu0 %v4624
      %4680 = vmatprep.subr.mxu0 0.0
      %4681 = vmatpush1.msra.mxu0 %v4625
      %4682 = vmatprep.subr.mxu0 0.0
      %4683 = vmatpush1.msra.mxu0 %v4626
      %4684 = vmatprep.subr.mxu0 0.0
      %4685 = vmatpush1.msra.mxu0 %v4627
      %4686 = vmatprep.subr.mxu0 0.0
      %4687 = vmatpush1.msra.mxu0 %v4628
      %4688 = vmatprep.subr.mxu0 0.0
      %4689 = vmatpush1.msra.mxu0 %v4629
      %4690 = vmatprep.subr.mxu0 0.0
      %4691 = vmatpush1.msra.mxu0 %v4630
      %4692 = vmatprep.subr.mxu0 0.0
      %4693 = vmatpush1.msra.mxu0 %v4631
      %4694 = vmatprep.subr.mxu0 0.0
      %4695 = vmatpush1.msra.mxu0 %v4632
      %4696 = vmatprep.subr.mxu0 0.0
      %4697 = vmatpush1.msra.mxu0 %v4633
      %4698 = vmatprep.subr.mxu0 0.0
      %4699 = vmatpush1.msra.mxu0 %v4634
      %4700 = vmatprep.subr.mxu0 0.0
      %4701 = vmatpush1.msra.mxu0 %v4635
      %4702 = vmatprep.subr.mxu0 0.0
      %4703 = vmatpush1.msra.mxu0 %v4636
      %4704 = vmatprep.subr.mxu0 0.0
      %4705 = vmatpush1.msra.mxu0 %v4637
      %4706 = vmatprep.subr.mxu0 0.0
      %4707 = vmatpush1.msra.mxu0 %v4638
      %4708 = vmatprep.subr.mxu0 0.0
      %4709 = vmatpush1.msra.mxu0 %v4639
      %4710 = vmatprep.subr.mxu0 0.0
      %4711 = vmatpush1.msra.mxu0 %v4640
      %4712 = vmatprep.subr.mxu0 0.0
      %4713 = vmatpush1.msra.mxu0 %v4641
      %4714 = vmatprep.subr.mxu0 0.0
      %4715 = vmatpush1.msra.mxu0 %v4642
      %4716 = vmatprep.subr.mxu0 0.0
      %4717 = vmatpush1.msra.mxu0 %v4643
      %4718 = vmatprep.subr.mxu0 0.0
      %4719 = vmatpush1.msra.mxu0 %v4644
      %4720 = vmatprep.subr.mxu0 0.0
      %4721 = vmatpush1.msra.mxu0 %v4645
      %4722 = vmatprep.subr.mxu0 0.0
      %4723 = vmatpush1.msra.mxu0 %v4646
      %4724 = vmatprep.subr.mxu0 0.0
      %4725 = vmatpush1.msra.mxu0 %v4647
      %4726 = vmatprep.subr.mxu0 0.0
      %4727 = vmatpush1.msra.mxu0 %v4648
      %4728 = vmatprep.subr.mxu0 0.0
      %4729 = vmatpush1.msra.mxu0 %v4649
      %4730 = vmatprep.subr.mxu0 0.0
      %4731 = vmatpush1.msra.mxu0 %v4650
      %4732 = vmatprep.subr.mxu0 0.0
      %4733 = vmatpush1.msra.mxu0 %v4651
      %4734 = vmatprep.subr.mxu0 0.0
      %4735 = vmatpush1.msra.mxu0 %v4652
      %4736 = vmatprep.mubr.f32.mxu0 %v4671
      %4737 = vmatmul.mubr.f32.gmra.mrb[0].mxu0 %v4670
      %v4738 = vpop.f32.mrb[0].mxu0
      %v4739 = vadd.f32 0.0, %v4738
      %v4740 = vpop.f32.mrb[0].mxu0
      %4741 = vdwg.mxu0
      %v4742 = vld [vmem:[%s7] sm:$0xff]
      %v4743 = vld [vmem:[%s7 + $0x8] sm:$0xff]
      %v4744 = vld [vmem:[%s7 + $0x10] sm:$0xff]
      %v4745 = vld [vmem:[%s7 + $0x18] sm:$0xff]
      %vm4746 = vcmask 261120
      %v4748 = vsel %vm4746, %v4621, 0
      %v4751 = vsel %vm4746, %v4622, 0
      %v4754 = vsel %vm4746, %v4623, 0
      %v4757 = vsel %vm4746, %v4624, 0
      %v4760 = vsel %vm4746, %v4625, 0
      %v4763 = vsel %vm4746, %v4626, 0
      %v4766 = vsel %vm4746, %v4627, 0
      %v4769 = vsel %vm4746, %v4628, 0
      %v4772 = vsel %vm4746, %v4629, 0
      %v4775 = vsel %vm4746, %v4630, 0
      %v4778 = vsel %vm4746, %v4631, 0
      %v4781 = vsel %vm4746, %v4632, 0
      %v4784 = vsel %vm4746, %v4633, 0
      %v4787 = vsel %vm4746, %v4634, 0
      %v4790 = vsel %vm4746, %v4635, 0
      %v4793 = vsel %vm4746, %v4636, 0
      %v4796 = vsel %vm4746, %v4637, 0
      %v4799 = vsel %vm4746, %v4638, 0
      %v4802 = vsel %vm4746, %v4639, 0
      %v4805 = vsel %vm4746, %v4640, 0
      %v4808 = vsel %vm4746, %v4641, 0
      %v4811 = vsel %vm4746, %v4642, 0
      %v4814 = vsel %vm4746, %v4643, 0
      %v4817 = vsel %vm4746, %v4644, 0
      %v4820 = vsel %vm4746, %v4645, 0
      %v4823 = vsel %vm4746, %v4646, 0
      %v4826 = vsel %vm4746, %v4647, 0
      %v4829 = vsel %vm4746, %v4648, 0
      %v4832 = vsel %vm4746, %v4649, 0
      %v4835 = vsel %vm4746, %v4650, 0
      %v4838 = vsel %vm4746, %v4651, 0
      %v4841 = vsel %vm4746, %v4652, 0
      %4843 = vmatprep.subr.mxu0 0.0
      %4844 = vmatpush1.msra.mxu0 %v4742
      %4845 = vmatprep.subr.mxu0 0.0
      %4846 = vmatpush1.msra.mxu0 %v4743
      %4847 = vmatprep.subr.mxu0 0.0
      %4848 = vmatpush1.msra.mxu0 %v4744
      %4849 = vmatprep.subr.mxu0 0.0
      %4850 = vmatpush1.msra.mxu0 %v4745
      %4851 = vmatprep.subr.mxu0 0.0
      %4852 = vmatpush1.msra.mxu0 0.0
      %4853 = vmatprep.subr.mxu0 0.0
      %4854 = vmatpush1.msra.mxu0 0.0
      %4855 = vmatprep.subr.mxu0 0.0
      %4856 = vmatpush1.msra.mxu0 0.0
      %4857 = vmatprep.subr.mxu0 0.0
      %4858 = vmatpush1.msra.mxu0 0.0
      %4859 = vmatprep.subr.mxu0 0.0
      %4860 = vmatpush1.msra.mxu0 0.0
      %4861 = vmatprep.subr.mxu0 0.0
      %4862 = vmatpush1.msra.mxu0 0.0
      %4863 = vmatprep.subr.mxu0 0.0
      %4864 = vmatpush1.msra.mxu0 0.0
      %4865 = vmatprep.subr.mxu0 0.0
      %4866 = vmatpush1.msra.mxu0 0.0
      %4867 = vmatprep.subr.mxu0 0.0
      %4868 = vmatpush1.msra.mxu0 0.0
      %4869 = vmatprep.subr.mxu0 0.0
      %4870 = vmatpush1.msra.mxu0 0.0
      %4871 = vmatprep.subr.mxu0 0.0
      %4872 = vmatpush1.msra.mxu0 0.0
      %4873 = vmatprep.subr.mxu0 0.0
      %4874 = vmatpush1.msra.mxu0 0.0
      %4875 = vmatprep.subr.mxu0 0.0
      %4876 = vmatpush1.msra.mxu0 0.0
      %4877 = vmatprep.subr.mxu0 0.0
      %4878 = vmatpush1.msra.mxu0 0.0
      %4879 = vmatprep.subr.mxu0 0.0
      %4880 = vmatpush1.msra.mxu0 0.0
      %4881 = vmatprep.subr.mxu0 0.0
      %4882 = vmatpush1.msra.mxu0 0.0
      %4883 = vmatprep.subr.mxu0 0.0
      %4884 = vmatpush1.msra.mxu0 0.0
      %4885 = vmatprep.subr.mxu0 0.0
      %4886 = vmatpush1.msra.mxu0 0.0
      %4887 = vmatprep.subr.mxu0 0.0
      %4888 = vmatpush1.msra.mxu0 0.0
      %4889 = vmatprep.subr.mxu0 0.0
      %4890 = vmatpush1.msra.mxu0 0.0
      %4891 = vmatprep.subr.mxu0 0.0
      %4892 = vmatpush1.msra.mxu0 0.0
      %4893 = vmatprep.subr.mxu0 0.0
      %4894 = vmatpush1.msra.mxu0 0.0
      %4895 = vmatprep.subr.mxu0 0.0
      %4896 = vmatpush1.msra.mxu0 0.0
      %4897 = vmatprep.subr.mxu0 0.0
      %4898 = vmatpush1.msra.mxu0 0.0
      %4899 = vmatprep.subr.mxu0 0.0
      %4900 = vmatpush1.msra.mxu0 0.0
      %4901 = vmatprep.subr.mxu0 0.0
      %4902 = vmatpush1.msra.mxu0 0.0
      %4903 = vmatprep.subr.mxu0 0.0
      %4904 = vmatpush1.msra.mxu0 0.0
      %4905 = vmatprep.subr.mxu0 0.0
      %4906 = vmatpush1.msra.mxu0 0.0
      %4907 = vmatprep.mubr.f32.mxu0 0.0
      %4908 = vmatmul.mubr.f32.gmra.mrb[0].mxu0 %v4748
      %v4909 = vpop.f32.mrb[0].mxu0
      %v4910 = vadd.f32 0.0, %v4909
      %v4911 = vpop.f32.mrb[0].mxu0
      %4912 = vmatprep.mubr.f32.mxu0 0.0
      %4913 = vmatmul.mubr.f32.gmra.mrb[0].mxu0 %v4751
      %v4914 = vpop.f32.mrb[0].mxu0
      %v4915 = vadd.f32 0.0, %v4914
      %v4916 = vpop.f32.mrb[0].mxu0
      %4917 = vmatprep.mubr.f32.mxu0 0.0
      %4918 = vmatmul.mubr.f32.gmra.mrb[0].mxu0 %v4754
      %v4919 = vpop.f32.mrb[0].mxu0
      %v4920 = vadd.f32 0.0, %v4919
      %v4921 = vpop.f32.mrb[0].mxu0
      %4922 = vmatprep.mubr.f32.mxu0 0.0
      %4923 = vmatmul.mubr.f32.gmra.mrb[0].mxu0 %v4757
      %v4924 = vpop.f32.mrb[0].mxu0
      %v4925 = vadd.f32 0.0, %v4924
      %v4926 = vpop.f32.mrb[0].mxu0
      %4927 = vmatprep.mubr.f32.mxu0 0.0
      %4928 = vmatmul.mubr.f32.gmra.mrb[0].mxu0 %v4760
      %v4929 = vpop.f32.mrb[0].mxu0
      %v4930 = vadd.f32 0.0, %v4929
      %v4931 = vpop.f32.mrb[0].mxu0
      %4932 = vmatprep.mubr.f32.mxu0 0.0
      %4933 = vmatmul.mubr.f32.gmra.mrb[0].mxu0 %v4763
      %v4934 = vpop.f32.mrb[0].mxu0
      %v4935 = vadd.f32 0.0, %v4934
      %v4936 = vpop.f32.mrb[0].mxu0
      %4937 = vmatprep.mubr.f32.mxu0 0.0
      %4938 = vmatmul.mubr.f32.gmra.mrb[0].mxu0 %v4766
      %v4939 = vpop.f32.mrb[0].mxu0
      %v4940 = vadd.f32 0.0, %v4939
      %v4941 = vpop.f32.mrb[0].mxu0
      %4942 = vmatprep.mubr.f32.mxu0 0.0
      %4943 = vmatmul.mubr.f32.gmra.mrb[0].mxu0 %v4769
      %v4944 = vpop.f32.mrb[0].mxu0
      %v4945 = vadd.f32 0.0, %v4944
      %v4946 = vpop.f32.mrb[0].mxu0
      %4947 = vmatprep.mubr.f32.mxu0 0.0
      %4948 = vmatmul.mubr.f32.gmra.mrb[0].mxu0 %v4772
      %v4949 = vpop.f32.mrb[0].mxu0
      %v4950 = vadd.f32 0.0, %v4949
      %v4951 = vpop.f32.mrb[0].mxu0
      %4952 = vmatprep.mubr.f32.mxu0 0.0
      %4953 = vmatmul.mubr.f32.gmra.mrb[0].mxu0 %v4775
      %v4954 = vpop.f32.mrb[0].mxu0
      %v4955 = vadd.f32 0.0, %v4954
      %v4956 = vpop.f32.mrb[0].mxu0
      %4957 = vmatprep.mubr.f32.mxu0 0.0
      %4958 = vmatmul.mubr.f32.gmra.mrb[0].mxu0 %v4778
      %v4959 = vpop.f32.mrb[0].mxu0
      %v4960 = vadd.f32 0.0, %v4959
      %v4961 = vpop.f32.mrb[0].mxu0
      %4962 = vmatprep.mubr.f32.mxu0 0.0
      %4963 = vmatmul.mubr.f32.gmra.mrb[0].mxu0 %v4781
      %v4964 = vpop.f32.mrb[0].mxu0
      %v4965 = vadd.f32 0.0, %v4964
      %v4966 = vpop.f32.mrb[0].mxu0
      %4967 = vmatprep.mubr.f32.mxu0 0.0
      %4968 = vmatmul.mubr.f32.gmra.mrb[0].mxu0 %v4784
      %v4969 = vpop.f32.mrb[0].mxu0
      %v4970 = vadd.f32 0.0, %v4969
      %v4971 = vpop.f32.mrb[0].mxu0
      %4972 = vmatprep.mubr.f32.mxu0 0.0
      %4973 = vmatmul.mubr.f32.gmra.mrb[0].mxu0 %v4787
      %v4974 = vpop.f32.mrb[0].mxu0
      %v4975 = vadd.f32 0.0, %v4974
      %v4976 = vpop.f32.mrb[0].mxu0
      %4977 = vmatprep.mubr.f32.mxu0 0.0
      %4978 = vmatmul.mubr.f32.gmra.mrb[0].mxu0 %v4790
      %v4979 = vpop.f32.mrb[0].mxu0
      %v4980 = vadd.f32 0.0, %v4979
      %v4981 = vpop.f32.mrb[0].mxu0
      %4982 = vmatprep.mubr.f32.mxu0 0.0
      %4983 = vmatmul.mubr.f32.gmra.mrb[0].mxu0 %v4793
      %v4984 = vpop.f32.mrb[0].mxu0
      %v4985 = vadd.f32 0.0, %v4984
      %v4986 = vpop.f32.mrb[0].mxu0
      %4987 = vmatprep.mubr.f32.mxu0 0.0
      %4988 = vmatmul.mubr.f32.gmra.mrb[0].mxu0 %v4796
      %v4989 = vpop.f32.mrb[0].mxu0
      %v4990 = vadd.f32 0.0, %v4989
      %v4991 = vpop.f32.mrb[0].mxu0
      %4992 = vmatprep.mubr.f32.mxu0 0.0
      %4993 = vmatmul.mubr.f32.gmra.mrb[0].mxu0 %v4799
      %v4994 = vpop.f32.mrb[0].mxu0
      %v4995 = vadd.f32 0.0, %v4994
      %v4996 = vpop.f32.mrb[0].mxu0
      %4997 = vmatprep.mubr.f32.mxu0 0.0
      %4998 = vmatmul.mubr.f32.gmra.mrb[0].mxu0 %v4802
      %v4999 = vpop.f32.mrb[0].mxu0
      %v5000 = vadd.f32 0.0, %v4999
      %v5001 = vpop.f32.mrb[0].mxu0
      %5002 = vmatprep.mubr.f32.mxu0 0.0
      %5003 = vmatmul.mubr.f32.gmra.mrb[0].mxu0 %v4805
      %v5004 = vpop.f32.mrb[0].mxu0
      %v5005 = vadd.f32 0.0, %v5004
      %v5006 = vpop.f32.mrb[0].mxu0
      %5007 = vmatprep.mubr.f32.mxu0 0.0
      %5008 = vmatmul.mubr.f32.gmra.mrb[0].mxu0 %v4808
      %v5009 = vpop.f32.mrb[0].mxu0
      %v5010 = vadd.f32 0.0, %v5009
      %v5011 = vpop.f32.mrb[0].mxu0
      %5012 = vmatprep.mubr.f32.mxu0 0.0
      %5013 = vmatmul.mubr.f32.gmra.mrb[0].mxu0 %v4811
      %v5014 = vpop.f32.mrb[0].mxu0
      %v5015 = vadd.f32 0.0, %v5014
      %v5016 = vpop.f32.mrb[0].mxu0
      %5017 = vmatprep.mubr.f32.mxu0 0.0
      %5018 = vmatmul.mubr.f32.gmra.mrb[0].mxu0 %v4814
      %v5019 = vpop.f32.mrb[0].mxu0
      %v5020 = vadd.f32 0.0, %v5019
      %v5021 = vpop.f32.mrb[0].mxu0
      %5022 = vmatprep.mubr.f32.mxu0 0.0
      %5023 = vmatmul.mubr.f32.gmra.mrb[0].mxu0 %v4817
      %v5024 = vpop.f32.mrb[0].mxu0
      %v5025 = vadd.f32 0.0, %v5024
      %v5026 = vpop.f32.mrb[0].mxu0
      %5027 = vmatprep.mubr.f32.mxu0 0.0
      %5028 = vmatmul.mubr.f32.gmra.mrb[0].mxu0 %v4820
      %v5029 = vpop.f32.mrb[0].mxu0
      %v5030 = vadd.f32 0.0, %v5029
      %v5031 = vpop.f32.mrb[0].mxu0
      %5032 = vmatprep.mubr.f32.mxu0 0.0
      %5033 = vmatmul.mubr.f32.gmra.mrb[0].mxu0 %v4823
      %v5034 = vpop.f32.mrb[0].mxu0
      %v5035 = vadd.f32 0.0, %v5034
      %v5036 = vpop.f32.mrb[0].mxu0
      %5037 = vmatprep.mubr.f32.mxu0 0.0
      %5038 = vmatmul.mubr.f32.gmra.mrb[0].mxu0 %v4826
      %v5039 = vpop.f32.mrb[0].mxu0
      %v5040 = vadd.f32 0.0, %v5039
      %v5041 = vpop.f32.mrb[0].mxu0
      %5042 = vmatprep.mubr.f32.mxu0 0.0
      %5043 = vmatmul.mubr.f32.gmra.mrb[0].mxu0 %v4829
      %v5044 = vpop.f32.mrb[0].mxu0
      %v5045 = vadd.f32 0.0, %v5044
      %v5046 = vpop.f32.mrb[0].mxu0
      %5047 = vmatprep.mubr.f32.mxu0 0.0
      %5048 = vmatmul.mubr.f32.gmra.mrb[0].mxu0 %v4832
      %v5049 = vpop.f32.mrb[0].mxu0
      %v5050 = vadd.f32 0.0, %v5049
      %v5051 = vpop.f32.mrb[0].mxu0
      %5052 = vmatprep.mubr.f32.mxu0 0.0
      %5053 = vmatmul.mubr.f32.gmra.mrb[0].mxu0 %v4835
      %v5054 = vpop.f32.mrb[0].mxu0
      %v5055 = vadd.f32 0.0, %v5054
      %v5056 = vpop.f32.mrb[0].mxu0
      %5057 = vmatprep.mubr.f32.mxu0 0.0
      %5058 = vmatmul.mubr.f32.gmra.mrb[0].mxu0 %v4838
      %v5059 = vpop.f32.mrb[0].mxu0
      %v5060 = vadd.f32 0.0, %v5059
      %v5061 = vpop.f32.mrb[0].mxu0
      %5062 = vmatprep.mubr.f32.mxu0 0.0
      %5063 = vmatmul.mubr.f32.gmra.mrb[0].mxu0 %v4841
      %v5064 = vpop.f32.mrb[0].mxu0
      %v5065 = vadd.f32 0.0, %v5064
      %v5066 = vpop.f32.mrb[0].mxu0
      %5067 = vdwg.mxu0
      %v5068 = vmax.f32 %v4910, 0.0
      %v5069 = vmax.f32 %v4915, 0.0
      %v5070 = vmax.f32 %v4920, 0.0
      %v5071 = vmax.f32 %v4925, 0.0
      %v5072 = vmax.f32 %v4930, 0.0
      %v5073 = vmax.f32 %v4935, 0.0
      %v5074 = vmax.f32 %v4940, 0.0
      %v5075 = vmax.f32 %v4945, 0.0
      %v5076 = vmax.f32 %v4950, 0.0
      %v5077 = vmax.f32 %v4955, 0.0
      %v5078 = vmax.f32 %v4960, 0.0
      %v5079 = vmax.f32 %v4965, 0.0
      %v5080 = vmax.f32 %v4970, 0.0
      %v5081 = vmax.f32 %v4975, 0.0
      %v5082 = vmax.f32 %v4980, 0.0
      %v5083 = vmax.f32 %v4985, 0.0
      %v5084 = vmax.f32 %v4990, 0.0
      %v5085 = vmax.f32 %v4995, 0.0
      %v5086 = vmax.f32 %v5000, 0.0
      %v5087 = vmax.f32 %v5005, 0.0
      %v5088 = vmax.f32 %v5010, 0.0
      %v5089 = vmax.f32 %v5015, 0.0
      %v5090 = vmax.f32 %v5020, 0.0
      %v5091 = vmax.f32 %v5025, 0.0
      %v5092 = vmax.f32 %v5030, 0.0
      %v5093 = vmax.f32 %v5035, 0.0
      %v5094 = vmax.f32 %v5040, 0.0
      %v5095 = vmax.f32 %v5045, 0.0
      %v5096 = vmax.f32 %v5050, 0.0
      %v5097 = vmax.f32 %v5055, 0.0
      %v5098 = vmax.f32 %v5060, 0.0
      %v5099 = vmax.f32 %v5065, 0.0
      %v5100 = vld [vmem:[%s8] sm:$0xff]
      %v5101 = vld [vmem:[%s8 + $0x8] sm:$0xff]
      %vm5102 = vcmask 130048
      %v5104 = vsel %vm5102, %v5068, 0
      %v5107 = vsel %vm5102, %v5069, 0
      %v5110 = vsel %vm5102, %v5070, 0
      %v5113 = vsel %vm5102, %v5071, 0
      %v5116 = vsel %vm5102, %v5072, 0
      %v5119 = vsel %vm5102, %v5073, 0
      %v5122 = vsel %vm5102, %v5074, 0
      %v5125 = vsel %vm5102, %v5075, 0
      %v5128 = vsel %vm5102, %v5076, 0
      %v5131 = vsel %vm5102, %v5077, 0
      %v5134 = vsel %vm5102, %v5078, 0
      %v5137 = vsel %vm5102, %v5079, 0
      %v5140 = vsel %vm5102, %v5080, 0
      %v5143 = vsel %vm5102, %v5081, 0
      %v5146 = vsel %vm5102, %v5082, 0
      %v5149 = vsel %vm5102, %v5083, 0
      %v5152 = vsel %vm5102, %v5084, 0
      %v5155 = vsel %vm5102, %v5085, 0
      %v5158 = vsel %vm5102, %v5086, 0
      %v5161 = vsel %vm5102, %v5087, 0
      %v5164 = vsel %vm5102, %v5088, 0
      %v5167 = vsel %vm5102, %v5089, 0
      %v5170 = vsel %vm5102, %v5090, 0
      %v5173 = vsel %vm5102, %v5091, 0
      %v5176 = vsel %vm5102, %v5092, 0
      %v5179 = vsel %vm5102, %v5093, 0
      %v5182 = vsel %vm5102, %v5094, 0
      %v5185 = vsel %vm5102, %v5095, 0
      %v5188 = vsel %vm5102, %v5096, 0
      %v5191 = vsel %vm5102, %v5097, 0
      %v5194 = vsel %vm5102, %v5098, 0
      %v5197 = vsel %vm5102, %v5099, 0
      %5199 = vmatprep.subr.mxu0 0.0
      %5200 = vmatpush1.msra.mxu0 %v5100
      %5201 = vmatprep.subr.mxu0 0.0
      %5202 = vmatpush1.msra.mxu0 %v5101
      %5203 = vmatprep.subr.mxu0 0.0
      %5204 = vmatpush1.msra.mxu0 0.0
      %5205 = vmatprep.subr.mxu0 0.0
      %5206 = vmatpush1.msra.mxu0 0.0
      %5207 = vmatprep.subr.mxu0 0.0
      %5208 = vmatpush1.msra.mxu0 0.0
      %5209 = vmatprep.subr.mxu0 0.0
      %5210 = vmatpush1.msra.mxu0 0.0
      %5211 = vmatprep.subr.mxu0 0.0
      %5212 = vmatpush1.msra.mxu0 0.0
      %5213 = vmatprep.subr.mxu0 0.0
      %5214 = vmatpush1.msra.mxu0 0.0
      %5215 = vmatprep.subr.mxu0 0.0
      %5216 = vmatpush1.msra.mxu0 0.0
      %5217 = vmatprep.subr.mxu0 0.0
      %5218 = vmatpush1.msra.mxu0 0.0
      %5219 = vmatprep.subr.mxu0 0.0
      %5220 = vmatpush1.msra.mxu0 0.0
      %5221 = vmatprep.subr.mxu0 0.0
      %5222 = vmatpush1.msra.mxu0 0.0
      %5223 = vmatprep.subr.mxu0 0.0
      %5224 = vmatpush1.msra.mxu0 0.0
      %5225 = vmatprep.subr.mxu0 0.0
      %5226 = vmatpush1.msra.mxu0 0.0
      %5227 = vmatprep.subr.mxu0 0.0
      %5228 = vmatpush1.msra.mxu0 0.0
      %5229 = vmatprep.subr.mxu0 0.0
      %5230 = vmatpush1.msra.mxu0 0.0
      %5231 = vmatprep.subr.mxu0 0.0
      %5232 = vmatpush1.msra.mxu0 0.0
      %5233 = vmatprep.subr.mxu0 0.0
      %5234 = vmatpush1.msra.mxu0 0.0
      %5235 = vmatprep.subr.mxu0 0.0
      %5236 = vmatpush1.msra.mxu0 0.0
      %5237 = vmatprep.subr.mxu0 0.0
      %5238 = vmatpush1.msra.mxu0 0.0
      %5239 = vmatprep.subr.mxu0 0.0
      %5240 = vmatpush1.msra.mxu0 0.0
      %5241 = vmatprep.subr.mxu0 0.0
      %5242 = vmatpush1.msra.mxu0 0.0
      %5243 = vmatprep.subr.mxu0 0.0
      %5244 = vmatpush1.msra.mxu0 0.0
      %5245 = vmatprep.subr.mxu0 0.0
      %5246 = vmatpush1.msra.mxu0 0.0
      %5247 = vmatprep.subr.mxu0 0.0
      %5248 = vmatpush1.msra.mxu0 0.0
      %5249 = vmatprep.subr.mxu0 0.0
      %5250 = vmatpush1.msra.mxu0 0.0
      %5251 = vmatprep.subr.mxu0 0.0
      %5252 = vmatpush1.msra.mxu0 0.0
      %5253 = vmatprep.subr.mxu0 0.0
      %5254 = vmatpush1.msra.mxu0 0.0
      %5255 = vmatprep.subr.mxu0 0.0
      %5256 = vmatpush1.msra.mxu0 0.0
      %5257 = vmatprep.subr.mxu0 0.0
      %5258 = vmatpush1.msra.mxu0 0.0
      %5259 = vmatprep.subr.mxu0 0.0
      %5260 = vmatpush1.msra.mxu0 0.0
      %5261 = vmatprep.subr.mxu0 0.0
      %5262 = vmatpush1.msra.mxu0 0.0
      %5263 = vmatprep.mubr.f32.mxu0 0.0
      %5264 = vmatmul.mubr.f32.gmra.mrb[0].mxu0 %v5104
      %v5265 = vpop.f32.mrb[0].mxu0
      %v5266 = vadd.f32 0.0, %v5265
      %v5267 = vpop.f32.mrb[0].mxu0
      %5268 = vmatprep.mubr.f32.mxu0 0.0
      %5269 = vmatmul.mubr.f32.gmra.mrb[0].mxu0 %v5107
      %v5270 = vpop.f32.mrb[0].mxu0
      %v5271 = vadd.f32 0.0, %v5270
      %v5272 = vpop.f32.mrb[0].mxu0
      %5273 = vmatprep.mubr.f32.mxu0 0.0
      %5274 = vmatmul.mubr.f32.gmra.mrb[0].mxu0 %v5110
      %v5275 = vpop.f32.mrb[0].mxu0
      %v5276 = vadd.f32 0.0, %v5275
      %v5277 = vpop.f32.mrb[0].mxu0
      %5278 = vmatprep.mubr.f32.mxu0 0.0
      %5279 = vmatmul.mubr.f32.gmra.mrb[0].mxu0 %v5113
      %v5280 = vpop.f32.mrb[0].mxu0
      %v5281 = vadd.f32 0.0, %v5280
      %v5282 = vpop.f32.mrb[0].mxu0
      %5283 = vmatprep.mubr.f32.mxu0 0.0
      %5284 = vmatmul.mubr.f32.gmra.mrb[0].mxu0 %v5116
      %v5285 = vpop.f32.mrb[0].mxu0
      %v5286 = vadd.f32 0.0, %v5285
      %v5287 = vpop.f32.mrb[0].mxu0
      %5288 = vmatprep.mubr.f32.mxu0 0.0
      %5289 = vmatmul.mubr.f32.gmra.mrb[0].mxu0 %v5119
      %v5290 = vpop.f32.mrb[0].mxu0
      %v5291 = vadd.f32 0.0, %v5290
      %v5292 = vpop.f32.mrb[0].mxu0
      %5293 = vmatprep.mubr.f32.mxu0 0.0
      %5294 = vmatmul.mubr.f32.gmra.mrb[0].mxu0 %v5122
      %v5295 = vpop.f32.mrb[0].mxu0
      %v5296 = vadd.f32 0.0, %v5295
      %v5297 = vpop.f32.mrb[0].mxu0
      %5298 = vmatprep.mubr.f32.mxu0 0.0
      %5299 = vmatmul.mubr.f32.gmra.mrb[0].mxu0 %v5125
      %v5300 = vpop.f32.mrb[0].mxu0
      %v5301 = vadd.f32 0.0, %v5300
      %v5302 = vpop.f32.mrb[0].mxu0
      %5303 = vmatprep.mubr.f32.mxu0 0.0
      %5304 = vmatmul.mubr.f32.gmra.mrb[0].mxu0 %v5128
      %v5305 = vpop.f32.mrb[0].mxu0
      %v5306 = vadd.f32 0.0, %v5305
      %v5307 = vpop.f32.mrb[0].mxu0
      %5308 = vmatprep.mubr.f32.mxu0 0.0
      %5309 = vmatmul.mubr.f32.gmra.mrb[0].mxu0 %v5131
      %v5310 = vpop.f32.mrb[0].mxu0
      %v5311 = vadd.f32 0.0, %v5310
      %v5312 = vpop.f32.mrb[0].mxu0
      %5313 = vmatprep.mubr.f32.mxu0 0.0
      %5314 = vmatmul.mubr.f32.gmra.mrb[0].mxu0 %v5134
      %v5315 = vpop.f32.mrb[0].mxu0
      %v5316 = vadd.f32 0.0, %v5315
      %v5317 = vpop.f32.mrb[0].mxu0
      %5318 = vmatprep.mubr.f32.mxu0 0.0
      %5319 = vmatmul.mubr.f32.gmra.mrb[0].mxu0 %v5137
      %v5320 = vpop.f32.mrb[0].mxu0
      %v5321 = vadd.f32 0.0, %v5320
      %v5322 = vpop.f32.mrb[0].mxu0
      %5323 = vmatprep.mubr.f32.mxu0 0.0
      %5324 = vmatmul.mubr.f32.gmra.mrb[0].mxu0 %v5140
      %v5325 = vpop.f32.mrb[0].mxu0
      %v5326 = vadd.f32 0.0, %v5325
      %v5327 = vpop.f32.mrb[0].mxu0
      %5328 = vmatprep.mubr.f32.mxu0 0.0
      %5329 = vmatmul.mubr.f32.gmra.mrb[0].mxu0 %v5143
      %v5330 = vpop.f32.mrb[0].mxu0
      %v5331 = vadd.f32 0.0, %v5330
      %v5332 = vpop.f32.mrb[0].mxu0
      %5333 = vmatprep.mubr.f32.mxu0 0.0
      %5334 = vmatmul.mubr.f32.gmra.mrb[0].mxu0 %v5146
      %v5335 = vpop.f32.mrb[0].mxu0
      %v5336 = vadd.f32 0.0, %v5335
      %v5337 = vpop.f32.mrb[0].mxu0
      %5338 = vmatprep.mubr.f32.mxu0 0.0
      %5339 = vmatmul.mubr.f32.gmra.mrb[0].mxu0 %v5149
      %v5340 = vpop.f32.mrb[0].mxu0
      %v5341 = vadd.f32 0.0, %v5340
      %v5342 = vpop.f32.mrb[0].mxu0
      %5343 = vmatprep.mubr.f32.mxu0 0.0
      %5344 = vmatmul.mubr.f32.gmra.mrb[0].mxu0 %v5152
      %v5345 = vpop.f32.mrb[0].mxu0
      %v5346 = vadd.f32 0.0, %v5345
      %v5347 = vpop.f32.mrb[0].mxu0
      %5348 = vmatprep.mubr.f32.mxu0 0.0
      %5349 = vmatmul.mubr.f32.gmra.mrb[0].mxu0 %v5155
      %v5350 = vpop.f32.mrb[0].mxu0
      %v5351 = vadd.f32 0.0, %v5350
      %v5352 = vpop.f32.mrb[0].mxu0
      %5353 = vmatprep.mubr.f32.mxu0 0.0
      %5354 = vmatmul.mubr.f32.gmra.mrb[0].mxu0 %v5158
      %v5355 = vpop.f32.mrb[0].mxu0
      %v5356 = vadd.f32 0.0, %v5355
      %v5357 = vpop.f32.mrb[0].mxu0
      %5358 = vmatprep.mubr.f32.mxu0 0.0
      %5359 = vmatmul.mubr.f32.gmra.mrb[0].mxu0 %v5161
      %v5360 = vpop.f32.mrb[0].mxu0
      %v5361 = vadd.f32 0.0, %v5360
      %v5362 = vpop.f32.mrb[0].mxu0
      %5363 = vmatprep.mubr.f32.mxu0 0.0
      %5364 = vmatmul.mubr.f32.gmra.mrb[0].mxu0 %v5164
      %v5365 = vpop.f32.mrb[0].mxu0
      %v5366 = vadd.f32 0.0, %v5365
      %v5367 = vpop.f32.mrb[0].mxu0
      %5368 = vmatprep.mubr.f32.mxu0 0.0
      %5369 = vmatmul.mubr.f32.gmra.mrb[0].mxu0 %v5167
      %v5370 = vpop.f32.mrb[0].mxu0
      %v5371 = vadd.f32 0.0, %v5370
      %v5372 = vpop.f32.mrb[0].mxu0
      %5373 = vmatprep.mubr.f32.mxu0 0.0
      %5374 = vmatmul.mubr.f32.gmra.mrb[0].mxu0 %v5170
      %v5375 = vpop.f32.mrb[0].mxu0
      %v5376 = vadd.f32 0.0, %v5375
      %v5377 = vpop.f32.mrb[0].mxu0
      %5378 = vmatprep.mubr.f32.mxu0 0.0
      %5379 = vmatmul.mubr.f32.gmra.mrb[0].mxu0 %v5173
      %v5380 = vpop.f32.mrb[0].mxu0
      %v5381 = vadd.f32 0.0, %v5380
      %v5382 = vpop.f32.mrb[0].mxu0
      %5383 = vmatprep.mubr.f32.mxu0 0.0
      %5384 = vmatmul.mubr.f32.gmra.mrb[0].mxu0 %v5176
      %v5385 = vpop.f32.mrb[0].mxu0
      %v5386 = vadd.f32 0.0, %v5385
      %v5387 = vpop.f32.mrb[0].mxu0
      %5388 = vmatprep.mubr.f32.mxu0 0.0
      %5389 = vmatmul.mubr.f32.gmra.mrb[0].mxu0 %v5179
      %v5390 = vpop.f32.mrb[0].mxu0
      %v5391 = vadd.f32 0.0, %v5390
      %v5392 = vpop.f32.mrb[0].mxu0
      %5393 = vmatprep.mubr.f32.mxu0 0.0
      %5394 = vmatmul.mubr.f32.gmra.mrb[0].mxu0 %v5182
      %v5395 = vpop.f32.mrb[0].mxu0
      %v5396 = vadd.f32 0.0, %v5395
      %v5397 = vpop.f32.mrb[0].mxu0
      %5398 = vmatprep.mubr.f32.mxu0 0.0
      %5399 = vmatmul.mubr.f32.gmra.mrb[0].mxu0 %v5185
      %v5400 = vpop.f32.mrb[0].mxu0
      %v5401 = vadd.f32 0.0, %v5400
      %v5402 = vpop.f32.mrb[0].mxu0
      %5403 = vmatprep.mubr.f32.mxu0 0.0
      %5404 = vmatmul.mubr.f32.gmra.mrb[0].mxu0 %v5188
      %v5405 = vpop.f32.mrb[0].mxu0
      %v5406 = vadd.f32 0.0, %v5405
      %v5407 = vpop.f32.mrb[0].mxu0
      %5408 = vmatprep.mubr.f32.mxu0 0.0
      %5409 = vmatmul.mubr.f32.gmra.mrb[0].mxu0 %v5191
      %v5410 = vpop.f32.mrb[0].mxu0
      %v5411 = vadd.f32 0.0, %v5410
      %v5412 = vpop.f32.mrb[0].mxu0
      %5413 = vmatprep.mubr.f32.mxu0 0.0
      %5414 = vmatmul.mubr.f32.gmra.mrb[0].mxu0 %v5194
      %v5415 = vpop.f32.mrb[0].mxu0
      %v5416 = vadd.f32 0.0, %v5415
      %v5417 = vpop.f32.mrb[0].mxu0
      %5418 = vmatprep.mubr.f32.mxu0 0.0
      %5419 = vmatmul.mubr.f32.gmra.mrb[0].mxu0 %v5197
      %v5420 = vpop.f32.mrb[0].mxu0
      %v5421 = vadd.f32 0.0, %v5420
      %v5422 = vpop.f32.mrb[0].mxu0
      %5423 = vdwg.mxu0
      %v5424 = vmax.f32 %v5266, 0.0
      %v5425 = vmax.f32 %v5271, 0.0
      %v5426 = vmax.f32 %v5276, 0.0
      %v5427 = vmax.f32 %v5281, 0.0
      %v5428 = vmax.f32 %v5286, 0.0
      %v5429 = vmax.f32 %v5291, 0.0
      %v5430 = vmax.f32 %v5296, 0.0
      %v5431 = vmax.f32 %v5301, 0.0
      %v5432 = vmax.f32 %v5306, 0.0
      %v5433 = vmax.f32 %v5311, 0.0
      %v5434 = vmax.f32 %v5316, 0.0
      %v5435 = vmax.f32 %v5321, 0.0
      %v5436 = vmax.f32 %v5326, 0.0
      %v5437 = vmax.f32 %v5331, 0.0
      %v5438 = vmax.f32 %v5336, 0.0
      %v5439 = vmax.f32 %v5341, 0.0
      %v5440 = vmax.f32 %v5346, 0.0
      %v5441 = vmax.f32 %v5351, 0.0
      %v5442 = vmax.f32 %v5356, 0.0
      %v5443 = vmax.f32 %v5361, 0.0
      %v5444 = vmax.f32 %v5366, 0.0
      %v5445 = vmax.f32 %v5371, 0.0
      %v5446 = vmax.f32 %v5376, 0.0
      %v5447 = vmax.f32 %v5381, 0.0
      %v5448 = vmax.f32 %v5386, 0.0
      %v5449 = vmax.f32 %v5391, 0.0
      %v5450 = vmax.f32 %v5396, 0.0
      %v5451 = vmax.f32 %v5401, 0.0
      %v5452 = vmax.f32 %v5406, 0.0
      %v5453 = vmax.f32 %v5411, 0.0
      %v5454 = vmax.f32 %v5416, 0.0
      %v5455 = vmax.f32 %v5421, 0.0
      %v5456 = vld [vmem:[%s9] sm:$0xff]
      %v5457 = vld [vmem:[%s9 + $0x8] sm:$0xff]
      %v5458 = vld [vmem:[%s9 + $0x10] sm:$0xff]
      %v5459 = vld [vmem:[%s9 + $0x18] sm:$0xff]
      %v5461 = vsel %vm4746, %v4739, 0
      %5463 = vmatprep.subr.mxu0 0.0
      %5464 = vmatpush1.msra.mxu0 %v5456
      %5465 = vmatprep.subr.mxu0 0.0
      %5466 = vmatpush1.msra.mxu0 %v5457
      %5467 = vmatprep.subr.mxu0 0.0
      %5468 = vmatpush1.msra.mxu0 %v5458
      %5469 = vmatprep.subr.mxu0 0.0
      %5470 = vmatpush1.msra.mxu0 %v5459
      %5471 = vmatprep.subr.mxu0 0.0
      %5472 = vmatpush1.msra.mxu0 0.0
      %5473 = vmatprep.subr.mxu0 0.0
      %5474 = vmatpush1.msra.mxu0 0.0
      %5475 = vmatprep.subr.mxu0 0.0
      %5476 = vmatpush1.msra.mxu0 0.0
      %5477 = vmatprep.subr.mxu0 0.0
      %5478 = vmatpush1.msra.mxu0 0.0
      %5479 = vmatprep.subr.mxu0 0.0
      %5480 = vmatpush1.msra.mxu0 0.0
      %5481 = vmatprep.subr.mxu0 0.0
      %5482 = vmatpush1.msra.mxu0 0.0
      %5483 = vmatprep.subr.mxu0 0.0
      %5484 = vmatpush1.msra.mxu0 0.0
      %5485 = vmatprep.subr.mxu0 0.0
      %5486 = vmatpush1.msra.mxu0 0.0
      %5487 = vmatprep.subr.mxu0 0.0
      %5488 = vmatpush1.msra.mxu0 0.0
      %5489 = vmatprep.subr.mxu0 0.0
      %5490 = vmatpush1.msra.mxu0 0.0
      %5491 = vmatprep.subr.mxu0 0.0
      %5492 = vmatpush1.msra.mxu0 0.0
      %5493 = vmatprep.subr.mxu0 0.0
      %5494 = vmatpush1.msra.mxu0 0.0
      %5495 = vmatprep.subr.mxu0 0.0
      %5496 = vmatpush1.msra.mxu0 0.0
      %5497 = vmatprep.subr.mxu0 0.0
      %5498 = vmatpush1.msra.mxu0 0.0
      %5499 = vmatprep.subr.mxu0 0.0
      %5500 = vmatpush1.msra.mxu0 0.0
      %5501 = vmatprep.subr.mxu0 0.0
      %5502 = vmatpush1.msra.mxu0 0.0
      %5503 = vmatprep.subr.mxu0 0.0
      %5504 = vmatpush1.msra.mxu0 0.0
      %5505 = vmatprep.subr.mxu0 0.0
      %5506 = vmatpush1.msra.mxu0 0.0
      %5507 = vmatprep.subr.mxu0 0.0
      %5508 = vmatpush1.msra.mxu0 0.0
      %5509 = vmatprep.subr.mxu0 0.0
      %5510 = vmatpush1.msra.mxu0 0.0
      %5511 = vmatprep.subr.mxu0 0.0
      %5512 = vmatpush1.msra.mxu0 0.0
      %5513 = vmatprep.subr.mxu0 0.0
      %5514 = vmatpush1.msra.mxu0 0.0
      %5515 = vmatprep.subr.mxu0 0.0
      %5516 = vmatpush1.msra.mxu0 0.0
      %5517 = vmatprep.subr.mxu0 0.0
      %5518 = vmatpush1.msra.mxu0 0.0
      %5519 = vmatprep.subr.mxu0 0.0
      %5520 = vmatpush1.msra.mxu0 0.0
      %5521 = vmatprep.subr.mxu0 0.0
      %5522 = vmatpush1.msra.mxu0 0.0
      %5523 = vmatprep.subr.mxu0 0.0
      %5524 = vmatpush1.msra.mxu0 0.0
      %5525 = vmatprep.subr.mxu0 0.0
      %5526 = vmatpush1.msra.mxu0 0.0
      %5527 = vmatprep.mubr.f32.mxu0 0.0
      %5528 = vmatmul.mubr.f32.gmra.mrb[0].mxu0 %v5461
      %v5529 = vpop.f32.mrb[0].mxu0
      %v5530 = vadd.f32 0.0, %v5529
      %v5531 = vpop.f32.mrb[0].mxu0
      %5532 = vdwg.mxu0
      %v5533 = vmax.f32 %v5530, 0.0
      %v5534 = vld [vmem:[%s10] sm:$0xff]
      %v5535 = vld [vmem:[%s10 + $0x8] sm:$0xff]
      %v5537 = vsel %vm5102, %v5533, 0
      %5539 = vmatprep.subr.mxu0 0.0
      %5540 = vmatpush1.msra.mxu0 %v5534
      %5541 = vmatprep.subr.mxu0 0.0
      %5542 = vmatpush1.msra.mxu0 %v5535
      %5543 = vmatprep.subr.mxu0 0.0
      %5544 = vmatpush1.msra.mxu0 0.0
      %5545 = vmatprep.subr.mxu0 0.0
      %5546 = vmatpush1.msra.mxu0 0.0
      %5547 = vmatprep.subr.mxu0 0.0
      %5548 = vmatpush1.msra.mxu0 0.0
      %5549 = vmatprep.subr.mxu0 0.0
      %5550 = vmatpush1.msra.mxu0 0.0
      %5551 = vmatprep.subr.mxu0 0.0
      %5552 = vmatpush1.msra.mxu0 0.0
      %5553 = vmatprep.subr.mxu0 0.0
      %5554 = vmatpush1.msra.mxu0 0.0
      %5555 = vmatprep.subr.mxu0 0.0
      %5556 = vmatpush1.msra.mxu0 0.0
      %5557 = vmatprep.subr.mxu0 0.0
      %5558 = vmatpush1.msra.mxu0 0.0
      %5559 = vmatprep.subr.mxu0 0.0
      %5560 = vmatpush1.msra.mxu0 0.0
      %5561 = vmatprep.subr.mxu0 0.0
      %5562 = vmatpush1.msra.mxu0 0.0
      %5563 = vmatprep.subr.mxu0 0.0
      %5564 = vmatpush1.msra.mxu0 0.0
      %5565 = vmatprep.subr.mxu0 0.0
      %5566 = vmatpush1.msra.mxu0 0.0
      %5567 = vmatprep.subr.mxu0 0.0
      %5568 = vmatpush1.msra.mxu0 0.0
      %5569 = vmatprep.subr.mxu0 0.0
      %5570 = vmatpush1.msra.mxu0 0.0
      %5571 = vmatprep.subr.mxu0 0.0
      %5572 = vmatpush1.msra.mxu0 0.0
      %5573 = vmatprep.subr.mxu0 0.0
      %5574 = vmatpush1.msra.mxu0 0.0
      %5575 = vmatprep.subr.mxu0 0.0
      %5576 = vmatpush1.msra.mxu0 0.0
      %5577 = vmatprep.subr.mxu0 0.0
      %5578 = vmatpush1.msra.mxu0 0.0
      %5579 = vmatprep.subr.mxu0 0.0
      %5580 = vmatpush1.msra.mxu0 0.0
      %5581 = vmatprep.subr.mxu0 0.0
      %5582 = vmatpush1.msra.mxu0 0.0
      %5583 = vmatprep.subr.mxu0 0.0
      %5584 = vmatpush1.msra.mxu0 0.0
      %5585 = vmatprep.subr.mxu0 0.0
      %5586 = vmatpush1.msra.mxu0 0.0
      %5587 = vmatprep.subr.mxu0 0.0
      %5588 = vmatpush1.msra.mxu0 0.0
      %5589 = vmatprep.subr.mxu0 0.0
      %5590 = vmatpush1.msra.mxu0 0.0
      %5591 = vmatprep.subr.mxu0 0.0
      %5592 = vmatpush1.msra.mxu0 0.0
      %5593 = vmatprep.subr.mxu0 0.0
      %5594 = vmatpush1.msra.mxu0 0.0
      %5595 = vmatprep.subr.mxu0 0.0
      %5596 = vmatpush1.msra.mxu0 0.0
      %5597 = vmatprep.subr.mxu0 0.0
      %5598 = vmatpush1.msra.mxu0 0.0
      %5599 = vmatprep.subr.mxu0 0.0
      %5600 = vmatpush1.msra.mxu0 0.0
      %5601 = vmatprep.subr.mxu0 0.0
      %5602 = vmatpush1.msra.mxu0 0.0
      %5603 = vmatprep.mubr.f32.mxu0 0.0
      %5604 = vmatmul.mubr.f32.gmra.mrb[0].mxu0 %v5537
      %v5605 = vpop.f32.mrb[0].mxu0
      %v5606 = vadd.f32 0.0, %v5605
      %v5607 = vpop.f32.mrb[0].mxu0
      %5608 = vdwg.mxu0
      %v5609 = vmax.f32 %v5606, 0.0
      %v5610 = vld [vmem:[%s11] sm:$0xff]
      %v5611 = vld [vmem:[%s11 + $0x8] sm:$0xff]
      %v5612 = vld [vmem:[%s11 + $0x10] sm:$0xff]
      %v5613 = vld [vmem:[%s11 + $0x18] sm:$0xff]
      %5614 = vmatprep.subr.mxu0 0.0
      %5615 = vmatpush1.msra.mxu0 %v5610
      %5616 = vmatprep.subr.mxu0 0.0
      %5617 = vmatpush1.msra.mxu0 %v5611
      %5618 = vmatprep.subr.mxu0 0.0
      %5619 = vmatpush1.msra.mxu0 %v5612
      %5620 = vmatprep.subr.mxu0 0.0
      %5621 = vmatpush1.msra.mxu0 %v5613
      %5622 = vmatprep.subr.mxu0 0.0
      %5623 = vmatpush1.msra.mxu0 0.0
      %5624 = vmatprep.subr.mxu0 0.0
      %5625 = vmatpush1.msra.mxu0 0.0
      %5626 = vmatprep.subr.mxu0 0.0
      %5627 = vmatpush1.msra.mxu0 0.0
      %5628 = vmatprep.subr.mxu0 0.0
      %5629 = vmatpush1.msra.mxu0 0.0
      %5630 = vmatprep.subr.mxu0 0.0
      %5631 = vmatpush1.msra.mxu0 0.0
      %5632 = vmatprep.subr.mxu0 0.0
      %5633 = vmatpush1.msra.mxu0 0.0
      %5634 = vmatprep.subr.mxu0 0.0
      %5635 = vmatpush1.msra.mxu0 0.0
      %5636 = vmatprep.subr.mxu0 0.0
      %5637 = vmatpush1.msra.mxu0 0.0
      %5638 = vmatprep.subr.mxu0 0.0
      %5639 = vmatpush1.msra.mxu0 0.0
      %5640 = vmatprep.subr.mxu0 0.0
      %5641 = vmatpush1.msra.mxu0 0.0
      %5642 = vmatprep.subr.mxu0 0.0
      %5643 = vmatpush1.msra.mxu0 0.0
      %5644 = vmatprep.subr.mxu0 0.0
      %5645 = vmatpush1.msra.mxu0 0.0
      %5646 = vmatprep.subr.mxu0 0.0
      %5647 = vmatpush1.msra.mxu0 0.0
      %5648 = vmatprep.subr.mxu0 0.0
      %5649 = vmatpush1.msra.mxu0 0.0
      %5650 = vmatprep.subr.mxu0 0.0
      %5651 = vmatpush1.msra.mxu0 0.0
      %5652 = vmatprep.subr.mxu0 0.0
      %5653 = vmatpush1.msra.mxu0 0.0
      %5654 = vmatprep.subr.mxu0 0.0
      %5655 = vmatpush1.msra.mxu0 0.0
      %5656 = vmatprep.subr.mxu0 0.0
      %5657 = vmatpush1.msra.mxu0 0.0
      %5658 = vmatprep.subr.mxu0 0.0
      %5659 = vmatpush1.msra.mxu0 0.0
      %5660 = vmatprep.subr.mxu0 0.0
      %5661 = vmatpush1.msra.mxu0 0.0
      %5662 = vmatprep.subr.mxu0 0.0
      %5663 = vmatpush1.msra.mxu0 0.0
      %5664 = vmatprep.subr.mxu0 0.0
      %5665 = vmatpush1.msra.mxu0 0.0
      %5666 = vmatprep.subr.mxu0 0.0
      %5667 = vmatpush1.msra.mxu0 0.0
      %5668 = vmatprep.subr.mxu0 0.0
      %5669 = vmatpush1.msra.mxu0 0.0
      %5670 = vmatprep.subr.mxu0 0.0
      %5671 = vmatpush1.msra.mxu0 0.0
      %5672 = vmatprep.subr.mxu0 0.0
      %5673 = vmatpush1.msra.mxu0 0.0
      %5674 = vmatprep.subr.mxu0 0.0
      %5675 = vmatpush1.msra.mxu0 0.0
      %5676 = vmatprep.subr.mxu0 0.0
      %5677 = vmatpush1.msra.mxu0 0.0
      %5678 = vmatprep.mubr.f32.mxu0 0.0
      %5679 = vmatmul.mubr.f32.gmra.mrb[0].mxu0 %v5461
      %v5680 = vpop.f32.mrb[0].mxu0
      %v5681 = vadd.f32 0.0, %v5680
      %v5682 = vpop.f32.mrb[0].mxu0
      %5683 = vdwg.mxu0
      %v5684 = vmax.f32 %v5681, 0.0
      %v5686 = vsel %vm5102, %v5424, 0
      %v5689 = vsel %vm5102, %v5425, 0
      %v5692 = vsel %vm5102, %v5426, 0
      %v5695 = vsel %vm5102, %v5427, 0
      %v5698 = vsel %vm5102, %v5428, 0
      %v5701 = vsel %vm5102, %v5429, 0
      %v5704 = vsel %vm5102, %v5430, 0
      %v5707 = vsel %vm5102, %v5431, 0
      %v5710 = vsel %vm5102, %v5432, 0
      %v5713 = vsel %vm5102, %v5433, 0
      %v5716 = vsel %vm5102, %v5434, 0
      %v5719 = vsel %vm5102, %v5435, 0
      %v5722 = vsel %vm5102, %v5436, 0
      %v5725 = vsel %vm5102, %v5437, 0
      %v5728 = vsel %vm5102, %v5438, 0
      %v5731 = vsel %vm5102, %v5439, 0
      %v5734 = vsel %vm5102, %v5440, 0
      %v5737 = vsel %vm5102, %v5441, 0
      %v5740 = vsel %vm5102, %v5442, 0
      %v5743 = vsel %vm5102, %v5443, 0
      %v5746 = vsel %vm5102, %v5444, 0
      %v5749 = vsel %vm5102, %v5445, 0
      %v5752 = vsel %vm5102, %v5446, 0
      %v5755 = vsel %vm5102, %v5447, 0
      %v5758 = vsel %vm5102, %v5448, 0
      %v5761 = vsel %vm5102, %v5449, 0
      %v5764 = vsel %vm5102, %v5450, 0
      %v5767 = vsel %vm5102, %v5451, 0
      %v5770 = vsel %vm5102, %v5452, 0
      %v5773 = vsel %vm5102, %v5453, 0
      %v5776 = vsel %vm5102, %v5454, 0
      %v5779 = vsel %vm5102, %v5455, 0
      %v5782 = vsel %vm5102, %v5609, 0
      %5784 = vmatprep.subr.mxu0 0.0
      %5785 = vmatpush1.xpose.msra.mxu0 %v5782
      %5786 = vmatprep.subr.mxu0 0.0
      %5787 = vmatpush1.xpose.msra.mxu0 0.0
      %5788 = vmatprep.subr.mxu0 0.0
      %5789 = vmatpush1.xpose.msra.mxu0 0.0
      %5790 = vmatprep.subr.mxu0 0.0
      %5791 = vmatpush1.xpose.msra.mxu0 0.0
      %5792 = vmatprep.subr.mxu0 0.0
      %5793 = vmatpush1.xpose.msra.mxu0 0.0
      %5794 = vmatprep.subr.mxu0 0.0
      %5795 = vmatpush1.xpose.msra.mxu0 0.0
      %5796 = vmatprep.subr.mxu0 0.0
      %5797 = vmatpush1.xpose.msra.mxu0 0.0
      %5798 = vmatprep.subr.mxu0 0.0
      %5799 = vmatpush1.xpose.msra.mxu0 0.0
      %5800 = vmatprep.subr.mxu0 0.0
      %5801 = vmatpush1.xpose.msra.mxu0 0.0
      %5802 = vmatprep.subr.mxu0 0.0
      %5803 = vmatpush1.xpose.msra.mxu0 0.0
      %5804 = vmatprep.subr.mxu0 0.0
      %5805 = vmatpush1.xpose.msra.mxu0 0.0
      %5806 = vmatprep.subr.mxu0 0.0
      %5807 = vmatpush1.xpose.msra.mxu0 0.0
      %5808 = vmatprep.subr.mxu0 0.0
      %5809 = vmatpush1.xpose.msra.mxu0 0.0
      %5810 = vmatprep.subr.mxu0 0.0
      %5811 = vmatpush1.xpose.msra.mxu0 0.0
      %5812 = vmatprep.subr.mxu0 0.0
      %5813 = vmatpush1.xpose.msra.mxu0 0.0
      %5814 = vmatprep.subr.mxu0 0.0
      %5815 = vmatpush1.xpose.msra.mxu0 0.0
      %5816 = vmatprep.subr.mxu0 0.0
      %5817 = vmatpush1.xpose.msra.mxu0 0.0
      %5818 = vmatprep.subr.mxu0 0.0
      %5819 = vmatpush1.xpose.msra.mxu0 0.0
      %5820 = vmatprep.subr.mxu0 0.0
      %5821 = vmatpush1.xpose.msra.mxu0 0.0
      %5822 = vmatprep.subr.mxu0 0.0
      %5823 = vmatpush1.xpose.msra.mxu0 0.0
      %5824 = vmatprep.subr.mxu0 0.0
      %5825 = vmatpush1.xpose.msra.mxu0 0.0
      %5826 = vmatprep.subr.mxu0 0.0
      %5827 = vmatpush1.xpose.msra.mxu0 0.0
      %5828 = vmatprep.subr.mxu0 0.0
      %5829 = vmatpush1.xpose.msra.mxu0 0.0
      %5830 = vmatprep.subr.mxu0 0.0
      %5831 = vmatpush1.xpose.msra.mxu0 0.0
      %5832 = vmatprep.subr.mxu0 0.0
      %5833 = vmatpush1.xpose.msra.mxu0 0.0
      %5834 = vmatprep.subr.mxu0 0.0
      %5835 = vmatpush1.xpose.msra.mxu0 0.0
      %5836 = vmatprep.subr.mxu0 0.0
      %5837 = vmatpush1.xpose.msra.mxu0 0.0
      %5838 = vmatprep.subr.mxu0 0.0
      %5839 = vmatpush1.xpose.msra.mxu0 0.0
      %5840 = vmatprep.subr.mxu0 0.0
      %5841 = vmatpush1.xpose.msra.mxu0 0.0
      %5842 = vmatprep.subr.mxu0 0.0
      %5843 = vmatpush1.xpose.msra.mxu0 0.0
      %5844 = vmatprep.subr.mxu0 0.0
      %5845 = vmatpush1.xpose.msra.mxu0 0.0
      %5846 = vmatprep.subr.mxu0 0.0
      %5847 = vmatpush1.xpose.msra.mxu0 0.0
      %5848 = vmatprep.mubr.f32.mxu0 0.0
      %5849 = vmatmul.mubr.f32.gmra.mrb[0].mxu0 %v5686
      %v5850 = vpop.f32.mrb[0].mxu0
      %v5851 = vadd.f32 0.0, %v5850
      %v5852 = vpop.f32.mrb[0].mxu0
      %5853 = vmatprep.mubr.f32.mxu0 0.0
      %5854 = vmatmul.mubr.f32.gmra.mrb[0].mxu0 %v5689
      %v5855 = vpop.f32.mrb[0].mxu0
      %v5856 = vadd.f32 0.0, %v5855
      %v5857 = vpop.f32.mrb[0].mxu0
      %5858 = vmatprep.mubr.f32.mxu0 0.0
      %5859 = vmatmul.mubr.f32.gmra.mrb[0].mxu0 %v5692
      %v5860 = vpop.f32.mrb[0].mxu0
      %v5861 = vadd.f32 0.0, %v5860
      %v5862 = vpop.f32.mrb[0].mxu0
      %5863 = vmatprep.mubr.f32.mxu0 0.0
      %5864 = vmatmul.mubr.f32.gmra.mrb[0].mxu0 %v5695
      %v5865 = vpop.f32.mrb[0].mxu0
      %v5866 = vadd.f32 0.0, %v5865
      %v5867 = vpop.f32.mrb[0].mxu0
      %5868 = vmatprep.mubr.f32.mxu0 0.0
      %5869 = vmatmul.mubr.f32.gmra.mrb[0].mxu0 %v5698
      %v5870 = vpop.f32.mrb[0].mxu0
      %v5871 = vadd.f32 0.0, %v5870
      %v5872 = vpop.f32.mrb[0].mxu0
      %5873 = vmatprep.mubr.f32.mxu0 0.0
      %5874 = vmatmul.mubr.f32.gmra.mrb[0].mxu0 %v5701
      %v5875 = vpop.f32.mrb[0].mxu0
      %v5876 = vadd.f32 0.0, %v5875
      %v5877 = vpop.f32.mrb[0].mxu0
      %5878 = vmatprep.mubr.f32.mxu0 0.0
      %5879 = vmatmul.mubr.f32.gmra.mrb[0].mxu0 %v5704
      %v5880 = vpop.f32.mrb[0].mxu0
      %v5881 = vadd.f32 0.0, %v5880
      %v5882 = vpop.f32.mrb[0].mxu0
      %5883 = vmatprep.mubr.f32.mxu0 0.0
      %5884 = vmatmul.mubr.f32.gmra.mrb[0].mxu0 %v5707
      %v5885 = vpop.f32.mrb[0].mxu0
      %v5886 = vadd.f32 0.0, %v5885
      %v5887 = vpop.f32.mrb[0].mxu0
      %5888 = vmatprep.mubr.f32.mxu0 0.0
      %5889 = vmatmul.mubr.f32.gmra.mrb[0].mxu0 %v5710
      %v5890 = vpop.f32.mrb[0].mxu0
      %v5891 = vadd.f32 0.0, %v5890
      %v5892 = vpop.f32.mrb[0].mxu0
      %5893 = vmatprep.mubr.f32.mxu0 0.0
      %5894 = vmatmul.mubr.f32.gmra.mrb[0].mxu0 %v5713
      %v5895 = vpop.f32.mrb[0].mxu0
      %v5896 = vadd.f32 0.0, %v5895
      %v5897 = vpop.f32.mrb[0].mxu0
      %5898 = vmatprep.mubr.f32.mxu0 0.0
      %5899 = vmatmul.mubr.f32.gmra.mrb[0].mxu0 %v5716
      %v5900 = vpop.f32.mrb[0].mxu0
      %v5901 = vadd.f32 0.0, %v5900
      %v5902 = vpop.f32.mrb[0].mxu0
      %5903 = vmatprep.mubr.f32.mxu0 0.0
      %5904 = vmatmul.mubr.f32.gmra.mrb[0].mxu0 %v5719
      %v5905 = vpop.f32.mrb[0].mxu0
      %v5906 = vadd.f32 0.0, %v5905
      %v5907 = vpop.f32.mrb[0].mxu0
      %5908 = vmatprep.mubr.f32.mxu0 0.0
      %5909 = vmatmul.mubr.f32.gmra.mrb[0].mxu0 %v5722
      %v5910 = vpop.f32.mrb[0].mxu0
      %v5911 = vadd.f32 0.0, %v5910
      %v5912 = vpop.f32.mrb[0].mxu0
      %5913 = vmatprep.mubr.f32.mxu0 0.0
      %5914 = vmatmul.mubr.f32.gmra.mrb[0].mxu0 %v5725
      %v5915 = vpop.f32.mrb[0].mxu0
      %v5916 = vadd.f32 0.0, %v5915
      %v5917 = vpop.f32.mrb[0].mxu0
      %5918 = vmatprep.mubr.f32.mxu0 0.0
      %5919 = vmatmul.mubr.f32.gmra.mrb[0].mxu0 %v5728
      %v5920 = vpop.f32.mrb[0].mxu0
      %v5921 = vadd.f32 0.0, %v5920
      %v5922 = vpop.f32.mrb[0].mxu0
      %5923 = vmatprep.mubr.f32.mxu0 0.0
      %5924 = vmatmul.mubr.f32.gmra.mrb[0].mxu0 %v5731
      %v5925 = vpop.f32.mrb[0].mxu0
      %v5926 = vadd.f32 0.0, %v5925
      %v5927 = vpop.f32.mrb[0].mxu0
      %5928 = vmatprep.mubr.f32.mxu0 0.0
      %5929 = vmatmul.mubr.f32.gmra.mrb[0].mxu0 %v5734
      %v5930 = vpop.f32.mrb[0].mxu0
      %v5931 = vadd.f32 0.0, %v5930
      %v5932 = vpop.f32.mrb[0].mxu0
      %5933 = vmatprep.mubr.f32.mxu0 0.0
      %5934 = vmatmul.mubr.f32.gmra.mrb[0].mxu0 %v5737
      %v5935 = vpop.f32.mrb[0].mxu0
      %v5936 = vadd.f32 0.0, %v5935
      %v5937 = vpop.f32.mrb[0].mxu0
      %5938 = vmatprep.mubr.f32.mxu0 0.0
      %5939 = vmatmul.mubr.f32.gmra.mrb[0].mxu0 %v5740
      %v5940 = vpop.f32.mrb[0].mxu0
      %v5941 = vadd.f32 0.0, %v5940
      %v5942 = vpop.f32.mrb[0].mxu0
      %5943 = vmatprep.mubr.f32.mxu0 0.0
      %5944 = vmatmul.mubr.f32.gmra.mrb[0].mxu0 %v5743
      %v5945 = vpop.f32.mrb[0].mxu0
      %v5946 = vadd.f32 0.0, %v5945
      %v5947 = vpop.f32.mrb[0].mxu0
      %5948 = vmatprep.mubr.f32.mxu0 0.0
      %5949 = vmatmul.mubr.f32.gmra.mrb[0].mxu0 %v5746
      %v5950 = vpop.f32.mrb[0].mxu0
      %v5951 = vadd.f32 0.0, %v5950
      %v5952 = vpop.f32.mrb[0].mxu0
      %5953 = vmatprep.mubr.f32.mxu0 0.0
      %5954 = vmatmul.mubr.f32.gmra.mrb[0].mxu0 %v5749
      %v5955 = vpop.f32.mrb[0].mxu0
      %v5956 = vadd.f32 0.0, %v5955
      %v5957 = vpop.f32.mrb[0].mxu0
      %5958 = vmatprep.mubr.f32.mxu0 0.0
      %5959 = vmatmul.mubr.f32.gmra.mrb[0].mxu0 %v5752
      %v5960 = vpop.f32.mrb[0].mxu0
      %v5961 = vadd.f32 0.0, %v5960
      %v5962 = vpop.f32.mrb[0].mxu0
      %5963 = vmatprep.mubr.f32.mxu0 0.0
      %5964 = vmatmul.mubr.f32.gmra.mrb[0].mxu0 %v5755
      %v5965 = vpop.f32.mrb[0].mxu0
      %v5966 = vadd.f32 0.0, %v5965
      %v5967 = vpop.f32.mrb[0].mxu0
      %5968 = vmatprep.mubr.f32.mxu0 0.0
      %5969 = vmatmul.mubr.f32.gmra.mrb[0].mxu0 %v5758
      %v5970 = vpop.f32.mrb[0].mxu0
      %v5971 = vadd.f32 0.0, %v5970
      %v5972 = vpop.f32.mrb[0].mxu0
      %5973 = vmatprep.mubr.f32.mxu0 0.0
      %5974 = vmatmul.mubr.f32.gmra.mrb[0].mxu0 %v5761
      %v5975 = vpop.f32.mrb[0].mxu0
      %v5976 = vadd.f32 0.0, %v5975
      %v5977 = vpop.f32.mrb[0].mxu0
      %5978 = vmatprep.mubr.f32.mxu0 0.0
      %5979 = vmatmul.mubr.f32.gmra.mrb[0].mxu0 %v5764
      %v5980 = vpop.f32.mrb[0].mxu0
      %v5981 = vadd.f32 0.0, %v5980
      %v5982 = vpop.f32.mrb[0].mxu0
      %5983 = vmatprep.mubr.f32.mxu0 0.0
      %5984 = vmatmul.mubr.f32.gmra.mrb[0].mxu0 %v5767
      %v5985 = vpop.f32.mrb[0].mxu0
      %v5986 = vadd.f32 0.0, %v5985
      %v5987 = vpop.f32.mrb[0].mxu0
      %5988 = vmatprep.mubr.f32.mxu0 0.0
      %5989 = vmatmul.mubr.f32.gmra.mrb[0].mxu0 %v5770
      %v5990 = vpop.f32.mrb[0].mxu0
      %v5991 = vadd.f32 0.0, %v5990
      %v5992 = vpop.f32.mrb[0].mxu0
      %5993 = vmatprep.mubr.f32.mxu0 0.0
      %5994 = vmatmul.mubr.f32.gmra.mrb[0].mxu0 %v5773
      %v5995 = vpop.f32.mrb[0].mxu0
      %v5996 = vadd.f32 0.0, %v5995
      %v5997 = vpop.f32.mrb[0].mxu0
      %5998 = vmatprep.mubr.f32.mxu0 0.0
      %5999 = vmatmul.mubr.f32.gmra.mrb[0].mxu0 %v5776
      %v6000 = vpop.f32.mrb[0].mxu0
      %v6001 = vadd.f32 0.0, %v6000
      %v6002 = vpop.f32.mrb[0].mxu0
      %6003 = vmatprep.mubr.f32.mxu0 0.0
      %6004 = vmatmul.mubr.f32.gmra.mrb[0].mxu0 %v5779
      %v6005 = vpop.f32.mrb[0].mxu0
      %v6006 = vadd.f32 0.0, %v6005
      %v6007 = vpop.f32.mrb[0].mxu0
      %6008 = vdwg.mxu0
      %v6009 = vmul.f32 %v5851, 0.25
      %v6010 = vmul.f32 %v5856, 0.25
      %v6011 = vmul.f32 %v5861, 0.25
      %v6012 = vmul.f32 %v5866, 0.25
      %v6013 = vmul.f32 %v5871, 0.25
      %v6014 = vmul.f32 %v5876, 0.25
      %v6015 = vmul.f32 %v5881, 0.25
      %v6016 = vmul.f32 %v5886, 0.25
      %v6017 = vmul.f32 %v5891, 0.25
      %v6018 = vmul.f32 %v5896, 0.25
      %v6019 = vmul.f32 %v5901, 0.25
      %v6020 = vmul.f32 %v5906, 0.25
      %v6021 = vmul.f32 %v5911, 0.25
      %v6022 = vmul.f32 %v5916, 0.25
      %v6023 = vmul.f32 %v5921, 0.25
      %v6024 = vmul.f32 %v5926, 0.25
      %v6025 = vmul.f32 %v5931, 0.25
      %v6026 = vmul.f32 %v5936, 0.25
      %v6027 = vmul.f32 %v5941, 0.25
      %v6028 = vmul.f32 %v5946, 0.25
      %v6029 = vmul.f32 %v5951, 0.25
      %v6030 = vmul.f32 %v5956, 0.25
      %v6031 = vmul.f32 %v5961, 0.25
      %v6032 = vmul.f32 %v5966, 0.25
      %v6033 = vmul.f32 %v5971, 0.25
      %v6034 = vmul.f32 %v5976, 0.25
      %v6035 = vmul.f32 %v5981, 0.25
      %v6036 = vmul.f32 %v5986, 0.25
      %v6037 = vmul.f32 %v5991, 0.25
      %v6038 = vmul.f32 %v5996, 0.25
      %v6039 = vmul.f32 %v6001, 0.25
      %v6040 = vmul.f32 %v6006, 0.25
      %vm6041 = vcmask 31744
      %v6042 = vsel %vm6041, %v6009, -inf
      %6043 = vmax.xlane.f32.xlu0 %v6042
      %v6044 = vpop.xlane.xlu0 %6043
      %v6045 = vsel %vm6041, %v6010, -inf
      %6046 = vmax.xlane.f32.xlu0 %v6045
      %v6047 = vpop.xlane.xlu0 %6046
      %v6048 = vsel %vm6041, %v6011, -inf
      %6049 = vmax.xlane.f32.xlu0 %v6048
      %v6050 = vpop.xlane.xlu0 %6049
      %v6051 = vsel %vm6041, %v6012, -inf
      %6052 = vmax.xlane.f32.xlu0 %v6051
      %v6053 = vpop.xlane.xlu0 %6052
      %v6054 = vsel %vm6041, %v6013, -inf
      %6055 = vmax.xlane.f32.xlu0 %v6054
      %v6056 = vpop.xlane.xlu0 %6055
      %v6057 = vsel %vm6041, %v6014, -inf
      %6058 = vmax.xlane.f32.xlu0 %v6057
      %v6059 = vpop.xlane.xlu0 %6058
      %v6060 = vsel %vm6041, %v6015, -inf
      %6061 = vmax.xlane.f32.xlu0 %v6060
      %v6062 = vpop.xlane.xlu0 %6061
      %v6063 = vsel %vm6041, %v6016, -inf
      %6064 = vmax.xlane.f32.xlu0 %v6063
      %v6065 = vpop.xlane.xlu0 %6064
      %v6066 = vsel %vm6041, %v6017, -inf
      %6067 = vmax.xlane.f32.xlu0 %v6066
      %v6068 = vpop.xlane.xlu0 %6067
      %v6069 = vsel %vm6041, %v6018, -inf
      %6070 = vmax.xlane.f32.xlu0 %v6069
      %v6071 = vpop.xlane.xlu0 %6070
      %v6072 = vsel %vm6041, %v6019, -inf
      %6073 = vmax.xlane.f32.xlu0 %v6072
      %v6074 = vpop.xlane.xlu0 %6073
      %v6075 = vsel %vm6041, %v6020, -inf
      %6076 = vmax.xlane.f32.xlu0 %v6075
      %v6077 = vpop.xlane.xlu0 %6076
      %v6078 = vsel %vm6041, %v6021, -inf
      %6079 = vmax.xlane.f32.xlu0 %v6078
      %v6080 = vpop.xlane.xlu0 %6079
      %v6081 = vsel %vm6041, %v6022, -inf
      %6082 = vmax.xlane.f32.xlu0 %v6081
      %v6083 = vpop.xlane.xlu0 %6082
      %v6084 = vsel %vm6041, %v6023, -inf
      %6085 = vmax.xlane.f32.xlu0 %v6084
      %v6086 = vpop.xlane.xlu0 %6085
      %v6087 = vsel %vm6041, %v6024, -inf
      %6088 = vmax.xlane.f32.xlu0 %v6087
      %v6089 = vpop.xlane.xlu0 %6088
      %v6090 = vsel %vm6041, %v6025, -inf
      %6091 = vmax.xlane.f32.xlu0 %v6090
      %v6092 = vpop.xlane.xlu0 %6091
      %v6093 = vsel %vm6041, %v6026, -inf
      %6094 = vmax.xlane.f32.xlu0 %v6093
      %v6095 = vpop.xlane.xlu0 %6094
      %v6096 = vsel %vm6041, %v6027, -inf
      %6097 = vmax.xlane.f32.xlu0 %v6096
      %v6098 = vpop.xlane.xlu0 %6097
      %v6099 = vsel %vm6041, %v6028, -inf
      %6100 = vmax.xlane.f32.xlu0 %v6099
      %v6101 = vpop.xlane.xlu0 %6100
      %v6102 = vsel %vm6041, %v6029, -inf
      %6103 = vmax.xlane.f32.xlu0 %v6102
      %v6104 = vpop.xlane.xlu0 %6103
      %v6105 = vsel %vm6041, %v6030, -inf
      %6106 = vmax.xlane.f32.xlu0 %v6105
      %v6107 = vpop.xlane.xlu0 %6106
      %v6108 = vsel %vm6041, %v6031, -inf
      %6109 = vmax.xlane.f32.xlu0 %v6108
      %v6110 = vpop.xlane.xlu0 %6109
      %v6111 = vsel %vm6041, %v6032, -inf
      %6112 = vmax.xlane.f32.xlu0 %v6111
      %v6113 = vpop.xlane.xlu0 %6112
      %v6114 = vsel %vm6041, %v6033, -inf
      %6115 = vmax.xlane.f32.xlu0 %v6114
      %v6116 = vpop.xlane.xlu0 %6115
      %v6117 = vsel %vm6041, %v6034, -inf
      %6118 = vmax.xlane.f32.xlu0 %v6117
      %v6119 = vpop.xlane.xlu0 %6118
      %v6120 = vsel %vm6041, %v6035, -inf
      %6121 = vmax.xlane.f32.xlu0 %v6120
      %v6122 = vpop.xlane.xlu0 %6121
      %v6123 = vsel %vm6041, %v6036, -inf
      %6124 = vmax.xlane.f32.xlu0 %v6123
      %v6125 = vpop.xlane.xlu0 %6124
      %v6126 = vsel %vm6041, %v6037, -inf
      %6127 = vmax.xlane.f32.xlu0 %v6126
      %v6128 = vpop.xlane.xlu0 %6127
      %v6129 = vsel %vm6041, %v6038, -inf
      %6130 = vmax.xlane.f32.xlu0 %v6129
      %v6131 = vpop.xlane.xlu0 %6130
      %v6132 = vsel %vm6041, %v6039, -inf
      %6133 = vmax.xlane.f32.xlu0 %v6132
      %v6134 = vpop.xlane.xlu0 %6133
      %v6135 = vsel %vm6041, %v6040, -inf
      %6136 = vmax.xlane.f32.xlu0 %v6135
      %v6137 = vpop.xlane.xlu0 %6136
      %v6138 = vsub.f32 %v6009, %v6044
      %v6139 = vsub.f32 %v6010, %v6047
      %v6140 = vsub.f32 %v6011, %v6050
      %v6141 = vsub.f32 %v6012, %v6053
      %v6142 = vsub.f32 %v6013, %v6056
      %v6143 = vsub.f32 %v6014, %v6059
      %v6144 = vsub.f32 %v6015, %v6062
      %v6145 = vsub.f32 %v6016, %v6065
      %v6146 = vsub.f32 %v6017, %v6068
      %v6147 = vsub.f32 %v6018, %v6071
      %v6148 = vsub.f32 %v6019, %v6074
      %v6149 = vsub.f32 %v6020, %v6077
      %v6150 = vsub.f32 %v6021, %v6080
      %v6151 = vsub.f32 %v6022, %v6083
      %v6152 = vsub.f32 %v6023, %v6086
      %v6153 = vsub.f32 %v6024, %v6089
      %v6154 = vsub.f32 %v6025, %v6092
      %v6155 = vsub.f32 %v6026, %v6095
      %v6156 = vsub.f32 %v6027, %v6098
      %v6157 = vsub.f32 %v6028, %v6101
      %v6158 = vsub.f32 %v6029, %v6104
      %v6159 = vsub.f32 %v6030, %v6107
      %v6160 = vsub.f32 %v6031, %v6110
      %v6161 = vsub.f32 %v6032, %v6113
      %v6162 = vsub.f32 %v6033, %v6116
      %v6163 = vsub.f32 %v6034, %v6119
      %v6164 = vsub.f32 %v6035, %v6122
      %v6165 = vsub.f32 %v6036, %v6125
      %v6166 = vsub.f32 %v6037, %v6128
      %v6167 = vsub.f32 %v6038, %v6131
      %v6168 = vsub.f32 %v6039, %v6134
      %v6169 = vsub.f32 %v6040, %v6137
      %v6170 = vmul.f32 %v6138, 1.442695
      %v6171 = vpow.pop %v6170
      %v6172 = vmul.f32 %v6139, 1.442695
      %v6173 = vpow.pop %v6172
      %v6174 = vmul.f32 %v6140, 1.442695
      %v6175 = vpow.pop %v6174
      %v6176 = vmul.f32 %v6141, 1.442695
      %v6177 = vpow.pop %v6176
      %v6178 = vmul.f32 %v6142, 1.442695
      %v6179 = vpow.pop %v6178
      %v6180 = vmul.f32 %v6143, 1.442695
      %v6181 = vpow.pop %v6180
      %v6182 = vmul.f32 %v6144, 1.442695
      %v6183 = vpow.pop %v6182
      %v6184 = vmul.f32 %v6145, 1.442695
      %v6185 = vpow.pop %v6184
      %v6186 = vmul.f32 %v6146, 1.442695
      %v6187 = vpow.pop %v6186
      %v6188 = vmul.f32 %v6147, 1.442695
      %v6189 = vpow.pop %v6188
      %v6190 = vmul.f32 %v6148, 1.442695
      %v6191 = vpow.pop %v6190
      %v6192 = vmul.f32 %v6149, 1.442695
      %v6193 = vpow.pop %v6192
      %v6194 = vmul.f32 %v6150, 1.442695
      %v6195 = vpow.pop %v6194
      %v6196 = vmul.f32 %v6151, 1.442695
      %v6197 = vpow.pop %v6196
      %v6198 = vmul.f32 %v6152, 1.442695
      %v6199 = vpow.pop %v6198
      %v6200 = vmul.f32 %v6153, 1.442695
      %v6201 = vpow.pop %v6200
      %v6202 = vmul.f32 %v6154, 1.442695
      %v6203 = vpow.pop %v6202
      %v6204 = vmul.f32 %v6155, 1.442695
      %v6205 = vpow.pop %v6204
      %v6206 = vmul.f32 %v6156, 1.442695
      %v6207 = vpow.pop %v6206
      %v6208 = vmul.f32 %v6157, 1.442695
      %v6209 = vpow.pop %v6208
      %v6210 = vmul.f32 %v6158, 1.442695
      %v6211 = vpow.pop %v6210
      %v6212 = vmul.f32 %v6159, 1.442695
      %v6213 = vpow.pop %v6212
      %v6214 = vmul.f32 %v6160, 1.442695
      %v6215 = vpow.pop %v6214
      %v6216 = vmul.f32 %v6161, 1.442695
      %v6217 = vpow.pop %v6216
      %v6218 = vmul.f32 %v6162, 1.442695
      %v6219 = vpow.pop %v6218
      %v6220 = vmul.f32 %v6163, 1.442695
      %v6221 = vpow.pop %v6220
      %v6222 = vmul.f32 %v6164, 1.442695
      %v6223 = vpow.pop %v6222
      %v6224 = vmul.f32 %v6165, 1.442695
      %v6225 = vpow.pop %v6224
      %v6226 = vmul.f32 %v6166, 1.442695
      %v6227 = vpow.pop %v6226
      %v6228 = vmul.f32 %v6167, 1.442695
      %v6229 = vpow.pop %v6228
      %v6230 = vmul.f32 %v6168, 1.442695
      %v6231 = vpow.pop %v6230
      %v6232 = vmul.f32 %v6169, 1.442695
      %v6233 = vpow.pop %v6232
      %v6234 = vsel %vm6041, %v6171, 0.0
      %6235 = vadd.xlane.f32.xlu0 %v6234
      %v6236 = vpop.xlane.xlu0 %6235
      %v6237 = vsel %vm6041, %v6173, 0.0
      %6238 = vadd.xlane.f32.xlu0 %v6237
      %v6239 = vpop.xlane.xlu0 %6238
      %v6240 = vsel %vm6041, %v6175, 0.0
      %6241 = vadd.xlane.f32.xlu0 %v6240
      %v6242 = vpop.xlane.xlu0 %6241
      %v6243 = vsel %vm6041, %v6177, 0.0
      %6244 = vadd.xlane.f32.xlu0 %v6243
      %v6245 = vpop.xlane.xlu0 %6244
      %v6246 = vsel %vm6041, %v6179, 0.0
      %6247 = vadd.xlane.f32.xlu0 %v6246
      %v6248 = vpop.xlane.xlu0 %6247
      %v6249 = vsel %vm6041, %v6181, 0.0
      %6250 = vadd.xlane.f32.xlu0 %v6249
      %v6251 = vpop.xlane.xlu0 %6250
      %v6252 = vsel %vm6041, %v6183, 0.0
      %6253 = vadd.xlane.f32.xlu0 %v6252
      %v6254 = vpop.xlane.xlu0 %6253
      %v6255 = vsel %vm6041, %v6185, 0.0
      %6256 = vadd.xlane.f32.xlu0 %v6255
      %v6257 = vpop.xlane.xlu0 %6256
      %v6258 = vsel %vm6041, %v6187, 0.0
      %6259 = vadd.xlane.f32.xlu0 %v6258
      %v6260 = vpop.xlane.xlu0 %6259
      %v6261 = vsel %vm6041, %v6189, 0.0
      %6262 = vadd.xlane.f32.xlu0 %v6261
      %v6263 = vpop.xlane.xlu0 %6262
      %v6264 = vsel %vm6041, %v6191, 0.0
      %6265 = vadd.xlane.f32.xlu0 %v6264
      %v6266 = vpop.xlane.xlu0 %6265
      %v6267 = vsel %vm6041, %v6193, 0.0
      %6268 = vadd.xlane.f32.xlu0 %v6267
      %v6269 = vpop.xlane.xlu0 %6268
      %v6270 = vsel %vm6041, %v6195, 0.0
      %6271 = vadd.xlane.f32.xlu0 %v6270
      %v6272 = vpop.xlane.xlu0 %6271
      %v6273 = vsel %vm6041, %v6197, 0.0
      %6274 = vadd.xlane.f32.xlu0 %v6273
      %v6275 = vpop.xlane.xlu0 %6274
      %v6276 = vsel %vm6041, %v6199, 0.0
      %6277 = vadd.xlane.f32.xlu0 %v6276
      %v6278 = vpop.xlane.xlu0 %6277
      %v6279 = vsel %vm6041, %v6201, 0.0
      %6280 = vadd.xlane.f32.xlu0 %v6279
      %v6281 = vpop.xlane.xlu0 %6280
      %v6282 = vsel %vm6041, %v6203, 0.0
      %6283 = vadd.xlane.f32.xlu0 %v6282
      %v6284 = vpop.xlane.xlu0 %6283
      %v6285 = vsel %vm6041, %v6205, 0.0
      %6286 = vadd.xlane.f32.xlu0 %v6285
      %v6287 = vpop.xlane.xlu0 %6286
      %v6288 = vsel %vm6041, %v6207, 0.0
      %6289 = vadd.xlane.f32.xlu0 %v6288
      %v6290 = vpop.xlane.xlu0 %6289
      %v6291 = vsel %vm6041, %v6209, 0.0
      %6292 = vadd.xlane.f32.xlu0 %v6291
      %v6293 = vpop.xlane.xlu0 %6292
      %v6294 = vsel %vm6041, %v6211, 0.0
      %6295 = vadd.xlane.f32.xlu0 %v6294
      %v6296 = vpop.xlane.xlu0 %6295
      %v6297 = vsel %vm6041, %v6213, 0.0
      %6298 = vadd.xlane.f32.xlu0 %v6297
      %v6299 = vpop.xlane.xlu0 %6298
      %v6300 = vsel %vm6041, %v6215, 0.0
      %6301 = vadd.xlane.f32.xlu0 %v6300
      %v6302 = vpop.xlane.xlu0 %6301
      %v6303 = vsel %vm6041, %v6217, 0.0
      %6304 = vadd.xlane.f32.xlu0 %v6303
      %v6305 = vpop.xlane.xlu0 %6304
      %v6306 = vsel %vm6041, %v6219, 0.0
      %6307 = vadd.xlane.f32.xlu0 %v6306
      %v6308 = vpop.xlane.xlu0 %6307
      %v6309 = vsel %vm6041, %v6221, 0.0
      %6310 = vadd.xlane.f32.xlu0 %v6309
      %v6311 = vpop.xlane.xlu0 %6310
      %v6312 = vsel %vm6041, %v6223, 0.0
      %6313 = vadd.xlane.f32.xlu0 %v6312
      %v6314 = vpop.xlane.xlu0 %6313
      %v6315 = vsel %vm6041, %v6225, 0.0
      %6316 = vadd.xlane.f32.xlu0 %v6315
      %v6317 = vpop.xlane.xlu0 %6316
      %v6318 = vsel %vm6041, %v6227, 0.0
      %6319 = vadd.xlane.f32.xlu0 %v6318
      %v6320 = vpop.xlane.xlu0 %6319
      %v6321 = vsel %vm6041, %v6229, 0.0
      %6322 = vadd.xlane.f32.xlu0 %v6321
      %v6323 = vpop.xlane.xlu0 %6322
      %v6324 = vsel %vm6041, %v6231, 0.0
      %6325 = vadd.xlane.f32.xlu0 %v6324
      %v6326 = vpop.xlane.xlu0 %6325
      %v6327 = vsel %vm6041, %v6233, 0.0
      %6328 = vadd.xlane.f32.xlu0 %v6327
      %v6329 = vpop.xlane.xlu0 %6328
      %v6330 = vrcp.pop %v6236
      %v6331 = vrcp.pop %v6239
      %v6332 = vrcp.pop %v6242
      %v6333 = vrcp.pop %v6245
      %v6334 = vrcp.pop %v6248
      %v6335 = vrcp.pop %v6251
      %v6336 = vrcp.pop %v6254
      %v6337 = vrcp.pop %v6257
      %v6338 = vrcp.pop %v6260
      %v6339 = vrcp.pop %v6263
      %v6340 = vrcp.pop %v6266
      %v6341 = vrcp.pop %v6269
      %v6342 = vrcp.pop %v6272
      %v6343 = vrcp.pop %v6275
      %v6344 = vrcp.pop %v6278
      %v6345 = vrcp.pop %v6281
      %v6346 = vrcp.pop %v6284
      %v6347 = vrcp.pop %v6287
      %v6348 = vrcp.pop %v6290
      %v6349 = vrcp.pop %v6293
      %v6350 = vrcp.pop %v6296
      %v6351 = vrcp.pop %v6299
      %v6352 = vrcp.pop %v6302
      %v6353 = vrcp.pop %v6305
      %v6354 = vrcp.pop %v6308
      %v6355 = vrcp.pop %v6311
      %v6356 = vrcp.pop %v6314
      %v6357 = vrcp.pop %v6317
      %v6358 = vrcp.pop %v6320
      %v6359 = vrcp.pop %v6323
      %v6360 = vrcp.pop %v6326
      %v6361 = vrcp.pop %v6329
      %v6362 = vmul.f32 %v6171, %v6330
      %v6363 = vmul.f32 %v6173, %v6331
      %v6364 = vmul.f32 %v6175, %v6332
      %v6365 = vmul.f32 %v6177, %v6333
      %v6366 = vmul.f32 %v6179, %v6334
      %v6367 = vmul.f32 %v6181, %v6335
      %v6368 = vmul.f32 %v6183, %v6336
      %v6369 = vmul.f32 %v6185, %v6337
      %v6370 = vmul.f32 %v6187, %v6338
      %v6371 = vmul.f32 %v6189, %v6339
      %v6372 = vmul.f32 %v6191, %v6340
      %v6373 = vmul.f32 %v6193, %v6341
      %v6374 = vmul.f32 %v6195, %v6342
      %v6375 = vmul.f32 %v6197, %v6343
      %v6376 = vmul.f32 %v6199, %v6344
      %v6377 = vmul.f32 %v6201, %v6345
      %v6378 = vmul.f32 %v6203, %v6346
      %v6379 = vmul.f32 %v6205, %v6347
      %v6380 = vmul.f32 %v6207, %v6348
      %v6381 = vmul.f32 %v6209, %v6349
      %v6382 = vmul.f32 %v6211, %v6350
      %v6383 = vmul.f32 %v6213, %v6351
      %v6384 = vmul.f32 %v6215, %v6352
      %v6385 = vmul.f32 %v6217, %v6353
      %v6386 = vmul.f32 %v6219, %v6354
      %v6387 = vmul.f32 %v6221, %v6355
      %v6388 = vmul.f32 %v6223, %v6356
      %v6389 = vmul.f32 %v6225, %v6357
      %v6390 = vmul.f32 %v6227, %v6358
      %v6391 = vmul.f32 %v6229, %v6359
      %v6392 = vmul.f32 %v6231, %v6360
      %v6393 = vmul.f32 %v6233, %v6361
      %6394 = vst.msk [vmem:[%s541] sm:$0xff] %vm6041, %v6362
      %6395 = vst.msk [vmem:[%s541 + $0x8] sm:$0xff] %vm6041, %v6363
      %6396 = vst.msk [vmem:[%s541 + $0x10] sm:$0xff] %vm6041, %v6364
      %6397 = vst.msk [vmem:[%s541 + $0x18] sm:$0xff] %vm6041, %v6365
      %6398 = vst.msk [vmem:[%s541 + $0x20] sm:$0xff] %vm6041, %v6366
      %6399 = vst.msk [vmem:[%s541 + $0x28] sm:$0xff] %vm6041, %v6367
      %6400 = vst.msk [vmem:[%s541 + $0x30] sm:$0xff] %vm6041, %v6368
      %6401 = vst.msk [vmem:[%s541 + $0x38] sm:$0xff] %vm6041, %v6369
      %6402 = vst.msk [vmem:[%s541 + $0x40] sm:$0xff] %vm6041, %v6370
      %6403 = vst.msk [vmem:[%s541 + $0x48] sm:$0xff] %vm6041, %v6371
      %6404 = vst.msk [vmem:[%s541 + $0x50] sm:$0xff] %vm6041, %v6372
      %6405 = vst.msk [vmem:[%s541 + $0x58] sm:$0xff] %vm6041, %v6373
      %6406 = vst.msk [vmem:[%s541 + $0x60] sm:$0xff] %vm6041, %v6374
      %6407 = vst.msk [vmem:[%s541 + $0x68] sm:$0xff] %vm6041, %v6375
      %6408 = vst.msk [vmem:[%s541 + $0x70] sm:$0xff] %vm6041, %v6376
      %6409 = vst.msk [vmem:[%s541 + $0x78] sm:$0xff] %vm6041, %v6377
      %6410 = vst.msk [vmem:[%s541 + $0x80] sm:$0xff] %vm6041, %v6378
      %6411 = vst.msk [vmem:[%s541 + $0x88] sm:$0xff] %vm6041, %v6379
      %6412 = vst.msk [vmem:[%s541 + $0x90] sm:$0xff] %vm6041, %v6380
      %6413 = vst.msk [vmem:[%s541 + $0x98] sm:$0xff] %vm6041, %v6381
      %6414 = vst.msk [vmem:[%s541 + $0xa0] sm:$0xff] %vm6041, %v6382
      %6415 = vst.msk [vmem:[%s541 + $0xa8] sm:$0xff] %vm6041, %v6383
      %6416 = vst.msk [vmem:[%s541 + $0xb0] sm:$0xff] %vm6041, %v6384
      %6417 = vst.msk [vmem:[%s541 + $0xb8] sm:$0xff] %vm6041, %v6385
      %6418 = vst.msk [vmem:[%s541 + $0xc0] sm:$0xff] %vm6041, %v6386
      %6419 = vst.msk [vmem:[%s541 + $0xc8] sm:$0xff] %vm6041, %v6387
      %6420 = vst.msk [vmem:[%s541 + $0xd0] sm:$0xff] %vm6041, %v6388
      %6421 = vst.msk [vmem:[%s541 + $0xd8] sm:$0xff] %vm6041, %v6389
      %6422 = vst.msk [vmem:[%s541 + $0xe0] sm:$0xff] %vm6041, %v6390
      %6423 = vst.msk [vmem:[%s541 + $0xe8] sm:$0xff] %vm6041, %v6391
      %6424 = vst.msk [vmem:[%s541 + $0xf0] sm:$0xff] %vm6041, %v6392
      %6425 = vst.msk [vmem:[%s541 + $0xf8] sm:$0xff] %vm6041, %v6393
      %v6427 = vsel %vm6041, %v6362, 0
      %v6430 = vsel %vm6041, %v6363, 0
      %v6433 = vsel %vm6041, %v6364, 0
      %v6436 = vsel %vm6041, %v6365, 0
      %v6439 = vsel %vm6041, %v6366, 0
      %v6442 = vsel %vm6041, %v6367, 0
      %v6445 = vsel %vm6041, %v6368, 0
      %v6448 = vsel %vm6041, %v6369, 0
      %v6451 = vsel %vm6041, %v6370, 0
      %v6454 = vsel %vm6041, %v6371, 0
      %v6457 = vsel %vm6041, %v6372, 0
      %v6460 = vsel %vm6041, %v6373, 0
      %v6463 = vsel %vm6041, %v6374, 0
      %v6466 = vsel %vm6041, %v6375, 0
      %v6469 = vsel %vm6041, %v6376, 0
      %v6472 = vsel %vm6041, %v6377, 0
      %v6475 = vsel %vm6041, %v6378, 0
      %v6478 = vsel %vm6041, %v6379, 0
      %v6481 = vsel %vm6041, %v6380, 0
      %v6484 = vsel %vm6041, %v6381, 0
      %v6487 = vsel %vm6041, %v6382, 0
      %v6490 = vsel %vm6041, %v6383, 0
      %v6493 = vsel %vm6041, %v6384, 0
      %v6496 = vsel %vm6041, %v6385, 0
      %v6499 = vsel %vm6041, %v6386, 0
      %v6502 = vsel %vm6041, %v6387, 0
      %v6505 = vsel %vm6041, %v6388, 0
      %v6508 = vsel %vm6041, %v6389, 0
      %v6511 = vsel %vm6041, %v6390, 0
      %v6514 = vsel %vm6041, %v6391, 0
      %v6517 = vsel %vm6041, %v6392, 0
      %v6520 = vsel %vm6041, %v6393, 0
      %v6523 = vsel %vm1119, %v5684, 0
      %6525 = vmatprep.subr.mxu0 0.0
      %6526 = vmatpush1.msra.mxu0 %v6523
      %6527 = vmatprep.subr.mxu0 0.0
      %6528 = vmatpush1.msra.mxu0 0.0
      %6529 = vmatprep.subr.mxu0 0.0
      %6530 = vmatpush1.msra.mxu0 0.0
      %6531 = vmatprep.subr.mxu0 0.0
      %6532 = vmatpush1.msra.mxu0 0.0
      %6533 = vmatprep.subr.mxu0 0.0
      %6534 = vmatpush1.msra.mxu0 0.0
      %6535 = vmatprep.subr.mxu0 0.0
      %6536 = vmatpush1.msra.mxu0 0.0
      %6537 = vmatprep.subr.mxu0 0.0
      %6538 = vmatpush1.msra.mxu0 0.0
      %6539 = vmatprep.subr.mxu0 0.0
      %6540 = vmatpush1.msra.mxu0 0.0
      %6541 = vmatprep.subr.mxu0 0.0
      %6542 = vmatpush1.msra.mxu0 0.0
      %6543 = vmatprep.subr.mxu0 0.0
      %6544 = vmatpush1.msra.mxu0 0.0
      %6545 = vmatprep.subr.mxu0 0.0
      %6546 = vmatpush1.msra.mxu0 0.0
      %6547 = vmatprep.subr.mxu0 0.0
      %6548 = vmatpush1.msra.mxu0 0.0
      %6549 = vmatprep.subr.mxu0 0.0
      %6550 = vmatpush1.msra.mxu0 0.0
      %6551 = vmatprep.subr.mxu0 0.0
      %6552 = vmatpush1.msra.mxu0 0.0
      %6553 = vmatprep.subr.mxu0 0.0
      %6554 = vmatpush1.msra.mxu0 0.0
      %6555 = vmatprep.subr.mxu0 0.0
      %6556 = vmatpush1.msra.mxu0 0.0
      %6557 = vmatprep.subr.mxu0 0.0
      %6558 = vmatpush1.msra.mxu0 0.0
      %6559 = vmatprep.subr.mxu0 0.0
      %6560 = vmatpush1.msra.mxu0 0.0
      %6561 = vmatprep.subr.mxu0 0.0
      %6562 = vmatpush1.msra.mxu0 0.0
      %6563 = vmatprep.subr.mxu0 0.0
      %6564 = vmatpush1.msra.mxu0 0.0
      %6565 = vmatprep.subr.mxu0 0.0
      %6566 = vmatpush1.msra.mxu0 0.0
      %6567 = vmatprep.subr.mxu0 0.0
      %6568 = vmatpush1.msra.mxu0 0.0
      %6569 = vmatprep.subr.mxu0 0.0
      %6570 = vmatpush1.msra.mxu0 0.0
      %6571 = vmatprep.subr.mxu0 0.0
      %6572 = vmatpush1.msra.mxu0 0.0
      %6573 = vmatprep.subr.mxu0 0.0
      %6574 = vmatpush1.msra.mxu0 0.0
      %6575 = vmatprep.subr.mxu0 0.0
      %6576 = vmatpush1.msra.mxu0 0.0
      %6577 = vmatprep.subr.mxu0 0.0
      %6578 = vmatpush1.msra.mxu0 0.0
      %6579 = vmatprep.subr.mxu0 0.0
      %6580 = vmatpush1.msra.mxu0 0.0
      %6581 = vmatprep.subr.mxu0 0.0
      %6582 = vmatpush1.msra.mxu0 0.0
      %6583 = vmatprep.subr.mxu0 0.0
      %6584 = vmatpush1.msra.mxu0 0.0
      %6585 = vmatprep.subr.mxu0 0.0
      %6586 = vmatpush1.msra.mxu0 0.0
      %6587 = vmatprep.subr.mxu0 0.0
      %6588 = vmatpush1.msra.mxu0 0.0
      %6589 = vmatprep.mubr.f32.mxu0 0.0
      %6590 = vmatmul.mubr.f32.gmra.mrb[0].mxu0 %v6427
      %v6591 = vpop.f32.mrb[0].mxu0
      %v6592 = vadd.f32 0.0, %v6591
      %v6593 = vpop.f32.mrb[0].mxu0
      %6594 = vmatprep.mubr.f32.mxu0 0.0
      %6595 = vmatmul.mubr.f32.gmra.mrb[0].mxu0 %v6430
      %v6596 = vpop.f32.mrb[0].mxu0
      %v6597 = vadd.f32 0.0, %v6596
      %v6598 = vpop.f32.mrb[0].mxu0
      %6599 = vmatprep.mubr.f32.mxu0 0.0
      %6600 = vmatmul.mubr.f32.gmra.mrb[0].mxu0 %v6433
      %v6601 = vpop.f32.mrb[0].mxu0
      %v6602 = vadd.f32 0.0, %v6601
      %v6603 = vpop.f32.mrb[0].mxu0
      %6604 = vmatprep.mubr.f32.mxu0 0.0
      %6605 = vmatmul.mubr.f32.gmra.mrb[0].mxu0 %v6436
      %v6606 = vpop.f32.mrb[0].mxu0
      %v6607 = vadd.f32 0.0, %v6606
      %v6608 = vpop.f32.mrb[0].mxu0
      %6609 = vmatprep.mubr.f32.mxu0 0.0
      %6610 = vmatmul.mubr.f32.gmra.mrb[0].mxu0 %v6439
      %v6611 = vpop.f32.mrb[0].mxu0
      %v6612 = vadd.f32 0.0, %v6611
      %v6613 = vpop.f32.mrb[0].mxu0
      %6614 = vmatprep.mubr.f32.mxu0 0.0
      %6615 = vmatmul.mubr.f32.gmra.mrb[0].mxu0 %v6442
      %v6616 = vpop.f32.mrb[0].mxu0
      %v6617 = vadd.f32 0.0, %v6616
      %v6618 = vpop.f32.mrb[0].mxu0
      %6619 = vmatprep.mubr.f32.mxu0 0.0
      %6620 = vmatmul.mubr.f32.gmra.mrb[0].mxu0 %v6445
      %v6621 = vpop.f32.mrb[0].mxu0
      %v6622 = vadd.f32 0.0, %v6621
      %v6623 = vpop.f32.mrb[0].mxu0
      %6624 = vmatprep.mubr.f32.mxu0 0.0
      %6625 = vmatmul.mubr.f32.gmra.mrb[0].mxu0 %v6448
      %v6626 = vpop.f32.mrb[0].mxu0
      %v6627 = vadd.f32 0.0, %v6626
      %v6628 = vpop.f32.mrb[0].mxu0
      %6629 = vmatprep.mubr.f32.mxu0 0.0
      %6630 = vmatmul.mubr.f32.gmra.mrb[0].mxu0 %v6451
      %v6631 = vpop.f32.mrb[0].mxu0
      %v6632 = vadd.f32 0.0, %v6631
      %v6633 = vpop.f32.mrb[0].mxu0
      %6634 = vmatprep.mubr.f32.mxu0 0.0
      %6635 = vmatmul.mubr.f32.gmra.mrb[0].mxu0 %v6454
      %v6636 = vpop.f32.mrb[0].mxu0
      %v6637 = vadd.f32 0.0, %v6636
      %v6638 = vpop.f32.mrb[0].mxu0
      %6639 = vmatprep.mubr.f32.mxu0 0.0
      %6640 = vmatmul.mubr.f32.gmra.mrb[0].mxu0 %v6457
      %v6641 = vpop.f32.mrb[0].mxu0
      %v6642 = vadd.f32 0.0, %v6641
      %v6643 = vpop.f32.mrb[0].mxu0
      %6644 = vmatprep.mubr.f32.mxu0 0.0
      %6645 = vmatmul.mubr.f32.gmra.mrb[0].mxu0 %v6460
      %v6646 = vpop.f32.mrb[0].mxu0
      %v6647 = vadd.f32 0.0, %v6646
      %v6648 = vpop.f32.mrb[0].mxu0
      %6649 = vmatprep.mubr.f32.mxu0 0.0
      %6650 = vmatmul.mubr.f32.gmra.mrb[0].mxu0 %v6463
      %v6651 = vpop.f32.mrb[0].mxu0
      %v6652 = vadd.f32 0.0, %v6651
      %v6653 = vpop.f32.mrb[0].mxu0
      %6654 = vmatprep.mubr.f32.mxu0 0.0
      %6655 = vmatmul.mubr.f32.gmra.mrb[0].mxu0 %v6466
      %v6656 = vpop.f32.mrb[0].mxu0
      %v6657 = vadd.f32 0.0, %v6656
      %v6658 = vpop.f32.mrb[0].mxu0
      %6659 = vmatprep.mubr.f32.mxu0 0.0
      %6660 = vmatmul.mubr.f32.gmra.mrb[0].mxu0 %v6469
      %v6661 = vpop.f32.mrb[0].mxu0
      %v6662 = vadd.f32 0.0, %v6661
      %v6663 = vpop.f32.mrb[0].mxu0
      %6664 = vmatprep.mubr.f32.mxu0 0.0
      %6665 = vmatmul.mubr.f32.gmra.mrb[0].mxu0 %v6472
      %v6666 = vpop.f32.mrb[0].mxu0
      %v6667 = vadd.f32 0.0, %v6666
      %v6668 = vpop.f32.mrb[0].mxu0
      %6669 = vmatprep.mubr.f32.mxu0 0.0
      %6670 = vmatmul.mubr.f32.gmra.mrb[0].mxu0 %v6475
      %v6671 = vpop.f32.mrb[0].mxu0
      %v6672 = vadd.f32 0.0, %v6671
      %v6673 = vpop.f32.mrb[0].mxu0
      %6674 = vmatprep.mubr.f32.mxu0 0.0
      %6675 = vmatmul.mubr.f32.gmra.mrb[0].mxu0 %v6478
      %v6676 = vpop.f32.mrb[0].mxu0
      %v6677 = vadd.f32 0.0, %v6676
      %v6678 = vpop.f32.mrb[0].mxu0
      %6679 = vmatprep.mubr.f32.mxu0 0.0
      %6680 = vmatmul.mubr.f32.gmra.mrb[0].mxu0 %v6481
      %v6681 = vpop.f32.mrb[0].mxu0
      %v6682 = vadd.f32 0.0, %v6681
      %v6683 = vpop.f32.mrb[0].mxu0
      %6684 = vmatprep.mubr.f32.mxu0 0.0
      %6685 = vmatmul.mubr.f32.gmra.mrb[0].mxu0 %v6484
      %v6686 = vpop.f32.mrb[0].mxu0
      %v6687 = vadd.f32 0.0, %v6686
      %v6688 = vpop.f32.mrb[0].mxu0
      %6689 = vmatprep.mubr.f32.mxu0 0.0
      %6690 = vmatmul.mubr.f32.gmra.mrb[0].mxu0 %v6487
      %v6691 = vpop.f32.mrb[0].mxu0
      %v6692 = vadd.f32 0.0, %v6691
      %v6693 = vpop.f32.mrb[0].mxu0
      %6694 = vmatprep.mubr.f32.mxu0 0.0
      %6695 = vmatmul.mubr.f32.gmra.mrb[0].mxu0 %v6490
      %v6696 = vpop.f32.mrb[0].mxu0
      %v6697 = vadd.f32 0.0, %v6696
      %v6698 = vpop.f32.mrb[0].mxu0
      %6699 = vmatprep.mubr.f32.mxu0 0.0
      %6700 = vmatmul.mubr.f32.gmra.mrb[0].mxu0 %v6493
      %v6701 = vpop.f32.mrb[0].mxu0
      %v6702 = vadd.f32 0.0, %v6701
      %v6703 = vpop.f32.mrb[0].mxu0
      %6704 = vmatprep.mubr.f32.mxu0 0.0
      %6705 = vmatmul.mubr.f32.gmra.mrb[0].mxu0 %v6496
      %v6706 = vpop.f32.mrb[0].mxu0
      %v6707 = vadd.f32 0.0, %v6706
      %v6708 = vpop.f32.mrb[0].mxu0
      %6709 = vmatprep.mubr.f32.mxu0 0.0
      %6710 = vmatmul.mubr.f32.gmra.mrb[0].mxu0 %v6499
      %v6711 = vpop.f32.mrb[0].mxu0
      %v6712 = vadd.f32 0.0, %v6711
      %v6713 = vpop.f32.mrb[0].mxu0
      %6714 = vmatprep.mubr.f32.mxu0 0.0
      %6715 = vmatmul.mubr.f32.gmra.mrb[0].mxu0 %v6502
      %v6716 = vpop.f32.mrb[0].mxu0
      %v6717 = vadd.f32 0.0, %v6716
      %v6718 = vpop.f32.mrb[0].mxu0
      %6719 = vmatprep.mubr.f32.mxu0 0.0
      %6720 = vmatmul.mubr.f32.gmra.mrb[0].mxu0 %v6505
      %v6721 = vpop.f32.mrb[0].mxu0
      %v6722 = vadd.f32 0.0, %v6721
      %v6723 = vpop.f32.mrb[0].mxu0
      %6724 = vmatprep.mubr.f32.mxu0 0.0
      %6725 = vmatmul.mubr.f32.gmra.mrb[0].mxu0 %v6508
      %v6726 = vpop.f32.mrb[0].mxu0
      %v6727 = vadd.f32 0.0, %v6726
      %v6728 = vpop.f32.mrb[0].mxu0
      %6729 = vmatprep.mubr.f32.mxu0 0.0
      %6730 = vmatmul.mubr.f32.gmra.mrb[0].mxu0 %v6511
      %v6731 = vpop.f32.mrb[0].mxu0
      %v6732 = vadd.f32 0.0, %v6731
      %v6733 = vpop.f32.mrb[0].mxu0
      %6734 = vmatprep.mubr.f32.mxu0 0.0
      %6735 = vmatmul.mubr.f32.gmra.mrb[0].mxu0 %v6514
      %v6736 = vpop.f32.mrb[0].mxu0
      %v6737 = vadd.f32 0.0, %v6736
      %v6738 = vpop.f32.mrb[0].mxu0
      %6739 = vmatprep.mubr.f32.mxu0 0.0
      %6740 = vmatmul.mubr.f32.gmra.mrb[0].mxu0 %v6517
      %v6741 = vpop.f32.mrb[0].mxu0
      %v6742 = vadd.f32 0.0, %v6741
      %v6743 = vpop.f32.mrb[0].mxu0
      %6744 = vmatprep.mubr.f32.mxu0 0.0
      %6745 = vmatmul.mubr.f32.gmra.mrb[0].mxu0 %v6520
      %v6746 = vpop.f32.mrb[0].mxu0
      %v6747 = vadd.f32 0.0, %v6746
      %v6748 = vpop.f32.mrb[0].mxu0
      %6749 = vdwg.mxu0
      %v6750 = vld [vmem:[%s12] sm:$0xff]
      %v6751 = vld [vmem:[%s12 + $0x8] sm:$0xff]
      %v6753 = vsel %vm5102, %v6592, 0
      %v6756 = vsel %vm5102, %v6597, 0
      %v6759 = vsel %vm5102, %v6602, 0
      %v6762 = vsel %vm5102, %v6607, 0
      %v6765 = vsel %vm5102, %v6612, 0
      %v6768 = vsel %vm5102, %v6617, 0
      %v6771 = vsel %vm5102, %v6622, 0
      %v6774 = vsel %vm5102, %v6627, 0
      %v6777 = vsel %vm5102, %v6632, 0
      %v6780 = vsel %vm5102, %v6637, 0
      %v6783 = vsel %vm5102, %v6642, 0
      %v6786 = vsel %vm5102, %v6647, 0
      %v6789 = vsel %vm5102, %v6652, 0
      %v6792 = vsel %vm5102, %v6657, 0
      %v6795 = vsel %vm5102, %v6662, 0
      %v6798 = vsel %vm5102, %v6667, 0
      %v6801 = vsel %vm5102, %v6672, 0
      %v6804 = vsel %vm5102, %v6677, 0
      %v6807 = vsel %vm5102, %v6682, 0
      %v6810 = vsel %vm5102, %v6687, 0
      %v6813 = vsel %vm5102, %v6692, 0
      %v6816 = vsel %vm5102, %v6697, 0
      %v6819 = vsel %vm5102, %v6702, 0
      %v6822 = vsel %vm5102, %v6707, 0
      %v6825 = vsel %vm5102, %v6712, 0
      %v6828 = vsel %vm5102, %v6717, 0
      %v6831 = vsel %vm5102, %v6722, 0
      %v6834 = vsel %vm5102, %v6727, 0
      %v6837 = vsel %vm5102, %v6732, 0
      %v6840 = vsel %vm5102, %v6737, 0
      %v6843 = vsel %vm5102, %v6742, 0
      %v6846 = vsel %vm5102, %v6747, 0
      %6848 = vmatprep.subr.mxu0 0.0
      %6849 = vmatpush1.msra.mxu0 %v6750
      %6850 = vmatprep.subr.mxu0 0.0
      %6851 = vmatpush1.msra.mxu0 %v6751
      %6852 = vmatprep.subr.mxu0 0.0
      %6853 = vmatpush1.msra.mxu0 0.0
      %6854 = vmatprep.subr.mxu0 0.0
      %6855 = vmatpush1.msra.mxu0 0.0
      %6856 = vmatprep.subr.mxu0 0.0
      %6857 = vmatpush1.msra.mxu0 0.0
      %6858 = vmatprep.subr.mxu0 0.0
      %6859 = vmatpush1.msra.mxu0 0.0
      %6860 = vmatprep.subr.mxu0 0.0
      %6861 = vmatpush1.msra.mxu0 0.0
      %6862 = vmatprep.subr.mxu0 0.0
      %6863 = vmatpush1.msra.mxu0 0.0
      %6864 = vmatprep.subr.mxu0 0.0
      %6865 = vmatpush1.msra.mxu0 0.0
      %6866 = vmatprep.subr.mxu0 0.0
      %6867 = vmatpush1.msra.mxu0 0.0
      %6868 = vmatprep.subr.mxu0 0.0
      %6869 = vmatpush1.msra.mxu0 0.0
      %6870 = vmatprep.subr.mxu0 0.0
      %6871 = vmatpush1.msra.mxu0 0.0
      %6872 = vmatprep.subr.mxu0 0.0
      %6873 = vmatpush1.msra.mxu0 0.0
      %6874 = vmatprep.subr.mxu0 0.0
      %6875 = vmatpush1.msra.mxu0 0.0
      %6876 = vmatprep.subr.mxu0 0.0
      %6877 = vmatpush1.msra.mxu0 0.0
      %6878 = vmatprep.subr.mxu0 0.0
      %6879 = vmatpush1.msra.mxu0 0.0
      %6880 = vmatprep.subr.mxu0 0.0
      %6881 = vmatpush1.msra.mxu0 0.0
      %6882 = vmatprep.subr.mxu0 0.0
      %6883 = vmatpush1.msra.mxu0 0.0
      %6884 = vmatprep.subr.mxu0 0.0
      %6885 = vmatpush1.msra.mxu0 0.0
      %6886 = vmatprep.subr.mxu0 0.0
      %6887 = vmatpush1.msra.mxu0 0.0
      %6888 = vmatprep.subr.mxu0 0.0
      %6889 = vmatpush1.msra.mxu0 0.0
      %6890 = vmatprep.subr.mxu0 0.0
      %6891 = vmatpush1.msra.mxu0 0.0
      %6892 = vmatprep.subr.mxu0 0.0
      %6893 = vmatpush1.msra.mxu0 0.0
      %6894 = vmatprep.subr.mxu0 0.0
      %6895 = vmatpush1.msra.mxu0 0.0
      %6896 = vmatprep.subr.mxu0 0.0
      %6897 = vmatpush1.msra.mxu0 0.0
      %6898 = vmatprep.subr.mxu0 0.0
      %6899 = vmatpush1.msra.mxu0 0.0
      %6900 = vmatprep.subr.mxu0 0.0
      %6901 = vmatpush1.msra.mxu0 0.0
      %6902 = vmatprep.subr.mxu0 0.0
      %6903 = vmatpush1.msra.mxu0 0.0
      %6904 = vmatprep.subr.mxu0 0.0
      %6905 = vmatpush1.msra.mxu0 0.0
      %6906 = vmatprep.subr.mxu0 0.0
      %6907 = vmatpush1.msra.mxu0 0.0
      %6908 = vmatprep.subr.mxu0 0.0
      %6909 = vmatpush1.msra.mxu0 0.0
      %6910 = vmatprep.subr.mxu0 0.0
      %6911 = vmatpush1.msra.mxu0 0.0
      %6912 = vmatprep.mubr.f32.mxu0 0.0
      %6913 = vmatmul.mubr.f32.gmra.mrb[0].mxu0 %v6753
      %v6914 = vpop.f32.mrb[0].mxu0
      %v6915 = vadd.f32 0.0, %v6914
      %v6916 = vpop.f32.mrb[0].mxu0
      %6917 = vmatprep.mubr.f32.mxu0 0.0
      %6918 = vmatmul.mubr.f32.gmra.mrb[0].mxu0 %v6756
      %v6919 = vpop.f32.mrb[0].mxu0
      %v6920 = vadd.f32 0.0, %v6919
      %v6921 = vpop.f32.mrb[0].mxu0
      %6922 = vmatprep.mubr.f32.mxu0 0.0
      %6923 = vmatmul.mubr.f32.gmra.mrb[0].mxu0 %v6759
      %v6924 = vpop.f32.mrb[0].mxu0
      %v6925 = vadd.f32 0.0, %v6924
      %v6926 = vpop.f32.mrb[0].mxu0
      %6927 = vmatprep.mubr.f32.mxu0 0.0
      %6928 = vmatmul.mubr.f32.gmra.mrb[0].mxu0 %v6762
      %v6929 = vpop.f32.mrb[0].mxu0
      %v6930 = vadd.f32 0.0, %v6929
      %v6931 = vpop.f32.mrb[0].mxu0
      %6932 = vmatprep.mubr.f32.mxu0 0.0
      %6933 = vmatmul.mubr.f32.gmra.mrb[0].mxu0 %v6765
      %v6934 = vpop.f32.mrb[0].mxu0
      %v6935 = vadd.f32 0.0, %v6934
      %v6936 = vpop.f32.mrb[0].mxu0
      %6937 = vmatprep.mubr.f32.mxu0 0.0
      %6938 = vmatmul.mubr.f32.gmra.mrb[0].mxu0 %v6768
      %v6939 = vpop.f32.mrb[0].mxu0
      %v6940 = vadd.f32 0.0, %v6939
      %v6941 = vpop.f32.mrb[0].mxu0
      %6942 = vmatprep.mubr.f32.mxu0 0.0
      %6943 = vmatmul.mubr.f32.gmra.mrb[0].mxu0 %v6771
      %v6944 = vpop.f32.mrb[0].mxu0
      %v6945 = vadd.f32 0.0, %v6944
      %v6946 = vpop.f32.mrb[0].mxu0
      %6947 = vmatprep.mubr.f32.mxu0 0.0
      %6948 = vmatmul.mubr.f32.gmra.mrb[0].mxu0 %v6774
      %v6949 = vpop.f32.mrb[0].mxu0
      %v6950 = vadd.f32 0.0, %v6949
      %v6951 = vpop.f32.mrb[0].mxu0
      %6952 = vmatprep.mubr.f32.mxu0 0.0
      %6953 = vmatmul.mubr.f32.gmra.mrb[0].mxu0 %v6777
      %v6954 = vpop.f32.mrb[0].mxu0
      %v6955 = vadd.f32 0.0, %v6954
      %v6956 = vpop.f32.mrb[0].mxu0
      %6957 = vmatprep.mubr.f32.mxu0 0.0
      %6958 = vmatmul.mubr.f32.gmra.mrb[0].mxu0 %v6780
      %v6959 = vpop.f32.mrb[0].mxu0
      %v6960 = vadd.f32 0.0, %v6959
      %v6961 = vpop.f32.mrb[0].mxu0
      %6962 = vmatprep.mubr.f32.mxu0 0.0
      %6963 = vmatmul.mubr.f32.gmra.mrb[0].mxu0 %v6783
      %v6964 = vpop.f32.mrb[0].mxu0
      %v6965 = vadd.f32 0.0, %v6964
      %v6966 = vpop.f32.mrb[0].mxu0
      %6967 = vmatprep.mubr.f32.mxu0 0.0
      %6968 = vmatmul.mubr.f32.gmra.mrb[0].mxu0 %v6786
      %v6969 = vpop.f32.mrb[0].mxu0
      %v6970 = vadd.f32 0.0, %v6969
      %v6971 = vpop.f32.mrb[0].mxu0
      %6972 = vmatprep.mubr.f32.mxu0 0.0
      %6973 = vmatmul.mubr.f32.gmra.mrb[0].mxu0 %v6789
      %v6974 = vpop.f32.mrb[0].mxu0
      %v6975 = vadd.f32 0.0, %v6974
      %v6976 = vpop.f32.mrb[0].mxu0
      %6977 = vmatprep.mubr.f32.mxu0 0.0
      %6978 = vmatmul.mubr.f32.gmra.mrb[0].mxu0 %v6792
      %v6979 = vpop.f32.mrb[0].mxu0
      %v6980 = vadd.f32 0.0, %v6979
      %v6981 = vpop.f32.mrb[0].mxu0
      %6982 = vmatprep.mubr.f32.mxu0 0.0
      %6983 = vmatmul.mubr.f32.gmra.mrb[0].mxu0 %v6795
      %v6984 = vpop.f32.mrb[0].mxu0
      %v6985 = vadd.f32 0.0, %v6984
      %v6986 = vpop.f32.mrb[0].mxu0
      %6987 = vmatprep.mubr.f32.mxu0 0.0
      %6988 = vmatmul.mubr.f32.gmra.mrb[0].mxu0 %v6798
      %v6989 = vpop.f32.mrb[0].mxu0
      %v6990 = vadd.f32 0.0, %v6989
      %v6991 = vpop.f32.mrb[0].mxu0
      %6992 = vmatprep.mubr.f32.mxu0 0.0
      %6993 = vmatmul.mubr.f32.gmra.mrb[0].mxu0 %v6801
      %v6994 = vpop.f32.mrb[0].mxu0
      %v6995 = vadd.f32 0.0, %v6994
      %v6996 = vpop.f32.mrb[0].mxu0
      %6997 = vmatprep.mubr.f32.mxu0 0.0
      %6998 = vmatmul.mubr.f32.gmra.mrb[0].mxu0 %v6804
      %v6999 = vpop.f32.mrb[0].mxu0
      %v7000 = vadd.f32 0.0, %v6999
      %v7001 = vpop.f32.mrb[0].mxu0
      %7002 = vmatprep.mubr.f32.mxu0 0.0
      %7003 = vmatmul.mubr.f32.gmra.mrb[0].mxu0 %v6807
      %v7004 = vpop.f32.mrb[0].mxu0
      %v7005 = vadd.f32 0.0, %v7004
      %v7006 = vpop.f32.mrb[0].mxu0
      %7007 = vmatprep.mubr.f32.mxu0 0.0
      %7008 = vmatmul.mubr.f32.gmra.mrb[0].mxu0 %v6810
      %v7009 = vpop.f32.mrb[0].mxu0
      %v7010 = vadd.f32 0.0, %v7009
      %v7011 = vpop.f32.mrb[0].mxu0
      %7012 = vmatprep.mubr.f32.mxu0 0.0
      %7013 = vmatmul.mubr.f32.gmra.mrb[0].mxu0 %v6813
      %v7014 = vpop.f32.mrb[0].mxu0
      %v7015 = vadd.f32 0.0, %v7014
      %v7016 = vpop.f32.mrb[0].mxu0
      %7017 = vmatprep.mubr.f32.mxu0 0.0
      %7018 = vmatmul.mubr.f32.gmra.mrb[0].mxu0 %v6816
      %v7019 = vpop.f32.mrb[0].mxu0
      %v7020 = vadd.f32 0.0, %v7019
      %v7021 = vpop.f32.mrb[0].mxu0
      %7022 = vmatprep.mubr.f32.mxu0 0.0
      %7023 = vmatmul.mubr.f32.gmra.mrb[0].mxu0 %v6819
      %v7024 = vpop.f32.mrb[0].mxu0
      %v7025 = vadd.f32 0.0, %v7024
      %v7026 = vpop.f32.mrb[0].mxu0
      %7027 = vmatprep.mubr.f32.mxu0 0.0
      %7028 = vmatmul.mubr.f32.gmra.mrb[0].mxu0 %v6822
      %v7029 = vpop.f32.mrb[0].mxu0
      %v7030 = vadd.f32 0.0, %v7029
      %v7031 = vpop.f32.mrb[0].mxu0
      %7032 = vmatprep.mubr.f32.mxu0 0.0
      %7033 = vmatmul.mubr.f32.gmra.mrb[0].mxu0 %v6825
      %v7034 = vpop.f32.mrb[0].mxu0
      %v7035 = vadd.f32 0.0, %v7034
      %v7036 = vpop.f32.mrb[0].mxu0
      %7037 = vmatprep.mubr.f32.mxu0 0.0
      %7038 = vmatmul.mubr.f32.gmra.mrb[0].mxu0 %v6828
      %v7039 = vpop.f32.mrb[0].mxu0
      %v7040 = vadd.f32 0.0, %v7039
      %v7041 = vpop.f32.mrb[0].mxu0
      %7042 = vmatprep.mubr.f32.mxu0 0.0
      %7043 = vmatmul.mubr.f32.gmra.mrb[0].mxu0 %v6831
      %v7044 = vpop.f32.mrb[0].mxu0
      %v7045 = vadd.f32 0.0, %v7044
      %v7046 = vpop.f32.mrb[0].mxu0
      %7047 = vmatprep.mubr.f32.mxu0 0.0
      %7048 = vmatmul.mubr.f32.gmra.mrb[0].mxu0 %v6834
      %v7049 = vpop.f32.mrb[0].mxu0
      %v7050 = vadd.f32 0.0, %v7049
      %v7051 = vpop.f32.mrb[0].mxu0
      %7052 = vmatprep.mubr.f32.mxu0 0.0
      %7053 = vmatmul.mubr.f32.gmra.mrb[0].mxu0 %v6837
      %v7054 = vpop.f32.mrb[0].mxu0
      %v7055 = vadd.f32 0.0, %v7054
      %v7056 = vpop.f32.mrb[0].mxu0
      %7057 = vmatprep.mubr.f32.mxu0 0.0
      %7058 = vmatmul.mubr.f32.gmra.mrb[0].mxu0 %v6840
      %v7059 = vpop.f32.mrb[0].mxu0
      %v7060 = vadd.f32 0.0, %v7059
      %v7061 = vpop.f32.mrb[0].mxu0
      %7062 = vmatprep.mubr.f32.mxu0 0.0
      %7063 = vmatmul.mubr.f32.gmra.mrb[0].mxu0 %v6843
      %v7064 = vpop.f32.mrb[0].mxu0
      %v7065 = vadd.f32 0.0, %v7064
      %v7066 = vpop.f32.mrb[0].mxu0
      %7067 = vmatprep.mubr.f32.mxu0 0.0
      %7068 = vmatmul.mubr.f32.gmra.mrb[0].mxu0 %v6846
      %v7069 = vpop.f32.mrb[0].mxu0
      %v7070 = vadd.f32 0.0, %v7069
      %v7071 = vpop.f32.mrb[0].mxu0
      %7072 = vdwg.mxu0
      %v7073 = vmax.f32 %v6915, 0.0
      %v7074 = vmax.f32 %v6920, 0.0
      %v7075 = vmax.f32 %v6925, 0.0
      %v7076 = vmax.f32 %v6930, 0.0
      %v7077 = vmax.f32 %v6935, 0.0
      %v7078 = vmax.f32 %v6940, 0.0
      %v7079 = vmax.f32 %v6945, 0.0
      %v7080 = vmax.f32 %v6950, 0.0
      %v7081 = vmax.f32 %v6955, 0.0
      %v7082 = vmax.f32 %v6960, 0.0
      %v7083 = vmax.f32 %v6965, 0.0
      %v7084 = vmax.f32 %v6970, 0.0
      %v7085 = vmax.f32 %v6975, 0.0
      %v7086 = vmax.f32 %v6980, 0.0
      %v7087 = vmax.f32 %v6985, 0.0
      %v7088 = vmax.f32 %v6990, 0.0
      %v7089 = vmax.f32 %v6995, 0.0
      %v7090 = vmax.f32 %v7000, 0.0
      %v7091 = vmax.f32 %v7005, 0.0
      %v7092 = vmax.f32 %v7010, 0.0
      %v7093 = vmax.f32 %v7015, 0.0
      %v7094 = vmax.f32 %v7020, 0.0
      %v7095 = vmax.f32 %v7025, 0.0
      %v7096 = vmax.f32 %v7030, 0.0
      %v7097 = vmax.f32 %v7035, 0.0
      %v7098 = vmax.f32 %v7040, 0.0
      %v7099 = vmax.f32 %v7045, 0.0
      %v7100 = vmax.f32 %v7050, 0.0
      %v7101 = vmax.f32 %v7055, 0.0
      %v7102 = vmax.f32 %v7060, 0.0
      %v7103 = vmax.f32 %v7065, 0.0
      %v7104 = vmax.f32 %v7070, 0.0
      %v7105 = vld [vmem:[%s13] sm:$0xff]
      %v7106 = vld [vmem:[%s13 + $0x8] sm:$0xff]
      %v7107 = vld [vmem:[%s13 + $0x10] sm:$0xff]
      %v7108 = vld [vmem:[%s13 + $0x18] sm:$0xff]
      %v7110 = vsel %vm4746, %v7105, 0
      %v7113 = vsel %vm4746, %v7106, 0
      %v7116 = vsel %vm4746, %v7107, 0
      %v7119 = vsel %vm4746, %v7108, 0
      %v7122 = vsel %vm4746, %v7073, 0
      %v7125 = vsel %vm4746, %v7074, 0
      %v7128 = vsel %vm4746, %v7075, 0
      %v7131 = vsel %vm4746, %v7076, 0
      %v7134 = vsel %vm4746, %v7077, 0
      %v7137 = vsel %vm4746, %v7078, 0
      %v7140 = vsel %vm4746, %v7079, 0
      %v7143 = vsel %vm4746, %v7080, 0
      %v7146 = vsel %vm4746, %v7081, 0
      %v7149 = vsel %vm4746, %v7082, 0
      %v7152 = vsel %vm4746, %v7083, 0
      %v7155 = vsel %vm4746, %v7084, 0
      %v7158 = vsel %vm4746, %v7085, 0
      %v7161 = vsel %vm4746, %v7086, 0
      %v7164 = vsel %vm4746, %v7087, 0
      %v7167 = vsel %vm4746, %v7088, 0
      %v7170 = vsel %vm4746, %v7089, 0
      %v7173 = vsel %vm4746, %v7090, 0
      %v7176 = vsel %vm4746, %v7091, 0
      %v7179 = vsel %vm4746, %v7092, 0
      %v7182 = vsel %vm4746, %v7093, 0
      %v7185 = vsel %vm4746, %v7094, 0
      %v7188 = vsel %vm4746, %v7095, 0
      %v7191 = vsel %vm4746, %v7096, 0
      %v7194 = vsel %vm4746, %v7097, 0
      %v7197 = vsel %vm4746, %v7098, 0
      %v7200 = vsel %vm4746, %v7099, 0
      %v7203 = vsel %vm4746, %v7100, 0
      %v7206 = vsel %vm4746, %v7101, 0
      %v7209 = vsel %vm4746, %v7102, 0
      %v7212 = vsel %vm4746, %v7103, 0
      %v7215 = vsel %vm4746, %v7104, 0
      %7217 = vmatprep.subr.mxu0 0.0
      %7218 = vmatpush1.xpose.msra.mxu0 %v7122
      %7219 = vmatprep.subr.mxu0 0.0
      %7220 = vmatpush1.xpose.msra.mxu0 %v7125
      %7221 = vmatprep.subr.mxu0 0.0
      %7222 = vmatpush1.xpose.msra.mxu0 %v7128
      %7223 = vmatprep.subr.mxu0 0.0
      %7224 = vmatpush1.xpose.msra.mxu0 %v7131
      %7225 = vmatprep.subr.mxu0 0.0
      %7226 = vmatpush1.xpose.msra.mxu0 %v7134
      %7227 = vmatprep.subr.mxu0 0.0
      %7228 = vmatpush1.xpose.msra.mxu0 %v7137
      %7229 = vmatprep.subr.mxu0 0.0
      %7230 = vmatpush1.xpose.msra.mxu0 %v7140
      %7231 = vmatprep.subr.mxu0 0.0
      %7232 = vmatpush1.xpose.msra.mxu0 %v7143
      %7233 = vmatprep.subr.mxu0 0.0
      %7234 = vmatpush1.xpose.msra.mxu0 %v7146
      %7235 = vmatprep.subr.mxu0 0.0
      %7236 = vmatpush1.xpose.msra.mxu0 %v7149
      %7237 = vmatprep.subr.mxu0 0.0
      %7238 = vmatpush1.xpose.msra.mxu0 %v7152
      %7239 = vmatprep.subr.mxu0 0.0
      %7240 = vmatpush1.xpose.msra.mxu0 %v7155
      %7241 = vmatprep.subr.mxu0 0.0
      %7242 = vmatpush1.xpose.msra.mxu0 %v7158
      %7243 = vmatprep.subr.mxu0 0.0
      %7244 = vmatpush1.xpose.msra.mxu0 %v7161
      %7245 = vmatprep.subr.mxu0 0.0
      %7246 = vmatpush1.xpose.msra.mxu0 %v7164
      %7247 = vmatprep.subr.mxu0 0.0
      %7248 = vmatpush1.xpose.msra.mxu0 %v7167
      %7249 = vmatprep.subr.mxu0 0.0
      %7250 = vmatpush1.xpose.msra.mxu0 %v7170
      %7251 = vmatprep.subr.mxu0 0.0
      %7252 = vmatpush1.xpose.msra.mxu0 %v7173
      %7253 = vmatprep.subr.mxu0 0.0
      %7254 = vmatpush1.xpose.msra.mxu0 %v7176
      %7255 = vmatprep.subr.mxu0 0.0
      %7256 = vmatpush1.xpose.msra.mxu0 %v7179
      %7257 = vmatprep.subr.mxu0 0.0
      %7258 = vmatpush1.xpose.msra.mxu0 %v7182
      %7259 = vmatprep.subr.mxu0 0.0
      %7260 = vmatpush1.xpose.msra.mxu0 %v7185
      %7261 = vmatprep.subr.mxu0 0.0
      %7262 = vmatpush1.xpose.msra.mxu0 %v7188
      %7263 = vmatprep.subr.mxu0 0.0
      %7264 = vmatpush1.xpose.msra.mxu0 %v7191
      %7265 = vmatprep.subr.mxu0 0.0
      %7266 = vmatpush1.xpose.msra.mxu0 %v7194
      %7267 = vmatprep.subr.mxu0 0.0
      %7268 = vmatpush1.xpose.msra.mxu0 %v7197
      %7269 = vmatprep.subr.mxu0 0.0
      %7270 = vmatpush1.xpose.msra.mxu0 %v7200
      %7271 = vmatprep.subr.mxu0 0.0
      %7272 = vmatpush1.xpose.msra.mxu0 %v7203
      %7273 = vmatprep.subr.mxu0 0.0
      %7274 = vmatpush1.xpose.msra.mxu0 %v7206
      %7275 = vmatprep.subr.mxu0 0.0
      %7276 = vmatpush1.xpose.msra.mxu0 %v7209
      %7277 = vmatprep.subr.mxu0 0.0
      %7278 = vmatpush1.xpose.msra.mxu0 %v7212
      %7279 = vmatprep.subr.mxu0 0.0
      %7280 = vmatpush1.xpose.msra.mxu0 %v7215
      %7281 = vmatprep.mubr.f32.mxu0 0.0
      %7282 = vmatmul.mubr.f32.gmra.mrb[0].mxu0 %v7110
      %v7283 = vpop.f32.mrb[0].mxu0
      %v7284 = vadd.f32 0.0, %v7283
      %v7285 = vpop.f32.mrb[0].mxu0
      %v7286 = vadd.f32 0.0, %v7285
      %7287 = vmatprep.mubr.f32.mxu0 0.0
      %7288 = vmatmul.mubr.f32.gmra.mrb[0].mxu0 %v7113
      %v7289 = vpop.f32.mrb[0].mxu0
      %v7290 = vadd.f32 0.0, %v7289
      %v7291 = vpop.f32.mrb[0].mxu0
      %v7292 = vadd.f32 0.0, %v7291
      %7293 = vmatprep.mubr.f32.mxu0 0.0
      %7294 = vmatmul.mubr.f32.gmra.mrb[0].mxu0 %v7116
      %v7295 = vpop.f32.mrb[0].mxu0
      %v7296 = vadd.f32 0.0, %v7295
      %v7297 = vpop.f32.mrb[0].mxu0
      %v7298 = vadd.f32 0.0, %v7297
      %7299 = vmatprep.mubr.f32.mxu0 0.0
      %7300 = vmatmul.mubr.f32.gmra.mrb[0].mxu0 %v7119
      %v7301 = vpop.f32.mrb[0].mxu0
      %v7302 = vadd.f32 0.0, %v7301
      %v7303 = vpop.f32.mrb[0].mxu0
      %v7304 = vadd.f32 0.0, %v7303
      %7305 = vdwg.mxu0
      %v7306 = vmax.f32 %v7284, 0.0
      %v7307 = vmax.f32 %v7286, 0.0
      %v7308 = vmax.f32 %v7290, 0.0
      %v7309 = vmax.f32 %v7292, 0.0
      %v7310 = vmax.f32 %v7296, 0.0
      %v7311 = vmax.f32 %v7298, 0.0
      %v7312 = vmax.f32 %v7302, 0.0
      %v7313 = vmax.f32 %v7304, 0.0
      %7314 = vst [vmem:[%s536] sm:$0xff] %v7306
      %7315 = vst [vmem:[%s536 + $0x8] sm:$0xff] %v7307
      %7316 = vst [vmem:[%s536 + $0x10] sm:$0xff] %v7308
      %7317 = vst [vmem:[%s536 + $0x18] sm:$0xff] %v7309
      %7318 = vst [vmem:[%s536 + $0x20] sm:$0xff] %v7310
      %7319 = vst [vmem:[%s536 + $0x28] sm:$0xff] %v7311
      %7320 = vst [vmem:[%s536 + $0x30] sm:$0xff] %v7312
      %7321 = vst [vmem:[%s536 + $0x38] sm:$0xff] %v7313
      %p7322 = scmp.lt.s32.totalorder %s28, 1
      %s7323 = scalar_select %p7322, %s28, 1
      %s7324 = smul.addr %s7323, 8
      %s7325 = smul.addr %s7324, 8
      %s7326 = scalar_lea.vmem %s14, %s7325
      %p7327 = scmp.lt.s32.totalorder %s28, 1
      %s7328 = scalar_select %p7327, %s28, 1
      %s7329 = smul.addr %s7328, 32
      %s7330 = smul.addr %s7329, 8
      %s7331 = scalar_lea.vmem %s15, %s7330
      %p7332 = scmp.lt.s32.totalorder %s28, 1
      %s7333 = scalar_select %p7332, %s28, 1
      %s7334 = smul.addr %s7333, 2
      %s7335 = smul.addr %s7334, 4
      %s7336 = scalar_lea.vmem %s16, %s7335
      // Predicated region
      $region77: #{ccm_forward.1} parent=75 // pred_check
        %p7337 = pneg %p345
      $region78: #{ccm_forward.1} parent=75 // pred_check_branch
        %7339 = sbr.rel (%p7337) target = $region80
      $region79: #{ccm_forward.1} parent=75 // pred_region
        _
      $region80: #{ccm_forward.1} parent=75 // pred_fallthru
        _
      // Predicated region
      $region81: #{ccm_forward.1} parent=75 // pred_check
        %p7340 = pneg %p371
      $region82: #{ccm_forward.1} parent=75 // pred_check_branch
        %7342 = sbr.rel (%p7340) target = $region84
      $region83: #{ccm_forward.1} parent=75 // pred_region
        _
      $region84: #{ccm_forward.1} parent=75 // pred_fallthru
        _
      // Predicated region
      $region85: #{ccm_forward.1} parent=75 // pred_check
        %p7343 = pneg %p397
      $region86: #{ccm_forward.1} parent=75 // pred_check_branch
        %7345 = sbr.rel (%p7343) target = $region88
      $region87: #{ccm_forward.1} parent=75 // pred_region
        _
      $region88: #{ccm_forward.1} parent=75 // pred_fallthru
        _
    $region76: #{ccm_forward.1} parent=5 // pred_fallthru
      _
    %p7346 = scmp.le.s32.totalorder 2, %s23
    // Predicated region
    $region89: #{ccm_forward.1} parent=5 // pred_check
      %p7347 = pneg %p7346
    $region90: #{ccm_forward.1} parent=5 // pred_check_branch
      %7349 = sbr.rel (%p7347) target = $region92
    $region91: #{ccm_forward.1} parent=5 // pred_region
      %s7350 = ssub.s32 %s23, 2
      // Predicated region
      $region93: #{ccm_forward.1} parent=91 // pred_check
        %p7351 = pneg %p351
      $region94: #{ccm_forward.1} parent=91 // pred_check_branch
        %7353 = sbr.rel (%p7351) target = $region96
      $region95: #{ccm_forward.1} parent=91 // pred_region
        %p7354 = scmp.lt.s32.totalorder %s29, 1
        %s7355 = scalar_select %p7354, %s29, 1
        %s7356 = smul.addr %s7355, 8
        %s7357 = smul.addr %s7356, 8
        %s7358 = scalar_lea.vmem %s14, %s7357
      $region96: #{ccm_forward.1} parent=91 // pred_fallthru
        _
      // Predicated region
      $region97: #{ccm_forward.1} parent=91 // pred_check
        %p7359 = pneg %p377
      $region98: #{ccm_forward.1} parent=91 // pred_check_branch
        %7361 = sbr.rel (%p7359) target = $region100
      $region99: #{ccm_forward.1} parent=91 // pred_region
        %p7362 = scmp.lt.s32.totalorder %s29, 1
        %s7363 = scalar_select %p7362, %s29, 1
        %s7364 = smul.addr %s7363, 32
        %s7365 = smul.addr %s7364, 8
        %s7366 = scalar_lea.vmem %s15, %s7365
      $region100: #{ccm_forward.1} parent=91 // pred_fallthru
        _
      // Predicated region
      $region101: #{ccm_forward.1} parent=91 // pred_check
        %p7367 = pneg %p403
      $region102: #{ccm_forward.1} parent=91 // pred_check_branch
        %7369 = sbr.rel (%p7367) target = $region104
      $region103: #{ccm_forward.1} parent=91 // pred_region
        %p7370 = scmp.lt.s32.totalorder %s29, 1
        %s7371 = scalar_select %p7370, %s29, 1
        %s7372 = smul.addr %s7371, 2
        %s7373 = smul.addr %s7372, 4
        %s7374 = scalar_lea.vmem %s16, %s7373
      $region104: #{ccm_forward.1} parent=91 // pred_fallthru
        _
    $region92: #{ccm_forward.1} parent=5 // pred_fallthru
      _
  $region6: #{ccm_forward.1} parent=0 // loop_footer
    %s27 = sadd.s32 1, %s23
  $region7: #{ccm_forward.1} parent=0 // loop_footer_branch
    %22 = sbr.rel target = $region3
  $region8: #{ccm_forward.1} parent=0 // loop_exit
    _

</llo_original>
